<compile_context>
chip_gen: v6e
topology: v6e:2x2x1
jax: 0.10.0
libtpu: 0.0.40
codegen_flags: <defaults>
</compile_context>

<pallas_src>
import math
import numpy as np
import jax
import jax.numpy as jnp
from jax.experimental import pallas as pl
from jax.experimental.pallas import tpu as pltpu

NEG_SLOPE = 0.01       # nn.LeakyReLU() default
SCALE_BOUND = 0.11     # GaussianConditional scale_bound
LIK_BOUND = 1e-9       # likelihood lower bound (both entropy models)
LANE = 128


def _round_up(x, m):
    return ((x + m - 1) // m) * m


def _cdiv(a, b):
    return (a + b - 1) // b


# --------------------------- tiled matmul kernel ---------------------------

def _matmul_kernel(leaky):
    def kernel(a_ref, w_ref, b_ref, o_ref, acc_ref):
        @pl.when(pl.program_id(2) == 0)
        def _init():
            acc_ref[...] = jnp.zeros_like(acc_ref)

        acc_ref[...] += jnp.dot(a_ref[...], w_ref[...],
                                preferred_element_type=jnp.float32)

        @pl.when(pl.program_id(2) == pl.num_programs(2) - 1)
        def _finalize():
            acc = acc_ref[...] + b_ref[...]
            if leaky:
                acc = jnp.where(acc >= 0.0, acc, NEG_SLOPE * acc)
            o_ref[...] = acc
    return kernel


def matmul_bias_act(a, w, b, *, leaky):
    """(M,K) @ (Kp,Np) + b, optional LeakyReLU.  w/b pre-padded (bf16 / f32)."""
    M, K = a.shape
    Kp, Np = w.shape
    tn = 256 if Np % 256 == 0 else 128
    tk = 512 if Kp % 512 == 0 else (256 if Kp % 256 == 0 else 128)
    tm = min(256, _round_up(M, 8))
    Mp = _round_up(M, tm)
    a_p = jnp.pad(a.astype(jnp.bfloat16), ((0, Mp - M), (0, Kp - K)))
    out = pl.pallas_call(
        _matmul_kernel(leaky),
        out_shape=jax.ShapeDtypeStruct((Mp, Np), jnp.float32),
        grid=(Mp // tm, Np // tn, Kp // tk),
        in_specs=[pl.BlockSpec((tm, tk), lambda i, j, k: (i, k)),
                  pl.BlockSpec((tk, tn), lambda i, j, k: (k, j)),
                  pl.BlockSpec((1, tn), lambda i, j, k: (0, j))],
        out_specs=pl.BlockSpec((tm, tn), lambda i, j, k: (i, j)),
        scratch_shapes=[pltpu.VMEM((tm, tn), jnp.float32)],
        compiler_params=pltpu.CompilerParams(
            dimension_semantics=("parallel", "parallel", "arbitrary"),
            vmem_limit_bytes=32 * 1024 * 1024),
    )(a_p, w, b)
    return out[:M]


# ------------------------------- conv glue ---------------------------------

def _im2col(x, kh, kw):
    """'same'-padded patches ordered (dy, dx, c) to match prepare_conv."""
    B, H, W, C = x.shape
    if kh == 1 and kw == 1:
        return x.reshape(B * H * W, C)
    ph, pw = kh // 2, kw // 2
    xp = jnp.pad(x, ((0, 0), (ph, ph), (pw, pw), (0, 0)))
    cols = [xp[:, dy:dy + H, dx:dx + W, :] for dy in range(kh) for dx in range(kw)]
    p = jnp.stack(cols, axis=3)                 # (B, H, W, kh*kw, C)
    return p.reshape(B * H * W, kh * kw * C)


def prepare_conv(w, b, out_perm=None):
    """PyTorch (Cout,Cin,kh,kw) -> padded bf16 (kh*kw*Cin_p, Cout_p) weight, once."""
    cout, cin, kh, kw = w.shape
    if out_perm is not None:
        idx = np.asarray(out_perm)
        w, b = w[idx], b[idx]
    wf = jnp.transpose(w, (2, 3, 1, 0)).reshape(kh * kw * cin, cout)
    K, N = wf.shape
    Kp, Np = _round_up(K, 128), _round_up(N, 128)
    w_p = jnp.pad(wf, ((0, Kp - K), (0, Np - N))).astype(jnp.bfloat16)
    b_p = jnp.pad(b.astype(jnp.float32), (0, Np - N)).reshape(1, Np)
    return {"w": w_p, "b": b_p, "kh": kh, "kw": kw, "cout": cout}


def conv2d(x, cp, *, leaky):
    B, H, W, _ = x.shape
    patches = _im2col(x, cp["kh"], cp["kw"])
    out = matmul_bias_act(patches, cp["w"], cp["b"], leaky=leaky)
    return out.reshape(B, H, W, -1)[..., :cp["cout"]]


# ----------------------- GaussianConditional kernel ------------------------

_INV_SQRT2 = 1.0 / math.sqrt(2.0)


def _std_cdf(z):
    # Phi(z) = 0.5 * erfc(-z / sqrt(2)); erfc tail via A&S 7.1.26 (no 1-(1-x)).
    u = -z * _INV_SQRT2
    au = jnp.abs(u)
    t = 1.0 / (1.0 + 0.3275911 * au)
    poly = ((((1.061405429 * t - 1.453152027) * t + 1.421413741) * t
             - 0.284496736) * t + 0.254829592) * t
    half_erfc = 0.5 * poly * jnp.exp(-au * au)
    return jnp.where(u >= 0.0, half_erfc, 1.0 - half_erfc)


def _gauss_kernel(x_ref, s_ref, m_ref, q_ref, si_ref):
    x = x_ref[...]
    mu = m_ref[...]
    s = jnp.maximum(s_ref[...], SCALE_BOUND)
    r = jnp.round(x - mu)
    q_ref[...] = r + mu
    v = jnp.abs(r)
    inv_s = 1.0 / s
    upper = _std_cdf((0.5 - v) * inv_s)
    lower = _std_cdf((-0.5 - v) * inv_s)
    lik = jnp.maximum(upper - lower, LIK_BOUND)
    si_ref[...] = -jnp.log2(lik)


def _lane_pack(flat, Rp):
    return jnp.pad(flat, (0, Rp * LANE - flat.shape[0])).reshape(Rp, LANE)


def gaussian_conditional(x, sigma, mu):
    """Returns (quantized = round(x-mu)+mu, self_info = -log2 likelihood)."""
    shape = x.shape
    n = int(np.prod(shape))
    R = _cdiv(n, LANE)
    tr = min(256, _round_up(R, 8))
    Rp = _round_up(R, tr)
    packed = [_lane_pack(t.reshape(-1).astype(jnp.float32), Rp)
              for t in (x, sigma, mu)]
    spec = pl.BlockSpec((tr, LANE), lambda i: (i, 0))
    q, si = pl.pallas_call(
        _gauss_kernel,
        out_shape=(jax.ShapeDtypeStruct((Rp, LANE), jnp.float32),
                   jax.ShapeDtypeStruct((Rp, LANE), jnp.float32)),
        grid=(Rp // tr,),
        in_specs=[spec, spec, spec],
        out_specs=(spec, spec),
        compiler_params=pltpu.CompilerParams(dimension_semantics=("parallel",)),
    )(*packed)
    unpack = lambda t: t.reshape(-1)[:n].reshape(shape)
    return unpack(q), unpack(si)


# ------------------------- EntropyBottleneck kernel -------------------------
# Per-channel param table layout (softplus(matrix), tanh(factor) precomputed):
#   [0]                 median
#   [1:4] [4:7] [7:10]  layer0: m(3x1), bias(3), tanh(factor)(3)
#   for l in 1..3, base = 10 + (l-1)*15:
#     [base:base+9]     m(3x3) row-major, [base+9:+12] bias, [base+12:+15] tanh(f)
#   [55:58] [58]        layer4: m(1x3), bias(1)

def _eb_kernel(p_ref, x_ref, q_ref, si_ref):
    c = pl.program_id(0)
    x = x_ref[...]
    med = p_ref[c, 0]
    r = jnp.round(x - med) + med
    q_ref[...] = r

    def logits(y):
        h = [p_ref[c, 1 + j] * y + p_ref[c, 4 + j] for j in range(3)]
        h = [hj + p_ref[c, 7 + j] * jnp.tanh(hj) for j, hj in enumerate(h)]
        for layer in range(3):
            base = 10 + layer * 15
            nh = []
            for j in range(3):
                acc = (p_ref[c, base + 3 * j + 0] * h[0]
                       + p_ref[c, base + 3 * j + 1] * h[1]
                       + p_ref[c, base + 3 * j + 2] * h[2]
                       + p_ref[c, base + 9 + j])
                acc = acc + p_ref[c, base + 12 + j] * jnp.tanh(acc)
                nh.append(acc)
            h = nh
        return (p_ref[c, 55] * h[0] + p_ref[c, 56] * h[1]
                + p_ref[c, 57] * h[2] + p_ref[c, 58])

    lower = logits(r - 0.5)
    upper = logits(r + 0.5)
    s = lower + upper
    sgn = jnp.where(s > 0.0, -1.0, jnp.where(s < 0.0, 1.0, 0.0))

    def sigm(t):
        return 1.0 / (1.0 + jnp.exp(-t))

    lik = jnp.abs(sigm(sgn * upper) - sigm(sgn * lower))
    lik = jnp.maximum(lik, LIK_BOUND)
    si_ref[...] = -jnp.log2(lik)


def entropy_bottleneck(x, packed):
    """Factorized entropy model (eval): returns (quantized, self_info), NHWC."""
    B, H, W, C = x.shape
    n = B * H * W
    xc = jnp.transpose(x, (3, 0, 1, 2)).reshape(C, n).astype(jnp.float32)
    R = _cdiv(n, LANE)
    tr = min(256, _round_up(R, 8))
    Rp = _round_up(R, tr)
    xp = jnp.pad(xc, ((0, 0), (0, Rp * LANE - n))).reshape(C, Rp, LANE)
    dspec = pl.BlockSpec((None, tr, LANE), lambda c, r: (c, r, 0))
    q, si = pl.pallas_call(
        _eb_kernel,
        out_shape=(jax.ShapeDtypeStruct((C, Rp, LANE), jnp.float32),
                   jax.ShapeDtypeStruct((C, Rp, LANE), jnp.float32)),
        grid=(C, Rp // tr),
        in_specs=[pl.BlockSpec(memory_space=pltpu.MemorySpace.SMEM), dspec],
        out_specs=(dspec, dspec),
        compiler_params=pltpu.CompilerParams(
            dimension_semantics=("parallel", "parallel")),
    )(packed, xp)

    def unpack(t):
        t = t.reshape(C, Rp * LANE)[:, :n].reshape(C, B, H, W)
        return jnp.transpose(t, (1, 2, 3, 0))
    return unpack(q), unpack(si)


# ---------------------------- parameter setup ------------------------------

def _conv_init(key, cout, cin, k):
    k1, k2 = jax.random.split(key)
    fan_in = cin * k * k
    w = jax.random.normal(k1, (cout, cin, k, k), jnp.float32) / np.sqrt(fan_in)
    b = 0.01 * jax.random.normal(k2, (cout,), jnp.float32)
    return w, b


def _init_eb(key, channels, filters=(3, 3, 3, 3), init_scale=10.0):
    f = (1,) + tuple(filters) + (1,)
    scale = init_scale ** (1.0 / (len(filters) + 1))
    matrices, biases, factors = [], [], []
    ks = jax.random.split(key, len(filters) + 1)
    for i in range(len(filters) + 1):
        init = float(np.log(np.expm1(1.0 / scale / f[i + 1])))
        matrices.append(jnp.full((channels, f[i + 1], f[i]), init, jnp.float32))
        biases.append(jax.random.uniform(ks[i], (channels, f[i + 1], 1),
                                         jnp.float32, -0.5, 0.5))
        if i < len(filters):
            factors.append(jnp.zeros((channels, f[i + 1], 1), jnp.float32))
    medians = jnp.zeros((channels,), jnp.float32)
    return medians, matrices, biases, factors


def _pack_eb(medians, matrices, biases, factors):
    C = medians.shape[0]
    cols = [medians.reshape(C, 1)]
    for i in range(5):
        cols.append(jax.nn.softplus(matrices[i]).reshape(C, -1))
        cols.append(biases[i].reshape(C, -1))
        if i < 4:
            cols.append(jnp.tanh(factors[i]).reshape(C, -1))
    return jnp.concatenate(cols, axis=1)            # (C, 59)


def init_params(key, dwtlevels=2, clrch=1):
    se_u, so_u = 1, 3
    se, so = se_u * clrch, so_u * clrch
    ses, sos = [], []
    for _ in range(dwtlevels):
        sos.append(so)
        ses.append(se)
        so = se * so_u
        se = se * se_u
    keys = iter(jax.random.split(key, 8 + 4 * dwtlevels))
    params = {"ses": ses, "sos": sos}
    params["eb_xe"] = _pack_eb(*_init_eb(next(keys), ses[-1]))
    params["eb_xo"] = _pack_eb(*_init_eb(next(keys), sos[-1]))
    plc = []
    for i in range(dwtlevels - 1):
        inn = sos[i + 1]
        mid = inn * 81
        w1, b1 = _conv_init(next(keys), mid, inn, 3)
        w2, b2 = _conv_init(next(keys), mid, mid, 3)
        w3, b3 = _conv_init(next(keys), 6, mid, 1)
        # de-interleave sigma/mu (torch 0::2 / 1::2) at weight-build time
        perm = np.concatenate([np.arange(0, 6, 2), np.arange(1, 6, 2)])
        plc.append((prepare_conv(w1, b1),
                    prepare_conv(w2, b2),
                    prepare_conv(w3, b3, out_perm=perm)))
    params["plc"] = plc
    return params


# ------------------------------- forward -----------------------------------

def forward(params, out_xe, out_xo_list):
    dwtlevels = len(out_xo_list)

    # low-pass subband: factorized entropy bottleneck
    out_xe_qnt, si_xe = entropy_bottleneck(out_xe, params["eb_xe"])

    si_xo_list, qnt_xo_list = [], []

    # coarsest high-pass subbands: factorized entropy bottleneck
    i = dwtlevels - 1
    q, si = entropy_bottleneck(out_xo_list[i], params["eb_xo"])
    si_xo_list.append(si)
    qnt_xo_list.append(q)
    con = jnp.repeat(jnp.repeat(q, 2, axis=1), 2, axis=2)   # repeat_interleave x2

    # finer levels: plc context model -> GaussianConditional
    for i in range(dwtlevels - 2, -1, -1):
        c1, c2, c3 = params["plc"][i]
        h = conv2d(con, c1, leaky=True)
        h = conv2d(h, c2, leaky=True)
        h = conv2d(h, c3, leaky=False)
        nh = c3["cout"] // 2
        sigma, mu = h[..., :nh], h[..., nh:]
        q, si = gaussian_conditional(out_xo_list[i], sigma, mu)
        si_xo_list.append(si)
        qnt_xo_list.append(q)
        con = jnp.repeat(jnp.repeat(q, 2, axis=1), 2, axis=2)

    si_xo_list.reverse()
    qnt_xo_list.reverse()
    return si_xe, si_xo_list, out_xe_qnt, qnt_xo_list


# --------------------------------- main -------------------------------------

if __name__ == "__main__":
    key = jax.random.PRNGKey(0)
    kp, kxe, k0, k1 = jax.random.split(key, 4)
    dwtlevels, clrch = 2, 1
    params = init_params(kp, dwtlevels=dwtlevels, clrch=clrch)

    B, Hc, Wc = 2, 8, 8   # coarsest-level spatial size
    out_xe = 4.0 * jax.random.normal(kxe, (B, Hc, Wc, params["ses"][-1]), jnp.float32)
    out_xo_list = [
        4.0 * jax.random.normal(k0, (B, 2 * Hc, 2 * Wc, params["sos"][0]), jnp.float32),
        4.0 * jax.random.normal(k1, (B, Hc, Wc, params["sos"][1]), jnp.float32),
    ]

    fwd = jax.jit(lambda xe, xos: forward(params, xe, xos))
    si_xe, si_xo_list, xe_qnt, xo_qnt_list = fwd(out_xe, out_xo_list)
    jax.block_until_ready((si_xe, si_xo_list, xe_qnt, xo_qnt_list))
    print("KERNEL_OK")
</pallas_src>

<mosaic_0001>
module attributes {stable_mosaic.version = 11 : i64} {
  func.func @_eb_kernel(%arg0: i32, %arg1: i32, %arg2: memref<3x59xf32, #tpu.memory_space<smem>>, %arg3: memref<1x8x128xf32, #tpu.memory_space<vmem>>, %arg4: memref<1x8x128xf32, #tpu.memory_space<vmem>>, %arg5: memref<1x8x128xf32, #tpu.memory_space<vmem>>) attributes {dimension_semantics = [#tpu.dimension_semantics<parallel>, #tpu.dimension_semantics<parallel>], iteration_bounds = array<i64: 3, 1>, scalar_prefetch = 0 : i64, scratch_operands = 0 : i64, tpu.core_type = #tpu.core_type<tc>, window_params = [{transform_indices = @transform_0, window_bounds = array<i64: 3, 59>}, {transform_indices = @transform_1, window_bounds = array<i64: 1, 8, 128>}, {transform_indices = @transform_2, window_bounds = array<i64: 1, 8, 128>}, {transform_indices = @transform_3, window_bounds = array<i64: 1, 8, 128>}]} {
    %c0 = arith.constant 0 : index
    %c0_0 = arith.constant 0 : index
    %c0_1 = arith.constant 0 : index
    %0 = vector.load %arg3[%c0, %c0_0, %c0_1] : memref<1x8x128xf32, #tpu.memory_space<vmem>>, vector<1x8x128xf32>
    %1 = vector.shape_cast %0 : vector<1x8x128xf32> to vector<8x128xf32>
    %2 = arith.index_cast %arg0 : i32 to index
    %c0_2 = arith.constant 0 : index
    %3 = memref.load %arg2[%2, %c0_2] : memref<3x59xf32, #tpu.memory_space<smem>>
    %4 = vector.broadcast %3 : f32 to vector<8x128xf32>
    %5 = arith.subf %1, %4 : vector<8x128xf32>
    %6 = math.roundeven %5 : vector<8x128xf32>
    %7 = vector.broadcast %3 : f32 to vector<8x128xf32>
    %8 = arith.addf %6, %7 : vector<8x128xf32>
    %c0_3 = arith.constant 0 : index
    %c0_4 = arith.constant 0 : index
    %c0_5 = arith.constant 0 : index
    %9 = vector.load %arg4[%c0_3, %c0_4, %c0_5] : memref<1x8x128xf32, #tpu.memory_space<vmem>>, vector<1x8x128xf32>
    %10 = vector.shape_cast %9 : vector<1x8x128xf32> to vector<8x128xf32>
    %11 = vector.shape_cast %8 : vector<8x128xf32> to vector<1x8x128xf32>
    tpu.vector_store %arg4[%c0_3, %c0_4, %c0_5], %11 {strides = array<i32>} : memref<1x8x128xf32, #tpu.memory_space<vmem>>, vector<1x8x128xf32>,
    %cst = arith.constant 5.000000e-01 : f32
    %12 = vector.broadcast %cst : f32 to vector<8x128xf32>
    %13 = arith.subf %8, %12 : vector<8x128xf32>
    %14 = arith.index_cast %arg0 : i32 to index
    %c1 = arith.constant 1 : index
    %15 = memref.load %arg2[%14, %c1] : memref<3x59xf32, #tpu.memory_space<smem>>
    %16 = vector.broadcast %15 : f32 to vector<8x128xf32>
    %17 = arith.mulf %16, %13 : vector<8x128xf32>
    %18 = arith.index_cast %arg0 : i32 to index
    %c4 = arith.constant 4 : index
    %19 = memref.load %arg2[%18, %c4] : memref<3x59xf32, #tpu.memory_space<smem>>
    %20 = vector.broadcast %19 : f32 to vector<8x128xf32>
    %21 = arith.addf %17, %20 : vector<8x128xf32>
    %22 = arith.index_cast %arg0 : i32 to index
    %c2 = arith.constant 2 : index
    %23 = memref.load %arg2[%22, %c2] : memref<3x59xf32, #tpu.memory_space<smem>>
    %24 = vector.broadcast %23 : f32 to vector<8x128xf32>
    %25 = arith.mulf %24, %13 : vector<8x128xf32>
    %26 = arith.index_cast %arg0 : i32 to index
    %c5 = arith.constant 5 : index
    %27 = memref.load %arg2[%26, %c5] : memref<3x59xf32, #tpu.memory_space<smem>>
    %28 = vector.broadcast %27 : f32 to vector<8x128xf32>
    %29 = arith.addf %25, %28 : vector<8x128xf32>
    %30 = arith.index_cast %arg0 : i32 to index
    %c3 = arith.constant 3 : index
    %31 = memref.load %arg2[%30, %c3] : memref<3x59xf32, #tpu.memory_space<smem>>
    %32 = vector.broadcast %31 : f32 to vector<8x128xf32>
    %33 = arith.mulf %32, %13 : vector<8x128xf32>
    %34 = arith.index_cast %arg0 : i32 to index
    %c6 = arith.constant 6 : index
    %35 = memref.load %arg2[%34, %c6] : memref<3x59xf32, #tpu.memory_space<smem>>
    %36 = vector.broadcast %35 : f32 to vector<8x128xf32>
    %37 = arith.addf %33, %36 : vector<8x128xf32>
    %38 = arith.index_cast %arg0 : i32 to index
    %c7 = arith.constant 7 : index
    %39 = memref.load %arg2[%38, %c7] : memref<3x59xf32, #tpu.memory_space<smem>>
    %40 = math.tanh %21 : vector<8x128xf32>
    %41 = vector.broadcast %39 : f32 to vector<8x128xf32>
    %42 = arith.mulf %41, %40 : vector<8x128xf32>
    %43 = arith.addf %21, %42 : vector<8x128xf32>
    %44 = arith.index_cast %arg0 : i32 to index
    %c8 = arith.constant 8 : index
    %45 = memref.load %arg2[%44, %c8] : memref<3x59xf32, #tpu.memory_space<smem>>
    %46 = math.tanh %29 : vector<8x128xf32>
    %47 = vector.broadcast %45 : f32 to vector<8x128xf32>
    %48 = arith.mulf %47, %46 : vector<8x128xf32>
    %49 = arith.addf %29, %48 : vector<8x128xf32>
    %50 = arith.index_cast %arg0 : i32 to index
    %c9 = arith.constant 9 : index
    %51 = memref.load %arg2[%50, %c9] : memref<3x59xf32, #tpu.memory_space<smem>>
    %52 = math.tanh %37 : vector<8x128xf32>
    %53 = vector.broadcast %51 : f32 to vector<8x128xf32>
    %54 = arith.mulf %53, %52 : vector<8x128xf32>
    %55 = arith.addf %37, %54 : vector<8x128xf32>
    %56 = arith.index_cast %arg0 : i32 to index
    %c10 = arith.constant 10 : index
    %57 = memref.load %arg2[%56, %c10] : memref<3x59xf32, #tpu.memory_space<smem>>
    %58 = vector.broadcast %57 : f32 to vector<8x128xf32>
    %59 = arith.mulf %58, %43 : vector<8x128xf32>
    %60 = arith.index_cast %arg0 : i32 to index
    %c11 = arith.constant 11 : index
    %61 = memref.load %arg2[%60, %c11] : memref<3x59xf32, #tpu.memory_space<smem>>
    %62 = vector.broadcast %61 : f32 to vector<8x128xf32>
    %63 = arith.mulf %62, %49 : vector<8x128xf32>
    %64 = arith.addf %59, %63 : vector<8x128xf32>
    %65 = arith.index_cast %arg0 : i32 to index
    %c12 = arith.constant 12 : index
    %66 = memref.load %arg2[%65, %c12] : memref<3x59xf32, #tpu.memory_space<smem>>
    %67 = vector.broadcast %66 : f32 to vector<8x128xf32>
    %68 = arith.mulf %67, %55 : vector<8x128xf32>
    %69 = arith.addf %64, %68 : vector<8x128xf32>
    %70 = arith.index_cast %arg0 : i32 to index
    %c19 = arith.constant 19 : index
    %71 = memref.load %arg2[%70, %c19] : memref<3x59xf32, #tpu.memory_space<smem>>
    %72 = vector.broadcast %71 : f32 to vector<8x128xf32>
    %73 = arith.addf %69, %72 : vector<8x128xf32>
    %74 = arith.index_cast %arg0 : i32 to index
    %c22 = arith.constant 22 : index
    %75 = memref.load %arg2[%74, %c22] : memref<3x59xf32, #tpu.memory_space<smem>>
    %76 = math.tanh %73 : vector<8x128xf32>
    %77 = vector.broadcast %75 : f32 to vector<8x128xf32>
    %78 = arith.mulf %77, %76 : vector<8x128xf32>
    %79 = arith.addf %73, %78 : vector<8x128xf32>
    %80 = arith.index_cast %arg0 : i32 to index
    %c13 = arith.constant 13 : index
    %81 = memref.load %arg2[%80, %c13] : memref<3x59xf32, #tpu.memory_space<smem>>
    %82 = vector.broadcast %81 : f32 to vector<8x128xf32>
    %83 = arith.mulf %82, %43 : vector<8x128xf32>
    %84 = arith.index_cast %arg0 : i32 to index
    %c14 = arith.constant 14 : index
    %85 = memref.load %arg2[%84, %c14] : memref<3x59xf32, #tpu.memory_space<smem>>
    %86 = vector.broadcast %85 : f32 to vector<8x128xf32>
    %87 = arith.mulf %86, %49 : vector<8x128xf32>
    %88 = arith.addf %83, %87 : vector<8x128xf32>
    %89 = arith.index_cast %arg0 : i32 to index
    %c15 = arith.constant 15 : index
    %90 = memref.load %arg2[%89, %c15] : memref<3x59xf32, #tpu.memory_space<smem>>
    %91 = vector.broadcast %90 : f32 to vector<8x128xf32>
    %92 = arith.mulf %91, %55 : vector<8x128xf32>
    %93 = arith.addf %88, %92 : vector<8x128xf32>
    %94 = arith.index_cast %arg0 : i32 to index
    %c20 = arith.constant 20 : index
    %95 = memref.load %arg2[%94, %c20] : memref<3x59xf32, #tpu.memory_space<smem>>
    %96 = vector.broadcast %95 : f32 to vector<8x128xf32>
    %97 = arith.addf %93, %96 : vector<8x128xf32>
    %98 = arith.index_cast %arg0 : i32 to index
    %c23 = arith.constant 23 : index
    %99 = memref.load %arg2[%98, %c23] : memref<3x59xf32, #tpu.memory_space<smem>>
    %100 = math.tanh %97 : vector<8x128xf32>
    %101 = vector.broadcast %99 : f32 to vector<8x128xf32>
    %102 = arith.mulf %101, %100 : vector<8x128xf32>
    %103 = arith.addf %97, %102 : vector<8x128xf32>
    %104 = arith.index_cast %arg0 : i32 to index
    %c16 = arith.constant 16 : index
    %105 = memref.load %arg2[%104, %c16] : memref<3x59xf32, #tpu.memory_space<smem>>
    %106 = vector.broadcast %105 : f32 to vector<8x128xf32>
    %107 = arith.mulf %106, %43 : vector<8x128xf32>
    %108 = arith.index_cast %arg0 : i32 to index
    %c17 = arith.constant 17 : index
    %109 = memref.load %arg2[%108, %c17] : memref<3x59xf32, #tpu.memory_space<smem>>
    %110 = vector.broadcast %109 : f32 to vector<8x128xf32>
    %111 = arith.mulf %110, %49 : vector<8x128xf32>
    %112 = arith.addf %107, %111 : vector<8x128xf32>
    %113 = arith.index_cast %arg0 : i32 to index
    %c18 = arith.constant 18 : index
    %114 = memref.load %arg2[%113, %c18] : memref<3x59xf32, #tpu.memory_space<smem>>
    %115 = vector.broadcast %114 : f32 to vector<8x128xf32>
    %116 = arith.mulf %115, %55 : vector<8x128xf32>
    %117 = arith.addf %112, %116 : vector<8x128xf32>
    %118 = arith.index_cast %arg0 : i32 to index
    %c21 = arith.constant 21 : index
    %119 = memref.load %arg2[%118, %c21] : memref<3x59xf32, #tpu.memory_space<smem>>
    %120 = vector.broadcast %119 : f32 to vector<8x128xf32>
    %121 = arith.addf %117, %120 : vector<8x128xf32>
    %122 = arith.index_cast %arg0 : i32 to index
    %c24 = arith.constant 24 : index
    %123 = memref.load %arg2[%122, %c24] : memref<3x59xf32, #tpu.memory_space<smem>>
    %124 = math.tanh %121 : vector<8x128xf32>
    %125 = vector.broadcast %123 : f32 to vector<8x128xf32>
    %126 = arith.mulf %125, %124 : vector<8x128xf32>
    %127 = arith.addf %121, %126 : vector<8x128xf32>
    %128 = arith.index_cast %arg0 : i32 to index
    %c25 = arith.constant 25 : index
    %129 = memref.load %arg2[%128, %c25] : memref<3x59xf32, #tpu.memory_space<smem>>
    %130 = vector.broadcast %129 : f32 to vector<8x128xf32>
    %131 = arith.mulf %130, %79 : vector<8x128xf32>
    %132 = arith.index_cast %arg0 : i32 to index
    %c26 = arith.constant 26 : index
    %133 = memref.load %arg2[%132, %c26] : memref<3x59xf32, #tpu.memory_space<smem>>
    %134 = vector.broadcast %133 : f32 to vector<8x128xf32>
    %135 = arith.mulf %134, %103 : vector<8x128xf32>
    %136 = arith.addf %131, %135 : vector<8x128xf32>
    %137 = arith.index_cast %arg0 : i32 to index
    %c27 = arith.constant 27 : index
    %138 = memref.load %arg2[%137, %c27] : memref<3x59xf32, #tpu.memory_space<smem>>
    %139 = vector.broadcast %138 : f32 to vector<8x128xf32>
    %140 = arith.mulf %139, %127 : vector<8x128xf32>
    %141 = arith.addf %136, %140 : vector<8x128xf32>
    %142 = arith.index_cast %arg0 : i32 to index
    %c34 = arith.constant 34 : index
    %143 = memref.load %arg2[%142, %c34] : memref<3x59xf32, #tpu.memory_space<smem>>
    %144 = vector.broadcast %143 : f32 to vector<8x128xf32>
    %145 = arith.addf %141, %144 : vector<8x128xf32>
    %146 = arith.index_cast %arg0 : i32 to index
    %c37 = arith.constant 37 : index
    %147 = memref.load %arg2[%146, %c37] : memref<3x59xf32, #tpu.memory_space<smem>>
    %148 = math.tanh %145 : vector<8x128xf32>
    %149 = vector.broadcast %147 : f32 to vector<8x128xf32>
    %150 = arith.mulf %149, %148 : vector<8x128xf32>
    %151 = arith.addf %145, %150 : vector<8x128xf32>
    %152 = arith.index_cast %arg0 : i32 to index
    %c28 = arith.constant 28 : index
    %153 = memref.load %arg2[%152, %c28] : memref<3x59xf32, #tpu.memory_space<smem>>
    %154 = vector.broadcast %153 : f32 to vector<8x128xf32>
    %155 = arith.mulf %154, %79 : vector<8x128xf32>
    %156 = arith.index_cast %arg0 : i32 to index
    %c29 = arith.constant 29 : index
    %157 = memref.load %arg2[%156, %c29] : memref<3x59xf32, #tpu.memory_space<smem>>
    %158 = vector.broadcast %157 : f32 to vector<8x128xf32>
    %159 = arith.mulf %158, %103 : vector<8x128xf32>
    %160 = arith.addf %155, %159 : vector<8x128xf32>
    %161 = arith.index_cast %arg0 : i32 to index
    %c30 = arith.constant 30 : index
    %162 = memref.load %arg2[%161, %c30] : memref<3x59xf32, #tpu.memory_space<smem>>
    %163 = vector.broadcast %162 : f32 to vector<8x128xf32>
    %164 = arith.mulf %163, %127 : vector<8x128xf32>
    %165 = arith.addf %160, %164 : vector<8x128xf32>
    %166 = arith.index_cast %arg0 : i32 to index
    %c35 = arith.constant 35 : index
    %167 = memref.load %arg2[%166, %c35] : memref<3x59xf32, #tpu.memory_space<smem>>
    %168 = vector.broadcast %167 : f32 to vector<8x128xf32>
    %169 = arith.addf %165, %168 : vector<8x128xf32>
    %170 = arith.index_cast %arg0 : i32 to index
    %c38 = arith.constant 38 : index
    %171 = memref.load %arg2[%170, %c38] : memref<3x59xf32, #tpu.memory_space<smem>>
    %172 = math.tanh %169 : vector<8x128xf32>
    %173 = vector.broadcast %171 : f32 to vector<8x128xf32>
    %174 = arith.mulf %173, %172 : vector<8x128xf32>
    %175 = arith.addf %169, %174 : vector<8x128xf32>
    %176 = arith.index_cast %arg0 : i32 to index
    %c31 = arith.constant 31 : index
    %177 = memref.load %arg2[%176, %c31] : memref<3x59xf32, #tpu.memory_space<smem>>
    %178 = vector.broadcast %177 : f32 to vector<8x128xf32>
    %179 = arith.mulf %178, %79 : vector<8x128xf32>
    %180 = arith.index_cast %arg0 : i32 to index
    %c32 = arith.constant 32 : index
    %181 = memref.load %arg2[%180, %c32] : memref<3x59xf32, #tpu.memory_space<smem>>
    %182 = vector.broadcast %181 : f32 to vector<8x128xf32>
    %183 = arith.mulf %182, %103 : vector<8x128xf32>
    %184 = arith.addf %179, %183 : vector<8x128xf32>
    %185 = arith.index_cast %arg0 : i32 to index
    %c33 = arith.constant 33 : index
    %186 = memref.load %arg2[%185, %c33] : memref<3x59xf32, #tpu.memory_space<smem>>
    %187 = vector.broadcast %186 : f32 to vector<8x128xf32>
    %188 = arith.mulf %187, %127 : vector<8x128xf32>
    %189 = arith.addf %184, %188 : vector<8x128xf32>
    %190 = arith.index_cast %arg0 : i32 to index
    %c36 = arith.constant 36 : index
    %191 = memref.load %arg2[%190, %c36] : memref<3x59xf32, #tpu.memory_space<smem>>
    %192 = vector.broadcast %191 : f32 to vector<8x128xf32>
    %193 = arith.addf %189, %192 : vector<8x128xf32>
    %194 = arith.index_cast %arg0 : i32 to index
    %c39 = arith.constant 39 : index
    %195 = memref.load %arg2[%194, %c39] : memref<3x59xf32, #tpu.memory_space<smem>>
    %196 = math.tanh %193 : vector<8x128xf32>
    %197 = vector.broadcast %195 : f32 to vector<8x128xf32>
    %198 = arith.mulf %197, %196 : vector<8x128xf32>
    %199 = arith.addf %193, %198 : vector<8x128xf32>
    %200 = arith.index_cast %arg0 : i32 to index
    %c40 = arith.constant 40 : index
    %201 = memref.load %arg2[%200, %c40] : memref<3x59xf32, #tpu.memory_space<smem>>
    %202 = vector.broadcast %201 : f32 to vector<8x128xf32>
    %203 = arith.mulf %202, %151 : vector<8x128xf32>
    %204 = arith.index_cast %arg0 : i32 to index
    %c41 = arith.constant 41 : index
    %205 = memref.load %arg2[%204, %c41] : memref<3x59xf32, #tpu.memory_space<smem>>
    %206 = vector.broadcast %205 : f32 to vector<8x128xf32>
    %207 = arith.mulf %206, %175 : vector<8x128xf32>
    %208 = arith.addf %203, %207 : vector<8x128xf32>
    %209 = arith.index_cast %arg0 : i32 to index
    %c42 = arith.constant 42 : index
    %210 = memref.load %arg2[%209, %c42] : memref<3x59xf32, #tpu.memory_space<smem>>
    %211 = vector.broadcast %210 : f32 to vector<8x128xf32>
    %212 = arith.mulf %211, %199 : vector<8x128xf32>
    %213 = arith.addf %208, %212 : vector<8x128xf32>
    %214 = arith.index_cast %arg0 : i32 to index
    %c49 = arith.constant 49 : index
    %215 = memref.load %arg2[%214, %c49] : memref<3x59xf32, #tpu.memory_space<smem>>
    %216 = vector.broadcast %215 : f32 to vector<8x128xf32>
    %217 = arith.addf %213, %216 : vector<8x128xf32>
    %218 = arith.index_cast %arg0 : i32 to index
    %c52 = arith.constant 52 : index
    %219 = memref.load %arg2[%218, %c52] : memref<3x59xf32, #tpu.memory_space<smem>>
    %220 = math.tanh %217 : vector<8x128xf32>
    %221 = vector.broadcast %219 : f32 to vector<8x128xf32>
    %222 = arith.mulf %221, %220 : vector<8x128xf32>
    %223 = arith.addf %217, %222 : vector<8x128xf32>
    %224 = arith.index_cast %arg0 : i32 to index
    %c43 = arith.constant 43 : index
    %225 = memref.load %arg2[%224, %c43] : memref<3x59xf32, #tpu.memory_space<smem>>
    %226 = vector.broadcast %225 : f32 to vector<8x128xf32>
    %227 = arith.mulf %226, %151 : vector<8x128xf32>
    %228 = arith.index_cast %arg0 : i32 to index
    %c44 = arith.constant 44 : index
    %229 = memref.load %arg2[%228, %c44] : memref<3x59xf32, #tpu.memory_space<smem>>
    %230 = vector.broadcast %229 : f32 to vector<8x128xf32>
    %231 = arith.mulf %230, %175 : vector<8x128xf32>
    %232 = arith.addf %227, %231 : vector<8x128xf32>
    %233 = arith.index_cast %arg0 : i32 to index
    %c45 = arith.constant 45 : index
    %234 = memref.load %arg2[%233, %c45] : memref<3x59xf32, #tpu.memory_space<smem>>
    %235 = vector.broadcast %234 : f32 to vector<8x128xf32>
    %236 = arith.mulf %235, %199 : vector<8x128xf32>
    %237 = arith.addf %232, %236 : vector<8x128xf32>
    %238 = arith.index_cast %arg0 : i32 to index
    %c50 = arith.constant 50 : index
    %239 = memref.load %arg2[%238, %c50] : memref<3x59xf32, #tpu.memory_space<smem>>
    %240 = vector.broadcast %239 : f32 to vector<8x128xf32>
    %241 = arith.addf %237, %240 : vector<8x128xf32>
    %242 = arith.index_cast %arg0 : i32 to index
    %c53 = arith.constant 53 : index
    %243 = memref.load %arg2[%242, %c53] : memref<3x59xf32, #tpu.memory_space<smem>>
    %244 = math.tanh %241 : vector<8x128xf32>
    %245 = vector.broadcast %243 : f32 to vector<8x128xf32>
    %246 = arith.mulf %245, %244 : vector<8x128xf32>
    %247 = arith.addf %241, %246 : vector<8x128xf32>
    %248 = arith.index_cast %arg0 : i32 to index
    %c46 = arith.constant 46 : index
    %249 = memref.load %arg2[%248, %c46] : memref<3x59xf32, #tpu.memory_space<smem>>
    %250 = vector.broadcast %249 : f32 to vector<8x128xf32>
    %251 = arith.mulf %250, %151 : vector<8x128xf32>
    %252 = arith.index_cast %arg0 : i32 to index
    %c47 = arith.constant 47 : index
    %253 = memref.load %arg2[%252, %c47] : memref<3x59xf32, #tpu.memory_space<smem>>
    %254 = vector.broadcast %253 : f32 to vector<8x128xf32>
    %255 = arith.mulf %254, %175 : vector<8x128xf32>
    %256 = arith.addf %251, %255 : vector<8x128xf32>
    %257 = arith.index_cast %arg0 : i32 to index
    %c48 = arith.constant 48 : index
    %258 = memref.load %arg2[%257, %c48] : memref<3x59xf32, #tpu.memory_space<smem>>
    %259 = vector.broadcast %258 : f32 to vector<8x128xf32>
    %260 = arith.mulf %259, %199 : vector<8x128xf32>
    %261 = arith.addf %256, %260 : vector<8x128xf32>
    %262 = arith.index_cast %arg0 : i32 to index
    %c51 = arith.constant 51 : index
    %263 = memref.load %arg2[%262, %c51] : memref<3x59xf32, #tpu.memory_space<smem>>
    %264 = vector.broadcast %263 : f32 to vector<8x128xf32>
    %265 = arith.addf %261, %264 : vector<8x128xf32>
    %266 = arith.index_cast %arg0 : i32 to index
    %c54 = arith.constant 54 : index
    %267 = memref.load %arg2[%266, %c54] : memref<3x59xf32, #tpu.memory_space<smem>>
    %268 = math.tanh %265 : vector<8x128xf32>
    %269 = vector.broadcast %267 : f32 to vector<8x128xf32>
    %270 = arith.mulf %269, %268 : vector<8x128xf32>
    %271 = arith.addf %265, %270 : vector<8x128xf32>
    %272 = arith.index_cast %arg0 : i32 to index
    %c55 = arith.constant 55 : index
    %273 = memref.load %arg2[%272, %c55] : memref<3x59xf32, #tpu.memory_space<smem>>
    %274 = vector.broadcast %273 : f32 to vector<8x128xf32>
    %275 = arith.mulf %274, %223 : vector<8x128xf32>
    %276 = arith.index_cast %arg0 : i32 to index
    %c56 = arith.constant 56 : index
    %277 = memref.load %arg2[%276, %c56] : memref<3x59xf32, #tpu.memory_space<smem>>
    %278 = vector.broadcast %277 : f32 to vector<8x128xf32>
    %279 = arith.mulf %278, %247 : vector<8x128xf32>
    %280 = arith.addf %275, %279 : vector<8x128xf32>
    %281 = arith.index_cast %arg0 : i32 to index
    %c57 = arith.constant 57 : index
    %282 = memref.load %arg2[%281, %c57] : memref<3x59xf32, #tpu.memory_space<smem>>
    %283 = vector.broadcast %282 : f32 to vector<8x128xf32>
    %284 = arith.mulf %283, %271 : vector<8x128xf32>
    %285 = arith.addf %280, %284 : vector<8x128xf32>
    %286 = arith.index_cast %arg0 : i32 to index
    %c58 = arith.constant 58 : index
    %287 = memref.load %arg2[%286, %c58] : memref<3x59xf32, #tpu.memory_space<smem>>
    %288 = vector.broadcast %287 : f32 to vector<8x128xf32>
    %289 = arith.addf %285, %288 : vector<8x128xf32>
    %cst_6 = arith.constant 5.000000e-01 : f32
    %290 = vector.broadcast %cst_6 : f32 to vector<8x128xf32>
    %291 = arith.addf %8, %290 : vector<8x128xf32>
    %292 = arith.index_cast %arg0 : i32 to index
    %c1_7 = arith.constant 1 : index
    %293 = memref.load %arg2[%292, %c1_7] : memref<3x59xf32, #tpu.memory_space<smem>>
    %294 = vector.broadcast %293 : f32 to vector<8x128xf32>
    %295 = arith.mulf %294, %291 : vector<8x128xf32>
    %296 = arith.index_cast %arg0 : i32 to index
    %c4_8 = arith.constant 4 : index
    %297 = memref.load %arg2[%296, %c4_8] : memref<3x59xf32, #tpu.memory_space<smem>>
    %298 = vector.broadcast %297 : f32 to vector<8x128xf32>
    %299 = arith.addf %295, %298 : vector<8x128xf32>
    %300 = arith.index_cast %arg0 : i32 to index
    %c2_9 = arith.constant 2 : index
    %301 = memref.load %arg2[%300, %c2_9] : memref<3x59xf32, #tpu.memory_space<smem>>
    %302 = vector.broadcast %301 : f32 to vector<8x128xf32>
    %303 = arith.mulf %302, %291 : vector<8x128xf32>
    %304 = arith.index_cast %arg0 : i32 to index
    %c5_10 = arith.constant 5 : index
    %305 = memref.load %arg2[%304, %c5_10] : memref<3x59xf32, #tpu.memory_space<smem>>
    %306 = vector.broadcast %305 : f32 to vector<8x128xf32>
    %307 = arith.addf %303, %306 : vector<8x128xf32>
    %308 = arith.index_cast %arg0 : i32 to index
    %c3_11 = arith.constant 3 : index
    %309 = memref.load %arg2[%308, %c3_11] : memref<3x59xf32, #tpu.memory_space<smem>>
    %310 = vector.broadcast %309 : f32 to vector<8x128xf32>
    %311 = arith.mulf %310, %291 : vector<8x128xf32>
    %312 = arith.index_cast %arg0 : i32 to index
    %c6_12 = arith.constant 6 : index
    %313 = memref.load %arg2[%312, %c6_12] : memref<3x59xf32, #tpu.memory_space<smem>>
    %314 = vector.broadcast %313 : f32 to vector<8x128xf32>
    %315 = arith.addf %311, %314 : vector<8x128xf32>
    %316 = arith.index_cast %arg0 : i32 to index
    %c7_13 = arith.constant 7 : index
    %317 = memref.load %arg2[%316, %c7_13] : memref<3x59xf32, #tpu.memory_space<smem>>
    %318 = math.tanh %299 : vector<8x128xf32>
    %319 = vector.broadcast %317 : f32 to vector<8x128xf32>
    %320 = arith.mulf %319, %318 : vector<8x128xf32>
    %321 = arith.addf %299, %320 : vector<8x128xf32>
    %322 = arith.index_cast %arg0 : i32 to index
    %c8_14 = arith.constant 8 : index
    %323 = memref.load %arg2[%322, %c8_14] : memref<3x59xf32, #tpu.memory_space<smem>>
    %324 = math.tanh %307 : vector<8x128xf32>
    %325 = vector.broadcast %323 : f32 to vector<8x128xf32>
    %326 = arith.mulf %325, %324 : vector<8x128xf32>
    %327 = arith.addf %307, %326 : vector<8x128xf32>
    %328 = arith.index_cast %arg0 : i32 to index
    %c9_15 = arith.constant 9 : index
    %329 = memref.load %arg2[%328, %c9_15] : memref<3x59xf32, #tpu.memory_space<smem>>
    %330 = math.tanh %315 : vector<8x128xf32>
    %331 = vector.broadcast %329 : f32 to vector<8x128xf32>
    %332 = arith.mulf %331, %330 : vector<8x128xf32>
    %333 = arith.addf %315, %332 : vector<8x128xf32>
    %334 = arith.index_cast %arg0 : i32 to index
    %c10_16 = arith.constant 10 : index
    %335 = memref.load %arg2[%334, %c10_16] : memref<3x59xf32, #tpu.memory_space<smem>>
    %336 = vector.broadcast %335 : f32 to vector<8x128xf32>
    %337 = arith.mulf %336, %321 : vector<8x128xf32>
    %338 = arith.index_cast %arg0 : i32 to index
    %c11_17 = arith.constant 11 : index
    %339 = memref.load %arg2[%338, %c11_17] : memref<3x59xf32, #tpu.memory_space<smem>>
    %340 = vector.broadcast %339 : f32 to vector<8x128xf32>
    %341 = arith.mulf %340, %327 : vector<8x128xf32>
    %342 = arith.addf %337, %341 : vector<8x128xf32>
    %343 = arith.index_cast %arg0 : i32 to index
    %c12_18 = arith.constant 12 : index
    %344 = memref.load %arg2[%343, %c12_18] : memref<3x59xf32, #tpu.memory_space<smem>>
    %345 = vector.broadcast %344 : f32 to vector<8x128xf32>
    %346 = arith.mulf %345, %333 : vector<8x128xf32>
    %347 = arith.addf %342, %346 : vector<8x128xf32>
    %348 = arith.index_cast %arg0 : i32 to index
    %c19_19 = arith.constant 19 : index
    %349 = memref.load %arg2[%348, %c19_19] : memref<3x59xf32, #tpu.memory_space<smem>>
    %350 = vector.broadcast %349 : f32 to vector<8x128xf32>
    %351 = arith.addf %347, %350 : vector<8x128xf32>
    %352 = arith.index_cast %arg0 : i32 to index
    %c22_20 = arith.constant 22 : index
    %353 = memref.load %arg2[%352, %c22_20] : memref<3x59xf32, #tpu.memory_space<smem>>
    %354 = math.tanh %351 : vector<8x128xf32>
    %355 = vector.broadcast %353 : f32 to vector<8x128xf32>
    %356 = arith.mulf %355, %354 : vector<8x128xf32>
    %357 = arith.addf %351, %356 : vector<8x128xf32>
    %358 = arith.index_cast %arg0 : i32 to index
    %c13_21 = arith.constant 13 : index
    %359 = memref.load %arg2[%358, %c13_21] : memref<3x59xf32, #tpu.memory_space<smem>>
    %360 = vector.broadcast %359 : f32 to vector<8x128xf32>
    %361 = arith.mulf %360, %321 : vector<8x128xf32>
    %362 = arith.index_cast %arg0 : i32 to index
    %c14_22 = arith.constant 14 : index
    %363 = memref.load %arg2[%362, %c14_22] : memref<3x59xf32, #tpu.memory_space<smem>>
    %364 = vector.broadcast %363 : f32 to vector<8x128xf32>
    %365 = arith.mulf %364, %327 : vector<8x128xf32>
    %366 = arith.addf %361, %365 : vector<8x128xf32>
    %367 = arith.index_cast %arg0 : i32 to index
    %c15_23 = arith.constant 15 : index
    %368 = memref.load %arg2[%367, %c15_23] : memref<3x59xf32, #tpu.memory_space<smem>>
    %369 = vector.broadcast %368 : f32 to vector<8x128xf32>
    %370 = arith.mulf %369, %333 : vector<8x128xf32>
    %371 = arith.addf %366, %370 : vector<8x128xf32>
    %372 = arith.index_cast %arg0 : i32 to index
    %c20_24 = arith.constant 20 : index
    %373 = memref.load %arg2[%372, %c20_24] : memref<3x59xf32, #tpu.memory_space<smem>>
    %374 = vector.broadcast %373 : f32 to vector<8x128xf32>
    %375 = arith.addf %371, %374 : vector<8x128xf32>
    %376 = arith.index_cast %arg0 : i32 to index
    %c23_25 = arith.constant 23 : index
    %377 = memref.load %arg2[%376, %c23_25] : memref<3x59xf32, #tpu.memory_space<smem>>
    %378 = math.tanh %375 : vector<8x128xf32>
    %379 = vector.broadcast %377 : f32 to vector<8x128xf32>
    %380 = arith.mulf %379, %378 : vector<8x128xf32>
    %381 = arith.addf %375, %380 : vector<8x128xf32>
    %382 = arith.index_cast %arg0 : i32 to index
    %c16_26 = arith.constant 16 : index
    %383 = memref.load %arg2[%382, %c16_26] : memref<3x59xf32, #tpu.memory_space<smem>>
    %384 = vector.broadcast %383 : f32 to vector<8x128xf32>
    %385 = arith.mulf %384, %321 : vector<8x128xf32>
    %386 = arith.index_cast %arg0 : i32 to index
    %c17_27 = arith.constant 17 : index
    %387 = memref.load %arg2[%386, %c17_27] : memref<3x59xf32, #tpu.memory_space<smem>>
    %388 = vector.broadcast %387 : f32 to vector<8x128xf32>
    %389 = arith.mulf %388, %327 : vector<8x128xf32>
    %390 = arith.addf %385, %389 : vector<8x128xf32>
    %391 = arith.index_cast %arg0 : i32 to index
    %c18_28 = arith.constant 18 : index
    %392 = memref.load %arg2[%391, %c18_28] : memref<3x59xf32, #tpu.memory_space<smem>>
    %393 = vector.broadcast %392 : f32 to vector<8x128xf32>
    %394 = arith.mulf %393, %333 : vector<8x128xf32>
    %395 = arith.addf %390, %394 : vector<8x128xf32>
    %396 = arith.index_cast %arg0 : i32 to index
    %c21_29 = arith.constant 21 : index
    %397 = memref.load %arg2[%396, %c21_29] : memref<3x59xf32, #tpu.memory_space<smem>>
    %398 = vector.broadcast %397 : f32 to vector<8x128xf32>
    %399 = arith.addf %395, %398 : vector<8x128xf32>
    %400 = arith.index_cast %arg0 : i32 to index
    %c24_30 = arith.constant 24 : index
    %401 = memref.load %arg2[%400, %c24_30] : memref<3x59xf32, #tpu.memory_space<smem>>
    %402 = math.tanh %399 : vector<8x128xf32>
    %403 = vector.broadcast %401 : f32 to vector<8x128xf32>
    %404 = arith.mulf %403, %402 : vector<8x128xf32>
    %405 = arith.addf %399, %404 : vector<8x128xf32>
    %406 = arith.index_cast %arg0 : i32 to index
    %c25_31 = arith.constant 25 : index
    %407 = memref.load %arg2[%406, %c25_31] : memref<3x59xf32, #tpu.memory_space<smem>>
    %408 = vector.broadcast %407 : f32 to vector<8x128xf32>
    %409 = arith.mulf %408, %357 : vector<8x128xf32>
    %410 = arith.index_cast %arg0 : i32 to index
    %c26_32 = arith.constant 26 : index
    %411 = memref.load %arg2[%410, %c26_32] : memref<3x59xf32, #tpu.memory_space<smem>>
    %412 = vector.broadcast %411 : f32 to vector<8x128xf32>
    %413 = arith.mulf %412, %381 : vector<8x128xf32>
    %414 = arith.addf %409, %413 : vector<8x128xf32>
    %415 = arith.index_cast %arg0 : i32 to index
    %c27_33 = arith.constant 27 : index
    %416 = memref.load %arg2[%415, %c27_33] : memref<3x59xf32, #tpu.memory_space<smem>>
    %417 = vector.broadcast %416 : f32 to vector<8x128xf32>
    %418 = arith.mulf %417, %405 : vector<8x128xf32>
    %419 = arith.addf %414, %418 : vector<8x128xf32>
    %420 = arith.index_cast %arg0 : i32 to index
    %c34_34 = arith.constant 34 : index
    %421 = memref.load %arg2[%420, %c34_34] : memref<3x59xf32, #tpu.memory_space<smem>>
    %422 = vector.broadcast %421 : f32 to vector<8x128xf32>
    %423 = arith.addf %419, %422 : vector<8x128xf32>
    %424 = arith.index_cast %arg0 : i32 to index
    %c37_35 = arith.constant 37 : index
    %425 = memref.load %arg2[%424, %c37_35] : memref<3x59xf32, #tpu.memory_space<smem>>
    %426 = math.tanh %423 : vector<8x128xf32>
    %427 = vector.broadcast %425 : f32 to vector<8x128xf32>
    %428 = arith.mulf %427, %426 : vector<8x128xf32>
    %429 = arith.addf %423, %428 : vector<8x128xf32>
    %430 = arith.index_cast %arg0 : i32 to index
    %c28_36 = arith.constant 28 : index
    %431 = memref.load %arg2[%430, %c28_36] : memref<3x59xf32, #tpu.memory_space<smem>>
    %432 = vector.broadcast %431 : f32 to vector<8x128xf32>
    %433 = arith.mulf %432, %357 : vector<8x128xf32>
    %434 = arith.index_cast %arg0 : i32 to index
    %c29_37 = arith.constant 29 : index
    %435 = memref.load %arg2[%434, %c29_37] : memref<3x59xf32, #tpu.memory_space<smem>>
    %436 = vector.broadcast %435 : f32 to vector<8x128xf32>
    %437 = arith.mulf %436, %381 : vector<8x128xf32>
    %438 = arith.addf %433, %437 : vector<8x128xf32>
    %439 = arith.index_cast %arg0 : i32 to index
    %c30_38 = arith.constant 30 : index
    %440 = memref.load %arg2[%439, %c30_38] : memref<3x59xf32, #tpu.memory_space<smem>>
    %441 = vector.broadcast %440 : f32 to vector<8x128xf32>
    %442 = arith.mulf %441, %405 : vector<8x128xf32>
    %443 = arith.addf %438, %442 : vector<8x128xf32>
    %444 = arith.index_cast %arg0 : i32 to index
    %c35_39 = arith.constant 35 : index
    %445 = memref.load %arg2[%444, %c35_39] : memref<3x59xf32, #tpu.memory_space<smem>>
    %446 = vector.broadcast %445 : f32 to vector<8x128xf32>
    %447 = arith.addf %443, %446 : vector<8x128xf32>
    %448 = arith.index_cast %arg0 : i32 to index
    %c38_40 = arith.constant 38 : index
    %449 = memref.load %arg2[%448, %c38_40] : memref<3x59xf32, #tpu.memory_space<smem>>
    %450 = math.tanh %447 : vector<8x128xf32>
    %451 = vector.broadcast %449 : f32 to vector<8x128xf32>
    %452 = arith.mulf %451, %450 : vector<8x128xf32>
    %453 = arith.addf %447, %452 : vector<8x128xf32>
    %454 = arith.index_cast %arg0 : i32 to index
    %c31_41 = arith.constant 31 : index
    %455 = memref.load %arg2[%454, %c31_41] : memref<3x59xf32, #tpu.memory_space<smem>>
    %456 = vector.broadcast %455 : f32 to vector<8x128xf32>
    %457 = arith.mulf %456, %357 : vector<8x128xf32>
    %458 = arith.index_cast %arg0 : i32 to index
    %c32_42 = arith.constant 32 : index
    %459 = memref.load %arg2[%458, %c32_42] : memref<3x59xf32, #tpu.memory_space<smem>>
    %460 = vector.broadcast %459 : f32 to vector<8x128xf32>
    %461 = arith.mulf %460, %381 : vector<8x128xf32>
    %462 = arith.addf %457, %461 : vector<8x128xf32>
    %463 = arith.index_cast %arg0 : i32 to index
    %c33_43 = arith.constant 33 : index
    %464 = memref.load %arg2[%463, %c33_43] : memref<3x59xf32, #tpu.memory_space<smem>>
    %465 = vector.broadcast %464 : f32 to vector<8x128xf32>
    %466 = arith.mulf %465, %405 : vector<8x128xf32>
    %467 = arith.addf %462, %466 : vector<8x128xf32>
    %468 = arith.index_cast %arg0 : i32 to index
    %c36_44 = arith.constant 36 : index
    %469 = memref.load %arg2[%468, %c36_44] : memref<3x59xf32, #tpu.memory_space<smem>>
    %470 = vector.broadcast %469 : f32 to vector<8x128xf32>
    %471 = arith.addf %467, %470 : vector<8x128xf32>
    %472 = arith.index_cast %arg0 : i32 to index
    %c39_45 = arith.constant 39 : index
    %473 = memref.load %arg2[%472, %c39_45] : memref<3x59xf32, #tpu.memory_space<smem>>
    %474 = math.tanh %471 : vector<8x128xf32>
    %475 = vector.broadcast %473 : f32 to vector<8x128xf32>
    %476 = arith.mulf %475, %474 : vector<8x128xf32>
    %477 = arith.addf %471, %476 : vector<8x128xf32>
    %478 = arith.index_cast %arg0 : i32 to index
    %c40_46 = arith.constant 40 : index
    %479 = memref.load %arg2[%478, %c40_46] : memref<3x59xf32, #tpu.memory_space<smem>>
    %480 = vector.broadcast %479 : f32 to vector<8x128xf32>
    %481 = arith.mulf %480, %429 : vector<8x128xf32>
    %482 = arith.index_cast %arg0 : i32 to index
    %c41_47 = arith.constant 41 : index
    %483 = memref.load %arg2[%482, %c41_47] : memref<3x59xf32, #tpu.memory_space<smem>>
    %484 = vector.broadcast %483 : f32 to vector<8x128xf32>
    %485 = arith.mulf %484, %453 : vector<8x128xf32>
    %486 = arith.addf %481, %485 : vector<8x128xf32>
    %487 = arith.index_cast %arg0 : i32 to index
    %c42_48 = arith.constant 42 : index
    %488 = memref.load %arg2[%487, %c42_48] : memref<3x59xf32, #tpu.memory_space<smem>>
    %489 = vector.broadcast %488 : f32 to vector<8x128xf32>
    %490 = arith.mulf %489, %477 : vector<8x128xf32>
    %491 = arith.addf %486, %490 : vector<8x128xf32>
    %492 = arith.index_cast %arg0 : i32 to index
    %c49_49 = arith.constant 49 : index
    %493 = memref.load %arg2[%492, %c49_49] : memref<3x59xf32, #tpu.memory_space<smem>>
    %494 = vector.broadcast %493 : f32 to vector<8x128xf32>
    %495 = arith.addf %491, %494 : vector<8x128xf32>
    %496 = arith.index_cast %arg0 : i32 to index
    %c52_50 = arith.constant 52 : index
    %497 = memref.load %arg2[%496, %c52_50] : memref<3x59xf32, #tpu.memory_space<smem>>
    %498 = math.tanh %495 : vector<8x128xf32>
    %499 = vector.broadcast %497 : f32 to vector<8x128xf32>
    %500 = arith.mulf %499, %498 : vector<8x128xf32>
    %501 = arith.addf %495, %500 : vector<8x128xf32>
    %502 = arith.index_cast %arg0 : i32 to index
    %c43_51 = arith.constant 43 : index
    %503 = memref.load %arg2[%502, %c43_51] : memref<3x59xf32, #tpu.memory_space<smem>>
    %504 = vector.broadcast %503 : f32 to vector<8x128xf32>
    %505 = arith.mulf %504, %429 : vector<8x128xf32>
    %506 = arith.index_cast %arg0 : i32 to index
    %c44_52 = arith.constant 44 : index
    %507 = memref.load %arg2[%506, %c44_52] : memref<3x59xf32, #tpu.memory_space<smem>>
    %508 = vector.broadcast %507 : f32 to vector<8x128xf32>
    %509 = arith.mulf %508, %453 : vector<8x128xf32>
    %510 = arith.addf %505, %509 : vector<8x128xf32>
    %511 = arith.index_cast %arg0 : i32 to index
    %c45_53 = arith.constant 45 : index
    %512 = memref.load %arg2[%511, %c45_53] : memref<3x59xf32, #tpu.memory_space<smem>>
    %513 = vector.broadcast %512 : f32 to vector<8x128xf32>
    %514 = arith.mulf %513, %477 : vector<8x128xf32>
    %515 = arith.addf %510, %514 : vector<8x128xf32>
    %516 = arith.index_cast %arg0 : i32 to index
    %c50_54 = arith.constant 50 : index
    %517 = memref.load %arg2[%516, %c50_54] : memref<3x59xf32, #tpu.memory_space<smem>>
    %518 = vector.broadcast %517 : f32 to vector<8x128xf32>
    %519 = arith.addf %515, %518 : vector<8x128xf32>
    %520 = arith.index_cast %arg0 : i32 to index
    %c53_55 = arith.constant 53 : index
    %521 = memref.load %arg2[%520, %c53_55] : memref<3x59xf32, #tpu.memory_space<smem>>
    %522 = math.tanh %519 : vector<8x128xf32>
    %523 = vector.broadcast %521 : f32 to vector<8x128xf32>
    %524 = arith.mulf %523, %522 : vector<8x128xf32>
    %525 = arith.addf %519, %524 : vector<8x128xf32>
    %526 = arith.index_cast %arg0 : i32 to index
    %c46_56 = arith.constant 46 : index
    %527 = memref.load %arg2[%526, %c46_56] : memref<3x59xf32, #tpu.memory_space<smem>>
    %528 = vector.broadcast %527 : f32 to vector<8x128xf32>
    %529 = arith.mulf %528, %429 : vector<8x128xf32>
    %530 = arith.index_cast %arg0 : i32 to index
    %c47_57 = arith.constant 47 : index
    %531 = memref.load %arg2[%530, %c47_57] : memref<3x59xf32, #tpu.memory_space<smem>>
    %532 = vector.broadcast %531 : f32 to vector<8x128xf32>
    %533 = arith.mulf %532, %453 : vector<8x128xf32>
    %534 = arith.addf %529, %533 : vector<8x128xf32>
    %535 = arith.index_cast %arg0 : i32 to index
    %c48_58 = arith.constant 48 : index
    %536 = memref.load %arg2[%535, %c48_58] : memref<3x59xf32, #tpu.memory_space<smem>>
    %537 = vector.broadcast %536 : f32 to vector<8x128xf32>
    %538 = arith.mulf %537, %477 : vector<8x128xf32>
    %539 = arith.addf %534, %538 : vector<8x128xf32>
    %540 = arith.index_cast %arg0 : i32 to index
    %c51_59 = arith.constant 51 : index
    %541 = memref.load %arg2[%540, %c51_59] : memref<3x59xf32, #tpu.memory_space<smem>>
    %542 = vector.broadcast %541 : f32 to vector<8x128xf32>
    %543 = arith.addf %539, %542 : vector<8x128xf32>
    %544 = arith.index_cast %arg0 : i32 to index
    %c54_60 = arith.constant 54 : index
    %545 = memref.load %arg2[%544, %c54_60] : memref<3x59xf32, #tpu.memory_space<smem>>
    %546 = math.tanh %543 : vector<8x128xf32>
    %547 = vector.broadcast %545 : f32 to vector<8x128xf32>
    %548 = arith.mulf %547, %546 : vector<8x128xf32>
    %549 = arith.addf %543, %548 : vector<8x128xf32>
    %550 = arith.index_cast %arg0 : i32 to index
    %c55_61 = arith.constant 55 : index
    %551 = memref.load %arg2[%550, %c55_61] : memref<3x59xf32, #tpu.memory_space<smem>>
    %552 = vector.broadcast %551 : f32 to vector<8x128xf32>
    %553 = arith.mulf %552, %501 : vector<8x128xf32>
    %554 = arith.index_cast %arg0 : i32 to index
    %c56_62 = arith.constant 56 : index
    %555 = memref.load %arg2[%554, %c56_62] : memref<3x59xf32, #tpu.memory_space<smem>>
    %556 = vector.broadcast %555 : f32 to vector<8x128xf32>
    %557 = arith.mulf %556, %525 : vector<8x128xf32>
    %558 = arith.addf %553, %557 : vector<8x128xf32>
    %559 = arith.index_cast %arg0 : i32 to index
    %c57_63 = arith.constant 57 : index
    %560 = memref.load %arg2[%559, %c57_63] : memref<3x59xf32, #tpu.memory_space<smem>>
    %561 = vector.broadcast %560 : f32 to vector<8x128xf32>
    %562 = arith.mulf %561, %549 : vector<8x128xf32>
    %563 = arith.addf %558, %562 : vector<8x128xf32>
    %564 = arith.index_cast %arg0 : i32 to index
    %c58_64 = arith.constant 58 : index
    %565 = memref.load %arg2[%564, %c58_64] : memref<3x59xf32, #tpu.memory_space<smem>>
    %566 = vector.broadcast %565 : f32 to vector<8x128xf32>
    %567 = arith.addf %563, %566 : vector<8x128xf32>
    %568 = arith.addf %289, %567 : vector<8x128xf32>
    %cst_65 = arith.constant 0.000000e+00 : f32
    %569 = vector.broadcast %cst_65 : f32 to vector<8x128xf32>
    %570 = arith.cmpf ogt, %568, %569 : vector<8x128xf32>
    %cst_66 = arith.constant 0.000000e+00 : f32
    %571 = vector.broadcast %cst_66 : f32 to vector<8x128xf32>
    %572 = arith.cmpf olt, %568, %571 : vector<8x128xf32>
    %cst_67 = arith.constant 1.000000e+00 : f32
    %cst_68 = arith.constant 0.000000e+00 : f32
    %573 = vector.broadcast %cst_67 : f32 to vector<8x128xf32>
    %574 = vector.broadcast %cst_68 : f32 to vector<8x128xf32>
    %575 = arith.select %572, %573, %574 : vector<8x128xi1>, vector<8x128xf32>
    %cst_69 = arith.constant -1.000000e+00 : f32
    %576 = vector.broadcast %cst_69 : f32 to vector<8x128xf32>
    %577 = arith.select %570, %576, %575 : vector<8x128xi1>, vector<8x128xf32>
    %578 = arith.mulf %577, %567 : vector<8x128xf32>
    %cst_70 = arith.constant 0.000000e+00 : f32
    %579 = vector.broadcast %cst_70 : f32 to vector<8x128xf32>
    %580 = arith.subf %579, %578 : vector<8x128xf32>
    %581 = math.exp %580 : vector<8x128xf32>
    %cst_71 = arith.constant 1.000000e+00 : f32
    %582 = vector.broadcast %cst_71 : f32 to vector<8x128xf32>
    %583 = arith.addf %582, %581 : vector<8x128xf32>
    %cst_72 = arith.constant 1.000000e+00 : f32
    %584 = vector.broadcast %cst_72 : f32 to vector<8x128xf32>
    %585 = arith.divf %584, %583 : vector<8x128xf32>
    %586 = arith.mulf %577, %289 : vector<8x128xf32>
    %cst_73 = arith.constant 0.000000e+00 : f32
    %587 = vector.broadcast %cst_73 : f32 to vector<8x128xf32>
    %588 = arith.subf %587, %586 : vector<8x128xf32>
    %589 = math.exp %588 : vector<8x128xf32>
    %cst_74 = arith.constant 1.000000e+00 : f32
    %590 = vector.broadcast %cst_74 : f32 to vector<8x128xf32>
    %591 = arith.addf %590, %589 : vector<8x128xf32>
    %cst_75 = arith.constant 1.000000e+00 : f32
    %592 = vector.broadcast %cst_75 : f32 to vector<8x128xf32>
    %593 = arith.divf %592, %591 : vector<8x128xf32>
    %594 = arith.subf %585, %593 : vector<8x128xf32>
    %595 = math.absf %594 : vector<8x128xf32>
    %cst_76 = arith.constant 9.99999971E-10 : f32
    %596 = vector.broadcast %cst_76 : f32 to vector<8x128xf32>
    %597 = arith.maximumf %595, %596 : vector<8x128xf32>
    %598 = math.log %597 : vector<8x128xf32>
    %cst_77 = arith.constant 2.000000e+00 : f32
    %599 = math.log %cst_77 : f32
    %600 = vector.broadcast %599 : f32 to vector<8x128xf32>
    %601 = arith.divf %598, %600 : vector<8x128xf32>
    %cst_78 = arith.constant 0.000000e+00 : f32
    %602 = vector.broadcast %cst_78 : f32 to vector<8x128xf32>
    %603 = arith.subf %602, %601 : vector<8x128xf32>
    %c0_79 = arith.constant 0 : index
    %c0_80 = arith.constant 0 : index
    %c0_81 = arith.constant 0 : index
    %604 = vector.load %arg5[%c0_79, %c0_80, %c0_81] : memref<1x8x128xf32, #tpu.memory_space<vmem>>, vector<1x8x128xf32>
    %605 = vector.shape_cast %604 : vector<1x8x128xf32> to vector<8x128xf32>
    %606 = vector.shape_cast %603 : vector<8x128xf32> to vector<1x8x128xf32>
    tpu.vector_store %arg5[%c0_79, %c0_80, %c0_81], %606 {strides = array<i32>} : memref<1x8x128xf32, #tpu.memory_space<vmem>>, vector<1x8x128xf32>,
    return
  }
  func.func @transform_0(%arg0: i32, %arg1: i32) -> (i32, i32) {
    %c0_i32 = arith.constant 0 : i32
    %c0_i32_0 = arith.constant 0 : i32
    %c0_i32_1 = arith.constant 0 : i32
    return %c0_i32, %c0_i32_0 : i32, i32
  }
  func.func @transform_1(%arg0: i32, %arg1: i32) -> (i32, i32, i32) {
    %c0_i32 = arith.constant 0 : i32
    %c0_i32_0 = arith.constant 0 : i32
    return %arg0, %arg1, %c0_i32 : i32, i32, i32
  }
  func.func @transform_2(%arg0: i32, %arg1: i32) -> (i32, i32, i32) {
    %c0_i32 = arith.constant 0 : i32
    %c0_i32_0 = arith.constant 0 : i32
    return %arg0, %arg1, %c0_i32 : i32, i32, i32
  }
  func.func @transform_3(%arg0: i32, %arg1: i32) -> (i32, i32, i32) {
    %c0_i32 = arith.constant 0 : i32
    %c0_i32_0 = arith.constant 0 : i32
    return %arg0, %arg1, %c0_i32 : i32, i32, i32
  }
}

module attributes {stable_mosaic.version = 11 : i64} {
  func.func @kernel(%arg0: i32, %arg1: i32, %arg2: i32, %arg3: memref<256x128xbf16, #tpu.memory_space<vmem>>, %arg4: memref<128x256xbf16, #tpu.memory_space<vmem>>, %arg5: memref<1x256xf32, #tpu.memory_space<vmem>>, %arg6: memref<256x256xf32, #tpu.memory_space<vmem>>, %arg7: memref<256x256xf32, #tpu.memory_space<vmem>>) attributes {dimension_semantics = [#tpu.dimension_semantics<parallel>, #tpu.dimension_semantics<parallel>, #tpu.dimension_semantics<arbitrary>], iteration_bounds = array<i64: 2, 1, 1>, scalar_prefetch = 0 : i64, scratch_operands = 1 : i64, tpu.core_type = #tpu.core_type<tc>, window_params = [{transform_indices = @transform_0, window_bounds = array<i64: 256, 128>}, {transform_indices = @transform_1, window_bounds = array<i64: 128, 256>}, {transform_indices = @transform_2, window_bounds = array<i64: 1, 256>}, {transform_indices = @transform_3, window_bounds = array<i64: 256, 256>}]} {
    %c0_i32 = arith.constant 0 : i32
    %0 = arith.cmpi eq, %arg2, %c0_i32 : i32
    %1 = arith.extui %0 : i1 to i32
    %c0_i32_0 = arith.constant 0 : i32
    %2 = arith.cmpi ne, %1, %c0_i32_0 : i32
    scf.if %2 {
      %cst_10 = arith.constant 0.000000e+00 : f32
      %12 = vector.broadcast %cst_10 : f32 to vector<256x256xf32>
      %c0_11 = arith.constant 0 : index
      %c0_12 = arith.constant 0 : index
      %13 = vector.load %arg7[%c0_11, %c0_12] : memref<256x256xf32, #tpu.memory_space<vmem>>, vector<256x256xf32>
      tpu.vector_store %arg7[%c0_11, %c0_12], %12 {strides = array<i32>} : memref<256x256xf32, #tpu.memory_space<vmem>>, vector<256x256xf32>,
    } else {
    }
    %c0 = arith.constant 0 : index
    %c0_1 = arith.constant 0 : index
    %3 = vector.load %arg7[%c0, %c0_1] : memref<256x256xf32, #tpu.memory_space<vmem>>, vector<256x256xf32>
    %c0_2 = arith.constant 0 : index
    %c0_3 = arith.constant 0 : index
    %4 = vector.load %arg3[%c0_2, %c0_3] : memref<256x128xbf16, #tpu.memory_space<vmem>>, vector<256x128xbf16>
    %c0_4 = arith.constant 0 : index
    %c0_5 = arith.constant 0 : index
    %5 = vector.load %arg4[%c0_4, %c0_5] : memref<128x256xbf16, #tpu.memory_space<vmem>>, vector<128x256xbf16>
    %cst = arith.constant dense<0.000000e+00> : vector<256x256xf32>
    %6 = tpu.matmul %4, %5, %cst {dimension_numbers = #tpu.dot_dimension_numbers<[1], [0], [0], [1], [0, 0, 1, 1], [], []>} : vector<256x128xbf16>, vector<128x256xbf16>, vector<256x256xf32> -> vector<256x256xf32>
    %7 = arith.addf %3, %6 : vector<256x256xf32>
    %c0_6 = arith.constant 0 : index
    %c0_7 = arith.constant 0 : index
    %8 = vector.load %arg7[%c0_6, %c0_7] : memref<256x256xf32, #tpu.memory_space<vmem>>, vector<256x256xf32>
    tpu.vector_store %arg7[%c0_6, %c0_7], %7 {strides = array<i32>} : memref<256x256xf32, #tpu.memory_space<vmem>>, vector<256x256xf32>,
    %c0_i32_8 = arith.constant 0 : i32
    %9 = arith.cmpi eq, %arg2, %c0_i32_8 : i32
    %10 = arith.extui %9 : i1 to i32
    %c0_i32_9 = arith.constant 0 : i32
    %11 = arith.cmpi ne, %10, %c0_i32_9 : i32
    scf.if %11 {
      %c0_10 = arith.constant 0 : index
      %c0_11 = arith.constant 0 : index
      %12 = vector.load %arg7[%c0_10, %c0_11] : memref<256x256xf32, #tpu.memory_space<vmem>>, vector<256x256xf32>
      %c0_12 = arith.constant 0 : index
      %c0_13 = arith.constant 0 : index
      %13 = vector.load %arg5[%c0_12, %c0_13] : memref<1x256xf32, #tpu.memory_space<vmem>>, vector<1x256xf32>
      %14 = vector.broadcast %13 : vector<1x256xf32> to vector<256x256xf32>
      %15 = arith.addf %12, %14 : vector<256x256xf32>
      %cst_14 = arith.constant 0.000000e+00 : f32
      %16 = vector.broadcast %cst_14 : f32 to vector<256x256xf32>
      %17 = arith.cmpf oge, %15, %16 : vector<256x256xf32>
      %cst_15 = arith.constant 0.00999999977 : f32
      %18 = vector.broadcast %cst_15 : f32 to vector<256x256xf32>
      %19 = arith.mulf %18, %15 : vector<256x256xf32>
      %20 = arith.select %17, %15, %19 : vector<256x256xi1>, vector<256x256xf32>
      %c0_16 = arith.constant 0 : index
      %c0_17 = arith.constant 0 : index
      %21 = vector.load %arg6[%c0_16, %c0_17] : memref<256x256xf32, #tpu.memory_space<vmem>>, vector<256x256xf32>
      tpu.vector_store %arg6[%c0_16, %c0_17], %20 {strides = array<i32>} : memref<256x256xf32, #tpu.memory_space<vmem>>, vector<256x256xf32>,
    } else {
    }
    return
  }
  func.func @transform_0(%arg0: i32, %arg1: i32, %arg2: i32) -> (i32, i32) {
    %c0_i32 = arith.constant 0 : i32
    return %arg0, %arg2 : i32, i32
  }
  func.func @transform_1(%arg0: i32, %arg1: i32, %arg2: i32) -> (i32, i32) {
    %c0_i32 = arith.constant 0 : i32
    return %arg2, %arg1 : i32, i32
  }
  func.func @transform_2(%arg0: i32, %arg1: i32, %arg2: i32) -> (i32, i32) {
    %c0_i32 = arith.constant 0 : i32
    %c0_i32_0 = arith.constant 0 : i32
    return %c0_i32, %arg1 : i32, i32
  }
  func.func @transform_3(%arg0: i32, %arg1: i32, %arg2: i32) -> (i32, i32) {
    %c0_i32 = arith.constant 0 : i32
    return %arg0, %arg1 : i32, i32
  }
}

module attributes {stable_mosaic.version = 11 : i64} {
  func.func @kernel(%arg0: i32, %arg1: i32, %arg2: i32, %arg3: memref<256x256xbf16, #tpu.memory_space<vmem>>, %arg4: memref<256x256xbf16, #tpu.memory_space<vmem>>, %arg5: memref<1x256xf32, #tpu.memory_space<vmem>>, %arg6: memref<256x256xf32, #tpu.memory_space<vmem>>, %arg7: memref<256x256xf32, #tpu.memory_space<vmem>>) attributes {dimension_semantics = [#tpu.dimension_semantics<parallel>, #tpu.dimension_semantics<parallel>, #tpu.dimension_semantics<arbitrary>], iteration_bounds = array<i64: 2, 1, 9>, scalar_prefetch = 0 : i64, scratch_operands = 1 : i64, tpu.core_type = #tpu.core_type<tc>, window_params = [{transform_indices = @transform_0, window_bounds = array<i64: 256, 256>}, {transform_indices = @transform_1, window_bounds = array<i64: 256, 256>}, {transform_indices = @transform_2, window_bounds = array<i64: 1, 256>}, {transform_indices = @transform_3, window_bounds = array<i64: 256, 256>}]} {
    %c0_i32 = arith.constant 0 : i32
    %0 = arith.cmpi eq, %arg2, %c0_i32 : i32
    %1 = arith.extui %0 : i1 to i32
    %c0_i32_0 = arith.constant 0 : i32
    %2 = arith.cmpi ne, %1, %c0_i32_0 : i32
    scf.if %2 {
      %cst_9 = arith.constant 0.000000e+00 : f32
      %12 = vector.broadcast %cst_9 : f32 to vector<256x256xf32>
      %c0_10 = arith.constant 0 : index
      %c0_11 = arith.constant 0 : index
      %13 = vector.load %arg7[%c0_10, %c0_11] : memref<256x256xf32, #tpu.memory_space<vmem>>, vector<256x256xf32>
      tpu.vector_store %arg7[%c0_10, %c0_11], %12 {strides = array<i32>} : memref<256x256xf32, #tpu.memory_space<vmem>>, vector<256x256xf32>,
    } else {
    }
    %c0 = arith.constant 0 : index
    %c0_1 = arith.constant 0 : index
    %3 = vector.load %arg7[%c0, %c0_1] : memref<256x256xf32, #tpu.memory_space<vmem>>, vector<256x256xf32>
    %c0_2 = arith.constant 0 : index
    %c0_3 = arith.constant 0 : index
    %4 = vector.load %arg3[%c0_2, %c0_3] : memref<256x256xbf16, #tpu.memory_space<vmem>>, vector<256x256xbf16>
    %c0_4 = arith.constant 0 : index
    %c0_5 = arith.constant 0 : index
    %5 = vector.load %arg4[%c0_4, %c0_5] : memref<256x256xbf16, #tpu.memory_space<vmem>>, vector<256x256xbf16>
    %cst = arith.constant dense<0.000000e+00> : vector<256x256xf32>
    %6 = tpu.matmul %4, %5, %cst {dimension_numbers = #tpu.dot_dimension_numbers<[1], [0], [0], [1], [0, 0, 1, 1], [], []>} : vector<256x256xbf16>, vector<256x256xbf16>, vector<256x256xf32> -> vector<256x256xf32>
    %7 = arith.addf %3, %6 : vector<256x256xf32>
    %c0_6 = arith.constant 0 : index
    %c0_7 = arith.constant 0 : index
    %8 = vector.load %arg7[%c0_6, %c0_7] : memref<256x256xf32, #tpu.memory_space<vmem>>, vector<256x256xf32>
    tpu.vector_store %arg7[%c0_6, %c0_7], %7 {strides = array<i32>} : memref<256x256xf32, #tpu.memory_space<vmem>>, vector<256x256xf32>,
    %c8_i32 = arith.constant 8 : i32
    %9 = arith.cmpi eq, %arg2, %c8_i32 : i32
    %10 = arith.extui %9 : i1 to i32
    %c0_i32_8 = arith.constant 0 : i32
    %11 = arith.cmpi ne, %10, %c0_i32_8 : i32
    scf.if %11 {
      %c0_9 = arith.constant 0 : index
      %c0_10 = arith.constant 0 : index
      %12 = vector.load %arg7[%c0_9, %c0_10] : memref<256x256xf32, #tpu.memory_space<vmem>>, vector<256x256xf32>
      %c0_11 = arith.constant 0 : index
      %c0_12 = arith.constant 0 : index
      %13 = vector.load %arg5[%c0_11, %c0_12] : memref<1x256xf32, #tpu.memory_space<vmem>>, vector<1x256xf32>
      %14 = vector.broadcast %13 : vector<1x256xf32> to vector<256x256xf32>
      %15 = arith.addf %12, %14 : vector<256x256xf32>
      %cst_13 = arith.constant 0.000000e+00 : f32
      %16 = vector.broadcast %cst_13 : f32 to vector<256x256xf32>
      %17 = arith.cmpf oge, %15, %16 : vector<256x256xf32>
      %cst_14 = arith.constant 0.00999999977 : f32
      %18 = vector.broadcast %cst_14 : f32 to vector<256x256xf32>
      %19 = arith.mulf %18, %15 : vector<256x256xf32>
      %20 = arith.select %17, %15, %19 : vector<256x256xi1>, vector<256x256xf32>
      %c0_15 = arith.constant 0 : index
      %c0_16 = arith.constant 0 : index
      %21 = vector.load %arg6[%c0_15, %c0_16] : memref<256x256xf32, #tpu.memory_space<vmem>>, vector<256x256xf32>
      tpu.vector_store %arg6[%c0_15, %c0_16], %20 {strides = array<i32>} : memref<256x256xf32, #tpu.memory_space<vmem>>, vector<256x256xf32>,
    } else {
    }
    return
  }
  func.func @transform_0(%arg0: i32, %arg1: i32, %arg2: i32) -> (i32, i32) {
    %c0_i32 = arith.constant 0 : i32
    return %arg0, %arg2 : i32, i32
  }
  func.func @transform_1(%arg0: i32, %arg1: i32, %arg2: i32) -> (i32, i32) {
    %c0_i32 = arith.constant 0 : i32
    return %arg2, %arg1 : i32, i32
  }
  func.func @transform_2(%arg0: i32, %arg1: i32, %arg2: i32) -> (i32, i32) {
    %c0_i32 = arith.constant 0 : i32
    %c0_i32_0 = arith.constant 0 : i32
    return %c0_i32, %arg1 : i32, i32
  }
  func.func @transform_3(%arg0: i32, %arg1: i32, %arg2: i32) -> (i32, i32) {
    %c0_i32 = arith.constant 0 : i32
    return %arg0, %arg1 : i32, i32
  }
}

module attributes {stable_mosaic.version = 11 : i64} {
  func.func @kernel(%arg0: i32, %arg1: i32, %arg2: i32, %arg3: memref<256x256xbf16, #tpu.memory_space<vmem>>, %arg4: memref<256x128xbf16, #tpu.memory_space<vmem>>, %arg5: memref<1x128xf32, #tpu.memory_space<vmem>>, %arg6: memref<256x128xf32, #tpu.memory_space<vmem>>, %arg7: memref<256x128xf32, #tpu.memory_space<vmem>>) attributes {dimension_semantics = [#tpu.dimension_semantics<parallel>, #tpu.dimension_semantics<parallel>, #tpu.dimension_semantics<arbitrary>], iteration_bounds = array<i64: 2, 1, 1>, scalar_prefetch = 0 : i64, scratch_operands = 1 : i64, tpu.core_type = #tpu.core_type<tc>, window_params = [{transform_indices = @transform_0, window_bounds = array<i64: 256, 256>}, {transform_indices = @transform_1, window_bounds = array<i64: 256, 128>}, {transform_indices = @transform_2, window_bounds = array<i64: 1, 128>}, {transform_indices = @transform_3, window_bounds = array<i64: 256, 128>}]} {
    %c0_i32 = arith.constant 0 : i32
    %0 = arith.cmpi eq, %arg2, %c0_i32 : i32
    %1 = arith.extui %0 : i1 to i32
    %c0_i32_0 = arith.constant 0 : i32
    %2 = arith.cmpi ne, %1, %c0_i32_0 : i32
    scf.if %2 {
      %cst_10 = arith.constant 0.000000e+00 : f32
      %12 = vector.broadcast %cst_10 : f32 to vector<256x128xf32>
      %c0_11 = arith.constant 0 : index
      %c0_12 = arith.constant 0 : index
      %13 = vector.load %arg7[%c0_11, %c0_12] : memref<256x128xf32, #tpu.memory_space<vmem>>, vector<256x128xf32>
      tpu.vector_store %arg7[%c0_11, %c0_12], %12 {strides = array<i32>} : memref<256x128xf32, #tpu.memory_space<vmem>>, vector<256x128xf32>,
    } else {
    }
    %c0 = arith.constant 0 : index
    %c0_1 = arith.constant 0 : index
    %3 = vector.load %arg7[%c0, %c0_1] : memref<256x128xf32, #tpu.memory_space<vmem>>, vector<256x128xf32>
    %c0_2 = arith.constant 0 : index
    %c0_3 = arith.constant 0 : index
    %4 = vector.load %arg3[%c0_2, %c0_3] : memref<256x256xbf16, #tpu.memory_space<vmem>>, vector<256x256xbf16>
    %c0_4 = arith.constant 0 : index
    %c0_5 = arith.constant 0 : index
    %5 = vector.load %arg4[%c0_4, %c0_5] : memref<256x128xbf16, #tpu.memory_space<vmem>>, vector<256x128xbf16>
    %cst = arith.constant dense<0.000000e+00> : vector<256x128xf32>
    %6 = tpu.matmul %4, %5, %cst {dimension_numbers = #tpu.dot_dimension_numbers<[1], [0], [0], [1], [0, 0, 1, 1], [], []>} : vector<256x256xbf16>, vector<256x128xbf16>, vector<256x128xf32> -> vector<256x128xf32>
    %7 = arith.addf %3, %6 : vector<256x128xf32>
    %c0_6 = arith.constant 0 : index
    %c0_7 = arith.constant 0 : index
    %8 = vector.load %arg7[%c0_6, %c0_7] : memref<256x128xf32, #tpu.memory_space<vmem>>, vector<256x128xf32>
    tpu.vector_store %arg7[%c0_6, %c0_7], %7 {strides = array<i32>} : memref<256x128xf32, #tpu.memory_space<vmem>>, vector<256x128xf32>,
    %c0_i32_8 = arith.constant 0 : i32
    %9 = arith.cmpi eq, %arg2, %c0_i32_8 : i32
    %10 = arith.extui %9 : i1 to i32
    %c0_i32_9 = arith.constant 0 : i32
    %11 = arith.cmpi ne, %10, %c0_i32_9 : i32
    scf.if %11 {
      %c0_10 = arith.constant 0 : index
      %c0_11 = arith.constant 0 : index
      %12 = vector.load %arg7[%c0_10, %c0_11] : memref<256x128xf32, #tpu.memory_space<vmem>>, vector<256x128xf32>
      %c0_12 = arith.constant 0 : index
      %c0_13 = arith.constant 0 : index
      %13 = vector.load %arg5[%c0_12, %c0_13] : memref<1x128xf32, #tpu.memory_space<vmem>>, vector<1x128xf32>
      %14 = vector.broadcast %13 : vector<1x128xf32> to vector<256x128xf32>
      %15 = arith.addf %12, %14 : vector<256x128xf32>
      %c0_14 = arith.constant 0 : index
      %c0_15 = arith.constant 0 : index
      %16 = vector.load %arg6[%c0_14, %c0_15] : memref<256x128xf32, #tpu.memory_space<vmem>>, vector<256x128xf32>
      tpu.vector_store %arg6[%c0_14, %c0_15], %15 {strides = array<i32>} : memref<256x128xf32, #tpu.memory_space<vmem>>, vector<256x128xf32>,
    } else {
    }
    return
  }
  func.func @transform_0(%arg0: i32, %arg1: i32, %arg2: i32) -> (i32, i32) {
    %c0_i32 = arith.constant 0 : i32
    return %arg0, %arg2 : i32, i32
  }
  func.func @transform_1(%arg0: i32, %arg1: i32, %arg2: i32) -> (i32, i32) {
    %c0_i32 = arith.constant 0 : i32
    return %arg2, %arg1 : i32, i32
  }
  func.func @transform_2(%arg0: i32, %arg1: i32, %arg2: i32) -> (i32, i32) {
    %c0_i32 = arith.constant 0 : i32
    %c0_i32_0 = arith.constant 0 : i32
    return %c0_i32, %arg1 : i32, i32
  }
  func.func @transform_3(%arg0: i32, %arg1: i32, %arg2: i32) -> (i32, i32) {
    %c0_i32 = arith.constant 0 : i32
    return %arg0, %arg1 : i32, i32
  }
}

module attributes {stable_mosaic.version = 11 : i64} {
  func.func @_gauss_kernel(%arg0: i32, %arg1: memref<16x128xf32, #tpu.memory_space<vmem>>, %arg2: memref<16x128xf32, #tpu.memory_space<vmem>>, %arg3: memref<16x128xf32, #tpu.memory_space<vmem>>, %arg4: memref<16x128xf32, #tpu.memory_space<vmem>>, %arg5: memref<16x128xf32, #tpu.memory_space<vmem>>) attributes {dimension_semantics = [#tpu.dimension_semantics<parallel>], iteration_bounds = array<i64: 1>, scalar_prefetch = 0 : i64, scratch_operands = 0 : i64, tpu.core_type = #tpu.core_type<tc>, window_params = [{transform_indices = @transform_0, window_bounds = array<i64: 16, 128>}, {transform_indices = @transform_1, window_bounds = array<i64: 16, 128>}, {transform_indices = @transform_2, window_bounds = array<i64: 16, 128>}, {transform_indices = @transform_3, window_bounds = array<i64: 16, 128>}, {transform_indices = @transform_4, window_bounds = array<i64: 16, 128>}]} {
    %c0 = arith.constant 0 : index
    %c0_0 = arith.constant 0 : index
    %0 = vector.load %arg1[%c0, %c0_0] : memref<16x128xf32, #tpu.memory_space<vmem>>, vector<16x128xf32>
    %c0_1 = arith.constant 0 : index
    %c0_2 = arith.constant 0 : index
    %1 = vector.load %arg3[%c0_1, %c0_2] : memref<16x128xf32, #tpu.memory_space<vmem>>, vector<16x128xf32>
    %c0_3 = arith.constant 0 : index
    %c0_4 = arith.constant 0 : index
    %2 = vector.load %arg2[%c0_3, %c0_4] : memref<16x128xf32, #tpu.memory_space<vmem>>, vector<16x128xf32>
    %cst = arith.constant 1.100000e-01 : f32
    %3 = vector.broadcast %cst : f32 to vector<16x128xf32>
    %4 = arith.maximumf %2, %3 : vector<16x128xf32>
    %5 = arith.subf %0, %1 : vector<16x128xf32>
    %6 = math.roundeven %5 : vector<16x128xf32>
    %7 = arith.addf %6, %1 : vector<16x128xf32>
    %c0_5 = arith.constant 0 : index
    %c0_6 = arith.constant 0 : index
    %8 = vector.load %arg4[%c0_5, %c0_6] : memref<16x128xf32, #tpu.memory_space<vmem>>, vector<16x128xf32>
    tpu.vector_store %arg4[%c0_5, %c0_6], %7 {strides = array<i32>} : memref<16x128xf32, #tpu.memory_space<vmem>>, vector<16x128xf32>,
    %9 = math.absf %6 : vector<16x128xf32>
    %cst_7 = arith.constant 1.000000e+00 : f32
    %10 = vector.broadcast %cst_7 : f32 to vector<16x128xf32>
    %11 = arith.divf %10, %4 : vector<16x128xf32>
    %cst_8 = arith.constant 5.000000e-01 : f32
    %12 = vector.broadcast %cst_8 : f32 to vector<16x128xf32>
    %13 = arith.subf %12, %9 : vector<16x128xf32>
    %14 = arith.mulf %13, %11 : vector<16x128xf32>
    %cst_9 = arith.constant 0.000000e+00 : f32
    %15 = vector.broadcast %cst_9 : f32 to vector<16x128xf32>
    %16 = arith.subf %15, %14 : vector<16x128xf32>
    %cst_10 = arith.constant 0.707106769 : f32
    %17 = vector.broadcast %cst_10 : f32 to vector<16x128xf32>
    %18 = arith.mulf %16, %17 : vector<16x128xf32>
    %19 = math.absf %18 : vector<16x128xf32>
    %cst_11 = arith.constant 0.327591091 : f32
    %20 = vector.broadcast %cst_11 : f32 to vector<16x128xf32>
    %21 = arith.mulf %20, %19 : vector<16x128xf32>
    %cst_12 = arith.constant 1.000000e+00 : f32
    %22 = vector.broadcast %cst_12 : f32 to vector<16x128xf32>
    %23 = arith.addf %22, %21 : vector<16x128xf32>
    %cst_13 = arith.constant 1.000000e+00 : f32
    %24 = vector.broadcast %cst_13 : f32 to vector<16x128xf32>
    %25 = arith.divf %24, %23 : vector<16x128xf32>
    %cst_14 = arith.constant 1.06140542 : f32
    %26 = vector.broadcast %cst_14 : f32 to vector<16x128xf32>
    %27 = arith.mulf %26, %25 : vector<16x128xf32>
    %cst_15 = arith.constant 1.45315206 : f32
    %28 = vector.broadcast %cst_15 : f32 to vector<16x128xf32>
    %29 = arith.subf %27, %28 : vector<16x128xf32>
    %30 = arith.mulf %29, %25 : vector<16x128xf32>
    %cst_16 = arith.constant 1.42141378 : f32
    %31 = vector.broadcast %cst_16 : f32 to vector<16x128xf32>
    %32 = arith.addf %30, %31 : vector<16x128xf32>
    %33 = arith.mulf %32, %25 : vector<16x128xf32>
    %cst_17 = arith.constant 0.284496725 : f32
    %34 = vector.broadcast %cst_17 : f32 to vector<16x128xf32>
    %35 = arith.subf %33, %34 : vector<16x128xf32>
    %36 = arith.mulf %35, %25 : vector<16x128xf32>
    %cst_18 = arith.constant 0.254829586 : f32
    %37 = vector.broadcast %cst_18 : f32 to vector<16x128xf32>
    %38 = arith.addf %36, %37 : vector<16x128xf32>
    %39 = arith.mulf %38, %25 : vector<16x128xf32>
    %cst_19 = arith.constant 5.000000e-01 : f32
    %40 = vector.broadcast %cst_19 : f32 to vector<16x128xf32>
    %41 = arith.mulf %40, %39 : vector<16x128xf32>
    %cst_20 = arith.constant 0.000000e+00 : f32
    %42 = vector.broadcast %cst_20 : f32 to vector<16x128xf32>
    %43 = arith.subf %42, %19 : vector<16x128xf32>
    %44 = arith.mulf %43, %19 : vector<16x128xf32>
    %45 = math.exp %44 : vector<16x128xf32>
    %46 = arith.mulf %41, %45 : vector<16x128xf32>
    %cst_21 = arith.constant 0.000000e+00 : f32
    %47 = vector.broadcast %cst_21 : f32 to vector<16x128xf32>
    %48 = arith.cmpf oge, %18, %47 : vector<16x128xf32>
    %cst_22 = arith.constant 1.000000e+00 : f32
    %49 = vector.broadcast %cst_22 : f32 to vector<16x128xf32>
    %50 = arith.subf %49, %46 : vector<16x128xf32>
    %51 = arith.select %48, %46, %50 : vector<16x128xi1>, vector<16x128xf32>
    %cst_23 = arith.constant -5.000000e-01 : f32
    %52 = vector.broadcast %cst_23 : f32 to vector<16x128xf32>
    %53 = arith.subf %52, %9 : vector<16x128xf32>
    %54 = arith.mulf %53, %11 : vector<16x128xf32>
    %cst_24 = arith.constant 0.000000e+00 : f32
    %55 = vector.broadcast %cst_24 : f32 to vector<16x128xf32>
    %56 = arith.subf %55, %54 : vector<16x128xf32>
    %cst_25 = arith.constant 0.707106769 : f32
    %57 = vector.broadcast %cst_25 : f32 to vector<16x128xf32>
    %58 = arith.mulf %56, %57 : vector<16x128xf32>
    %59 = math.absf %58 : vector<16x128xf32>
    %cst_26 = arith.constant 0.327591091 : f32
    %60 = vector.broadcast %cst_26 : f32 to vector<16x128xf32>
    %61 = arith.mulf %60, %59 : vector<16x128xf32>
    %cst_27 = arith.constant 1.000000e+00 : f32
    %62 = vector.broadcast %cst_27 : f32 to vector<16x128xf32>
    %63 = arith.addf %62, %61 : vector<16x128xf32>
    %cst_28 = arith.constant 1.000000e+00 : f32
    %64 = vector.broadcast %cst_28 : f32 to vector<16x128xf32>
    %65 = arith.divf %64, %63 : vector<16x128xf32>
    %cst_29 = arith.constant 1.06140542 : f32
    %66 = vector.broadcast %cst_29 : f32 to vector<16x128xf32>
    %67 = arith.mulf %66, %65 : vector<16x128xf32>
    %cst_30 = arith.constant 1.45315206 : f32
    %68 = vector.broadcast %cst_30 : f32 to vector<16x128xf32>
    %69 = arith.subf %67, %68 : vector<16x128xf32>
    %70 = arith.mulf %69, %65 : vector<16x128xf32>
    %cst_31 = arith.constant 1.42141378 : f32
    %71 = vector.broadcast %cst_31 : f32 to vector<16x128xf32>
    %72 = arith.addf %70, %71 : vector<16x128xf32>
    %73 = arith.mulf %72, %65 : vector<16x128xf32>
    %cst_32 = arith.constant 0.284496725 : f32
    %74 = vector.broadcast %cst_32 : f32 to vector<16x128xf32>
    %75 = arith.subf %73, %74 : vector<16x128xf32>
    %76 = arith.mulf %75, %65 : vector<16x128xf32>
    %cst_33 = arith.constant 0.254829586 : f32
    %77 = vector.broadcast %cst_33 : f32 to vector<16x128xf32>
    %78 = arith.addf %76, %77 : vector<16x128xf32>
    %79 = arith.mulf %78, %65 : vector<16x128xf32>
    %cst_34 = arith.constant 5.000000e-01 : f32
    %80 = vector.broadcast %cst_34 : f32 to vector<16x128xf32>
    %81 = arith.mulf %80, %79 : vector<16x128xf32>
    %cst_35 = arith.constant 0.000000e+00 : f32
    %82 = vector.broadcast %cst_35 : f32 to vector<16x128xf32>
    %83 = arith.subf %82, %59 : vector<16x128xf32>
    %84 = arith.mulf %83, %59 : vector<16x128xf32>
    %85 = math.exp %84 : vector<16x128xf32>
    %86 = arith.mulf %81, %85 : vector<16x128xf32>
    %cst_36 = arith.constant 0.000000e+00 : f32
    %87 = vector.broadcast %cst_36 : f32 to vector<16x128xf32>
    %88 = arith.cmpf oge, %58, %87 : vector<16x128xf32>
    %cst_37 = arith.constant 1.000000e+00 : f32
    %89 = vector.broadcast %cst_37 : f32 to vector<16x128xf32>
    %90 = arith.subf %89, %86 : vector<16x128xf32>
    %91 = arith.select %88, %86, %90 : vector<16x128xi1>, vector<16x128xf32>
    %92 = arith.subf %51, %91 : vector<16x128xf32>
    %cst_38 = arith.constant 9.99999971E-10 : f32
    %93 = vector.broadcast %cst_38 : f32 to vector<16x128xf32>
    %94 = arith.maximumf %92, %93 : vector<16x128xf32>
    %95 = math.log %94 : vector<16x128xf32>
    %cst_39 = arith.constant 2.000000e+00 : f32
    %96 = math.log %cst_39 : f32
    %97 = vector.broadcast %96 : f32 to vector<16x128xf32>
    %98 = arith.divf %95, %97 : vector<16x128xf32>
    %cst_40 = arith.constant 0.000000e+00 : f32
    %99 = vector.broadcast %cst_40 : f32 to vector<16x128xf32>
    %100 = arith.subf %99, %98 : vector<16x128xf32>
    %c0_41 = arith.constant 0 : index
    %c0_42 = arith.constant 0 : index
    %101 = vector.load %arg5[%c0_41, %c0_42] : memref<16x128xf32, #tpu.memory_space<vmem>>, vector<16x128xf32>
    tpu.vector_store %arg5[%c0_41, %c0_42], %100 {strides = array<i32>} : memref<16x128xf32, #tpu.memory_space<vmem>>, vector<16x128xf32>,
    return
  }
  func.func @transform_0(%arg0: i32) -> (i32, i32) {
    %c0_i32 = arith.constant 0 : i32
    %c0_i32_0 = arith.constant 0 : i32
    return %arg0, %c0_i32 : i32, i32
  }
  func.func @transform_1(%arg0: i32) -> (i32, i32) {
    %c0_i32 = arith.constant 0 : i32
    %c0_i32_0 = arith.constant 0 : i32
    return %arg0, %c0_i32 : i32, i32
  }
  func.func @transform_2(%arg0: i32) -> (i32, i32) {
    %c0_i32 = arith.constant 0 : i32
    %c0_i32_0 = arith.constant 0 : i32
    return %arg0, %c0_i32 : i32, i32
  }
  func.func @transform_3(%arg0: i32) -> (i32, i32) {
    %c0_i32 = arith.constant 0 : i32
    %c0_i32_0 = arith.constant 0 : i32
    return %arg0, %c0_i32 : i32, i32
  }
  func.func @transform_4(%arg0: i32) -> (i32, i32) {
    %c0_i32 = arith.constant 0 : i32
    %c0_i32_0 = arith.constant 0 : i32
    return %arg0, %c0_i32 : i32, i32
  }
}

module attributes {stable_mosaic.version = 11 : i64} {
  func.func @_eb_kernel(%arg0: i32, %arg1: i32, %arg2: memref<1x59xf32, #tpu.memory_space<smem>>, %arg3: memref<1x8x128xf32, #tpu.memory_space<vmem>>, %arg4: memref<1x8x128xf32, #tpu.memory_space<vmem>>, %arg5: memref<1x8x128xf32, #tpu.memory_space<vmem>>) attributes {dimension_semantics = [#tpu.dimension_semantics<parallel>, #tpu.dimension_semantics<parallel>], iteration_bounds = array<i64: 1, 1>, scalar_prefetch = 0 : i64, scratch_operands = 0 : i64, tpu.core_type = #tpu.core_type<tc>, window_params = [{transform_indices = @transform_0, window_bounds = array<i64: 1, 59>}, {transform_indices = @transform_1, window_bounds = array<i64: 1, 8, 128>}, {transform_indices = @transform_2, window_bounds = array<i64: 1, 8, 128>}, {transform_indices = @transform_3, window_bounds = array<i64: 1, 8, 128>}]} {
    %c0 = arith.constant 0 : index
    %c0_0 = arith.constant 0 : index
    %c0_1 = arith.constant 0 : index
    %0 = vector.load %arg3[%c0, %c0_0, %c0_1] : memref<1x8x128xf32, #tpu.memory_space<vmem>>, vector<1x8x128xf32>
    %1 = vector.shape_cast %0 : vector<1x8x128xf32> to vector<8x128xf32>
    %2 = arith.index_cast %arg0 : i32 to index
    %c0_2 = arith.constant 0 : index
    %3 = memref.load %arg2[%2, %c0_2] : memref<1x59xf32, #tpu.memory_space<smem>>
    %4 = vector.broadcast %3 : f32 to vector<8x128xf32>
    %5 = arith.subf %1, %4 : vector<8x128xf32>
    %6 = math.roundeven %5 : vector<8x128xf32>
    %7 = vector.broadcast %3 : f32 to vector<8x128xf32>
    %8 = arith.addf %6, %7 : vector<8x128xf32>
    %c0_3 = arith.constant 0 : index
    %c0_4 = arith.constant 0 : index
    %c0_5 = arith.constant 0 : index
    %9 = vector.load %arg4[%c0_3, %c0_4, %c0_5] : memref<1x8x128xf32, #tpu.memory_space<vmem>>, vector<1x8x128xf32>
    %10 = vector.shape_cast %9 : vector<1x8x128xf32> to vector<8x128xf32>
    %11 = vector.shape_cast %8 : vector<8x128xf32> to vector<1x8x128xf32>
    tpu.vector_store %arg4[%c0_3, %c0_4, %c0_5], %11 {strides = array<i32>} : memref<1x8x128xf32, #tpu.memory_space<vmem>>, vector<1x8x128xf32>,
    %cst = arith.constant 5.000000e-01 : f32
    %12 = vector.broadcast %cst : f32 to vector<8x128xf32>
    %13 = arith.subf %8, %12 : vector<8x128xf32>
    %14 = arith.index_cast %arg0 : i32 to index
    %c1 = arith.constant 1 : index
    %15 = memref.load %arg2[%14, %c1] : memref<1x59xf32, #tpu.memory_space<smem>>
    %16 = vector.broadcast %15 : f32 to vector<8x128xf32>
    %17 = arith.mulf %16, %13 : vector<8x128xf32>
    %18 = arith.index_cast %arg0 : i32 to index
    %c4 = arith.constant 4 : index
    %19 = memref.load %arg2[%18, %c4] : memref<1x59xf32, #tpu.memory_space<smem>>
    %20 = vector.broadcast %19 : f32 to vector<8x128xf32>
    %21 = arith.addf %17, %20 : vector<8x128xf32>
    %22 = arith.index_cast %arg0 : i32 to index
    %c2 = arith.constant 2 : index
    %23 = memref.load %arg2[%22, %c2] : memref<1x59xf32, #tpu.memory_space<smem>>
    %24 = vector.broadcast %23 : f32 to vector<8x128xf32>
    %25 = arith.mulf %24, %13 : vector<8x128xf32>
    %26 = arith.index_cast %arg0 : i32 to index
    %c5 = arith.constant 5 : index
    %27 = memref.load %arg2[%26, %c5] : memref<1x59xf32, #tpu.memory_space<smem>>
    %28 = vector.broadcast %27 : f32 to vector<8x128xf32>
    %29 = arith.addf %25, %28 : vector<8x128xf32>
    %30 = arith.index_cast %arg0 : i32 to index
    %c3 = arith.constant 3 : index
    %31 = memref.load %arg2[%30, %c3] : memref<1x59xf32, #tpu.memory_space<smem>>
    %32 = vector.broadcast %31 : f32 to vector<8x128xf32>
    %33 = arith.mulf %32, %13 : vector<8x128xf32>
    %34 = arith.index_cast %arg0 : i32 to index
    %c6 = arith.constant 6 : index
    %35 = memref.load %arg2[%34, %c6] : memref<1x59xf32, #tpu.memory_space<smem>>
    %36 = vector.broadcast %35 : f32 to vector<8x128xf32>
    %37 = arith.addf %33, %36 : vector<8x128xf32>
    %38 = arith.index_cast %arg0 : i32 to index
    %c7 = arith.constant 7 : index
    %39 = memref.load %arg2[%38, %c7] : memref<1x59xf32, #tpu.memory_space<smem>>
    %40 = math.tanh %21 : vector<8x128xf32>
    %41 = vector.broadcast %39 : f32 to vector<8x128xf32>
    %42 = arith.mulf %41, %40 : vector<8x128xf32>
    %43 = arith.addf %21, %42 : vector<8x128xf32>
    %44 = arith.index_cast %arg0 : i32 to index
    %c8 = arith.constant 8 : index
    %45 = memref.load %arg2[%44, %c8] : memref<1x59xf32, #tpu.memory_space<smem>>
    %46 = math.tanh %29 : vector<8x128xf32>
    %47 = vector.broadcast %45 : f32 to vector<8x128xf32>
    %48 = arith.mulf %47, %46 : vector<8x128xf32>
    %49 = arith.addf %29, %48 : vector<8x128xf32>
    %50 = arith.index_cast %arg0 : i32 to index
    %c9 = arith.constant 9 : index
    %51 = memref.load %arg2[%50, %c9] : memref<1x59xf32, #tpu.memory_space<smem>>
    %52 = math.tanh %37 : vector<8x128xf32>
    %53 = vector.broadcast %51 : f32 to vector<8x128xf32>
    %54 = arith.mulf %53, %52 : vector<8x128xf32>
    %55 = arith.addf %37, %54 : vector<8x128xf32>
    %56 = arith.index_cast %arg0 : i32 to index
    %c10 = arith.constant 10 : index
    %57 = memref.load %arg2[%56, %c10] : memref<1x59xf32, #tpu.memory_space<smem>>
    %58 = vector.broadcast %57 : f32 to vector<8x128xf32>
    %59 = arith.mulf %58, %43 : vector<8x128xf32>
    %60 = arith.index_cast %arg0 : i32 to index
    %c11 = arith.constant 11 : index
    %61 = memref.load %arg2[%60, %c11] : memref<1x59xf32, #tpu.memory_space<smem>>
    %62 = vector.broadcast %61 : f32 to vector<8x128xf32>
    %63 = arith.mulf %62, %49 : vector<8x128xf32>
    %64 = arith.addf %59, %63 : vector<8x128xf32>
    %65 = arith.index_cast %arg0 : i32 to index
    %c12 = arith.constant 12 : index
    %66 = memref.load %arg2[%65, %c12] : memref<1x59xf32, #tpu.memory_space<smem>>
    %67 = vector.broadcast %66 : f32 to vector<8x128xf32>
    %68 = arith.mulf %67, %55 : vector<8x128xf32>
    %69 = arith.addf %64, %68 : vector<8x128xf32>
    %70 = arith.index_cast %arg0 : i32 to index
    %c19 = arith.constant 19 : index
    %71 = memref.load %arg2[%70, %c19] : memref<1x59xf32, #tpu.memory_space<smem>>
    %72 = vector.broadcast %71 : f32 to vector<8x128xf32>
    %73 = arith.addf %69, %72 : vector<8x128xf32>
    %74 = arith.index_cast %arg0 : i32 to index
    %c22 = arith.constant 22 : index
    %75 = memref.load %arg2[%74, %c22] : memref<1x59xf32, #tpu.memory_space<smem>>
    %76 = math.tanh %73 : vector<8x128xf32>
    %77 = vector.broadcast %75 : f32 to vector<8x128xf32>
    %78 = arith.mulf %77, %76 : vector<8x128xf32>
    %79 = arith.addf %73, %78 : vector<8x128xf32>
    %80 = arith.index_cast %arg0 : i32 to index
    %c13 = arith.constant 13 : index
    %81 = memref.load %arg2[%80, %c13] : memref<1x59xf32, #tpu.memory_space<smem>>
    %82 = vector.broadcast %81 : f32 to vector<8x128xf32>
    %83 = arith.mulf %82, %43 : vector<8x128xf32>
    %84 = arith.index_cast %arg0 : i32 to index
    %c14 = arith.constant 14 : index
    %85 = memref.load %arg2[%84, %c14] : memref<1x59xf32, #tpu.memory_space<smem>>
    %86 = vector.broadcast %85 : f32 to vector<8x128xf32>
    %87 = arith.mulf %86, %49 : vector<8x128xf32>
    %88 = arith.addf %83, %87 : vector<8x128xf32>
    %89 = arith.index_cast %arg0 : i32 to index
    %c15 = arith.constant 15 : index
    %90 = memref.load %arg2[%89, %c15] : memref<1x59xf32, #tpu.memory_space<smem>>
    %91 = vector.broadcast %90 : f32 to vector<8x128xf32>
    %92 = arith.mulf %91, %55 : vector<8x128xf32>
    %93 = arith.addf %88, %92 : vector<8x128xf32>
    %94 = arith.index_cast %arg0 : i32 to index
    %c20 = arith.constant 20 : index
    %95 = memref.load %arg2[%94, %c20] : memref<1x59xf32, #tpu.memory_space<smem>>
    %96 = vector.broadcast %95 : f32 to vector<8x128xf32>
    %97 = arith.addf %93, %96 : vector<8x128xf32>
    %98 = arith.index_cast %arg0 : i32 to index
    %c23 = arith.constant 23 : index
    %99 = memref.load %arg2[%98, %c23] : memref<1x59xf32, #tpu.memory_space<smem>>
    %100 = math.tanh %97 : vector<8x128xf32>
    %101 = vector.broadcast %99 : f32 to vector<8x128xf32>
    %102 = arith.mulf %101, %100 : vector<8x128xf32>
    %103 = arith.addf %97, %102 : vector<8x128xf32>
    %104 = arith.index_cast %arg0 : i32 to index
    %c16 = arith.constant 16 : index
    %105 = memref.load %arg2[%104, %c16] : memref<1x59xf32, #tpu.memory_space<smem>>
    %106 = vector.broadcast %105 : f32 to vector<8x128xf32>
    %107 = arith.mulf %106, %43 : vector<8x128xf32>
    %108 = arith.index_cast %arg0 : i32 to index
    %c17 = arith.constant 17 : index
    %109 = memref.load %arg2[%108, %c17] : memref<1x59xf32, #tpu.memory_space<smem>>
    %110 = vector.broadcast %109 : f32 to vector<8x128xf32>
    %111 = arith.mulf %110, %49 : vector<8x128xf32>
    %112 = arith.addf %107, %111 : vector<8x128xf32>
    %113 = arith.index_cast %arg0 : i32 to index
    %c18 = arith.constant 18 : index
    %114 = memref.load %arg2[%113, %c18] : memref<1x59xf32, #tpu.memory_space<smem>>
    %115 = vector.broadcast %114 : f32 to vector<8x128xf32>
    %116 = arith.mulf %115, %55 : vector<8x128xf32>
    %117 = arith.addf %112, %116 : vector<8x128xf32>
    %118 = arith.index_cast %arg0 : i32 to index
    %c21 = arith.constant 21 : index
    %119 = memref.load %arg2[%118, %c21] : memref<1x59xf32, #tpu.memory_space<smem>>
    %120 = vector.broadcast %119 : f32 to vector<8x128xf32>
    %121 = arith.addf %117, %120 : vector<8x128xf32>
    %122 = arith.index_cast %arg0 : i32 to index
    %c24 = arith.constant 24 : index
    %123 = memref.load %arg2[%122, %c24] : memref<1x59xf32, #tpu.memory_space<smem>>
    %124 = math.tanh %121 : vector<8x128xf32>
    %125 = vector.broadcast %123 : f32 to vector<8x128xf32>
    %126 = arith.mulf %125, %124 : vector<8x128xf32>
    %127 = arith.addf %121, %126 : vector<8x128xf32>
    %128 = arith.index_cast %arg0 : i32 to index
    %c25 = arith.constant 25 : index
    %129 = memref.load %arg2[%128, %c25] : memref<1x59xf32, #tpu.memory_space<smem>>
    %130 = vector.broadcast %129 : f32 to vector<8x128xf32>
    %131 = arith.mulf %130, %79 : vector<8x128xf32>
    %132 = arith.index_cast %arg0 : i32 to index
    %c26 = arith.constant 26 : index
    %133 = memref.load %arg2[%132, %c26] : memref<1x59xf32, #tpu.memory_space<smem>>
    %134 = vector.broadcast %133 : f32 to vector<8x128xf32>
    %135 = arith.mulf %134, %103 : vector<8x128xf32>
    %136 = arith.addf %131, %135 : vector<8x128xf32>
    %137 = arith.index_cast %arg0 : i32 to index
    %c27 = arith.constant 27 : index
    %138 = memref.load %arg2[%137, %c27] : memref<1x59xf32, #tpu.memory_space<smem>>
    %139 = vector.broadcast %138 : f32 to vector<8x128xf32>
    %140 = arith.mulf %139, %127 : vector<8x128xf32>
    %141 = arith.addf %136, %140 : vector<8x128xf32>
    %142 = arith.index_cast %arg0 : i32 to index
    %c34 = arith.constant 34 : index
    %143 = memref.load %arg2[%142, %c34] : memref<1x59xf32, #tpu.memory_space<smem>>
    %144 = vector.broadcast %143 : f32 to vector<8x128xf32>
    %145 = arith.addf %141, %144 : vector<8x128xf32>
    %146 = arith.index_cast %arg0 : i32 to index
    %c37 = arith.constant 37 : index
    %147 = memref.load %arg2[%146, %c37] : memref<1x59xf32, #tpu.memory_space<smem>>
    %148 = math.tanh %145 : vector<8x128xf32>
    %149 = vector.broadcast %147 : f32 to vector<8x128xf32>
    %150 = arith.mulf %149, %148 : vector<8x128xf32>
    %151 = arith.addf %145, %150 : vector<8x128xf32>
    %152 = arith.index_cast %arg0 : i32 to index
    %c28 = arith.constant 28 : index
    %153 = memref.load %arg2[%152, %c28] : memref<1x59xf32, #tpu.memory_space<smem>>
    %154 = vector.broadcast %153 : f32 to vector<8x128xf32>
    %155 = arith.mulf %154, %79 : vector<8x128xf32>
    %156 = arith.index_cast %arg0 : i32 to index
    %c29 = arith.constant 29 : index
    %157 = memref.load %arg2[%156, %c29] : memref<1x59xf32, #tpu.memory_space<smem>>
    %158 = vector.broadcast %157 : f32 to vector<8x128xf32>
    %159 = arith.mulf %158, %103 : vector<8x128xf32>
    %160 = arith.addf %155, %159 : vector<8x128xf32>
    %161 = arith.index_cast %arg0 : i32 to index
    %c30 = arith.constant 30 : index
    %162 = memref.load %arg2[%161, %c30] : memref<1x59xf32, #tpu.memory_space<smem>>
    %163 = vector.broadcast %162 : f32 to vector<8x128xf32>
    %164 = arith.mulf %163, %127 : vector<8x128xf32>
    %165 = arith.addf %160, %164 : vector<8x128xf32>
    %166 = arith.index_cast %arg0 : i32 to index
    %c35 = arith.constant 35 : index
    %167 = memref.load %arg2[%166, %c35] : memref<1x59xf32, #tpu.memory_space<smem>>
    %168 = vector.broadcast %167 : f32 to vector<8x128xf32>
    %169 = arith.addf %165, %168 : vector<8x128xf32>
    %170 = arith.index_cast %arg0 : i32 to index
    %c38 = arith.constant 38 : index
    %171 = memref.load %arg2[%170, %c38] : memref<1x59xf32, #tpu.memory_space<smem>>
    %172 = math.tanh %169 : vector<8x128xf32>
    %173 = vector.broadcast %171 : f32 to vector<8x128xf32>
    %174 = arith.mulf %173, %172 : vector<8x128xf32>
    %175 = arith.addf %169, %174 : vector<8x128xf32>
    %176 = arith.index_cast %arg0 : i32 to index
    %c31 = arith.constant 31 : index
    %177 = memref.load %arg2[%176, %c31] : memref<1x59xf32, #tpu.memory_space<smem>>
    %178 = vector.broadcast %177 : f32 to vector<8x128xf32>
    %179 = arith.mulf %178, %79 : vector<8x128xf32>
    %180 = arith.index_cast %arg0 : i32 to index
    %c32 = arith.constant 32 : index
    %181 = memref.load %arg2[%180, %c32] : memref<1x59xf32, #tpu.memory_space<smem>>
    %182 = vector.broadcast %181 : f32 to vector<8x128xf32>
    %183 = arith.mulf %182, %103 : vector<8x128xf32>
    %184 = arith.addf %179, %183 : vector<8x128xf32>
    %185 = arith.index_cast %arg0 : i32 to index
    %c33 = arith.constant 33 : index
    %186 = memref.load %arg2[%185, %c33] : memref<1x59xf32, #tpu.memory_space<smem>>
    %187 = vector.broadcast %186 : f32 to vector<8x128xf32>
    %188 = arith.mulf %187, %127 : vector<8x128xf32>
    %189 = arith.addf %184, %188 : vector<8x128xf32>
    %190 = arith.index_cast %arg0 : i32 to index
    %c36 = arith.constant 36 : index
    %191 = memref.load %arg2[%190, %c36] : memref<1x59xf32, #tpu.memory_space<smem>>
    %192 = vector.broadcast %191 : f32 to vector<8x128xf32>
    %193 = arith.addf %189, %192 : vector<8x128xf32>
    %194 = arith.index_cast %arg0 : i32 to index
    %c39 = arith.constant 39 : index
    %195 = memref.load %arg2[%194, %c39] : memref<1x59xf32, #tpu.memory_space<smem>>
    %196 = math.tanh %193 : vector<8x128xf32>
    %197 = vector.broadcast %195 : f32 to vector<8x128xf32>
    %198 = arith.mulf %197, %196 : vector<8x128xf32>
    %199 = arith.addf %193, %198 : vector<8x128xf32>
    %200 = arith.index_cast %arg0 : i32 to index
    %c40 = arith.constant 40 : index
    %201 = memref.load %arg2[%200, %c40] : memref<1x59xf32, #tpu.memory_space<smem>>
    %202 = vector.broadcast %201 : f32 to vector<8x128xf32>
    %203 = arith.mulf %202, %151 : vector<8x128xf32>
    %204 = arith.index_cast %arg0 : i32 to index
    %c41 = arith.constant 41 : index
    %205 = memref.load %arg2[%204, %c41] : memref<1x59xf32, #tpu.memory_space<smem>>
    %206 = vector.broadcast %205 : f32 to vector<8x128xf32>
    %207 = arith.mulf %206, %175 : vector<8x128xf32>
    %208 = arith.addf %203, %207 : vector<8x128xf32>
    %209 = arith.index_cast %arg0 : i32 to index
    %c42 = arith.constant 42 : index
    %210 = memref.load %arg2[%209, %c42] : memref<1x59xf32, #tpu.memory_space<smem>>
    %211 = vector.broadcast %210 : f32 to vector<8x128xf32>
    %212 = arith.mulf %211, %199 : vector<8x128xf32>
    %213 = arith.addf %208, %212 : vector<8x128xf32>
    %214 = arith.index_cast %arg0 : i32 to index
    %c49 = arith.constant 49 : index
    %215 = memref.load %arg2[%214, %c49] : memref<1x59xf32, #tpu.memory_space<smem>>
    %216 = vector.broadcast %215 : f32 to vector<8x128xf32>
    %217 = arith.addf %213, %216 : vector<8x128xf32>
    %218 = arith.index_cast %arg0 : i32 to index
    %c52 = arith.constant 52 : index
    %219 = memref.load %arg2[%218, %c52] : memref<1x59xf32, #tpu.memory_space<smem>>
    %220 = math.tanh %217 : vector<8x128xf32>
    %221 = vector.broadcast %219 : f32 to vector<8x128xf32>
    %222 = arith.mulf %221, %220 : vector<8x128xf32>
    %223 = arith.addf %217, %222 : vector<8x128xf32>
    %224 = arith.index_cast %arg0 : i32 to index
    %c43 = arith.constant 43 : index
    %225 = memref.load %arg2[%224, %c43] : memref<1x59xf32, #tpu.memory_space<smem>>
    %226 = vector.broadcast %225 : f32 to vector<8x128xf32>
    %227 = arith.mulf %226, %151 : vector<8x128xf32>
    %228 = arith.index_cast %arg0 : i32 to index
    %c44 = arith.constant 44 : index
    %229 = memref.load %arg2[%228, %c44] : memref<1x59xf32, #tpu.memory_space<smem>>
    %230 = vector.broadcast %229 : f32 to vector<8x128xf32>
    %231 = arith.mulf %230, %175 : vector<8x128xf32>
    %232 = arith.addf %227, %231 : vector<8x128xf32>
    %233 = arith.index_cast %arg0 : i32 to index
    %c45 = arith.constant 45 : index
    %234 = memref.load %arg2[%233, %c45] : memref<1x59xf32, #tpu.memory_space<smem>>
    %235 = vector.broadcast %234 : f32 to vector<8x128xf32>
    %236 = arith.mulf %235, %199 : vector<8x128xf32>
    %237 = arith.addf %232, %236 : vector<8x128xf32>
    %238 = arith.index_cast %arg0 : i32 to index
    %c50 = arith.constant 50 : index
    %239 = memref.load %arg2[%238, %c50] : memref<1x59xf32, #tpu.memory_space<smem>>
    %240 = vector.broadcast %239 : f32 to vector<8x128xf32>
    %241 = arith.addf %237, %240 : vector<8x128xf32>
    %242 = arith.index_cast %arg0 : i32 to index
    %c53 = arith.constant 53 : index
    %243 = memref.load %arg2[%242, %c53] : memref<1x59xf32, #tpu.memory_space<smem>>
    %244 = math.tanh %241 : vector<8x128xf32>
    %245 = vector.broadcast %243 : f32 to vector<8x128xf32>
    %246 = arith.mulf %245, %244 : vector<8x128xf32>
    %247 = arith.addf %241, %246 : vector<8x128xf32>
    %248 = arith.index_cast %arg0 : i32 to index
    %c46 = arith.constant 46 : index
    %249 = memref.load %arg2[%248, %c46] : memref<1x59xf32, #tpu.memory_space<smem>>
    %250 = vector.broadcast %249 : f32 to vector<8x128xf32>
    %251 = arith.mulf %250, %151 : vector<8x128xf32>
    %252 = arith.index_cast %arg0 : i32 to index
    %c47 = arith.constant 47 : index
    %253 = memref.load %arg2[%252, %c47] : memref<1x59xf32, #tpu.memory_space<smem>>
    %254 = vector.broadcast %253 : f32 to vector<8x128xf32>
    %255 = arith.mulf %254, %175 : vector<8x128xf32>
    %256 = arith.addf %251, %255 : vector<8x128xf32>
    %257 = arith.index_cast %arg0 : i32 to index
    %c48 = arith.constant 48 : index
    %258 = memref.load %arg2[%257, %c48] : memref<1x59xf32, #tpu.memory_space<smem>>
    %259 = vector.broadcast %258 : f32 to vector<8x128xf32>
    %260 = arith.mulf %259, %199 : vector<8x128xf32>
    %261 = arith.addf %256, %260 : vector<8x128xf32>
    %262 = arith.index_cast %arg0 : i32 to index
    %c51 = arith.constant 51 : index
    %263 = memref.load %arg2[%262, %c51] : memref<1x59xf32, #tpu.memory_space<smem>>
    %264 = vector.broadcast %263 : f32 to vector<8x128xf32>
    %265 = arith.addf %261, %264 : vector<8x128xf32>
    %266 = arith.index_cast %arg0 : i32 to index
    %c54 = arith.constant 54 : index
    %267 = memref.load %arg2[%266, %c54] : memref<1x59xf32, #tpu.memory_space<smem>>
    %268 = math.tanh %265 : vector<8x128xf32>
    %269 = vector.broadcast %267 : f32 to vector<8x128xf32>
    %270 = arith.mulf %269, %268 : vector<8x128xf32>
    %271 = arith.addf %265, %270 : vector<8x128xf32>
    %272 = arith.index_cast %arg0 : i32 to index
    %c55 = arith.constant 55 : index
    %273 = memref.load %arg2[%272, %c55] : memref<1x59xf32, #tpu.memory_space<smem>>
    %274 = vector.broadcast %273 : f32 to vector<8x128xf32>
    %275 = arith.mulf %274, %223 : vector<8x128xf32>
    %276 = arith.index_cast %arg0 : i32 to index
    %c56 = arith.constant 56 : index
    %277 = memref.load %arg2[%276, %c56] : memref<1x59xf32, #tpu.memory_space<smem>>
    %278 = vector.broadcast %277 : f32 to vector<8x128xf32>
    %279 = arith.mulf %278, %247 : vector<8x128xf32>
    %280 = arith.addf %275, %279 : vector<8x128xf32>
    %281 = arith.index_cast %arg0 : i32 to index
    %c57 = arith.constant 57 : index
    %282 = memref.load %arg2[%281, %c57] : memref<1x59xf32, #tpu.memory_space<smem>>
    %283 = vector.broadcast %282 : f32 to vector<8x128xf32>
    %284 = arith.mulf %283, %271 : vector<8x128xf32>
    %285 = arith.addf %280, %284 : vector<8x128xf32>
    %286 = arith.index_cast %arg0 : i32 to index
    %c58 = arith.constant 58 : index
    %287 = memref.load %arg2[%286, %c58] : memref<1x59xf32, #tpu.memory_space<smem>>
    %288 = vector.broadcast %287 : f32 to vector<8x128xf32>
    %289 = arith.addf %285, %288 : vector<8x128xf32>
    %cst_6 = arith.constant 5.000000e-01 : f32
    %290 = vector.broadcast %cst_6 : f32 to vector<8x128xf32>
    %291 = arith.addf %8, %290 : vector<8x128xf32>
    %292 = arith.index_cast %arg0 : i32 to index
    %c1_7 = arith.constant 1 : index
    %293 = memref.load %arg2[%292, %c1_7] : memref<1x59xf32, #tpu.memory_space<smem>>
    %294 = vector.broadcast %293 : f32 to vector<8x128xf32>
    %295 = arith.mulf %294, %291 : vector<8x128xf32>
    %296 = arith.index_cast %arg0 : i32 to index
    %c4_8 = arith.constant 4 : index
    %297 = memref.load %arg2[%296, %c4_8] : memref<1x59xf32, #tpu.memory_space<smem>>
    %298 = vector.broadcast %297 : f32 to vector<8x128xf32>
    %299 = arith.addf %295, %298 : vector<8x128xf32>
    %300 = arith.index_cast %arg0 : i32 to index
    %c2_9 = arith.constant 2 : index
    %301 = memref.load %arg2[%300, %c2_9] : memref<1x59xf32, #tpu.memory_space<smem>>
    %302 = vector.broadcast %301 : f32 to vector<8x128xf32>
    %303 = arith.mulf %302, %291 : vector<8x128xf32>
    %304 = arith.index_cast %arg0 : i32 to index
    %c5_10 = arith.constant 5 : index
    %305 = memref.load %arg2[%304, %c5_10] : memref<1x59xf32, #tpu.memory_space<smem>>
    %306 = vector.broadcast %305 : f32 to vector<8x128xf32>
    %307 = arith.addf %303, %306 : vector<8x128xf32>
    %308 = arith.index_cast %arg0 : i32 to index
    %c3_11 = arith.constant 3 : index
    %309 = memref.load %arg2[%308, %c3_11] : memref<1x59xf32, #tpu.memory_space<smem>>
    %310 = vector.broadcast %309 : f32 to vector<8x128xf32>
    %311 = arith.mulf %310, %291 : vector<8x128xf32>
    %312 = arith.index_cast %arg0 : i32 to index
    %c6_12 = arith.constant 6 : index
    %313 = memref.load %arg2[%312, %c6_12] : memref<1x59xf32, #tpu.memory_space<smem>>
    %314 = vector.broadcast %313 : f32 to vector<8x128xf32>
    %315 = arith.addf %311, %314 : vector<8x128xf32>
    %316 = arith.index_cast %arg0 : i32 to index
    %c7_13 = arith.constant 7 : index
    %317 = memref.load %arg2[%316, %c7_13] : memref<1x59xf32, #tpu.memory_space<smem>>
    %318 = math.tanh %299 : vector<8x128xf32>
    %319 = vector.broadcast %317 : f32 to vector<8x128xf32>
    %320 = arith.mulf %319, %318 : vector<8x128xf32>
    %321 = arith.addf %299, %320 : vector<8x128xf32>
    %322 = arith.index_cast %arg0 : i32 to index
    %c8_14 = arith.constant 8 : index
    %323 = memref.load %arg2[%322, %c8_14] : memref<1x59xf32, #tpu.memory_space<smem>>
    %324 = math.tanh %307 : vector<8x128xf32>
    %325 = vector.broadcast %323 : f32 to vector<8x128xf32>
    %326 = arith.mulf %325, %324 : vector<8x128xf32>
    %327 = arith.addf %307, %326 : vector<8x128xf32>
    %328 = arith.index_cast %arg0 : i32 to index
    %c9_15 = arith.constant 9 : index
    %329 = memref.load %arg2[%328, %c9_15] : memref<1x59xf32, #tpu.memory_space<smem>>
    %330 = math.tanh %315 : vector<8x128xf32>
    %331 = vector.broadcast %329 : f32 to vector<8x128xf32>
    %332 = arith.mulf %331, %330 : vector<8x128xf32>
    %333 = arith.addf %315, %332 : vector<8x128xf32>
    %334 = arith.index_cast %arg0 : i32 to index
    %c10_16 = arith.constant 10 : index
    %335 = memref.load %arg2[%334, %c10_16] : memref<1x59xf32, #tpu.memory_space<smem>>
    %336 = vector.broadcast %335 : f32 to vector<8x128xf32>
    %337 = arith.mulf %336, %321 : vector<8x128xf32>
    %338 = arith.index_cast %arg0 : i32 to index
    %c11_17 = arith.constant 11 : index
    %339 = memref.load %arg2[%338, %c11_17] : memref<1x59xf32, #tpu.memory_space<smem>>
    %340 = vector.broadcast %339 : f32 to vector<8x128xf32>
    %341 = arith.mulf %340, %327 : vector<8x128xf32>
    %342 = arith.addf %337, %341 : vector<8x128xf32>
    %343 = arith.index_cast %arg0 : i32 to index
    %c12_18 = arith.constant 12 : index
    %344 = memref.load %arg2[%343, %c12_18] : memref<1x59xf32, #tpu.memory_space<smem>>
    %345 = vector.broadcast %344 : f32 to vector<8x128xf32>
    %346 = arith.mulf %345, %333 : vector<8x128xf32>
    %347 = arith.addf %342, %346 : vector<8x128xf32>
    %348 = arith.index_cast %arg0 : i32 to index
    %c19_19 = arith.constant 19 : index
    %349 = memref.load %arg2[%348, %c19_19] : memref<1x59xf32, #tpu.memory_space<smem>>
    %350 = vector.broadcast %349 : f32 to vector<8x128xf32>
    %351 = arith.addf %347, %350 : vector<8x128xf32>
    %352 = arith.index_cast %arg0 : i32 to index
    %c22_20 = arith.constant 22 : index
    %353 = memref.load %arg2[%352, %c22_20] : memref<1x59xf32, #tpu.memory_space<smem>>
    %354 = math.tanh %351 : vector<8x128xf32>
    %355 = vector.broadcast %353 : f32 to vector<8x128xf32>
    %356 = arith.mulf %355, %354 : vector<8x128xf32>
    %357 = arith.addf %351, %356 : vector<8x128xf32>
    %358 = arith.index_cast %arg0 : i32 to index
    %c13_21 = arith.constant 13 : index
    %359 = memref.load %arg2[%358, %c13_21] : memref<1x59xf32, #tpu.memory_space<smem>>
    %360 = vector.broadcast %359 : f32 to vector<8x128xf32>
    %361 = arith.mulf %360, %321 : vector<8x128xf32>
    %362 = arith.index_cast %arg0 : i32 to index
    %c14_22 = arith.constant 14 : index
    %363 = memref.load %arg2[%362, %c14_22] : memref<1x59xf32, #tpu.memory_space<smem>>
    %364 = vector.broadcast %363 : f32 to vector<8x128xf32>
    %365 = arith.mulf %364, %327 : vector<8x128xf32>
    %366 = arith.addf %361, %365 : vector<8x128xf32>
    %367 = arith.index_cast %arg0 : i32 to index
    %c15_23 = arith.constant 15 : index
    %368 = memref.load %arg2[%367, %c15_23] : memref<1x59xf32, #tpu.memory_space<smem>>
    %369 = vector.broadcast %368 : f32 to vector<8x128xf32>
    %370 = arith.mulf %369, %333 : vector<8x128xf32>
    %371 = arith.addf %366, %370 : vector<8x128xf32>
    %372 = arith.index_cast %arg0 : i32 to index
    %c20_24 = arith.constant 20 : index
    %373 = memref.load %arg2[%372, %c20_24] : memref<1x59xf32, #tpu.memory_space<smem>>
    %374 = vector.broadcast %373 : f32 to vector<8x128xf32>
    %375 = arith.addf %371, %374 : vector<8x128xf32>
    %376 = arith.index_cast %arg0 : i32 to index
    %c23_25 = arith.constant 23 : index
    %377 = memref.load %arg2[%376, %c23_25] : memref<1x59xf32, #tpu.memory_space<smem>>
    %378 = math.tanh %375 : vector<8x128xf32>
    %379 = vector.broadcast %377 : f32 to vector<8x128xf32>
    %380 = arith.mulf %379, %378 : vector<8x128xf32>
    %381 = arith.addf %375, %380 : vector<8x128xf32>
    %382 = arith.index_cast %arg0 : i32 to index
    %c16_26 = arith.constant 16 : index
    %383 = memref.load %arg2[%382, %c16_26] : memref<1x59xf32, #tpu.memory_space<smem>>
    %384 = vector.broadcast %383 : f32 to vector<8x128xf32>
    %385 = arith.mulf %384, %321 : vector<8x128xf32>
    %386 = arith.index_cast %arg0 : i32 to index
    %c17_27 = arith.constant 17 : index
    %387 = memref.load %arg2[%386, %c17_27] : memref<1x59xf32, #tpu.memory_space<smem>>
    %388 = vector.broadcast %387 : f32 to vector<8x128xf32>
    %389 = arith.mulf %388, %327 : vector<8x128xf32>
    %390 = arith.addf %385, %389 : vector<8x128xf32>
    %391 = arith.index_cast %arg0 : i32 to index
    %c18_28 = arith.constant 18 : index
    %392 = memref.load %arg2[%391, %c18_28] : memref<1x59xf32, #tpu.memory_space<smem>>
    %393 = vector.broadcast %392 : f32 to vector<8x128xf32>
    %394 = arith.mulf %393, %333 : vector<8x128xf32>
    %395 = arith.addf %390, %394 : vector<8x128xf32>
    %396 = arith.index_cast %arg0 : i32 to index
    %c21_29 = arith.constant 21 : index
    %397 = memref.load %arg2[%396, %c21_29] : memref<1x59xf32, #tpu.memory_space<smem>>
    %398 = vector.broadcast %397 : f32 to vector<8x128xf32>
    %399 = arith.addf %395, %398 : vector<8x128xf32>
    %400 = arith.index_cast %arg0 : i32 to index
    %c24_30 = arith.constant 24 : index
    %401 = memref.load %arg2[%400, %c24_30] : memref<1x59xf32, #tpu.memory_space<smem>>
    %402 = math.tanh %399 : vector<8x128xf32>
    %403 = vector.broadcast %401 : f32 to vector<8x128xf32>
    %404 = arith.mulf %403, %402 : vector<8x128xf32>
    %405 = arith.addf %399, %404 : vector<8x128xf32>
    %406 = arith.index_cast %arg0 : i32 to index
    %c25_31 = arith.constant 25 : index
    %407 = memref.load %arg2[%406, %c25_31] : memref<1x59xf32, #tpu.memory_space<smem>>
    %408 = vector.broadcast %407 : f32 to vector<8x128xf32>
    %409 = arith.mulf %408, %357 : vector<8x128xf32>
    %410 = arith.index_cast %arg0 : i32 to index
    %c26_32 = arith.constant 26 : index
    %411 = memref.load %arg2[%410, %c26_32] : memref<1x59xf32, #tpu.memory_space<smem>>
    %412 = vector.broadcast %411 : f32 to vector<8x128xf32>
    %413 = arith.mulf %412, %381 : vector<8x128xf32>
    %414 = arith.addf %409, %413 : vector<8x128xf32>
    %415 = arith.index_cast %arg0 : i32 to index
    %c27_33 = arith.constant 27 : index
    %416 = memref.load %arg2[%415, %c27_33] : memref<1x59xf32, #tpu.memory_space<smem>>
    %417 = vector.broadcast %416 : f32 to vector<8x128xf32>
    %418 = arith.mulf %417, %405 : vector<8x128xf32>
    %419 = arith.addf %414, %418 : vector<8x128xf32>
    %420 = arith.index_cast %arg0 : i32 to index
    %c34_34 = arith.constant 34 : index
    %421 = memref.load %arg2[%420, %c34_34] : memref<1x59xf32, #tpu.memory_space<smem>>
    %422 = vector.broadcast %421 : f32 to vector<8x128xf32>
    %423 = arith.addf %419, %422 : vector<8x128xf32>
    %424 = arith.index_cast %arg0 : i32 to index
    %c37_35 = arith.constant 37 : index
    %425 = memref.load %arg2[%424, %c37_35] : memref<1x59xf32, #tpu.memory_space<smem>>
    %426 = math.tanh %423 : vector<8x128xf32>
    %427 = vector.broadcast %425 : f32 to vector<8x128xf32>
    %428 = arith.mulf %427, %426 : vector<8x128xf32>
    %429 = arith.addf %423, %428 : vector<8x128xf32>
    %430 = arith.index_cast %arg0 : i32 to index
    %c28_36 = arith.constant 28 : index
    %431 = memref.load %arg2[%430, %c28_36] : memref<1x59xf32, #tpu.memory_space<smem>>
    %432 = vector.broadcast %431 : f32 to vector<8x128xf32>
    %433 = arith.mulf %432, %357 : vector<8x128xf32>
    %434 = arith.index_cast %arg0 : i32 to index
    %c29_37 = arith.constant 29 : index
    %435 = memref.load %arg2[%434, %c29_37] : memref<1x59xf32, #tpu.memory_space<smem>>
    %436 = vector.broadcast %435 : f32 to vector<8x128xf32>
    %437 = arith.mulf %436, %381 : vector<8x128xf32>
    %438 = arith.addf %433, %437 : vector<8x128xf32>
    %439 = arith.index_cast %arg0 : i32 to index
    %c30_38 = arith.constant 30 : index
    %440 = memref.load %arg2[%439, %c30_38] : memref<1x59xf32, #tpu.memory_space<smem>>
    %441 = vector.broadcast %440 : f32 to vector<8x128xf32>
    %442 = arith.mulf %441, %405 : vector<8x128xf32>
    %443 = arith.addf %438, %442 : vector<8x128xf32>
    %444 = arith.index_cast %arg0 : i32 to index
    %c35_39 = arith.constant 35 : index
    %445 = memref.load %arg2[%444, %c35_39] : memref<1x59xf32, #tpu.memory_space<smem>>
    %446 = vector.broadcast %445 : f32 to vector<8x128xf32>
    %447 = arith.addf %443, %446 : vector<8x128xf32>
    %448 = arith.index_cast %arg0 : i32 to index
    %c38_40 = arith.constant 38 : index
    %449 = memref.load %arg2[%448, %c38_40] : memref<1x59xf32, #tpu.memory_space<smem>>
    %450 = math.tanh %447 : vector<8x128xf32>
    %451 = vector.broadcast %449 : f32 to vector<8x128xf32>
    %452 = arith.mulf %451, %450 : vector<8x128xf32>
    %453 = arith.addf %447, %452 : vector<8x128xf32>
    %454 = arith.index_cast %arg0 : i32 to index
    %c31_41 = arith.constant 31 : index
    %455 = memref.load %arg2[%454, %c31_41] : memref<1x59xf32, #tpu.memory_space<smem>>
    %456 = vector.broadcast %455 : f32 to vector<8x128xf32>
    %457 = arith.mulf %456, %357 : vector<8x128xf32>
    %458 = arith.index_cast %arg0 : i32 to index
    %c32_42 = arith.constant 32 : index
    %459 = memref.load %arg2[%458, %c32_42] : memref<1x59xf32, #tpu.memory_space<smem>>
    %460 = vector.broadcast %459 : f32 to vector<8x128xf32>
    %461 = arith.mulf %460, %381 : vector<8x128xf32>
    %462 = arith.addf %457, %461 : vector<8x128xf32>
    %463 = arith.index_cast %arg0 : i32 to index
    %c33_43 = arith.constant 33 : index
    %464 = memref.load %arg2[%463, %c33_43] : memref<1x59xf32, #tpu.memory_space<smem>>
    %465 = vector.broadcast %464 : f32 to vector<8x128xf32>
    %466 = arith.mulf %465, %405 : vector<8x128xf32>
    %467 = arith.addf %462, %466 : vector<8x128xf32>
    %468 = arith.index_cast %arg0 : i32 to index
    %c36_44 = arith.constant 36 : index
    %469 = memref.load %arg2[%468, %c36_44] : memref<1x59xf32, #tpu.memory_space<smem>>
    %470 = vector.broadcast %469 : f32 to vector<8x128xf32>
    %471 = arith.addf %467, %470 : vector<8x128xf32>
    %472 = arith.index_cast %arg0 : i32 to index
    %c39_45 = arith.constant 39 : index
    %473 = memref.load %arg2[%472, %c39_45] : memref<1x59xf32, #tpu.memory_space<smem>>
    %474 = math.tanh %471 : vector<8x128xf32>
    %475 = vector.broadcast %473 : f32 to vector<8x128xf32>
    %476 = arith.mulf %475, %474 : vector<8x128xf32>
    %477 = arith.addf %471, %476 : vector<8x128xf32>
    %478 = arith.index_cast %arg0 : i32 to index
    %c40_46 = arith.constant 40 : index
    %479 = memref.load %arg2[%478, %c40_46] : memref<1x59xf32, #tpu.memory_space<smem>>
    %480 = vector.broadcast %479 : f32 to vector<8x128xf32>
    %481 = arith.mulf %480, %429 : vector<8x128xf32>
    %482 = arith.index_cast %arg0 : i32 to index
    %c41_47 = arith.constant 41 : index
    %483 = memref.load %arg2[%482, %c41_47] : memref<1x59xf32, #tpu.memory_space<smem>>
    %484 = vector.broadcast %483 : f32 to vector<8x128xf32>
    %485 = arith.mulf %484, %453 : vector<8x128xf32>
    %486 = arith.addf %481, %485 : vector<8x128xf32>
    %487 = arith.index_cast %arg0 : i32 to index
    %c42_48 = arith.constant 42 : index
    %488 = memref.load %arg2[%487, %c42_48] : memref<1x59xf32, #tpu.memory_space<smem>>
    %489 = vector.broadcast %488 : f32 to vector<8x128xf32>
    %490 = arith.mulf %489, %477 : vector<8x128xf32>
    %491 = arith.addf %486, %490 : vector<8x128xf32>
    %492 = arith.index_cast %arg0 : i32 to index
    %c49_49 = arith.constant 49 : index
    %493 = memref.load %arg2[%492, %c49_49] : memref<1x59xf32, #tpu.memory_space<smem>>
    %494 = vector.broadcast %493 : f32 to vector<8x128xf32>
    %495 = arith.addf %491, %494 : vector<8x128xf32>
    %496 = arith.index_cast %arg0 : i32 to index
    %c52_50 = arith.constant 52 : index
    %497 = memref.load %arg2[%496, %c52_50] : memref<1x59xf32, #tpu.memory_space<smem>>
    %498 = math.tanh %495 : vector<8x128xf32>
    %499 = vector.broadcast %497 : f32 to vector<8x128xf32>
    %500 = arith.mulf %499, %498 : vector<8x128xf32>
    %501 = arith.addf %495, %500 : vector<8x128xf32>
    %502 = arith.index_cast %arg0 : i32 to index
    %c43_51 = arith.constant 43 : index
    %503 = memref.load %arg2[%502, %c43_51] : memref<1x59xf32, #tpu.memory_space<smem>>
    %504 = vector.broadcast %503 : f32 to vector<8x128xf32>
    %505 = arith.mulf %504, %429 : vector<8x128xf32>
    %506 = arith.index_cast %arg0 : i32 to index
    %c44_52 = arith.constant 44 : index
    %507 = memref.load %arg2[%506, %c44_52] : memref<1x59xf32, #tpu.memory_space<smem>>
    %508 = vector.broadcast %507 : f32 to vector<8x128xf32>
    %509 = arith.mulf %508, %453 : vector<8x128xf32>
    %510 = arith.addf %505, %509 : vector<8x128xf32>
    %511 = arith.index_cast %arg0 : i32 to index
    %c45_53 = arith.constant 45 : index
    %512 = memref.load %arg2[%511, %c45_53] : memref<1x59xf32, #tpu.memory_space<smem>>
    %513 = vector.broadcast %512 : f32 to vector<8x128xf32>
    %514 = arith.mulf %513, %477 : vector<8x128xf32>
    %515 = arith.addf %510, %514 : vector<8x128xf32>
    %516 = arith.index_cast %arg0 : i32 to index
    %c50_54 = arith.constant 50 : index
    %517 = memref.load %arg2[%516, %c50_54] : memref<1x59xf32, #tpu.memory_space<smem>>
    %518 = vector.broadcast %517 : f32 to vector<8x128xf32>
    %519 = arith.addf %515, %518 : vector<8x128xf32>
    %520 = arith.index_cast %arg0 : i32 to index
    %c53_55 = arith.constant 53 : index
    %521 = memref.load %arg2[%520, %c53_55] : memref<1x59xf32, #tpu.memory_space<smem>>
    %522 = math.tanh %519 : vector<8x128xf32>
    %523 = vector.broadcast %521 : f32 to vector<8x128xf32>
    %524 = arith.mulf %523, %522 : vector<8x128xf32>
    %525 = arith.addf %519, %524 : vector<8x128xf32>
    %526 = arith.index_cast %arg0 : i32 to index
    %c46_56 = arith.constant 46 : index
    %527 = memref.load %arg2[%526, %c46_56] : memref<1x59xf32, #tpu.memory_space<smem>>
    %528 = vector.broadcast %527 : f32 to vector<8x128xf32>
    %529 = arith.mulf %528, %429 : vector<8x128xf32>
    %530 = arith.index_cast %arg0 : i32 to index
    %c47_57 = arith.constant 47 : index
    %531 = memref.load %arg2[%530, %c47_57] : memref<1x59xf32, #tpu.memory_space<smem>>
    %532 = vector.broadcast %531 : f32 to vector<8x128xf32>
    %533 = arith.mulf %532, %453 : vector<8x128xf32>
    %534 = arith.addf %529, %533 : vector<8x128xf32>
    %535 = arith.index_cast %arg0 : i32 to index
    %c48_58 = arith.constant 48 : index
    %536 = memref.load %arg2[%535, %c48_58] : memref<1x59xf32, #tpu.memory_space<smem>>
    %537 = vector.broadcast %536 : f32 to vector<8x128xf32>
    %538 = arith.mulf %537, %477 : vector<8x128xf32>
    %539 = arith.addf %534, %538 : vector<8x128xf32>
    %540 = arith.index_cast %arg0 : i32 to index
    %c51_59 = arith.constant 51 : index
    %541 = memref.load %arg2[%540, %c51_59] : memref<1x59xf32, #tpu.memory_space<smem>>
    %542 = vector.broadcast %541 : f32 to vector<8x128xf32>
    %543 = arith.addf %539, %542 : vector<8x128xf32>
    %544 = arith.index_cast %arg0 : i32 to index
    %c54_60 = arith.constant 54 : index
    %545 = memref.load %arg2[%544, %c54_60] : memref<1x59xf32, #tpu.memory_space<smem>>
    %546 = math.tanh %543 : vector<8x128xf32>
    %547 = vector.broadcast %545 : f32 to vector<8x128xf32>
    %548 = arith.mulf %547, %546 : vector<8x128xf32>
    %549 = arith.addf %543, %548 : vector<8x128xf32>
    %550 = arith.index_cast %arg0 : i32 to index
    %c55_61 = arith.constant 55 : index
    %551 = memref.load %arg2[%550, %c55_61] : memref<1x59xf32, #tpu.memory_space<smem>>
    %552 = vector.broadcast %551 : f32 to vector<8x128xf32>
    %553 = arith.mulf %552, %501 : vector<8x128xf32>
    %554 = arith.index_cast %arg0 : i32 to index
    %c56_62 = arith.constant 56 : index
    %555 = memref.load %arg2[%554, %c56_62] : memref<1x59xf32, #tpu.memory_space<smem>>
    %556 = vector.broadcast %555 : f32 to vector<8x128xf32>
    %557 = arith.mulf %556, %525 : vector<8x128xf32>
    %558 = arith.addf %553, %557 : vector<8x128xf32>
    %559 = arith.index_cast %arg0 : i32 to index
    %c57_63 = arith.constant 57 : index
    %560 = memref.load %arg2[%559, %c57_63] : memref<1x59xf32, #tpu.memory_space<smem>>
    %561 = vector.broadcast %560 : f32 to vector<8x128xf32>
    %562 = arith.mulf %561, %549 : vector<8x128xf32>
    %563 = arith.addf %558, %562 : vector<8x128xf32>
    %564 = arith.index_cast %arg0 : i32 to index
    %c58_64 = arith.constant 58 : index
    %565 = memref.load %arg2[%564, %c58_64] : memref<1x59xf32, #tpu.memory_space<smem>>
    %566 = vector.broadcast %565 : f32 to vector<8x128xf32>
    %567 = arith.addf %563, %566 : vector<8x128xf32>
    %568 = arith.addf %289, %567 : vector<8x128xf32>
    %cst_65 = arith.constant 0.000000e+00 : f32
    %569 = vector.broadcast %cst_65 : f32 to vector<8x128xf32>
    %570 = arith.cmpf ogt, %568, %569 : vector<8x128xf32>
    %cst_66 = arith.constant 0.000000e+00 : f32
    %571 = vector.broadcast %cst_66 : f32 to vector<8x128xf32>
    %572 = arith.cmpf olt, %568, %571 : vector<8x128xf32>
    %cst_67 = arith.constant 1.000000e+00 : f32
    %cst_68 = arith.constant 0.000000e+00 : f32
    %573 = vector.broadcast %cst_67 : f32 to vector<8x128xf32>
    %574 = vector.broadcast %cst_68 : f32 to vector<8x128xf32>
    %575 = arith.select %572, %573, %574 : vector<8x128xi1>, vector<8x128xf32>
    %cst_69 = arith.constant -1.000000e+00 : f32
    %576 = vector.broadcast %cst_69 : f32 to vector<8x128xf32>
    %577 = arith.select %570, %576, %575 : vector<8x128xi1>, vector<8x128xf32>
    %578 = arith.mulf %577, %567 : vector<8x128xf32>
    %cst_70 = arith.constant 0.000000e+00 : f32
    %579 = vector.broadcast %cst_70 : f32 to vector<8x128xf32>
    %580 = arith.subf %579, %578 : vector<8x128xf32>
    %581 = math.exp %580 : vector<8x128xf32>
    %cst_71 = arith.constant 1.000000e+00 : f32
    %582 = vector.broadcast %cst_71 : f32 to vector<8x128xf32>
    %583 = arith.addf %582, %581 : vector<8x128xf32>
    %cst_72 = arith.constant 1.000000e+00 : f32
    %584 = vector.broadcast %cst_72 : f32 to vector<8x128xf32>
    %585 = arith.divf %584, %583 : vector<8x128xf32>
    %586 = arith.mulf %577, %289 : vector<8x128xf32>
    %cst_73 = arith.constant 0.000000e+00 : f32
    %587 = vector.broadcast %cst_73 : f32 to vector<8x128xf32>
    %588 = arith.subf %587, %586 : vector<8x128xf32>
    %589 = math.exp %588 : vector<8x128xf32>
    %cst_74 = arith.constant 1.000000e+00 : f32
    %590 = vector.broadcast %cst_74 : f32 to vector<8x128xf32>
    %591 = arith.addf %590, %589 : vector<8x128xf32>
    %cst_75 = arith.constant 1.000000e+00 : f32
    %592 = vector.broadcast %cst_75 : f32 to vector<8x128xf32>
    %593 = arith.divf %592, %591 : vector<8x128xf32>
    %594 = arith.subf %585, %593 : vector<8x128xf32>
    %595 = math.absf %594 : vector<8x128xf32>
    %cst_76 = arith.constant 9.99999971E-10 : f32
    %596 = vector.broadcast %cst_76 : f32 to vector<8x128xf32>
    %597 = arith.maximumf %595, %596 : vector<8x128xf32>
    %598 = math.log %597 : vector<8x128xf32>
    %cst_77 = arith.constant 2.000000e+00 : f32
    %599 = math.log %cst_77 : f32
    %600 = vector.broadcast %599 : f32 to vector<8x128xf32>
    %601 = arith.divf %598, %600 : vector<8x128xf32>
    %cst_78 = arith.constant 0.000000e+00 : f32
    %602 = vector.broadcast %cst_78 : f32 to vector<8x128xf32>
    %603 = arith.subf %602, %601 : vector<8x128xf32>
    %c0_79 = arith.constant 0 : index
    %c0_80 = arith.constant 0 : index
    %c0_81 = arith.constant 0 : index
    %604 = vector.load %arg5[%c0_79, %c0_80, %c0_81] : memref<1x8x128xf32, #tpu.memory_space<vmem>>, vector<1x8x128xf32>
    %605 = vector.shape_cast %604 : vector<1x8x128xf32> to vector<8x128xf32>
    %606 = vector.shape_cast %603 : vector<8x128xf32> to vector<1x8x128xf32>
    tpu.vector_store %arg5[%c0_79, %c0_80, %c0_81], %606 {strides = array<i32>} : memref<1x8x128xf32, #tpu.memory_space<vmem>>, vector<1x8x128xf32>,
    return
  }
  func.func @transform_0(%arg0: i32, %arg1: i32) -> (i32, i32) {
    %c0_i32 = arith.constant 0 : i32
    %c0_i32_0 = arith.constant 0 : i32
    %c0_i32_1 = arith.constant 0 : i32
    return %c0_i32, %c0_i32_0 : i32, i32
  }
  func.func @transform_1(%arg0: i32, %arg1: i32) -> (i32, i32, i32) {
    %c0_i32 = arith.constant 0 : i32
    %c0_i32_0 = arith.constant 0 : i32
    return %arg0, %arg1, %c0_i32 : i32, i32, i32
  }
  func.func @transform_2(%arg0: i32, %arg1: i32) -> (i32, i32, i32) {
    %c0_i32 = arith.constant 0 : i32
    %c0_i32_0 = arith.constant 0 : i32
    return %arg0, %arg1, %c0_i32 : i32, i32, i32
  }
  func.func @transform_3(%arg0: i32, %arg1: i32) -> (i32, i32, i32) {
    %c0_i32 = arith.constant 0 : i32
    %c0_i32_0 = arith.constant 0 : i32
    return %arg0, %arg1, %c0_i32 : i32, i32, i32
  }
}

</mosaic_0001>

<llo_original>
// kernel: _lambda_.7
$region0: #{_lambda_.7}
  #allocation0 [shape = 'u32[]', space=smem, size = 0x4, offset = 0x4, fixed_abs, tag = 'smem constant byte address 0x4 - core index']
  #allocation1 [shape = 'u32[144,128]{1,0:T(1,128)}', space=vmem, size = 0x12000, scoped, tag = 'internal scratch']
  %s0 = inlined_call_operand.hbm [shape: f32[3,59], index: 0, kind: input, shape index: {}]
  %s1 = inlined_call_operand.vmem [shape: f32[3,8,128], index: 1, kind: input, shape index: {}]
  %s2 = inlined_call_operand.vmem [shape: f32[3,8,128], index: 2, kind: output, shape index: {0}]
  %s3 = inlined_call_operand.vmem [shape: f32[3,8,128], index: 3, kind: output, shape index: {1}]
  %4 = xla_tuple %s2, %s3
  %s5 = sld [smem:[#allocation0]]
  $region53: #{_lambda_.7} parent=0
    _
  %s7 = ssub.s32 1, %s5
  %s8 = scalar_select 0, %s7, %s5
  $region1: #{_lambda_.7} parent=0
    #allocation2 [shape = 'u8[2048]{0}', space=smem, size = 0x800, scoped, tag = 'input window, operand 0, single buffered']
    #allocation3 [shape = 's32[2]{0}', space=sflag, size = 0x8, scoped, tag = 'scoped memory for _lambda_.7']
    %9 = vsyncpa [#allocation3], 0
    loop: start=0, step=1, limit=5
    $region2: #{_lambda_.7} parent=1 // loop_pre_header
      _
    $region3: #{_lambda_.7} parent=1 // loop_header
      %s11 = sphi 0, %s15
      %p12 = scmp.ge.s32.totalorder %s11, 5
      %s18 = sphi 0, %s30
      %s19 = sphi 0, %s26
      %s20 = sphi 0, %s18
      %s21 = sphi 0, %s19
      %s22 = sphi 0, %s20
      %s23 = sphi 0, %s21
      %s31 = sphi 0, %s31
      %s33 = sphi 0, %s31
      %s34 = sphi 0, %s33
      %s48 = sphi 0, %s34
      %s56 = sphi 0, %s58
      %s59 = sphi 0, %s56
      %s60 = sphi 0, %s59
      %s76 = sphi 0, %s60
      %s84 = sphi 0, %s86
      %s87 = sphi 0, %s84
      %s88 = sphi 0, %s87
      %s104 = sphi 0, %s88
      %s112 = sphi 0, %s114
      %s115 = sphi 0, %s112
      %s116 = sphi 0, %s115
      %s132 = sphi 0, %s116
    $region4: #{_lambda_.7} parent=1 // loop_header_branch
      %14 = sbr.rel (%p12) target = $region8
    $region5: #{_lambda_.7} parent=1 // loop_body
      %s16 = ssub.s32 %s11, 1
      %s17 = ssub.s32 %s11, 2
      %s24 = sadd.s32 1, %s19
      %p25 = scmp.ge.s32.totalorder %s24, 1
      %s26 = scalar_select %p25, 0, %s24
      %s27 = sadd.s32 1, %s18
      %s28 = scalar_select %p25, %s27, %s18
      %p29 = scmp.ge.s32.totalorder %s28, 3
      %s30 = scalar_select %p29, 0, %s28
      %s32 = sadd.s32 %s31, 1
      %p35 = scmp.eq.s32.totalorder %s11, 2
      %p36 = scmp.ne.s32.totalorder %s31, %s33
      %p37 = scmp.eq.s32.totalorder %s11, 0
      %p38 = por %p36, %p37
      %p39 = scmp.ne.s32.totalorder %s31, %s33
      %p40 = scmp.eq.s32.totalorder %s16, 2
      %p41 = por %p39, %p40
      %p42 = scmp.ne.s32.totalorder %s33, %s34
      %p43 = scmp.eq.s32.totalorder %s16, 0
      %p44 = por %p42, %p43
      %p45 = scmp.ne.s32.totalorder %s33, %s34
      %p46 = scmp.eq.s32.totalorder %s17, 2
      %p47 = por %p45, %p46
      %p49 = scmp.ne.s32.totalorder %s34, %s48
      %p50 = scmp.eq.s32.totalorder %s17, 0
      %p51 = por %p49, %p50
      %s52 = ssub.s32 %s18, %s30
      %s53 = ssub.s32 %s19, %s26
      %s54 = sor.u32 %s52, %s53
      %p55 = scmp.eq.s32.totalorder %s54, 0
      %s57 = sadd.s32 %s56, 1
      %s58 = scalar_select %p55, %s56, %s57
      %p61 = pneg %p55
      %p62 = scmp.eq.s32.totalorder %s11, 2
      %p63 = por %p61, %p62
      %p64 = scmp.ne.s32.totalorder %s56, %s59
      %p65 = scmp.eq.s32.totalorder %s11, 0
      %p66 = por %p64, %p65
      %p67 = scmp.ne.s32.totalorder %s56, %s59
      %p68 = scmp.eq.s32.totalorder %s16, 2
      %p69 = por %p67, %p68
      %p70 = scmp.ne.s32.totalorder %s59, %s60
      %p71 = scmp.eq.s32.totalorder %s16, 0
      %p72 = por %p70, %p71
      %p73 = scmp.ne.s32.totalorder %s59, %s60
      %p74 = scmp.eq.s32.totalorder %s17, 2
      %p75 = por %p73, %p74
      %p77 = scmp.ne.s32.totalorder %s60, %s76
      %p78 = scmp.eq.s32.totalorder %s17, 0
      %p79 = por %p77, %p78
      %s80 = ssub.s32 %s18, %s30
      %s81 = ssub.s32 %s19, %s26
      %s82 = sor.u32 %s80, %s81
      %p83 = scmp.eq.s32.totalorder %s82, 0
      %s85 = sadd.s32 %s84, 1
      %s86 = scalar_select %p83, %s84, %s85
      %p89 = pneg %p83
      %p90 = scmp.eq.s32.totalorder %s11, 2
      %p91 = por %p89, %p90
      %p92 = scmp.ne.s32.totalorder %s84, %s87
      %p93 = scmp.eq.s32.totalorder %s11, 0
      %p94 = por %p92, %p93
      %p95 = scmp.ne.s32.totalorder %s84, %s87
      %p96 = scmp.eq.s32.totalorder %s16, 2
      %p97 = por %p95, %p96
      %p98 = scmp.ne.s32.totalorder %s87, %s88
      %p99 = scmp.eq.s32.totalorder %s16, 0
      %p100 = por %p98, %p99
      %p101 = scmp.ne.s32.totalorder %s87, %s88
      %p102 = scmp.eq.s32.totalorder %s17, 2
      %p103 = por %p101, %p102
      %p105 = scmp.ne.s32.totalorder %s88, %s104
      %p106 = scmp.eq.s32.totalorder %s17, 0
      %p107 = por %p105, %p106
      %s108 = ssub.s32 %s18, %s30
      %s109 = ssub.s32 %s19, %s26
      %s110 = sor.u32 %s108, %s109
      %p111 = scmp.eq.s32.totalorder %s110, 0
      %s113 = sadd.s32 %s112, 1
      %s114 = scalar_select %p111, %s112, %s113
      %p117 = pneg %p111
      %p118 = scmp.eq.s32.totalorder %s11, 2
      %p119 = por %p117, %p118
      %p120 = scmp.ne.s32.totalorder %s112, %s115
      %p121 = scmp.eq.s32.totalorder %s11, 0
      %p122 = por %p120, %p121
      %p123 = scmp.ne.s32.totalorder %s112, %s115
      %p124 = scmp.eq.s32.totalorder %s16, 2
      %p125 = por %p123, %p124
      %p126 = scmp.ne.s32.totalorder %s115, %s116
      %p127 = scmp.eq.s32.totalorder %s16, 0
      %p128 = por %p126, %p127
      %p129 = scmp.ne.s32.totalorder %s115, %s116
      %p130 = scmp.eq.s32.totalorder %s17, 2
      %p131 = por %p129, %p130
      %p133 = scmp.ne.s32.totalorder %s116, %s132
      %p134 = scmp.eq.s32.totalorder %s17, 0
      %p135 = por %p133, %p134
      %p136 = scmp.le.s32.totalorder 1, %s11
      %p137 = scmp.lt.s32.totalorder %s11, 4
      %p138 = pnand %p136, %p137
      %p139 = pneg %p138
      // Predicated region
      $region9: #{_lambda_.7} parent=5 // pred_check
        _
      $region10: #{_lambda_.7} parent=5 // pred_check_branch
        %141 = sbr.rel (%p138) target = $region12
      $region11: #{_lambda_.7} parent=5 // pred_region
        %s142 = ssub.s32 %s11, 1
        // Predicated region
        $region13: #{_lambda_.7} parent=11 // pred_check
          %p143 = pneg %p44
        $region14: #{_lambda_.7} parent=11 // pred_check_branch
          %145 = sbr.rel (%p143) target = $region16
        $region15: #{_lambda_.7} parent=11 // pred_region
          %s147 = ssub.s32 64, 64
          %148 = vsyncadd [#allocation3], %s147
          %151 = dma.hbm_to_smem %s0, 64, [#allocation2], [#allocation3]
        $region16: #{_lambda_.7} parent=11 // pred_fallthru
          _
      $region12: #{_lambda_.7} parent=5 // pred_fallthru
        _
      %p152 = scmp.lt.s32.totalorder %s11, 3
      // Predicated region
      $region17: #{_lambda_.7} parent=5 // pred_check
        %p153 = pneg %p152
      $region18: #{_lambda_.7} parent=5 // pred_check_branch
        %155 = sbr.rel (%p153) target = $region20
      $region19: #{_lambda_.7} parent=5 // pred_region
        // Predicated region
        $region21: #{_lambda_.7} parent=19 // pred_check
          %p156 = pneg %p66
        $region22: #{_lambda_.7} parent=19 // pred_check_branch
          %158 = sbr.rel (%p156) target = $region24
        $region23: #{_lambda_.7} parent=19 // pred_region
          %p159 = scmp.lt.s32.totalorder %s18, 2
          %s160 = scalar_select %p159, %s18, 2
          %p161 = scmp.lt.s32.totalorder %s19, 0
          %s162 = scalar_select %p161, %s19, 0
          %s163 = sadd.s32 %s162, %s160
          %s164 = smul.addr %s163, 8
          %s165 = scalar_lea.vmem %s1, %s164
        $region24: #{_lambda_.7} parent=19 // pred_fallthru
          _
      $region20: #{_lambda_.7} parent=5 // pred_fallthru
        _
      %p166 = scmp.le.s32.totalorder 1, %s11
      %p167 = scmp.lt.s32.totalorder %s11, 4
      %p168 = pnand %p166, %p167
      %p169 = pneg %p168
      // Predicated region
      $region25: #{_lambda_.7} parent=5 // pred_check
        _
      $region26: #{_lambda_.7} parent=5 // pred_check_branch
        %171 = sbr.rel (%p168) target = $region28
      $region27: #{_lambda_.7} parent=5 // pred_region
        %s172 = ssub.s32 %s11, 1
        // Predicated region
        $region29: #{_lambda_.7} parent=27 // pred_check
          %p173 = pneg %p44
        $region30: #{_lambda_.7} parent=27 // pred_check_branch
          %175 = sbr.rel (%p173) target = $region32
        $region31: #{_lambda_.7} parent=27 // pred_region
          %176 = dma.done [#allocation3], 64
        $region32: #{_lambda_.7} parent=27 // pred_fallthru
          _
        %177 = sfence
        %p178 = pneg %p44
        %p179 = pneg %p41
        %p180 = scmp.lt.s32.totalorder %s20, 2
        %s181 = scalar_select %p180, %s20, 2
        %p182 = scmp.lt.s32.totalorder %s21, 0
        %s183 = scalar_select %p182, %s21, 0
        %s184 = sadd.s32 %s183, %s181
        %s185 = smul.addr %s184, 8
        %s186 = scalar_lea.vmem %s1, %s185
        %p187 = pneg %p72
        %p188 = pneg %p69
        %p189 = pneg %p100
        %p190 = pneg %p97
        %p191 = scmp.lt.s32.totalorder %s20, 2
        %s192 = scalar_select %p191, %s20, 2
        %p193 = scmp.lt.s32.totalorder %s21, 0
        %s194 = scalar_select %p193, %s21, 0
        %s195 = sadd.s32 %s194, %s192
        %s196 = smul.addr %s195, 8
        %s197 = scalar_lea.vmem %s2, %s196
        %p198 = pneg %p128
        %p199 = pneg %p125
        %p200 = scmp.lt.s32.totalorder %s20, 2
        %s201 = scalar_select %p200, %s20, 2
        %p202 = scmp.lt.s32.totalorder %s21, 0
        %s203 = scalar_select %p202, %s21, 0
        %s204 = sadd.s32 %s203, %s201
        %s205 = smul.addr %s204, 8
        %s206 = scalar_lea.vmem %s3, %s205
        %p207 = scmp.lt.s32.totalorder %s20, 2
        %s208 = scalar_select %p207, %s20, 2
        %p209 = scmp.lt.s32.totalorder %s21, 0
        %s210 = scalar_select %p209, %s21, 0
        %s211 = sadd.s32 %s210, %s208
        %s212 = smul.addr %s211, 8
        %s213 = scalar_lea.vmem %s1, %s212
        %p214 = scmp.lt.s32.totalorder %s20, 2
        %s215 = scalar_select %p214, %s20, 2
        %p216 = scmp.lt.s32.totalorder %s21, 0
        %s217 = scalar_select %p216, %s21, 0
        %s218 = sadd.s32 %s217, %s215
        %s219 = smul.addr %s218, 8
        %s220 = scalar_lea.vmem %s2, %s219
        %p221 = scmp.lt.s32.totalorder %s20, 2
        %s222 = scalar_select %p221, %s20, 2
        %p223 = scmp.lt.s32.totalorder %s21, 0
        %s224 = scalar_select %p223, %s21, 0
        %s225 = sadd.s32 %s224, %s222
        %s226 = smul.addr %s225, 8
        %s227 = scalar_lea.vmem %s3, %s226
        %v228 = vld [vmem:[%s213] sm:$0xff]
        %s229 = smul.u32 %s20, 128
        %s230 = sld [smem:[#allocation2 + %s229]]
        %v231 = vstv %s230
        %v232 = vsub.f32 %v228, %v231
        %v233 = vround.ne.pseudo %v232
        %v234 = vadd.f32 %v233, %v231
        %235 = vst [vmem:[%s220] sm:$0xff] %v234
        %v236 = vsub.f32 %v234, 0.5
        %s237 = sadd.s32 %s229, 1
        %s238 = sld [smem:[#allocation2 + %s237]]
        %v239 = vstv %s238
        %v240 = vmul.f32 %v239, %v236
        %s241 = sadd.s32 %s229, 4
        %s242 = sld [smem:[#allocation2 + %s241]]
        %v243 = vstv %s242
        %v244 = vadd.f32 %v240, %v243
        %s245 = sadd.s32 %s229, 2
        %s246 = sld [smem:[#allocation2 + %s245]]
        %v247 = vstv %s246
        %v248 = vmul.f32 %v247, %v236
        %s249 = sadd.s32 %s229, 5
        %s250 = sld [smem:[#allocation2 + %s249]]
        %v251 = vstv %s250
        %v252 = vadd.f32 %v248, %v251
        %s253 = sadd.s32 %s229, 3
        %s254 = sld [smem:[#allocation2 + %s253]]
        %v255 = vstv %s254
        %v256 = vmul.f32 %v255, %v236
        %s257 = sadd.s32 %s229, 6
        %s258 = sld [smem:[#allocation2 + %s257]]
        %v259 = vstv %s258
        %v260 = vadd.f32 %v256, %v259
        %s261 = sadd.s32 %s229, 7
        %s262 = sld [smem:[#allocation2 + %s261]]
        %v263 = vtanh.pop %v244
        %v264 = vstv %s262
        %v265 = vmul.f32 %v264, %v263
        %v266 = vadd.f32 %v244, %v265
        %s267 = sadd.s32 %s229, 8
        %s268 = sld [smem:[#allocation2 + %s267]]
        %v269 = vtanh.pop %v252
        %v270 = vstv %s268
        %v271 = vmul.f32 %v270, %v269
        %v272 = vadd.f32 %v252, %v271
        %s273 = sadd.s32 %s229, 9
        %s274 = sld [smem:[#allocation2 + %s273]]
        %v275 = vtanh.pop %v260
        %v276 = vstv %s274
        %v277 = vmul.f32 %v276, %v275
        %v278 = vadd.f32 %v260, %v277
        %s279 = sadd.s32 %s229, 10
        %s280 = sld [smem:[#allocation2 + %s279]]
        %v281 = vstv %s280
        %v282 = vmul.f32 %v281, %v266
        %s283 = sadd.s32 %s229, 11
        %s284 = sld [smem:[#allocation2 + %s283]]
        %v285 = vstv %s284
        %v286 = vmul.f32 %v285, %v272
        %v287 = vadd.f32 %v282, %v286
        %s288 = sadd.s32 %s229, 12
        %s289 = sld [smem:[#allocation2 + %s288]]
        %v290 = vstv %s289
        %v291 = vmul.f32 %v290, %v278
        %v292 = vadd.f32 %v287, %v291
        %s293 = sadd.s32 %s229, 19
        %s294 = sld [smem:[#allocation2 + %s293]]
        %v295 = vstv %s294
        %v296 = vadd.f32 %v292, %v295
        %s297 = sadd.s32 %s229, 22
        %s298 = sld [smem:[#allocation2 + %s297]]
        %v299 = vtanh.pop %v296
        %v300 = vstv %s298
        %v301 = vmul.f32 %v300, %v299
        %v302 = vadd.f32 %v296, %v301
        %s303 = sadd.s32 %s229, 13
        %s304 = sld [smem:[#allocation2 + %s303]]
        %v305 = vstv %s304
        %v306 = vmul.f32 %v305, %v266
        %s307 = sadd.s32 %s229, 14
        %s308 = sld [smem:[#allocation2 + %s307]]
        %v309 = vstv %s308
        %v310 = vmul.f32 %v309, %v272
        %v311 = vadd.f32 %v306, %v310
        %s312 = sadd.s32 %s229, 15
        %s313 = sld [smem:[#allocation2 + %s312]]
        %v314 = vstv %s313
        %v315 = vmul.f32 %v314, %v278
        %v316 = vadd.f32 %v311, %v315
        %s317 = sadd.s32 %s229, 20
        %s318 = sld [smem:[#allocation2 + %s317]]
        %v319 = vstv %s318
        %v320 = vadd.f32 %v316, %v319
        %s321 = sadd.s32 %s229, 23
        %s322 = sld [smem:[#allocation2 + %s321]]
        %v323 = vtanh.pop %v320
        %v324 = vstv %s322
        %v325 = vmul.f32 %v324, %v323
        %v326 = vadd.f32 %v320, %v325
        %s327 = sadd.s32 %s229, 16
        %s328 = sld [smem:[#allocation2 + %s327]]
        %v329 = vstv %s328
        %v330 = vmul.f32 %v329, %v266
        %s331 = sadd.s32 %s229, 17
        %s332 = sld [smem:[#allocation2 + %s331]]
        %v333 = vstv %s332
        %v334 = vmul.f32 %v333, %v272
        %v335 = vadd.f32 %v330, %v334
        %s336 = sadd.s32 %s229, 18
        %s337 = sld [smem:[#allocation2 + %s336]]
        %v338 = vstv %s337
        %v339 = vmul.f32 %v338, %v278
        %v340 = vadd.f32 %v335, %v339
        %s341 = sadd.s32 %s229, 21
        %s342 = sld [smem:[#allocation2 + %s341]]
        %v343 = vstv %s342
        %v344 = vadd.f32 %v340, %v343
        %s345 = sadd.s32 %s229, 24
        %s346 = sld [smem:[#allocation2 + %s345]]
        %v347 = vtanh.pop %v344
        %v348 = vstv %s346
        %v349 = vmul.f32 %v348, %v347
        %v350 = vadd.f32 %v344, %v349
        %s351 = sadd.s32 %s229, 25
        %s352 = sld [smem:[#allocation2 + %s351]]
        %v353 = vstv %s352
        %v354 = vmul.f32 %v353, %v302
        %s355 = sadd.s32 %s229, 26
        %s356 = sld [smem:[#allocation2 + %s355]]
        %v357 = vstv %s356
        %v358 = vmul.f32 %v357, %v326
        %v359 = vadd.f32 %v354, %v358
        %s360 = sadd.s32 %s229, 27
        %s361 = sld [smem:[#allocation2 + %s360]]
        %v362 = vstv %s361
        %v363 = vmul.f32 %v362, %v350
        %v364 = vadd.f32 %v359, %v363
        %s365 = sadd.s32 %s229, 34
        %s366 = sld [smem:[#allocation2 + %s365]]
        %v367 = vstv %s366
        %v368 = vadd.f32 %v364, %v367
        %s369 = sadd.s32 %s229, 37
        %s370 = sld [smem:[#allocation2 + %s369]]
        %v371 = vtanh.pop %v368
        %v372 = vstv %s370
        %v373 = vmul.f32 %v372, %v371
        %v374 = vadd.f32 %v368, %v373
        %s375 = sadd.s32 %s229, 28
        %s376 = sld [smem:[#allocation2 + %s375]]
        %v377 = vstv %s376
        %v378 = vmul.f32 %v377, %v302
        %s379 = sadd.s32 %s229, 29
        %s380 = sld [smem:[#allocation2 + %s379]]
        %v381 = vstv %s380
        %v382 = vmul.f32 %v381, %v326
        %v383 = vadd.f32 %v378, %v382
        %s384 = sadd.s32 %s229, 30
        %s385 = sld [smem:[#allocation2 + %s384]]
        %v386 = vstv %s385
        %v387 = vmul.f32 %v386, %v350
        %v388 = vadd.f32 %v383, %v387
        %s389 = sadd.s32 %s229, 35
        %s390 = sld [smem:[#allocation2 + %s389]]
        %v391 = vstv %s390
        %v392 = vadd.f32 %v388, %v391
        %s393 = sadd.s32 %s229, 38
        %s394 = sld [smem:[#allocation2 + %s393]]
        %v395 = vtanh.pop %v392
        %v396 = vstv %s394
        %v397 = vmul.f32 %v396, %v395
        %v398 = vadd.f32 %v392, %v397
        %s399 = sadd.s32 %s229, 31
        %s400 = sld [smem:[#allocation2 + %s399]]
        %v401 = vstv %s400
        %v402 = vmul.f32 %v401, %v302
        %s403 = sadd.s32 %s229, 32
        %s404 = sld [smem:[#allocation2 + %s403]]
        %v405 = vstv %s404
        %v406 = vmul.f32 %v405, %v326
        %v407 = vadd.f32 %v402, %v406
        %s408 = sadd.s32 %s229, 33
        %s409 = sld [smem:[#allocation2 + %s408]]
        %v410 = vstv %s409
        %v411 = vmul.f32 %v410, %v350
        %v412 = vadd.f32 %v407, %v411
        %s413 = sadd.s32 %s229, 36
        %s414 = sld [smem:[#allocation2 + %s413]]
        %v415 = vstv %s414
        %v416 = vadd.f32 %v412, %v415
        %s417 = sadd.s32 %s229, 39
        %s418 = sld [smem:[#allocation2 + %s417]]
        %v419 = vtanh.pop %v416
        %v420 = vstv %s418
        %v421 = vmul.f32 %v420, %v419
        %v422 = vadd.f32 %v416, %v421
        %s423 = sadd.s32 %s229, 40
        %s424 = sld [smem:[#allocation2 + %s423]]
        %v425 = vstv %s424
        %v426 = vmul.f32 %v425, %v374
        %s427 = sadd.s32 %s229, 41
        %s428 = sld [smem:[#allocation2 + %s427]]
        %v429 = vstv %s428
        %v430 = vmul.f32 %v429, %v398
        %v431 = vadd.f32 %v426, %v430
        %s432 = sadd.s32 %s229, 42
        %s433 = sld [smem:[#allocation2 + %s432]]
        %v434 = vstv %s433
        %v435 = vmul.f32 %v434, %v422
        %v436 = vadd.f32 %v431, %v435
        %s437 = sadd.s32 %s229, 49
        %s438 = sld [smem:[#allocation2 + %s437]]
        %v439 = vstv %s438
        %v440 = vadd.f32 %v436, %v439
        %s441 = sadd.s32 %s229, 52
        %s442 = sld [smem:[#allocation2 + %s441]]
        %v443 = vtanh.pop %v440
        %v444 = vstv %s442
        %v445 = vmul.f32 %v444, %v443
        %v446 = vadd.f32 %v440, %v445
        %s447 = sadd.s32 %s229, 43
        %s448 = sld [smem:[#allocation2 + %s447]]
        %v449 = vstv %s448
        %v450 = vmul.f32 %v449, %v374
        %s451 = sadd.s32 %s229, 44
        %s452 = sld [smem:[#allocation2 + %s451]]
        %v453 = vstv %s452
        %v454 = vmul.f32 %v453, %v398
        %v455 = vadd.f32 %v450, %v454
        %s456 = sadd.s32 %s229, 45
        %s457 = sld [smem:[#allocation2 + %s456]]
        %v458 = vstv %s457
        %v459 = vmul.f32 %v458, %v422
        %v460 = vadd.f32 %v455, %v459
        %s461 = sadd.s32 %s229, 50
        %s462 = sld [smem:[#allocation2 + %s461]]
        %v463 = vstv %s462
        %v464 = vadd.f32 %v460, %v463
        %s465 = sadd.s32 %s229, 53
        %s466 = sld [smem:[#allocation2 + %s465]]
        %v467 = vtanh.pop %v464
        %v468 = vstv %s466
        %v469 = vmul.f32 %v468, %v467
        %v470 = vadd.f32 %v464, %v469
        %s471 = sadd.s32 %s229, 46
        %s472 = sld [smem:[#allocation2 + %s471]]
        %v473 = vstv %s472
        %v474 = vmul.f32 %v473, %v374
        %s475 = sadd.s32 %s229, 47
        %s476 = sld [smem:[#allocation2 + %s475]]
        %v477 = vstv %s476
        %v478 = vmul.f32 %v477, %v398
        %v479 = vadd.f32 %v474, %v478
        %s480 = sadd.s32 %s229, 48
        %s481 = sld [smem:[#allocation2 + %s480]]
        %v482 = vstv %s481
        %v483 = vmul.f32 %v482, %v422
        %v484 = vadd.f32 %v479, %v483
        %s485 = sadd.s32 %s229, 51
        %s486 = sld [smem:[#allocation2 + %s485]]
        %v487 = vstv %s486
        %v488 = vadd.f32 %v484, %v487
        %s489 = sadd.s32 %s229, 54
        %s490 = sld [smem:[#allocation2 + %s489]]
        %v491 = vtanh.pop %v488
        %v492 = vstv %s490
        %v493 = vmul.f32 %v492, %v491
        %v494 = vadd.f32 %v488, %v493
        %s495 = sadd.s32 %s229, 55
        %s496 = sld [smem:[#allocation2 + %s495]]
        %v497 = vstv %s496
        %v498 = vmul.f32 %v497, %v446
        %s499 = sadd.s32 %s229, 56
        %s500 = sld [smem:[#allocation2 + %s499]]
        %v501 = vstv %s500
        %v502 = vmul.f32 %v501, %v470
        %v503 = vadd.f32 %v498, %v502
        %s504 = sadd.s32 %s229, 57
        %s505 = sld [smem:[#allocation2 + %s504]]
        %v506 = vstv %s505
        %v507 = vmul.f32 %v506, %v494
        %v508 = vadd.f32 %v503, %v507
        %s509 = sadd.s32 %s229, 58
        %s510 = sld [smem:[#allocation2 + %s509]]
        %v511 = vstv %s510
        %v512 = vadd.f32 %v508, %v511
        %v513 = vadd.f32 %v234, 0.5
        %v514 = vmul.f32 %v239, %v513
        %v515 = vadd.f32 %v514, %v243
        %v516 = vmul.f32 %v247, %v513
        %v517 = vadd.f32 %v516, %v251
        %v518 = vmul.f32 %v255, %v513
        %v519 = vadd.f32 %v518, %v259
        %v520 = vtanh.pop %v515
        %v521 = vmul.f32 %v264, %v520
        %v522 = vadd.f32 %v515, %v521
        %v523 = vtanh.pop %v517
        %v524 = vmul.f32 %v270, %v523
        %v525 = vadd.f32 %v517, %v524
        %v526 = vtanh.pop %v519
        %v527 = vmul.f32 %v276, %v526
        %v528 = vadd.f32 %v519, %v527
        %v529 = vmul.f32 %v281, %v522
        %v530 = vmul.f32 %v285, %v525
        %v531 = vadd.f32 %v529, %v530
        %v532 = vmul.f32 %v290, %v528
        %v533 = vadd.f32 %v531, %v532
        %v534 = vadd.f32 %v533, %v295
        %v535 = vtanh.pop %v534
        %v536 = vmul.f32 %v300, %v535
        %v537 = vadd.f32 %v534, %v536
        %v538 = vmul.f32 %v305, %v522
        %v539 = vmul.f32 %v309, %v525
        %v540 = vadd.f32 %v538, %v539
        %v541 = vmul.f32 %v314, %v528
        %v542 = vadd.f32 %v540, %v541
        %v543 = vadd.f32 %v542, %v319
        %v544 = vtanh.pop %v543
        %v545 = vmul.f32 %v324, %v544
        %v546 = vadd.f32 %v543, %v545
        %v547 = vmul.f32 %v329, %v522
        %v548 = vmul.f32 %v333, %v525
        %v549 = vadd.f32 %v547, %v548
        %v550 = vmul.f32 %v338, %v528
        %v551 = vadd.f32 %v549, %v550
        %v552 = vadd.f32 %v551, %v343
        %v553 = vtanh.pop %v552
        %v554 = vmul.f32 %v348, %v553
        %v555 = vadd.f32 %v552, %v554
        %v556 = vmul.f32 %v353, %v537
        %v557 = vmul.f32 %v357, %v546
        %v558 = vadd.f32 %v556, %v557
        %v559 = vmul.f32 %v362, %v555
        %v560 = vadd.f32 %v558, %v559
        %v561 = vadd.f32 %v560, %v367
        %v562 = vtanh.pop %v561
        %v563 = vmul.f32 %v372, %v562
        %v564 = vadd.f32 %v561, %v563
        %v565 = vmul.f32 %v377, %v537
        %v566 = vmul.f32 %v381, %v546
        %v567 = vadd.f32 %v565, %v566
        %v568 = vmul.f32 %v386, %v555
        %v569 = vadd.f32 %v567, %v568
        %v570 = vadd.f32 %v569, %v391
        %v571 = vtanh.pop %v570
        %v572 = vmul.f32 %v396, %v571
        %v573 = vadd.f32 %v570, %v572
        %v574 = vmul.f32 %v401, %v537
        %v575 = vmul.f32 %v405, %v546
        %v576 = vadd.f32 %v574, %v575
        %v577 = vmul.f32 %v410, %v555
        %v578 = vadd.f32 %v576, %v577
        %v579 = vadd.f32 %v578, %v415
        %v580 = vtanh.pop %v579
        %v581 = vmul.f32 %v420, %v580
        %v582 = vadd.f32 %v579, %v581
        %v583 = vmul.f32 %v425, %v564
        %v584 = vmul.f32 %v429, %v573
        %v585 = vadd.f32 %v583, %v584
        %v586 = vmul.f32 %v434, %v582
        %v587 = vadd.f32 %v585, %v586
        %v588 = vadd.f32 %v587, %v439
        %v589 = vtanh.pop %v588
        %v590 = vmul.f32 %v444, %v589
        %v591 = vadd.f32 %v588, %v590
        %v592 = vmul.f32 %v449, %v564
        %v593 = vmul.f32 %v453, %v573
        %v594 = vadd.f32 %v592, %v593
        %v595 = vmul.f32 %v458, %v582
        %v596 = vadd.f32 %v594, %v595
        %v597 = vadd.f32 %v596, %v463
        %v598 = vtanh.pop %v597
        %v599 = vmul.f32 %v468, %v598
        %v600 = vadd.f32 %v597, %v599
        %v601 = vmul.f32 %v473, %v564
        %v602 = vmul.f32 %v477, %v573
        %v603 = vadd.f32 %v601, %v602
        %v604 = vmul.f32 %v482, %v582
        %v605 = vadd.f32 %v603, %v604
        %v606 = vadd.f32 %v605, %v487
        %v607 = vtanh.pop %v606
        %v608 = vmul.f32 %v492, %v607
        %v609 = vadd.f32 %v606, %v608
        %v610 = vmul.f32 %v497, %v591
        %v611 = vmul.f32 %v501, %v600
        %v612 = vadd.f32 %v610, %v611
        %v613 = vmul.f32 %v506, %v609
        %v614 = vadd.f32 %v612, %v613
        %v615 = vadd.f32 %v614, %v511
        %v616 = vadd.f32 %v512, %v615
        %vm617 = vcmp.gt.f32.partialorder %v616, 0.0
        %vm618 = vcmp.lt.f32.partialorder %v616, 0.0
        %v619 = vsel %vm618, 1.0, 0.0
        %v620 = vsel %vm617, -1.0, %v619
        %v621 = vmul.f32 %v620, %v615
        %v622 = vsub.f32 0.0, %v621
        %v623 = vmul.f32 %v622, 1.442695
        %v624 = vpow.pop %v623
        %v625 = vadd.f32 %v624, 1.0
        %v626 = vrcp.pop %v625
        %v627 = vmul.f32 1.0, %v626
        %v628 = vmul.f32 %v620, %v512
        %v629 = vsub.f32 0.0, %v628
        %v630 = vmul.f32 %v629, 1.442695
        %v631 = vpow.pop %v630
        %v632 = vadd.f32 %v631, 1.0
        %v633 = vrcp.pop %v632
        %v634 = vmul.f32 1.0, %v633
        %v635 = vsub.f32 %v627, %v634
        %v636 = vand.u32 2147483647, %v635
        %v637 = vmax.f32 %v636, 1e-09
        %v638 = vlog2.pop %v637
        %v639 = vmul.f32 %v638, 0.6931472
        %v640 = vrcp.pop 0.6931472
        %v641 = vmul.f32 %v639, %v640
        %v642 = vsub.f32 0.0, %v641
        %643 = vst [vmem:[%s227] sm:$0xff] %v642
        %p644 = scmp.lt.s32.totalorder %s20, 2
        %s645 = scalar_select %p644, %s20, 2
        %p646 = scmp.lt.s32.totalorder %s21, 0
        %s647 = scalar_select %p646, %s21, 0
        %s648 = sadd.s32 %s647, %s645
        %s649 = smul.addr %s648, 8
        %s650 = scalar_lea.vmem %s2, %s649
        %p651 = scmp.lt.s32.totalorder %s20, 2
        %s652 = scalar_select %p651, %s20, 2
        %p653 = scmp.lt.s32.totalorder %s21, 0
        %s654 = scalar_select %p653, %s21, 0
        %s655 = sadd.s32 %s654, %s652
        %s656 = smul.addr %s655, 8
        %s657 = scalar_lea.vmem %s3, %s656
        // Predicated region
        $region33: #{_lambda_.7} parent=27 // pred_check
          %p658 = pneg %p97
        $region34: #{_lambda_.7} parent=27 // pred_check_branch
          %660 = sbr.rel (%p658) target = $region36
        $region35: #{_lambda_.7} parent=27 // pred_region
          _
        $region36: #{_lambda_.7} parent=27 // pred_fallthru
          _
        // Predicated region
        $region37: #{_lambda_.7} parent=27 // pred_check
          %p661 = pneg %p125
        $region38: #{_lambda_.7} parent=27 // pred_check_branch
          %663 = sbr.rel (%p661) target = $region40
        $region39: #{_lambda_.7} parent=27 // pred_region
          _
        $region40: #{_lambda_.7} parent=27 // pred_fallthru
          _
      $region28: #{_lambda_.7} parent=5 // pred_fallthru
        _
      %p664 = scmp.le.s32.totalorder 2, %s11
      // Predicated region
      $region41: #{_lambda_.7} parent=5 // pred_check
        %p665 = pneg %p664
      $region42: #{_lambda_.7} parent=5 // pred_check_branch
        %667 = sbr.rel (%p665) target = $region44
      $region43: #{_lambda_.7} parent=5 // pred_region
        %s668 = ssub.s32 %s11, 2
        // Predicated region
        $region45: #{_lambda_.7} parent=43 // pred_check
          %p669 = pneg %p103
        $region46: #{_lambda_.7} parent=43 // pred_check_branch
          %671 = sbr.rel (%p669) target = $region48
        $region47: #{_lambda_.7} parent=43 // pred_region
          %p672 = scmp.lt.s32.totalorder %s22, 2
          %s673 = scalar_select %p672, %s22, 2
          %p674 = scmp.lt.s32.totalorder %s23, 0
          %s675 = scalar_select %p674, %s23, 0
          %s676 = sadd.s32 %s675, %s673
          %s677 = smul.addr %s676, 8
          %s678 = scalar_lea.vmem %s2, %s677
        $region48: #{_lambda_.7} parent=43 // pred_fallthru
          _
        // Predicated region
        $region49: #{_lambda_.7} parent=43 // pred_check
          %p679 = pneg %p131
        $region50: #{_lambda_.7} parent=43 // pred_check_branch
          %681 = sbr.rel (%p679) target = $region52
        $region51: #{_lambda_.7} parent=43 // pred_region
          %p682 = scmp.lt.s32.totalorder %s22, 2
          %s683 = scalar_select %p682, %s22, 2
          %p684 = scmp.lt.s32.totalorder %s23, 0
          %s685 = scalar_select %p684, %s23, 0
          %s686 = sadd.s32 %s685, %s683
          %s687 = smul.addr %s686, 8
          %s688 = scalar_lea.vmem %s3, %s687
        $region52: #{_lambda_.7} parent=43 // pred_fallthru
          _
      $region44: #{_lambda_.7} parent=5 // pred_fallthru
        _
    $region6: #{_lambda_.7} parent=1 // loop_footer
      %s15 = sadd.s32 1, %s11
    $region7: #{_lambda_.7} parent=1 // loop_footer_branch
      %10 = sbr.rel target = $region3
    $region8: #{_lambda_.7} parent=1 // loop_exit
      _
    %689 = vsyncpa [#allocation3], 1
    %s690 = scalar_lea.sflag [#allocation3], 1
    %691 = vsyncpa %s690, 1

// kernel: _lambda_.8
$region0: #{_lambda_.8}
  #allocation0 [shape = 'u32[]', space=smem, size = 0x4, offset = 0x4, fixed_abs, tag = 'smem constant byte address 0x4 - core index']
  #allocation1 [shape = 'u32[144,128]{1,0:T(1,128)}', space=vmem, size = 0x12000, scoped, tag = 'internal scratch']
  #allocation2 [shape = 'f32[256,256]{1,0:T(8,128)}', space=vmem, size = 0x40000, scoped, tag = 'scratch operand']
  %s0 = inlined_call_operand.vmem [shape: bf16[512,128], index: 0, kind: input, shape index: {}]
  %s1 = inlined_call_operand.hbm [shape: bf16[128,256], index: 1, kind: input, shape index: {}]
  %s2 = inlined_call_operand.hbm [shape: f32[1,256], index: 2, kind: input, shape index: {}]
  %s3 = inlined_call_operand.vmem [shape: f32[512,256], index: 3, kind: output, shape index: {}]
  %s4 = sld [smem:[#allocation0]]
  $region61: #{_lambda_.8} parent=0
    _
  %s6 = ssub.s32 1, %s4
  %s7 = scalar_select 0, %s6, %s4
  $region1: #{_lambda_.8} parent=0
    #allocation3 [shape = 'u8[65536]{0}', space=vmem, size = 0x10000, scoped, tag = 'input window, operand 1, single buffered']
    #allocation4 [shape = 's32[2]{0}', space=sflag, size = 0x8, scoped, tag = 'scoped memory for _lambda_.8']
    #allocation5 [shape = 'u8[1024]{0}', space=vmem, size = 0x400, scoped, tag = 'input window, operand 2, single buffered']
    #allocation6 [shape = 's32[1]{0}', space=sflag, size = 0x4, scoped, tag = 'scoped memory for _lambda_.8']
    %8 = vsyncpa [#allocation4], 0
    %9 = vsyncpa [#allocation6], 0
    loop: start=0, step=1, limit=4
    $region2: #{_lambda_.8} parent=1 // loop_pre_header
      _
    $region3: #{_lambda_.8} parent=1 // loop_header
      %s11 = sphi 0, %s15
      %p12 = scmp.ge.s32.totalorder %s11, 4
      %s18 = sphi 0, %s37
      %s19 = sphi 0, %s33
      %s20 = sphi 0, %s29
      %s21 = sphi 0, %s18
      %s22 = sphi 0, %s19
      %s23 = sphi 0, %s20
      %s24 = sphi 0, %s21
      %s25 = sphi 0, %s22
      %s26 = sphi 0, %s23
      %s42 = sphi 0, %s44
      %s45 = sphi 0, %s42
      %s46 = sphi 0, %s45
      %s62 = sphi 0, %s46
      %s70 = sphi 0, %s72
      %s73 = sphi 0, %s70
      %s74 = sphi 0, %s73
      %s90 = sphi 0, %s74
      %s96 = sphi 0, %s98
      %s99 = sphi 0, %s96
      %s100 = sphi 0, %s99
      %s116 = sphi 0, %s100
      %s124 = sphi 0, %s126
      %s127 = sphi 0, %s124
      %s128 = sphi 0, %s127
      %s144 = sphi 0, %s128
    $region4: #{_lambda_.8} parent=1 // loop_header_branch
      %14 = sbr.rel (%p12) target = $region8
    $region5: #{_lambda_.8} parent=1 // loop_body
      %s16 = ssub.s32 %s11, 1
      %s17 = ssub.s32 %s11, 2
      %s27 = sadd.s32 1, %s20
      %p28 = scmp.ge.s32.totalorder %s27, 1
      %s29 = scalar_select %p28, 0, %s27
      %s30 = sadd.s32 1, %s19
      %s31 = scalar_select %p28, %s30, %s19
      %p32 = scmp.ge.s32.totalorder %s31, 1
      %s33 = scalar_select %p32, 0, %s31
      %s34 = sadd.s32 1, %s18
      %s35 = scalar_select %p32, %s34, %s18
      %p36 = scmp.ge.s32.totalorder %s35, 2
      %s37 = scalar_select %p36, 0, %s35
      %s38 = ssub.s32 %s18, %s37
      %s39 = ssub.s32 %s20, %s29
      %s40 = sor.u32 %s38, %s39
      %p41 = scmp.eq.s32.totalorder %s40, 0
      %s43 = sadd.s32 %s42, 1
      %s44 = scalar_select %p41, %s42, %s43
      %p47 = pneg %p41
      %p48 = scmp.eq.s32.totalorder %s11, 1
      %p49 = por %p47, %p48
      %p50 = scmp.ne.s32.totalorder %s42, %s45
      %p51 = scmp.eq.s32.totalorder %s11, 0
      %p52 = por %p50, %p51
      %p53 = scmp.ne.s32.totalorder %s42, %s45
      %p54 = scmp.eq.s32.totalorder %s16, 1
      %p55 = por %p53, %p54
      %p56 = scmp.ne.s32.totalorder %s45, %s46
      %p57 = scmp.eq.s32.totalorder %s16, 0
      %p58 = por %p56, %p57
      %p59 = scmp.ne.s32.totalorder %s45, %s46
      %p60 = scmp.eq.s32.totalorder %s17, 1
      %p61 = por %p59, %p60
      %p63 = scmp.ne.s32.totalorder %s46, %s62
      %p64 = scmp.eq.s32.totalorder %s17, 0
      %p65 = por %p63, %p64
      %s66 = ssub.s32 %s20, %s29
      %s67 = ssub.s32 %s19, %s33
      %s68 = sor.u32 %s66, %s67
      %p69 = scmp.eq.s32.totalorder %s68, 0
      %s71 = sadd.s32 %s70, 1
      %s72 = scalar_select %p69, %s70, %s71
      %p75 = pneg %p69
      %p76 = scmp.eq.s32.totalorder %s11, 1
      %p77 = por %p75, %p76
      %p78 = scmp.ne.s32.totalorder %s70, %s73
      %p79 = scmp.eq.s32.totalorder %s11, 0
      %p80 = por %p78, %p79
      %p81 = scmp.ne.s32.totalorder %s70, %s73
      %p82 = scmp.eq.s32.totalorder %s16, 1
      %p83 = por %p81, %p82
      %p84 = scmp.ne.s32.totalorder %s73, %s74
      %p85 = scmp.eq.s32.totalorder %s16, 0
      %p86 = por %p84, %p85
      %p87 = scmp.ne.s32.totalorder %s73, %s74
      %p88 = scmp.eq.s32.totalorder %s17, 1
      %p89 = por %p87, %p88
      %p91 = scmp.ne.s32.totalorder %s74, %s90
      %p92 = scmp.eq.s32.totalorder %s17, 0
      %p93 = por %p91, %p92
      %s94 = ssub.s32 %s19, %s33
      %p95 = scmp.eq.s32.totalorder %s94, 0
      %s97 = sadd.s32 %s96, 1
      %s98 = scalar_select %p95, %s96, %s97
      %p101 = pneg %p95
      %p102 = scmp.eq.s32.totalorder %s11, 1
      %p103 = por %p101, %p102
      %p104 = scmp.ne.s32.totalorder %s96, %s99
      %p105 = scmp.eq.s32.totalorder %s11, 0
      %p106 = por %p104, %p105
      %p107 = scmp.ne.s32.totalorder %s96, %s99
      %p108 = scmp.eq.s32.totalorder %s16, 1
      %p109 = por %p107, %p108
      %p110 = scmp.ne.s32.totalorder %s99, %s100
      %p111 = scmp.eq.s32.totalorder %s16, 0
      %p112 = por %p110, %p111
      %p113 = scmp.ne.s32.totalorder %s99, %s100
      %p114 = scmp.eq.s32.totalorder %s17, 1
      %p115 = por %p113, %p114
      %p117 = scmp.ne.s32.totalorder %s100, %s116
      %p118 = scmp.eq.s32.totalorder %s17, 0
      %p119 = por %p117, %p118
      %s120 = ssub.s32 %s18, %s37
      %s121 = ssub.s32 %s19, %s33
      %s122 = sor.u32 %s120, %s121
      %p123 = scmp.eq.s32.totalorder %s122, 0
      %s125 = sadd.s32 %s124, 1
      %s126 = scalar_select %p123, %s124, %s125
      %p129 = pneg %p123
      %p130 = scmp.eq.s32.totalorder %s11, 1
      %p131 = por %p129, %p130
      %p132 = scmp.ne.s32.totalorder %s124, %s127
      %p133 = scmp.eq.s32.totalorder %s11, 0
      %p134 = por %p132, %p133
      %p135 = scmp.ne.s32.totalorder %s124, %s127
      %p136 = scmp.eq.s32.totalorder %s16, 1
      %p137 = por %p135, %p136
      %p138 = scmp.ne.s32.totalorder %s127, %s128
      %p139 = scmp.eq.s32.totalorder %s16, 0
      %p140 = por %p138, %p139
      %p141 = scmp.ne.s32.totalorder %s127, %s128
      %p142 = scmp.eq.s32.totalorder %s17, 1
      %p143 = por %p141, %p142
      %p145 = scmp.ne.s32.totalorder %s128, %s144
      %p146 = scmp.eq.s32.totalorder %s17, 0
      %p147 = por %p145, %p146
      %p148 = scmp.le.s32.totalorder 1, %s11
      %p149 = scmp.lt.s32.totalorder %s11, 3
      %p150 = pnand %p148, %p149
      %p151 = pneg %p150
      // Predicated region
      $region9: #{_lambda_.8} parent=5 // pred_check
        _
      $region10: #{_lambda_.8} parent=5 // pred_check_branch
        %153 = sbr.rel (%p150) target = $region12
      $region11: #{_lambda_.8} parent=5 // pred_region
        %s154 = ssub.s32 %s11, 1
        // Predicated region
        $region13: #{_lambda_.8} parent=11 // pred_check
          %p155 = pneg %p86
        $region14: #{_lambda_.8} parent=11 // pred_check_branch
          %157 = sbr.rel (%p155) target = $region16
        $region15: #{_lambda_.8} parent=11 // pred_region
          %s158 = smul.u32 16, %s23
          %s159 = smul.u32 2, %s22
          %s161 = ssub.s32 2048, 2048
          %162 = vsyncadd [#allocation4], %s161
          %s163 = smul.addr %s158, 2
          %s164 = sadd.s32 %s159, %s163
          %s165 = smul.addr %s164, 64
          %s166 = scalar_lea.hbm %s1, %s165
          %s167 = sshll.u32 [#allocation3], 4
          %s168 = int_to_ptr.vmem [resolvable:$true] %s167
          %173 = dma.hbm_to_vmem [thread:$0]  %s166, 2048, %s168, [#allocation4], 128, 128, 8
        $region16: #{_lambda_.8} parent=11 // pred_fallthru
          _
        // Predicated region
        $region17: #{_lambda_.8} parent=11 // pred_check
          %p174 = pneg %p112
        $region18: #{_lambda_.8} parent=11 // pred_check_branch
          %176 = sbr.rel (%p174) target = $region20
        $region19: #{_lambda_.8} parent=11 // pred_region
          %s177 = smul.u32 2, %s22
          %s179 = ssub.s32 32, 32
          %180 = vsyncadd [#allocation6], %s179
          %s181 = smul.addr %s177, 16
          %s182 = scalar_lea.hbm %s2, %s181
          %s184 = sshll.u32 [#allocation5], 4
          %s185 = int_to_ptr.vmem [resolvable:$true] %s184
          %187 = dma.hbm_to_vmem [thread:$0]  %s182, 32, %s185, [#allocation6]
        $region20: #{_lambda_.8} parent=11 // pred_fallthru
          _
      $region12: #{_lambda_.8} parent=5 // pred_fallthru
        _
      %p188 = scmp.lt.s32.totalorder %s11, 2
      // Predicated region
      $region21: #{_lambda_.8} parent=5 // pred_check
        %p189 = pneg %p188
      $region22: #{_lambda_.8} parent=5 // pred_check_branch
        %191 = sbr.rel (%p189) target = $region24
      $region23: #{_lambda_.8} parent=5 // pred_region
        // Predicated region
        $region25: #{_lambda_.8} parent=23 // pred_check
          %p192 = pneg %p52
        $region26: #{_lambda_.8} parent=23 // pred_check_branch
          %194 = sbr.rel (%p192) target = $region28
        $region27: #{_lambda_.8} parent=23 // pred_region
          %s195 = smul.u32 32, %s18
          %p196 = scmp.lt.s32.totalorder %s195, 63
          %s197 = scalar_select %p196, %s195, 63
          %p198 = scmp.lt.s32.totalorder %s20, 0
          %s199 = scalar_select %p198, %s20, 0
          %s200 = sadd.s32 %s199, %s197
          %s201 = smul.addr %s200, 4
          %s202 = scalar_lea.vmem %s0, %s201
          %s203 = smul.u32 32, %s18
        $region28: #{_lambda_.8} parent=23 // pred_fallthru
          _
      $region24: #{_lambda_.8} parent=5 // pred_fallthru
        _
      %p204 = scmp.le.s32.totalorder 1, %s11
      %p205 = scmp.lt.s32.totalorder %s11, 3
      %p206 = pnand %p204, %p205
      %p207 = pneg %p206
      // Predicated region
      $region29: #{_lambda_.8} parent=5 // pred_check
        _
      $region30: #{_lambda_.8} parent=5 // pred_check_branch
        %209 = sbr.rel (%p206) target = $region32
      $region31: #{_lambda_.8} parent=5 // pred_region
        %s210 = ssub.s32 %s11, 1
        // Predicated region
        $region33: #{_lambda_.8} parent=31 // pred_check
          %p211 = pneg %p86
        $region34: #{_lambda_.8} parent=31 // pred_check_branch
          %213 = sbr.rel (%p211) target = $region36
        $region35: #{_lambda_.8} parent=31 // pred_region
          %214 = dma.done [#allocation4], 2048
        $region36: #{_lambda_.8} parent=31 // pred_fallthru
          _
        // Predicated region
        $region37: #{_lambda_.8} parent=31 // pred_check
          %p215 = pneg %p112
        $region38: #{_lambda_.8} parent=31 // pred_check_branch
          %217 = sbr.rel (%p215) target = $region40
        $region39: #{_lambda_.8} parent=31 // pred_region
          %218 = dma.done [#allocation6], 32
        $region40: #{_lambda_.8} parent=31 // pred_fallthru
          _
        %s219 = smul.u32 32, %s21
        %p220 = scmp.lt.s32.totalorder %s219, 63
        %s221 = scalar_select %p220, %s219, 63
        %p222 = scmp.lt.s32.totalorder %s23, 0
        %s223 = scalar_select %p222, %s23, 0
        %s224 = sadd.s32 %s223, %s221
        %s225 = smul.addr %s224, 4
        %s226 = scalar_lea.vmem %s0, %s225
        %p227 = pneg %p58
        %p228 = pneg %p55
        %p229 = pneg %p86
        %p230 = pneg %p83
        %p231 = pneg %p112
        %p232 = pneg %p109
        %p233 = pneg %p140
        %p234 = pneg %p137
        %s235 = smul.u32 32, %s21
        %s236 = smul.u32 2, %s22
        %p237 = scmp.lt.s32.totalorder %s235, 63
        %s238 = scalar_select %p237, %s235, 63
        %p239 = scmp.lt.s32.totalorder %s236, 1
        %s240 = scalar_select %p239, %s236, 1
        %s241 = smul.addr %s238, 2
        %s242 = sadd.s32 %s240, %s241
        %s243 = smul.addr %s242, 8
        %s244 = scalar_lea.vmem %s3, %s243
        %s245 = smul.u32 32, %s21
        %p246 = scmp.lt.s32.totalorder %s245, 63
        %s247 = scalar_select %p246, %s245, 63
        %p248 = scmp.lt.s32.totalorder %s23, 0
        %s249 = scalar_select %p248, %s23, 0
        %s250 = sadd.s32 %s249, %s247
        %s251 = smul.addr %s250, 4
        %s252 = scalar_lea.vmem %s0, %s251
        %s253 = smul.u32 32, %s21
        %s254 = smul.u32 16, %s23
        %s255 = smul.u32 2, %s22
        %s256 = smul.u32 2, %s22
        %s257 = smul.u32 32, %s21
        %s258 = smul.u32 2, %s22
        %p259 = scmp.lt.s32.totalorder %s257, 63
        %s260 = scalar_select %p259, %s257, 63
        %p261 = scmp.lt.s32.totalorder %s258, 1
        %s262 = scalar_select %p261, %s258, 1
        %s263 = smul.addr %s260, 2
        %s264 = sadd.s32 %s262, %s263
        %s265 = smul.addr %s264, 8
        %s266 = scalar_lea.vmem %s3, %s265
        %s267 = smul.u32 32, %s21
        %s268 = smul.u32 2, %s22
        %p270 = scmp.eq.s32.totalorder %s23, 0
        // Predicated region
        $region41: #{_lambda_.8} parent=31 // pred_check
          %p271 = pneg %p270
        $region42: #{_lambda_.8} parent=31 // pred_check_branch
          %273 = sbr.rel (%p271) target = $region44
        $region43: #{_lambda_.8} parent=31 // pred_region
          %274 = vst [vmem:[#allocation2] sm:$0xff] 0.0
          %275 = vst [vmem:[#allocation2 + $0x8] sm:$0xff] 0.0
          %276 = vst [vmem:[#allocation2 + $0x10] sm:$0xff] 0.0
          %277 = vst [vmem:[#allocation2 + $0x18] sm:$0xff] 0.0
          %278 = vst [vmem:[#allocation2 + $0x20] sm:$0xff] 0.0
          %279 = vst [vmem:[#allocation2 + $0x28] sm:$0xff] 0.0
          %280 = vst [vmem:[#allocation2 + $0x30] sm:$0xff] 0.0
          %281 = vst [vmem:[#allocation2 + $0x38] sm:$0xff] 0.0
          %282 = vst [vmem:[#allocation2 + $0x40] sm:$0xff] 0.0
          %283 = vst [vmem:[#allocation2 + $0x48] sm:$0xff] 0.0
          %284 = vst [vmem:[#allocation2 + $0x50] sm:$0xff] 0.0
          %285 = vst [vmem:[#allocation2 + $0x58] sm:$0xff] 0.0
          %286 = vst [vmem:[#allocation2 + $0x60] sm:$0xff] 0.0
          %287 = vst [vmem:[#allocation2 + $0x68] sm:$0xff] 0.0
          %288 = vst [vmem:[#allocation2 + $0x70] sm:$0xff] 0.0
          %289 = vst [vmem:[#allocation2 + $0x78] sm:$0xff] 0.0
          %290 = vst [vmem:[#allocation2 + $0x80] sm:$0xff] 0.0
          %291 = vst [vmem:[#allocation2 + $0x88] sm:$0xff] 0.0
          %292 = vst [vmem:[#allocation2 + $0x90] sm:$0xff] 0.0
          %293 = vst [vmem:[#allocation2 + $0x98] sm:$0xff] 0.0
          %294 = vst [vmem:[#allocation2 + $0xa0] sm:$0xff] 0.0
          %295 = vst [vmem:[#allocation2 + $0xa8] sm:$0xff] 0.0
          %296 = vst [vmem:[#allocation2 + $0xb0] sm:$0xff] 0.0
          %297 = vst [vmem:[#allocation2 + $0xb8] sm:$0xff] 0.0
          %298 = vst [vmem:[#allocation2 + $0xc0] sm:$0xff] 0.0
          %299 = vst [vmem:[#allocation2 + $0xc8] sm:$0xff] 0.0
          %300 = vst [vmem:[#allocation2 + $0xd0] sm:$0xff] 0.0
          %301 = vst [vmem:[#allocation2 + $0xd8] sm:$0xff] 0.0
          %302 = vst [vmem:[#allocation2 + $0xe0] sm:$0xff] 0.0
          %303 = vst [vmem:[#allocation2 + $0xe8] sm:$0xff] 0.0
          %304 = vst [vmem:[#allocation2 + $0xf0] sm:$0xff] 0.0
          %305 = vst [vmem:[#allocation2 + $0xf8] sm:$0xff] 0.0
          %306 = vst [vmem:[#allocation2 + $0x100] sm:$0xff] 0.0
          %307 = vst [vmem:[#allocation2 + $0x108] sm:$0xff] 0.0
          %308 = vst [vmem:[#allocation2 + $0x110] sm:$0xff] 0.0
          %309 = vst [vmem:[#allocation2 + $0x118] sm:$0xff] 0.0
          %310 = vst [vmem:[#allocation2 + $0x120] sm:$0xff] 0.0
          %311 = vst [vmem:[#allocation2 + $0x128] sm:$0xff] 0.0
          %312 = vst [vmem:[#allocation2 + $0x130] sm:$0xff] 0.0
          %313 = vst [vmem:[#allocation2 + $0x138] sm:$0xff] 0.0
          %314 = vst [vmem:[#allocation2 + $0x140] sm:$0xff] 0.0
          %315 = vst [vmem:[#allocation2 + $0x148] sm:$0xff] 0.0
          %316 = vst [vmem:[#allocation2 + $0x150] sm:$0xff] 0.0
          %317 = vst [vmem:[#allocation2 + $0x158] sm:$0xff] 0.0
          %318 = vst [vmem:[#allocation2 + $0x160] sm:$0xff] 0.0
          %319 = vst [vmem:[#allocation2 + $0x168] sm:$0xff] 0.0
          %320 = vst [vmem:[#allocation2 + $0x170] sm:$0xff] 0.0
          %321 = vst [vmem:[#allocation2 + $0x178] sm:$0xff] 0.0
          %322 = vst [vmem:[#allocation2 + $0x180] sm:$0xff] 0.0
          %323 = vst [vmem:[#allocation2 + $0x188] sm:$0xff] 0.0
          %324 = vst [vmem:[#allocation2 + $0x190] sm:$0xff] 0.0
          %325 = vst [vmem:[#allocation2 + $0x198] sm:$0xff] 0.0
          %326 = vst [vmem:[#allocation2 + $0x1a0] sm:$0xff] 0.0
          %327 = vst [vmem:[#allocation2 + $0x1a8] sm:$0xff] 0.0
          %328 = vst [vmem:[#allocation2 + $0x1b0] sm:$0xff] 0.0
          %329 = vst [vmem:[#allocation2 + $0x1b8] sm:$0xff] 0.0
          %330 = vst [vmem:[#allocation2 + $0x1c0] sm:$0xff] 0.0
          %331 = vst [vmem:[#allocation2 + $0x1c8] sm:$0xff] 0.0
          %332 = vst [vmem:[#allocation2 + $0x1d0] sm:$0xff] 0.0
          %333 = vst [vmem:[#allocation2 + $0x1d8] sm:$0xff] 0.0
          %334 = vst [vmem:[#allocation2 + $0x1e0] sm:$0xff] 0.0
          %335 = vst [vmem:[#allocation2 + $0x1e8] sm:$0xff] 0.0
          %336 = vst [vmem:[#allocation2 + $0x1f0] sm:$0xff] 0.0
          %337 = vst [vmem:[#allocation2 + $0x1f8] sm:$0xff] 0.0
        $region44: #{_lambda_.8} parent=31 // pred_fallthru
          _
        %v338 = vld [vmem:[#allocation2] sm:$0xff]
        %v339 = vld [vmem:[#allocation2 + $0x8] sm:$0xff]
        %v340 = vld [vmem:[#allocation2 + $0x10] sm:$0xff]
        %v341 = vld [vmem:[#allocation2 + $0x18] sm:$0xff]
        %v342 = vld [vmem:[#allocation2 + $0x20] sm:$0xff]
        %v343 = vld [vmem:[#allocation2 + $0x28] sm:$0xff]
        %v344 = vld [vmem:[#allocation2 + $0x30] sm:$0xff]
        %v345 = vld [vmem:[#allocation2 + $0x38] sm:$0xff]
        %v346 = vld [vmem:[#allocation2 + $0x40] sm:$0xff]
        %v347 = vld [vmem:[#allocation2 + $0x48] sm:$0xff]
        %v348 = vld [vmem:[#allocation2 + $0x50] sm:$0xff]
        %v349 = vld [vmem:[#allocation2 + $0x58] sm:$0xff]
        %v350 = vld [vmem:[#allocation2 + $0x60] sm:$0xff]
        %v351 = vld [vmem:[#allocation2 + $0x68] sm:$0xff]
        %v352 = vld [vmem:[#allocation2 + $0x70] sm:$0xff]
        %v353 = vld [vmem:[#allocation2 + $0x78] sm:$0xff]
        %v354 = vld [vmem:[#allocation2 + $0x80] sm:$0xff]
        %v355 = vld [vmem:[#allocation2 + $0x88] sm:$0xff]
        %v356 = vld [vmem:[#allocation2 + $0x90] sm:$0xff]
        %v357 = vld [vmem:[#allocation2 + $0x98] sm:$0xff]
        %v358 = vld [vmem:[#allocation2 + $0xa0] sm:$0xff]
        %v359 = vld [vmem:[#allocation2 + $0xa8] sm:$0xff]
        %v360 = vld [vmem:[#allocation2 + $0xb0] sm:$0xff]
        %v361 = vld [vmem:[#allocation2 + $0xb8] sm:$0xff]
        %v362 = vld [vmem:[#allocation2 + $0xc0] sm:$0xff]
        %v363 = vld [vmem:[#allocation2 + $0xc8] sm:$0xff]
        %v364 = vld [vmem:[#allocation2 + $0xd0] sm:$0xff]
        %v365 = vld [vmem:[#allocation2 + $0xd8] sm:$0xff]
        %v366 = vld [vmem:[#allocation2 + $0xe0] sm:$0xff]
        %v367 = vld [vmem:[#allocation2 + $0xe8] sm:$0xff]
        %v368 = vld [vmem:[#allocation2 + $0xf0] sm:$0xff]
        %v369 = vld [vmem:[#allocation2 + $0xf8] sm:$0xff]
        %v370 = vld [vmem:[#allocation2 + $0x100] sm:$0xff]
        %v371 = vld [vmem:[#allocation2 + $0x108] sm:$0xff]
        %v372 = vld [vmem:[#allocation2 + $0x110] sm:$0xff]
        %v373 = vld [vmem:[#allocation2 + $0x118] sm:$0xff]
        %v374 = vld [vmem:[#allocation2 + $0x120] sm:$0xff]
        %v375 = vld [vmem:[#allocation2 + $0x128] sm:$0xff]
        %v376 = vld [vmem:[#allocation2 + $0x130] sm:$0xff]
        %v377 = vld [vmem:[#allocation2 + $0x138] sm:$0xff]
        %v378 = vld [vmem:[#allocation2 + $0x140] sm:$0xff]
        %v379 = vld [vmem:[#allocation2 + $0x148] sm:$0xff]
        %v380 = vld [vmem:[#allocation2 + $0x150] sm:$0xff]
        %v381 = vld [vmem:[#allocation2 + $0x158] sm:$0xff]
        %v382 = vld [vmem:[#allocation2 + $0x160] sm:$0xff]
        %v383 = vld [vmem:[#allocation2 + $0x168] sm:$0xff]
        %v384 = vld [vmem:[#allocation2 + $0x170] sm:$0xff]
        %v385 = vld [vmem:[#allocation2 + $0x178] sm:$0xff]
        %v386 = vld [vmem:[#allocation2 + $0x180] sm:$0xff]
        %v387 = vld [vmem:[#allocation2 + $0x188] sm:$0xff]
        %v388 = vld [vmem:[#allocation2 + $0x190] sm:$0xff]
        %v389 = vld [vmem:[#allocation2 + $0x198] sm:$0xff]
        %v390 = vld [vmem:[#allocation2 + $0x1a0] sm:$0xff]
        %v391 = vld [vmem:[#allocation2 + $0x1a8] sm:$0xff]
        %v392 = vld [vmem:[#allocation2 + $0x1b0] sm:$0xff]
        %v393 = vld [vmem:[#allocation2 + $0x1b8] sm:$0xff]
        %v394 = vld [vmem:[#allocation2 + $0x1c0] sm:$0xff]
        %v395 = vld [vmem:[#allocation2 + $0x1c8] sm:$0xff]
        %v396 = vld [vmem:[#allocation2 + $0x1d0] sm:$0xff]
        %v397 = vld [vmem:[#allocation2 + $0x1d8] sm:$0xff]
        %v398 = vld [vmem:[#allocation2 + $0x1e0] sm:$0xff]
        %v399 = vld [vmem:[#allocation2 + $0x1e8] sm:$0xff]
        %v400 = vld [vmem:[#allocation2 + $0x1f0] sm:$0xff]
        %v401 = vld [vmem:[#allocation2 + $0x1f8] sm:$0xff]
        %v402 = vld [vmem:[%s252] sm:$0xf]
        %v403 = vld [vmem:[%s252 + $0x4] sm:$0xf]
        %v404 = vld [vmem:[%s252 + $0x8] sm:$0xf]
        %v405 = vld [vmem:[%s252 + $0xc] sm:$0xf]
        %v406 = vld [vmem:[%s252 + $0x10] sm:$0xf]
        %v407 = vld [vmem:[%s252 + $0x14] sm:$0xf]
        %v408 = vld [vmem:[%s252 + $0x18] sm:$0xf]
        %v409 = vld [vmem:[%s252 + $0x1c] sm:$0xf]
        %v410 = vld [vmem:[%s252 + $0x20] sm:$0xf]
        %v411 = vld [vmem:[%s252 + $0x24] sm:$0xf]
        %v412 = vld [vmem:[%s252 + $0x28] sm:$0xf]
        %v413 = vld [vmem:[%s252 + $0x2c] sm:$0xf]
        %v414 = vld [vmem:[%s252 + $0x30] sm:$0xf]
        %v415 = vld [vmem:[%s252 + $0x34] sm:$0xf]
        %v416 = vld [vmem:[%s252 + $0x38] sm:$0xf]
        %v417 = vld [vmem:[%s252 + $0x3c] sm:$0xf]
        %v418 = vld [vmem:[%s252 + $0x40] sm:$0xf]
        %v419 = vld [vmem:[%s252 + $0x44] sm:$0xf]
        %v420 = vld [vmem:[%s252 + $0x48] sm:$0xf]
        %v421 = vld [vmem:[%s252 + $0x4c] sm:$0xf]
        %v422 = vld [vmem:[%s252 + $0x50] sm:$0xf]
        %v423 = vld [vmem:[%s252 + $0x54] sm:$0xf]
        %v424 = vld [vmem:[%s252 + $0x58] sm:$0xf]
        %v425 = vld [vmem:[%s252 + $0x5c] sm:$0xf]
        %v426 = vld [vmem:[%s252 + $0x60] sm:$0xf]
        %v427 = vld [vmem:[%s252 + $0x64] sm:$0xf]
        %v428 = vld [vmem:[%s252 + $0x68] sm:$0xf]
        %v429 = vld [vmem:[%s252 + $0x6c] sm:$0xf]
        %v430 = vld [vmem:[%s252 + $0x70] sm:$0xf]
        %v431 = vld [vmem:[%s252 + $0x74] sm:$0xf]
        %v432 = vld [vmem:[%s252 + $0x78] sm:$0xf]
        %v433 = vld [vmem:[%s252 + $0x7c] sm:$0xf]
        %v434 = vld [vmem:[#allocation3] sm:$0xff]
        %v435 = vld [vmem:[#allocation3 + $0x8] sm:$0xff]
        %v436 = vld [vmem:[#allocation3 + $0x10] sm:$0xff]
        %v437 = vld [vmem:[#allocation3 + $0x18] sm:$0xff]
        %v438 = vld [vmem:[#allocation3 + $0x20] sm:$0xff]
        %v439 = vld [vmem:[#allocation3 + $0x28] sm:$0xff]
        %v440 = vld [vmem:[#allocation3 + $0x30] sm:$0xff]
        %v441 = vld [vmem:[#allocation3 + $0x38] sm:$0xff]
        %v442 = vld [vmem:[#allocation3 + $0x40] sm:$0xff]
        %v443 = vld [vmem:[#allocation3 + $0x48] sm:$0xff]
        %v444 = vld [vmem:[#allocation3 + $0x50] sm:$0xff]
        %v445 = vld [vmem:[#allocation3 + $0x58] sm:$0xff]
        %v446 = vld [vmem:[#allocation3 + $0x60] sm:$0xff]
        %v447 = vld [vmem:[#allocation3 + $0x68] sm:$0xff]
        %v448 = vld [vmem:[#allocation3 + $0x70] sm:$0xff]
        %v449 = vld [vmem:[#allocation3 + $0x78] sm:$0xff]
        %v482 = vunpack.c.l.b16 %v402
        %v483 = vunpack.c.l.b16 %v403
        %v484 = vunpack.c.l.b16 %v404
        %v485 = vunpack.c.l.b16 %v405
        %v486 = vunpack.c.l.b16 %v406
        %v487 = vunpack.c.l.b16 %v407
        %v488 = vunpack.c.l.b16 %v408
        %v489 = vunpack.c.l.b16 %v409
        %v490 = vunpack.c.l.b16 %v410
        %v491 = vunpack.c.l.b16 %v411
        %v492 = vunpack.c.l.b16 %v412
        %v493 = vunpack.c.l.b16 %v413
        %v494 = vunpack.c.l.b16 %v414
        %v495 = vunpack.c.l.b16 %v415
        %v496 = vunpack.c.l.b16 %v416
        %v497 = vunpack.c.l.b16 %v417
        %v498 = vunpack.c.l.b16 %v418
        %v499 = vunpack.c.l.b16 %v419
        %v500 = vunpack.c.l.b16 %v420
        %v501 = vunpack.c.l.b16 %v421
        %v502 = vunpack.c.l.b16 %v422
        %v503 = vunpack.c.l.b16 %v423
        %v504 = vunpack.c.l.b16 %v424
        %v505 = vunpack.c.l.b16 %v425
        %v506 = vunpack.c.l.b16 %v426
        %v507 = vunpack.c.l.b16 %v427
        %v508 = vunpack.c.l.b16 %v428
        %v509 = vunpack.c.l.b16 %v429
        %v510 = vunpack.c.l.b16 %v430
        %v511 = vunpack.c.l.b16 %v431
        %v512 = vunpack.c.l.b16 %v432
        %v513 = vunpack.c.l.b16 %v433
        %v514 = vpack.c.b16 %v483, %v482
        %v515 = vpack.c.b16 %v485, %v484
        %v516 = vpack.c.b16 %v487, %v486
        %v517 = vpack.c.b16 %v489, %v488
        %v518 = vpack.c.b16 %v491, %v490
        %v519 = vpack.c.b16 %v493, %v492
        %v520 = vpack.c.b16 %v495, %v494
        %v521 = vpack.c.b16 %v497, %v496
        %v522 = vpack.c.b16 %v499, %v498
        %v523 = vpack.c.b16 %v501, %v500
        %v524 = vpack.c.b16 %v503, %v502
        %v525 = vpack.c.b16 %v505, %v504
        %v526 = vpack.c.b16 %v507, %v506
        %v527 = vpack.c.b16 %v509, %v508
        %v528 = vpack.c.b16 %v511, %v510
        %v529 = vpack.c.b16 %v513, %v512
        %v562 = vunpack.c.l.b16 %v434
        %v563 = vunpack.c.h.b16 %v434
        %v564 = vunpack.c.l.b16 %v435
        %v565 = vunpack.c.h.b16 %v435
        %v566 = vunpack.c.l.b16 %v436
        %v567 = vunpack.c.h.b16 %v436
        %v568 = vunpack.c.l.b16 %v437
        %v569 = vunpack.c.h.b16 %v437
        %v570 = vunpack.c.l.b16 %v438
        %v571 = vunpack.c.h.b16 %v438
        %v572 = vunpack.c.l.b16 %v439
        %v573 = vunpack.c.h.b16 %v439
        %v574 = vunpack.c.l.b16 %v440
        %v575 = vunpack.c.h.b16 %v440
        %v576 = vunpack.c.l.b16 %v441
        %v577 = vunpack.c.h.b16 %v441
        %v578 = vunpack.c.l.b16 %v442
        %v579 = vunpack.c.h.b16 %v442
        %v580 = vunpack.c.l.b16 %v443
        %v581 = vunpack.c.h.b16 %v443
        %v582 = vunpack.c.l.b16 %v444
        %v583 = vunpack.c.h.b16 %v444
        %v584 = vunpack.c.l.b16 %v445
        %v585 = vunpack.c.h.b16 %v445
        %v586 = vunpack.c.l.b16 %v446
        %v587 = vunpack.c.h.b16 %v446
        %v588 = vunpack.c.l.b16 %v447
        %v589 = vunpack.c.h.b16 %v447
        %v590 = vunpack.c.l.b16 %v448
        %v591 = vunpack.c.h.b16 %v448
        %v592 = vunpack.c.l.b16 %v449
        %v593 = vunpack.c.h.b16 %v449
        %v594 = vpack.c.b16 %v564, %v562
        %v595 = vpack.c.b16 %v565, %v563
        %v596 = vpack.c.b16 %v568, %v566
        %v597 = vpack.c.b16 %v569, %v567
        %v598 = vpack.c.b16 %v572, %v570
        %v599 = vpack.c.b16 %v573, %v571
        %v600 = vpack.c.b16 %v576, %v574
        %v601 = vpack.c.b16 %v577, %v575
        %v602 = vpack.c.b16 %v580, %v578
        %v603 = vpack.c.b16 %v581, %v579
        %v604 = vpack.c.b16 %v584, %v582
        %v605 = vpack.c.b16 %v585, %v583
        %v606 = vpack.c.b16 %v588, %v586
        %v607 = vpack.c.b16 %v589, %v587
        %v608 = vpack.c.b16 %v592, %v590
        %v609 = vpack.c.b16 %v593, %v591
        %626 = vmatprep.subr.bf16.mxu0 %v609
        %627 = vmatpush1.bf16.msra.mxu0 %v608
        %628 = vmatprep.subr.bf16.mxu0 %v607
        %629 = vmatpush1.bf16.msra.mxu0 %v606
        %630 = vmatprep.subr.bf16.mxu0 %v605
        %631 = vmatpush1.bf16.msra.mxu0 %v604
        %632 = vmatprep.subr.bf16.mxu0 %v603
        %633 = vmatpush1.bf16.msra.mxu0 %v602
        %634 = vmatprep.subr.bf16.mxu0 %v601
        %635 = vmatpush1.bf16.msra.mxu0 %v600
        %636 = vmatprep.subr.bf16.mxu0 %v599
        %637 = vmatpush1.bf16.msra.mxu0 %v598
        %638 = vmatprep.subr.bf16.mxu0 %v597
        %639 = vmatpush1.bf16.msra.mxu0 %v596
        %640 = vmatprep.subr.bf16.mxu0 %v595
        %641 = vmatpush1.bf16.msra.mxu0 %v594
        %642 = vmatprep.subr.bf16.mxu0 0
        %643 = vmatpush2.bf16.msra.mxu0 0
        %644 = vmatprep.subr.bf16.mxu0 0
        %645 = vmatpush2.bf16.msra.mxu0 0
        %646 = vmatprep.subr.bf16.mxu0 0
        %647 = vmatpush2.bf16.msra.mxu0 0
        %648 = vmatprep.subr.bf16.mxu0 0
        %649 = vmatpush2.bf16.msra.mxu0 0
        %650 = vmatprep.subr.bf16.mxu0 0
        %651 = vmatpush2.bf16.msra.mxu0 0
        %652 = vmatprep.subr.bf16.mxu0 0
        %653 = vmatpush2.bf16.msra.mxu0 0
        %654 = vmatprep.subr.bf16.mxu0 0
        %655 = vmatpush2.bf16.msra.mxu0 0
        %656 = vmatprep.subr.bf16.mxu0 0
        %657 = vmatpush2.bf16.msra.mxu0 0
        %658 = vmatprep.mubr.bf16.mxu0 0
        %659 = vmatmul.mubr.bf16.gmra.mxu0 %v514
        %v660 = vpop.f32.mrf.mxu0
        %v661 = vadd.f32 0.0, %v660
        %v662 = vpop.f32.mrf.mxu0
        %v663 = vadd.f32 0.0, %v662
        %v664 = vpop.f32.mrf.mxu0
        %v665 = vadd.f32 0.0, %v664
        %v666 = vpop.f32.mrf.mxu0
        %v667 = vadd.f32 0.0, %v666
        %668 = vmatprep.mubr.bf16.mxu0 0
        %669 = vmatmul.mubr.bf16.gmra.mxu0 %v515
        %v670 = vpop.f32.mrf.mxu0
        %v671 = vadd.f32 0.0, %v670
        %v672 = vpop.f32.mrf.mxu0
        %v673 = vadd.f32 0.0, %v672
        %v674 = vpop.f32.mrf.mxu0
        %v675 = vadd.f32 0.0, %v674
        %v676 = vpop.f32.mrf.mxu0
        %v677 = vadd.f32 0.0, %v676
        %678 = vmatprep.mubr.bf16.mxu0 0
        %679 = vmatmul.mubr.bf16.gmra.mxu0 %v516
        %v680 = vpop.f32.mrf.mxu0
        %v681 = vadd.f32 0.0, %v680
        %v682 = vpop.f32.mrf.mxu0
        %v683 = vadd.f32 0.0, %v682
        %v684 = vpop.f32.mrf.mxu0
        %v685 = vadd.f32 0.0, %v684
        %v686 = vpop.f32.mrf.mxu0
        %v687 = vadd.f32 0.0, %v686
        %688 = vmatprep.mubr.bf16.mxu0 0
        %689 = vmatmul.mubr.bf16.gmra.mxu0 %v517
        %v690 = vpop.f32.mrf.mxu0
        %v691 = vadd.f32 0.0, %v690
        %v692 = vpop.f32.mrf.mxu0
        %v693 = vadd.f32 0.0, %v692
        %v694 = vpop.f32.mrf.mxu0
        %v695 = vadd.f32 0.0, %v694
        %v696 = vpop.f32.mrf.mxu0
        %v697 = vadd.f32 0.0, %v696
        %698 = vmatprep.mubr.bf16.mxu0 0
        %699 = vmatmul.mubr.bf16.gmra.mxu0 %v518
        %v700 = vpop.f32.mrf.mxu0
        %v701 = vadd.f32 0.0, %v700
        %v702 = vpop.f32.mrf.mxu0
        %v703 = vadd.f32 0.0, %v702
        %v704 = vpop.f32.mrf.mxu0
        %v705 = vadd.f32 0.0, %v704
        %v706 = vpop.f32.mrf.mxu0
        %v707 = vadd.f32 0.0, %v706
        %708 = vmatprep.mubr.bf16.mxu0 0
        %709 = vmatmul.mubr.bf16.gmra.mxu0 %v519
        %v710 = vpop.f32.mrf.mxu0
        %v711 = vadd.f32 0.0, %v710
        %v712 = vpop.f32.mrf.mxu0
        %v713 = vadd.f32 0.0, %v712
        %v714 = vpop.f32.mrf.mxu0
        %v715 = vadd.f32 0.0, %v714
        %v716 = vpop.f32.mrf.mxu0
        %v717 = vadd.f32 0.0, %v716
        %718 = vmatprep.mubr.bf16.mxu0 0
        %719 = vmatmul.mubr.bf16.gmra.mxu0 %v520
        %v720 = vpop.f32.mrf.mxu0
        %v721 = vadd.f32 0.0, %v720
        %v722 = vpop.f32.mrf.mxu0
        %v723 = vadd.f32 0.0, %v722
        %v724 = vpop.f32.mrf.mxu0
        %v725 = vadd.f32 0.0, %v724
        %v726 = vpop.f32.mrf.mxu0
        %v727 = vadd.f32 0.0, %v726
        %728 = vmatprep.mubr.bf16.mxu0 0
        %729 = vmatmul.mubr.bf16.gmra.mxu0 %v521
        %v730 = vpop.f32.mrf.mxu0
        %v731 = vadd.f32 0.0, %v730
        %v732 = vpop.f32.mrf.mxu0
        %v733 = vadd.f32 0.0, %v732
        %v734 = vpop.f32.mrf.mxu0
        %v735 = vadd.f32 0.0, %v734
        %v736 = vpop.f32.mrf.mxu0
        %v737 = vadd.f32 0.0, %v736
        %738 = vmatprep.mubr.bf16.mxu0 0
        %739 = vmatmul.mubr.bf16.gmra.mxu0 %v522
        %v740 = vpop.f32.mrf.mxu0
        %v741 = vadd.f32 0.0, %v740
        %v742 = vpop.f32.mrf.mxu0
        %v743 = vadd.f32 0.0, %v742
        %v744 = vpop.f32.mrf.mxu0
        %v745 = vadd.f32 0.0, %v744
        %v746 = vpop.f32.mrf.mxu0
        %v747 = vadd.f32 0.0, %v746
        %748 = vmatprep.mubr.bf16.mxu0 0
        %749 = vmatmul.mubr.bf16.gmra.mxu0 %v523
        %v750 = vpop.f32.mrf.mxu0
        %v751 = vadd.f32 0.0, %v750
        %v752 = vpop.f32.mrf.mxu0
        %v753 = vadd.f32 0.0, %v752
        %v754 = vpop.f32.mrf.mxu0
        %v755 = vadd.f32 0.0, %v754
        %v756 = vpop.f32.mrf.mxu0
        %v757 = vadd.f32 0.0, %v756
        %758 = vmatprep.mubr.bf16.mxu0 0
        %759 = vmatmul.mubr.bf16.gmra.mxu0 %v524
        %v760 = vpop.f32.mrf.mxu0
        %v761 = vadd.f32 0.0, %v760
        %v762 = vpop.f32.mrf.mxu0
        %v763 = vadd.f32 0.0, %v762
        %v764 = vpop.f32.mrf.mxu0
        %v765 = vadd.f32 0.0, %v764
        %v766 = vpop.f32.mrf.mxu0
        %v767 = vadd.f32 0.0, %v766
        %768 = vmatprep.mubr.bf16.mxu0 0
        %769 = vmatmul.mubr.bf16.gmra.mxu0 %v525
        %v770 = vpop.f32.mrf.mxu0
        %v771 = vadd.f32 0.0, %v770
        %v772 = vpop.f32.mrf.mxu0
        %v773 = vadd.f32 0.0, %v772
        %v774 = vpop.f32.mrf.mxu0
        %v775 = vadd.f32 0.0, %v774
        %v776 = vpop.f32.mrf.mxu0
        %v777 = vadd.f32 0.0, %v776
        %778 = vmatprep.mubr.bf16.mxu0 0
        %779 = vmatmul.mubr.bf16.gmra.mxu0 %v526
        %v780 = vpop.f32.mrf.mxu0
        %v781 = vadd.f32 0.0, %v780
        %v782 = vpop.f32.mrf.mxu0
        %v783 = vadd.f32 0.0, %v782
        %v784 = vpop.f32.mrf.mxu0
        %v785 = vadd.f32 0.0, %v784
        %v786 = vpop.f32.mrf.mxu0
        %v787 = vadd.f32 0.0, %v786
        %788 = vmatprep.mubr.bf16.mxu0 0
        %789 = vmatmul.mubr.bf16.gmra.mxu0 %v527
        %v790 = vpop.f32.mrf.mxu0
        %v791 = vadd.f32 0.0, %v790
        %v792 = vpop.f32.mrf.mxu0
        %v793 = vadd.f32 0.0, %v792
        %v794 = vpop.f32.mrf.mxu0
        %v795 = vadd.f32 0.0, %v794
        %v796 = vpop.f32.mrf.mxu0
        %v797 = vadd.f32 0.0, %v796
        %798 = vmatprep.mubr.bf16.mxu0 0
        %799 = vmatmul.mubr.bf16.gmra.mxu0 %v528
        %v800 = vpop.f32.mrf.mxu0
        %v801 = vadd.f32 0.0, %v800
        %v802 = vpop.f32.mrf.mxu0
        %v803 = vadd.f32 0.0, %v802
        %v804 = vpop.f32.mrf.mxu0
        %v805 = vadd.f32 0.0, %v804
        %v806 = vpop.f32.mrf.mxu0
        %v807 = vadd.f32 0.0, %v806
        %808 = vmatprep.mubr.bf16.mxu0 0
        %809 = vmatmul.mubr.bf16.gmra.mxu0 %v529
        %v810 = vpop.f32.mrf.mxu0
        %v811 = vadd.f32 0.0, %v810
        %v812 = vpop.f32.mrf.mxu0
        %v813 = vadd.f32 0.0, %v812
        %v814 = vpop.f32.mrf.mxu0
        %v815 = vadd.f32 0.0, %v814
        %v816 = vpop.f32.mrf.mxu0
        %v817 = vadd.f32 0.0, %v816
        %818 = vdwg.mxu0
        %v819 = vadd.f32 %v338, %v661
        %v820 = vadd.f32 %v339, %v663
        %v821 = vadd.f32 %v340, %v665
        %v822 = vadd.f32 %v341, %v667
        %v823 = vadd.f32 %v342, %v671
        %v824 = vadd.f32 %v343, %v673
        %v825 = vadd.f32 %v344, %v675
        %v826 = vadd.f32 %v345, %v677
        %v827 = vadd.f32 %v346, %v681
        %v828 = vadd.f32 %v347, %v683
        %v829 = vadd.f32 %v348, %v685
        %v830 = vadd.f32 %v349, %v687
        %v831 = vadd.f32 %v350, %v691
        %v832 = vadd.f32 %v351, %v693
        %v833 = vadd.f32 %v352, %v695
        %v834 = vadd.f32 %v353, %v697
        %v835 = vadd.f32 %v354, %v701
        %v836 = vadd.f32 %v355, %v703
        %v837 = vadd.f32 %v356, %v705
        %v838 = vadd.f32 %v357, %v707
        %v839 = vadd.f32 %v358, %v711
        %v840 = vadd.f32 %v359, %v713
        %v841 = vadd.f32 %v360, %v715
        %v842 = vadd.f32 %v361, %v717
        %v843 = vadd.f32 %v362, %v721
        %v844 = vadd.f32 %v363, %v723
        %v845 = vadd.f32 %v364, %v725
        %v846 = vadd.f32 %v365, %v727
        %v847 = vadd.f32 %v366, %v731
        %v848 = vadd.f32 %v367, %v733
        %v849 = vadd.f32 %v368, %v735
        %v850 = vadd.f32 %v369, %v737
        %v851 = vadd.f32 %v370, %v741
        %v852 = vadd.f32 %v371, %v743
        %v853 = vadd.f32 %v372, %v745
        %v854 = vadd.f32 %v373, %v747
        %v855 = vadd.f32 %v374, %v751
        %v856 = vadd.f32 %v375, %v753
        %v857 = vadd.f32 %v376, %v755
        %v858 = vadd.f32 %v377, %v757
        %v859 = vadd.f32 %v378, %v761
        %v860 = vadd.f32 %v379, %v763
        %v861 = vadd.f32 %v380, %v765
        %v862 = vadd.f32 %v381, %v767
        %v863 = vadd.f32 %v382, %v771
        %v864 = vadd.f32 %v383, %v773
        %v865 = vadd.f32 %v384, %v775
        %v866 = vadd.f32 %v385, %v777
        %v867 = vadd.f32 %v386, %v781
        %v868 = vadd.f32 %v387, %v783
        %v869 = vadd.f32 %v388, %v785
        %v870 = vadd.f32 %v389, %v787
        %v871 = vadd.f32 %v390, %v791
        %v872 = vadd.f32 %v391, %v793
        %v873 = vadd.f32 %v392, %v795
        %v874 = vadd.f32 %v393, %v797
        %v875 = vadd.f32 %v394, %v801
        %v876 = vadd.f32 %v395, %v803
        %v877 = vadd.f32 %v396, %v805
        %v878 = vadd.f32 %v397, %v807
        %v879 = vadd.f32 %v398, %v811
        %v880 = vadd.f32 %v399, %v813
        %v881 = vadd.f32 %v400, %v815
        %v882 = vadd.f32 %v401, %v817
        %883 = vst [vmem:[#allocation2] sm:$0xff] %v819
        %884 = vst [vmem:[#allocation2 + $0x8] sm:$0xff] %v820
        %885 = vst [vmem:[#allocation2 + $0x10] sm:$0xff] %v821
        %886 = vst [vmem:[#allocation2 + $0x18] sm:$0xff] %v822
        %887 = vst [vmem:[#allocation2 + $0x20] sm:$0xff] %v823
        %888 = vst [vmem:[#allocation2 + $0x28] sm:$0xff] %v824
        %889 = vst [vmem:[#allocation2 + $0x30] sm:$0xff] %v825
        %890 = vst [vmem:[#allocation2 + $0x38] sm:$0xff] %v826
        %891 = vst [vmem:[#allocation2 + $0x40] sm:$0xff] %v827
        %892 = vst [vmem:[#allocation2 + $0x48] sm:$0xff] %v828
        %893 = vst [vmem:[#allocation2 + $0x50] sm:$0xff] %v829
        %894 = vst [vmem:[#allocation2 + $0x58] sm:$0xff] %v830
        %895 = vst [vmem:[#allocation2 + $0x60] sm:$0xff] %v831
        %896 = vst [vmem:[#allocation2 + $0x68] sm:$0xff] %v832
        %897 = vst [vmem:[#allocation2 + $0x70] sm:$0xff] %v833
        %898 = vst [vmem:[#allocation2 + $0x78] sm:$0xff] %v834
        %899 = vst [vmem:[#allocation2 + $0x80] sm:$0xff] %v835
        %900 = vst [vmem:[#allocation2 + $0x88] sm:$0xff] %v836
        %901 = vst [vmem:[#allocation2 + $0x90] sm:$0xff] %v837
        %902 = vst [vmem:[#allocation2 + $0x98] sm:$0xff] %v838
        %903 = vst [vmem:[#allocation2 + $0xa0] sm:$0xff] %v839
        %904 = vst [vmem:[#allocation2 + $0xa8] sm:$0xff] %v840
        %905 = vst [vmem:[#allocation2 + $0xb0] sm:$0xff] %v841
        %906 = vst [vmem:[#allocation2 + $0xb8] sm:$0xff] %v842
        %907 = vst [vmem:[#allocation2 + $0xc0] sm:$0xff] %v843
        %908 = vst [vmem:[#allocation2 + $0xc8] sm:$0xff] %v844
        %909 = vst [vmem:[#allocation2 + $0xd0] sm:$0xff] %v845
        %910 = vst [vmem:[#allocation2 + $0xd8] sm:$0xff] %v846
        %911 = vst [vmem:[#allocation2 + $0xe0] sm:$0xff] %v847
        %912 = vst [vmem:[#allocation2 + $0xe8] sm:$0xff] %v848
        %913 = vst [vmem:[#allocation2 + $0xf0] sm:$0xff] %v849
        %914 = vst [vmem:[#allocation2 + $0xf8] sm:$0xff] %v850
        %915 = vst [vmem:[#allocation2 + $0x100] sm:$0xff] %v851
        %916 = vst [vmem:[#allocation2 + $0x108] sm:$0xff] %v852
        %917 = vst [vmem:[#allocation2 + $0x110] sm:$0xff] %v853
        %918 = vst [vmem:[#allocation2 + $0x118] sm:$0xff] %v854
        %919 = vst [vmem:[#allocation2 + $0x120] sm:$0xff] %v855
        %920 = vst [vmem:[#allocation2 + $0x128] sm:$0xff] %v856
        %921 = vst [vmem:[#allocation2 + $0x130] sm:$0xff] %v857
        %922 = vst [vmem:[#allocation2 + $0x138] sm:$0xff] %v858
        %923 = vst [vmem:[#allocation2 + $0x140] sm:$0xff] %v859
        %924 = vst [vmem:[#allocation2 + $0x148] sm:$0xff] %v860
        %925 = vst [vmem:[#allocation2 + $0x150] sm:$0xff] %v861
        %926 = vst [vmem:[#allocation2 + $0x158] sm:$0xff] %v862
        %927 = vst [vmem:[#allocation2 + $0x160] sm:$0xff] %v863
        %928 = vst [vmem:[#allocation2 + $0x168] sm:$0xff] %v864
        %929 = vst [vmem:[#allocation2 + $0x170] sm:$0xff] %v865
        %930 = vst [vmem:[#allocation2 + $0x178] sm:$0xff] %v866
        %931 = vst [vmem:[#allocation2 + $0x180] sm:$0xff] %v867
        %932 = vst [vmem:[#allocation2 + $0x188] sm:$0xff] %v868
        %933 = vst [vmem:[#allocation2 + $0x190] sm:$0xff] %v869
        %934 = vst [vmem:[#allocation2 + $0x198] sm:$0xff] %v870
        %935 = vst [vmem:[#allocation2 + $0x1a0] sm:$0xff] %v871
        %936 = vst [vmem:[#allocation2 + $0x1a8] sm:$0xff] %v872
        %937 = vst [vmem:[#allocation2 + $0x1b0] sm:$0xff] %v873
        %938 = vst [vmem:[#allocation2 + $0x1b8] sm:$0xff] %v874
        %939 = vst [vmem:[#allocation2 + $0x1c0] sm:$0xff] %v875
        %940 = vst [vmem:[#allocation2 + $0x1c8] sm:$0xff] %v876
        %941 = vst [vmem:[#allocation2 + $0x1d0] sm:$0xff] %v877
        %942 = vst [vmem:[#allocation2 + $0x1d8] sm:$0xff] %v878
        %943 = vst [vmem:[#allocation2 + $0x1e0] sm:$0xff] %v879
        %944 = vst [vmem:[#allocation2 + $0x1e8] sm:$0xff] %v880
        %945 = vst [vmem:[#allocation2 + $0x1f0] sm:$0xff] %v881
        %946 = vst [vmem:[#allocation2 + $0x1f8] sm:$0xff] %v882
        // Predicated region
        $region45: #{_lambda_.8} parent=31 // pred_check
          %p947 = pneg %p270
        $region46: #{_lambda_.8} parent=31 // pred_check_branch
          %949 = sbr.rel (%p947) target = $region48
        $region47: #{_lambda_.8} parent=31 // pred_region
          %v950 = vld [vmem:[#allocation2] sm:$0xff]
          %v951 = vld [vmem:[#allocation2 + $0x8] sm:$0xff]
          %v952 = vld [vmem:[#allocation2 + $0x10] sm:$0xff]
          %v953 = vld [vmem:[#allocation2 + $0x18] sm:$0xff]
          %v954 = vld [vmem:[#allocation2 + $0x20] sm:$0xff]
          %v955 = vld [vmem:[#allocation2 + $0x28] sm:$0xff]
          %v956 = vld [vmem:[#allocation2 + $0x30] sm:$0xff]
          %v957 = vld [vmem:[#allocation2 + $0x38] sm:$0xff]
          %v958 = vld [vmem:[#allocation2 + $0x40] sm:$0xff]
          %v959 = vld [vmem:[#allocation2 + $0x48] sm:$0xff]
          %v960 = vld [vmem:[#allocation2 + $0x50] sm:$0xff]
          %v961 = vld [vmem:[#allocation2 + $0x58] sm:$0xff]
          %v962 = vld [vmem:[#allocation2 + $0x60] sm:$0xff]
          %v963 = vld [vmem:[#allocation2 + $0x68] sm:$0xff]
          %v964 = vld [vmem:[#allocation2 + $0x70] sm:$0xff]
          %v965 = vld [vmem:[#allocation2 + $0x78] sm:$0xff]
          %v966 = vld [vmem:[#allocation2 + $0x80] sm:$0xff]
          %v967 = vld [vmem:[#allocation2 + $0x88] sm:$0xff]
          %v968 = vld [vmem:[#allocation2 + $0x90] sm:$0xff]
          %v969 = vld [vmem:[#allocation2 + $0x98] sm:$0xff]
          %v970 = vld [vmem:[#allocation2 + $0xa0] sm:$0xff]
          %v971 = vld [vmem:[#allocation2 + $0xa8] sm:$0xff]
          %v972 = vld [vmem:[#allocation2 + $0xb0] sm:$0xff]
          %v973 = vld [vmem:[#allocation2 + $0xb8] sm:$0xff]
          %v974 = vld [vmem:[#allocation2 + $0xc0] sm:$0xff]
          %v975 = vld [vmem:[#allocation2 + $0xc8] sm:$0xff]
          %v976 = vld [vmem:[#allocation2 + $0xd0] sm:$0xff]
          %v977 = vld [vmem:[#allocation2 + $0xd8] sm:$0xff]
          %v978 = vld [vmem:[#allocation2 + $0xe0] sm:$0xff]
          %v979 = vld [vmem:[#allocation2 + $0xe8] sm:$0xff]
          %v980 = vld [vmem:[#allocation2 + $0xf0] sm:$0xff]
          %v981 = vld [vmem:[#allocation2 + $0xf8] sm:$0xff]
          %v982 = vld [vmem:[#allocation2 + $0x100] sm:$0xff]
          %v983 = vld [vmem:[#allocation2 + $0x108] sm:$0xff]
          %v984 = vld [vmem:[#allocation2 + $0x110] sm:$0xff]
          %v985 = vld [vmem:[#allocation2 + $0x118] sm:$0xff]
          %v986 = vld [vmem:[#allocation2 + $0x120] sm:$0xff]
          %v987 = vld [vmem:[#allocation2 + $0x128] sm:$0xff]
          %v988 = vld [vmem:[#allocation2 + $0x130] sm:$0xff]
          %v989 = vld [vmem:[#allocation2 + $0x138] sm:$0xff]
          %v990 = vld [vmem:[#allocation2 + $0x140] sm:$0xff]
          %v991 = vld [vmem:[#allocation2 + $0x148] sm:$0xff]
          %v992 = vld [vmem:[#allocation2 + $0x150] sm:$0xff]
          %v993 = vld [vmem:[#allocation2 + $0x158] sm:$0xff]
          %v994 = vld [vmem:[#allocation2 + $0x160] sm:$0xff]
          %v995 = vld [vmem:[#allocation2 + $0x168] sm:$0xff]
          %v996 = vld [vmem:[#allocation2 + $0x170] sm:$0xff]
          %v997 = vld [vmem:[#allocation2 + $0x178] sm:$0xff]
          %v998 = vld [vmem:[#allocation2 + $0x180] sm:$0xff]
          %v999 = vld [vmem:[#allocation2 + $0x188] sm:$0xff]
          %v1000 = vld [vmem:[#allocation2 + $0x190] sm:$0xff]
          %v1001 = vld [vmem:[#allocation2 + $0x198] sm:$0xff]
          %v1002 = vld [vmem:[#allocation2 + $0x1a0] sm:$0xff]
          %v1003 = vld [vmem:[#allocation2 + $0x1a8] sm:$0xff]
          %v1004 = vld [vmem:[#allocation2 + $0x1b0] sm:$0xff]
          %v1005 = vld [vmem:[#allocation2 + $0x1b8] sm:$0xff]
          %v1006 = vld [vmem:[#allocation2 + $0x1c0] sm:$0xff]
          %v1007 = vld [vmem:[#allocation2 + $0x1c8] sm:$0xff]
          %v1008 = vld [vmem:[#allocation2 + $0x1d0] sm:$0xff]
          %v1009 = vld [vmem:[#allocation2 + $0x1d8] sm:$0xff]
          %v1010 = vld [vmem:[#allocation2 + $0x1e0] sm:$0xff]
          %v1011 = vld [vmem:[#allocation2 + $0x1e8] sm:$0xff]
          %v1012 = vld [vmem:[#allocation2 + $0x1f0] sm:$0xff]
          %v1013 = vld [vmem:[#allocation2 + $0x1f8] sm:$0xff]
          %v1014 = vld [vmem:[#allocation5] sm:$0x3]
          %v1016 = vlaneseq
          %v1017 = vshrl.u32 %v1016, 7
          %v1018 = vsub.s32 0, %v1017
          %v1019 = vrot.slane %v1014, %v1018
          %v1020 = vlaneseq
          %v1021 = vshrl.u32 %v1020, 7
          %v1022 = vsub.s32 1, %v1021
          %v1023 = vrot.slane %v1014, %v1022
          %v1026 = vadd.f32 %v950, %v1019
          %v1027 = vadd.f32 %v951, %v1023
          %v1028 = vadd.f32 %v952, %v1019
          %v1029 = vadd.f32 %v953, %v1023
          %v1030 = vadd.f32 %v954, %v1019
          %v1031 = vadd.f32 %v955, %v1023
          %v1032 = vadd.f32 %v956, %v1019
          %v1033 = vadd.f32 %v957, %v1023
          %v1034 = vadd.f32 %v958, %v1019
          %v1035 = vadd.f32 %v959, %v1023
          %v1036 = vadd.f32 %v960, %v1019
          %v1037 = vadd.f32 %v961, %v1023
          %v1038 = vadd.f32 %v962, %v1019
          %v1039 = vadd.f32 %v963, %v1023
          %v1040 = vadd.f32 %v964, %v1019
          %v1041 = vadd.f32 %v965, %v1023
          %v1042 = vadd.f32 %v966, %v1019
          %v1043 = vadd.f32 %v967, %v1023
          %v1044 = vadd.f32 %v968, %v1019
          %v1045 = vadd.f32 %v969, %v1023
          %v1046 = vadd.f32 %v970, %v1019
          %v1047 = vadd.f32 %v971, %v1023
          %v1048 = vadd.f32 %v972, %v1019
          %v1049 = vadd.f32 %v973, %v1023
          %v1050 = vadd.f32 %v974, %v1019
          %v1051 = vadd.f32 %v975, %v1023
          %v1052 = vadd.f32 %v976, %v1019
          %v1053 = vadd.f32 %v977, %v1023
          %v1054 = vadd.f32 %v978, %v1019
          %v1055 = vadd.f32 %v979, %v1023
          %v1056 = vadd.f32 %v980, %v1019
          %v1057 = vadd.f32 %v981, %v1023
          %v1058 = vadd.f32 %v982, %v1019
          %v1059 = vadd.f32 %v983, %v1023
          %v1060 = vadd.f32 %v984, %v1019
          %v1061 = vadd.f32 %v985, %v1023
          %v1062 = vadd.f32 %v986, %v1019
          %v1063 = vadd.f32 %v987, %v1023
          %v1064 = vadd.f32 %v988, %v1019
          %v1065 = vadd.f32 %v989, %v1023
          %v1066 = vadd.f32 %v990, %v1019
          %v1067 = vadd.f32 %v991, %v1023
          %v1068 = vadd.f32 %v992, %v1019
          %v1069 = vadd.f32 %v993, %v1023
          %v1070 = vadd.f32 %v994, %v1019
          %v1071 = vadd.f32 %v995, %v1023
          %v1072 = vadd.f32 %v996, %v1019
          %v1073 = vadd.f32 %v997, %v1023
          %v1074 = vadd.f32 %v998, %v1019
          %v1075 = vadd.f32 %v999, %v1023
          %v1076 = vadd.f32 %v1000, %v1019
          %v1077 = vadd.f32 %v1001, %v1023
          %v1078 = vadd.f32 %v1002, %v1019
          %v1079 = vadd.f32 %v1003, %v1023
          %v1080 = vadd.f32 %v1004, %v1019
          %v1081 = vadd.f32 %v1005, %v1023
          %v1082 = vadd.f32 %v1006, %v1019
          %v1083 = vadd.f32 %v1007, %v1023
          %v1084 = vadd.f32 %v1008, %v1019
          %v1085 = vadd.f32 %v1009, %v1023
          %v1086 = vadd.f32 %v1010, %v1019
          %v1087 = vadd.f32 %v1011, %v1023
          %v1088 = vadd.f32 %v1012, %v1019
          %v1089 = vadd.f32 %v1013, %v1023
          %vm1090 = vcmp.ge.f32.partialorder %v1026, 0.0
          %vm1091 = vcmp.ge.f32.partialorder %v1027, 0.0
          %vm1092 = vcmp.ge.f32.partialorder %v1028, 0.0
          %vm1093 = vcmp.ge.f32.partialorder %v1029, 0.0
          %vm1094 = vcmp.ge.f32.partialorder %v1030, 0.0
          %vm1095 = vcmp.ge.f32.partialorder %v1031, 0.0
          %vm1096 = vcmp.ge.f32.partialorder %v1032, 0.0
          %vm1097 = vcmp.ge.f32.partialorder %v1033, 0.0
          %vm1098 = vcmp.ge.f32.partialorder %v1034, 0.0
          %vm1099 = vcmp.ge.f32.partialorder %v1035, 0.0
          %vm1100 = vcmp.ge.f32.partialorder %v1036, 0.0
          %vm1101 = vcmp.ge.f32.partialorder %v1037, 0.0
          %vm1102 = vcmp.ge.f32.partialorder %v1038, 0.0
          %vm1103 = vcmp.ge.f32.partialorder %v1039, 0.0
          %vm1104 = vcmp.ge.f32.partialorder %v1040, 0.0
          %vm1105 = vcmp.ge.f32.partialorder %v1041, 0.0
          %vm1106 = vcmp.ge.f32.partialorder %v1042, 0.0
          %vm1107 = vcmp.ge.f32.partialorder %v1043, 0.0
          %vm1108 = vcmp.ge.f32.partialorder %v1044, 0.0
          %vm1109 = vcmp.ge.f32.partialorder %v1045, 0.0
          %vm1110 = vcmp.ge.f32.partialorder %v1046, 0.0
          %vm1111 = vcmp.ge.f32.partialorder %v1047, 0.0
          %vm1112 = vcmp.ge.f32.partialorder %v1048, 0.0
          %vm1113 = vcmp.ge.f32.partialorder %v1049, 0.0
          %vm1114 = vcmp.ge.f32.partialorder %v1050, 0.0
          %vm1115 = vcmp.ge.f32.partialorder %v1051, 0.0
          %vm1116 = vcmp.ge.f32.partialorder %v1052, 0.0
          %vm1117 = vcmp.ge.f32.partialorder %v1053, 0.0
          %vm1118 = vcmp.ge.f32.partialorder %v1054, 0.0
          %vm1119 = vcmp.ge.f32.partialorder %v1055, 0.0
          %vm1120 = vcmp.ge.f32.partialorder %v1056, 0.0
          %vm1121 = vcmp.ge.f32.partialorder %v1057, 0.0
          %vm1122 = vcmp.ge.f32.partialorder %v1058, 0.0
          %vm1123 = vcmp.ge.f32.partialorder %v1059, 0.0
          %vm1124 = vcmp.ge.f32.partialorder %v1060, 0.0
          %vm1125 = vcmp.ge.f32.partialorder %v1061, 0.0
          %vm1126 = vcmp.ge.f32.partialorder %v1062, 0.0
          %vm1127 = vcmp.ge.f32.partialorder %v1063, 0.0
          %vm1128 = vcmp.ge.f32.partialorder %v1064, 0.0
          %vm1129 = vcmp.ge.f32.partialorder %v1065, 0.0
          %vm1130 = vcmp.ge.f32.partialorder %v1066, 0.0
          %vm1131 = vcmp.ge.f32.partialorder %v1067, 0.0
          %vm1132 = vcmp.ge.f32.partialorder %v1068, 0.0
          %vm1133 = vcmp.ge.f32.partialorder %v1069, 0.0
          %vm1134 = vcmp.ge.f32.partialorder %v1070, 0.0
          %vm1135 = vcmp.ge.f32.partialorder %v1071, 0.0
          %vm1136 = vcmp.ge.f32.partialorder %v1072, 0.0
          %vm1137 = vcmp.ge.f32.partialorder %v1073, 0.0
          %vm1138 = vcmp.ge.f32.partialorder %v1074, 0.0
          %vm1139 = vcmp.ge.f32.partialorder %v1075, 0.0
          %vm1140 = vcmp.ge.f32.partialorder %v1076, 0.0
          %vm1141 = vcmp.ge.f32.partialorder %v1077, 0.0
          %vm1142 = vcmp.ge.f32.partialorder %v1078, 0.0
          %vm1143 = vcmp.ge.f32.partialorder %v1079, 0.0
          %vm1144 = vcmp.ge.f32.partialorder %v1080, 0.0
          %vm1145 = vcmp.ge.f32.partialorder %v1081, 0.0
          %vm1146 = vcmp.ge.f32.partialorder %v1082, 0.0
          %vm1147 = vcmp.ge.f32.partialorder %v1083, 0.0
          %vm1148 = vcmp.ge.f32.partialorder %v1084, 0.0
          %vm1149 = vcmp.ge.f32.partialorder %v1085, 0.0
          %vm1150 = vcmp.ge.f32.partialorder %v1086, 0.0
          %vm1151 = vcmp.ge.f32.partialorder %v1087, 0.0
          %vm1152 = vcmp.ge.f32.partialorder %v1088, 0.0
          %vm1153 = vcmp.ge.f32.partialorder %v1089, 0.0
          %v1154 = vmul.f32 %v1026, 0.01
          %v1155 = vmul.f32 %v1027, 0.01
          %v1156 = vmul.f32 %v1028, 0.01
          %v1157 = vmul.f32 %v1029, 0.01
          %v1158 = vmul.f32 %v1030, 0.01
          %v1159 = vmul.f32 %v1031, 0.01
          %v1160 = vmul.f32 %v1032, 0.01
          %v1161 = vmul.f32 %v1033, 0.01
          %v1162 = vmul.f32 %v1034, 0.01
          %v1163 = vmul.f32 %v1035, 0.01
          %v1164 = vmul.f32 %v1036, 0.01
          %v1165 = vmul.f32 %v1037, 0.01
          %v1166 = vmul.f32 %v1038, 0.01
          %v1167 = vmul.f32 %v1039, 0.01
          %v1168 = vmul.f32 %v1040, 0.01
          %v1169 = vmul.f32 %v1041, 0.01
          %v1170 = vmul.f32 %v1042, 0.01
          %v1171 = vmul.f32 %v1043, 0.01
          %v1172 = vmul.f32 %v1044, 0.01
          %v1173 = vmul.f32 %v1045, 0.01
          %v1174 = vmul.f32 %v1046, 0.01
          %v1175 = vmul.f32 %v1047, 0.01
          %v1176 = vmul.f32 %v1048, 0.01
          %v1177 = vmul.f32 %v1049, 0.01
          %v1178 = vmul.f32 %v1050, 0.01
          %v1179 = vmul.f32 %v1051, 0.01
          %v1180 = vmul.f32 %v1052, 0.01
          %v1181 = vmul.f32 %v1053, 0.01
          %v1182 = vmul.f32 %v1054, 0.01
          %v1183 = vmul.f32 %v1055, 0.01
          %v1184 = vmul.f32 %v1056, 0.01
          %v1185 = vmul.f32 %v1057, 0.01
          %v1186 = vmul.f32 %v1058, 0.01
          %v1187 = vmul.f32 %v1059, 0.01
          %v1188 = vmul.f32 %v1060, 0.01
          %v1189 = vmul.f32 %v1061, 0.01
          %v1190 = vmul.f32 %v1062, 0.01
          %v1191 = vmul.f32 %v1063, 0.01
          %v1192 = vmul.f32 %v1064, 0.01
          %v1193 = vmul.f32 %v1065, 0.01
          %v1194 = vmul.f32 %v1066, 0.01
          %v1195 = vmul.f32 %v1067, 0.01
          %v1196 = vmul.f32 %v1068, 0.01
          %v1197 = vmul.f32 %v1069, 0.01
          %v1198 = vmul.f32 %v1070, 0.01
          %v1199 = vmul.f32 %v1071, 0.01
          %v1200 = vmul.f32 %v1072, 0.01
          %v1201 = vmul.f32 %v1073, 0.01
          %v1202 = vmul.f32 %v1074, 0.01
          %v1203 = vmul.f32 %v1075, 0.01
          %v1204 = vmul.f32 %v1076, 0.01
          %v1205 = vmul.f32 %v1077, 0.01
          %v1206 = vmul.f32 %v1078, 0.01
          %v1207 = vmul.f32 %v1079, 0.01
          %v1208 = vmul.f32 %v1080, 0.01
          %v1209 = vmul.f32 %v1081, 0.01
          %v1210 = vmul.f32 %v1082, 0.01
          %v1211 = vmul.f32 %v1083, 0.01
          %v1212 = vmul.f32 %v1084, 0.01
          %v1213 = vmul.f32 %v1085, 0.01
          %v1214 = vmul.f32 %v1086, 0.01
          %v1215 = vmul.f32 %v1087, 0.01
          %v1216 = vmul.f32 %v1088, 0.01
          %v1217 = vmul.f32 %v1089, 0.01
          %v1218 = vsel %vm1090, %v1026, %v1154
          %v1219 = vsel %vm1091, %v1027, %v1155
          %v1220 = vsel %vm1092, %v1028, %v1156
          %v1221 = vsel %vm1093, %v1029, %v1157
          %v1222 = vsel %vm1094, %v1030, %v1158
          %v1223 = vsel %vm1095, %v1031, %v1159
          %v1224 = vsel %vm1096, %v1032, %v1160
          %v1225 = vsel %vm1097, %v1033, %v1161
          %v1226 = vsel %vm1098, %v1034, %v1162
          %v1227 = vsel %vm1099, %v1035, %v1163
          %v1228 = vsel %vm1100, %v1036, %v1164
          %v1229 = vsel %vm1101, %v1037, %v1165
          %v1230 = vsel %vm1102, %v1038, %v1166
          %v1231 = vsel %vm1103, %v1039, %v1167
          %v1232 = vsel %vm1104, %v1040, %v1168
          %v1233 = vsel %vm1105, %v1041, %v1169
          %v1234 = vsel %vm1106, %v1042, %v1170
          %v1235 = vsel %vm1107, %v1043, %v1171
          %v1236 = vsel %vm1108, %v1044, %v1172
          %v1237 = vsel %vm1109, %v1045, %v1173
          %v1238 = vsel %vm1110, %v1046, %v1174
          %v1239 = vsel %vm1111, %v1047, %v1175
          %v1240 = vsel %vm1112, %v1048, %v1176
          %v1241 = vsel %vm1113, %v1049, %v1177
          %v1242 = vsel %vm1114, %v1050, %v1178
          %v1243 = vsel %vm1115, %v1051, %v1179
          %v1244 = vsel %vm1116, %v1052, %v1180
          %v1245 = vsel %vm1117, %v1053, %v1181
          %v1246 = vsel %vm1118, %v1054, %v1182
          %v1247 = vsel %vm1119, %v1055, %v1183
          %v1248 = vsel %vm1120, %v1056, %v1184
          %v1249 = vsel %vm1121, %v1057, %v1185
          %v1250 = vsel %vm1122, %v1058, %v1186
          %v1251 = vsel %vm1123, %v1059, %v1187
          %v1252 = vsel %vm1124, %v1060, %v1188
          %v1253 = vsel %vm1125, %v1061, %v1189
          %v1254 = vsel %vm1126, %v1062, %v1190
          %v1255 = vsel %vm1127, %v1063, %v1191
          %v1256 = vsel %vm1128, %v1064, %v1192
          %v1257 = vsel %vm1129, %v1065, %v1193
          %v1258 = vsel %vm1130, %v1066, %v1194
          %v1259 = vsel %vm1131, %v1067, %v1195
          %v1260 = vsel %vm1132, %v1068, %v1196
          %v1261 = vsel %vm1133, %v1069, %v1197
          %v1262 = vsel %vm1134, %v1070, %v1198
          %v1263 = vsel %vm1135, %v1071, %v1199
          %v1264 = vsel %vm1136, %v1072, %v1200
          %v1265 = vsel %vm1137, %v1073, %v1201
          %v1266 = vsel %vm1138, %v1074, %v1202
          %v1267 = vsel %vm1139, %v1075, %v1203
          %v1268 = vsel %vm1140, %v1076, %v1204
          %v1269 = vsel %vm1141, %v1077, %v1205
          %v1270 = vsel %vm1142, %v1078, %v1206
          %v1271 = vsel %vm1143, %v1079, %v1207
          %v1272 = vsel %vm1144, %v1080, %v1208
          %v1273 = vsel %vm1145, %v1081, %v1209
          %v1274 = vsel %vm1146, %v1082, %v1210
          %v1275 = vsel %vm1147, %v1083, %v1211
          %v1276 = vsel %vm1148, %v1084, %v1212
          %v1277 = vsel %vm1149, %v1085, %v1213
          %v1278 = vsel %vm1150, %v1086, %v1214
          %v1279 = vsel %vm1151, %v1087, %v1215
          %v1280 = vsel %vm1152, %v1088, %v1216
          %v1281 = vsel %vm1153, %v1089, %v1217
          %1282 = vst [vmem:[%s266] sm:$0xff] %v1218
          %1283 = vst [vmem:[%s266 + $0x8] sm:$0xff] %v1219
          %1284 = vst [vmem:[%s266 + $0x10] sm:$0xff] %v1220
          %1285 = vst [vmem:[%s266 + $0x18] sm:$0xff] %v1221
          %1286 = vst [vmem:[%s266 + $0x20] sm:$0xff] %v1222
          %1287 = vst [vmem:[%s266 + $0x28] sm:$0xff] %v1223
          %1288 = vst [vmem:[%s266 + $0x30] sm:$0xff] %v1224
          %1289 = vst [vmem:[%s266 + $0x38] sm:$0xff] %v1225
          %1290 = vst [vmem:[%s266 + $0x40] sm:$0xff] %v1226
          %1291 = vst [vmem:[%s266 + $0x48] sm:$0xff] %v1227
          %1292 = vst [vmem:[%s266 + $0x50] sm:$0xff] %v1228
          %1293 = vst [vmem:[%s266 + $0x58] sm:$0xff] %v1229
          %1294 = vst [vmem:[%s266 + $0x60] sm:$0xff] %v1230
          %1295 = vst [vmem:[%s266 + $0x68] sm:$0xff] %v1231
          %1296 = vst [vmem:[%s266 + $0x70] sm:$0xff] %v1232
          %1297 = vst [vmem:[%s266 + $0x78] sm:$0xff] %v1233
          %1298 = vst [vmem:[%s266 + $0x80] sm:$0xff] %v1234
          %1299 = vst [vmem:[%s266 + $0x88] sm:$0xff] %v1235
          %1300 = vst [vmem:[%s266 + $0x90] sm:$0xff] %v1236
          %1301 = vst [vmem:[%s266 + $0x98] sm:$0xff] %v1237
          %1302 = vst [vmem:[%s266 + $0xa0] sm:$0xff] %v1238
          %1303 = vst [vmem:[%s266 + $0xa8] sm:$0xff] %v1239
          %1304 = vst [vmem:[%s266 + $0xb0] sm:$0xff] %v1240
          %1305 = vst [vmem:[%s266 + $0xb8] sm:$0xff] %v1241
          %1306 = vst [vmem:[%s266 + $0xc0] sm:$0xff] %v1242
          %1307 = vst [vmem:[%s266 + $0xc8] sm:$0xff] %v1243
          %1308 = vst [vmem:[%s266 + $0xd0] sm:$0xff] %v1244
          %1309 = vst [vmem:[%s266 + $0xd8] sm:$0xff] %v1245
          %1310 = vst [vmem:[%s266 + $0xe0] sm:$0xff] %v1246
          %1311 = vst [vmem:[%s266 + $0xe8] sm:$0xff] %v1247
          %1312 = vst [vmem:[%s266 + $0xf0] sm:$0xff] %v1248
          %1313 = vst [vmem:[%s266 + $0xf8] sm:$0xff] %v1249
          %1314 = vst [vmem:[%s266 + $0x100] sm:$0xff] %v1250
          %1315 = vst [vmem:[%s266 + $0x108] sm:$0xff] %v1251
          %1316 = vst [vmem:[%s266 + $0x110] sm:$0xff] %v1252
          %1317 = vst [vmem:[%s266 + $0x118] sm:$0xff] %v1253
          %1318 = vst [vmem:[%s266 + $0x120] sm:$0xff] %v1254
          %1319 = vst [vmem:[%s266 + $0x128] sm:$0xff] %v1255
          %1320 = vst [vmem:[%s266 + $0x130] sm:$0xff] %v1256
          %1321 = vst [vmem:[%s266 + $0x138] sm:$0xff] %v1257
          %1322 = vst [vmem:[%s266 + $0x140] sm:$0xff] %v1258
          %1323 = vst [vmem:[%s266 + $0x148] sm:$0xff] %v1259
          %1324 = vst [vmem:[%s266 + $0x150] sm:$0xff] %v1260
          %1325 = vst [vmem:[%s266 + $0x158] sm:$0xff] %v1261
          %1326 = vst [vmem:[%s266 + $0x160] sm:$0xff] %v1262
          %1327 = vst [vmem:[%s266 + $0x168] sm:$0xff] %v1263
          %1328 = vst [vmem:[%s266 + $0x170] sm:$0xff] %v1264
          %1329 = vst [vmem:[%s266 + $0x178] sm:$0xff] %v1265
          %1330 = vst [vmem:[%s266 + $0x180] sm:$0xff] %v1266
          %1331 = vst [vmem:[%s266 + $0x188] sm:$0xff] %v1267
          %1332 = vst [vmem:[%s266 + $0x190] sm:$0xff] %v1268
          %1333 = vst [vmem:[%s266 + $0x198] sm:$0xff] %v1269
          %1334 = vst [vmem:[%s266 + $0x1a0] sm:$0xff] %v1270
          %1335 = vst [vmem:[%s266 + $0x1a8] sm:$0xff] %v1271
          %1336 = vst [vmem:[%s266 + $0x1b0] sm:$0xff] %v1272
          %1337 = vst [vmem:[%s266 + $0x1b8] sm:$0xff] %v1273
          %1338 = vst [vmem:[%s266 + $0x1c0] sm:$0xff] %v1274
          %1339 = vst [vmem:[%s266 + $0x1c8] sm:$0xff] %v1275
          %1340 = vst [vmem:[%s266 + $0x1d0] sm:$0xff] %v1276
          %1341 = vst [vmem:[%s266 + $0x1d8] sm:$0xff] %v1277
          %1342 = vst [vmem:[%s266 + $0x1e0] sm:$0xff] %v1278
          %1343 = vst [vmem:[%s266 + $0x1e8] sm:$0xff] %v1279
          %1344 = vst [vmem:[%s266 + $0x1f0] sm:$0xff] %v1280
          %1345 = vst [vmem:[%s266 + $0x1f8] sm:$0xff] %v1281
        $region48: #{_lambda_.8} parent=31 // pred_fallthru
          _
        %s1346 = smul.u32 32, %s21
        %s1347 = smul.u32 2, %s22
        %p1348 = scmp.lt.s32.totalorder %s1346, 63
        %s1349 = scalar_select %p1348, %s1346, 63
        %p1350 = scmp.lt.s32.totalorder %s1347, 1
        %s1351 = scalar_select %p1350, %s1347, 1
        %s1352 = smul.addr %s1349, 2
        %s1353 = sadd.s32 %s1351, %s1352
        %s1354 = smul.addr %s1353, 8
        %s1355 = scalar_lea.vmem %s3, %s1354
        // Predicated region
        $region49: #{_lambda_.8} parent=31 // pred_check
          %p1356 = pneg %p137
        $region50: #{_lambda_.8} parent=31 // pred_check_branch
          %1358 = sbr.rel (%p1356) target = $region52
        $region51: #{_lambda_.8} parent=31 // pred_region
          %s1359 = smul.u32 32, %s21
          %s1360 = smul.u32 2, %s22
        $region52: #{_lambda_.8} parent=31 // pred_fallthru
          _
      $region32: #{_lambda_.8} parent=5 // pred_fallthru
        _
      %p1361 = scmp.le.s32.totalorder 2, %s11
      // Predicated region
      $region53: #{_lambda_.8} parent=5 // pred_check
        %p1362 = pneg %p1361
      $region54: #{_lambda_.8} parent=5 // pred_check_branch
        %1364 = sbr.rel (%p1362) target = $region56
      $region55: #{_lambda_.8} parent=5 // pred_region
        %s1365 = ssub.s32 %s11, 2
        // Predicated region
        $region57: #{_lambda_.8} parent=55 // pred_check
          %p1366 = pneg %p143
        $region58: #{_lambda_.8} parent=55 // pred_check_branch
          %1368 = sbr.rel (%p1366) target = $region60
        $region59: #{_lambda_.8} parent=55 // pred_region
          %s1369 = smul.u32 32, %s24
          %s1370 = smul.u32 2, %s25
          %p1371 = scmp.lt.s32.totalorder %s1369, 63
          %s1372 = scalar_select %p1371, %s1369, 63
          %p1373 = scmp.lt.s32.totalorder %s1370, 1
          %s1374 = scalar_select %p1373, %s1370, 1
          %s1375 = smul.addr %s1372, 2
          %s1376 = sadd.s32 %s1374, %s1375
          %s1377 = smul.addr %s1376, 8
          %s1378 = scalar_lea.vmem %s3, %s1377
        $region60: #{_lambda_.8} parent=55 // pred_fallthru
          _
      $region56: #{_lambda_.8} parent=5 // pred_fallthru
        _
    $region6: #{_lambda_.8} parent=1 // loop_footer
      %s15 = sadd.s32 1, %s11
    $region7: #{_lambda_.8} parent=1 // loop_footer_branch
      %10 = sbr.rel target = $region3
    $region8: #{_lambda_.8} parent=1 // loop_exit
      _
    %1379 = vsyncpa [#allocation4], 1
    %s1380 = scalar_lea.sflag [#allocation4], 1
    %1381 = vsyncpa %s1380, 1
    %1382 = vsyncpa [#allocation6], 1

// kernel: _lambda_.9
$region0: #{_lambda_.9}
  #allocation0 [shape = 'u32[]', space=smem, size = 0x4, offset = 0x4, fixed_abs, tag = 'smem constant byte address 0x4 - core index']
  #allocation1 [shape = 'u32[144,128]{1,0:T(1,128)}', space=vmem, size = 0x12000, scoped, tag = 'internal scratch']
  #allocation2 [shape = 'f32[256,256]{1,0:T(8,128)}', space=vmem, size = 0x40000, scoped, tag = 'scratch operand']
  %s0 = inlined_call_operand.vmem [shape: bf16[512,2304], index: 0, kind: input, shape index: {}]
  %s1 = inlined_call_operand.vmem [shape: bf16[2304,256], index: 1, kind: input, shape index: {}]
  %s2 = inlined_call_operand.vmem [shape: f32[1,256], index: 2, kind: input, shape index: {}]
  %s3 = inlined_call_operand.vmem [shape: f32[512,256], index: 3, kind: output, shape index: {}]
  %s4 = sld [smem:[#allocation0]]
  $region91: #{_lambda_.9} parent=0
    _
  %s6 = ssub.s32 1, %s4
  %s7 = scalar_select 0, %s6, %s4
  $region1: #{_lambda_.9} parent=0
    #allocation3 [shape = 'u8[262144]{0}', space=vmem, size = 0x40000, scoped, tag = 'input window, operand 0']
    loop: start=0, step=1, limit=20
    $region2: #{_lambda_.9} parent=1 // loop_pre_header
      _
    $region3: #{_lambda_.9} parent=1 // loop_header
      %s9 = sphi 0, %s13
      %p10 = scmp.ge.s32.totalorder %s9, 20
      %s16 = sphi 0, %s35
      %s17 = sphi 0, %s31
      %s18 = sphi 0, %s27
      %s19 = sphi 0, %s16
      %s20 = sphi 0, %s17
      %s21 = sphi 0, %s18
      %s22 = sphi 0, %s19
      %s23 = sphi 0, %s20
      %s24 = sphi 0, %s21
      %s40 = sphi 0, %s42
      %s43 = sphi 0, %s40
      %s44 = sphi 0, %s43
      %s60 = sphi 0, %s44
      %s68 = sphi 0, %s70
      %s71 = sphi 0, %s68
      %s72 = sphi 0, %s71
      %s88 = sphi 0, %s72
      %s94 = sphi 0, %s96
      %s97 = sphi 0, %s94
      %s98 = sphi 0, %s97
      %s114 = sphi 0, %s98
      %s122 = sphi 0, %s124
      %s125 = sphi 0, %s122
      %s126 = sphi 0, %s125
      %s142 = sphi 0, %s126
    $region4: #{_lambda_.9} parent=1 // loop_header_branch
      %12 = sbr.rel (%p10) target = $region8
    $region5: #{_lambda_.9} parent=1 // loop_body
      %s14 = ssub.s32 %s9, 1
      %s15 = ssub.s32 %s9, 2
      %s25 = sadd.s32 1, %s18
      %p26 = scmp.ge.s32.totalorder %s25, 9
      %s27 = scalar_select %p26, 0, %s25
      %s28 = sadd.s32 1, %s17
      %s29 = scalar_select %p26, %s28, %s17
      %p30 = scmp.ge.s32.totalorder %s29, 1
      %s31 = scalar_select %p30, 0, %s29
      %s32 = sadd.s32 1, %s16
      %s33 = scalar_select %p30, %s32, %s16
      %p34 = scmp.ge.s32.totalorder %s33, 2
      %s35 = scalar_select %p34, 0, %s33
      %s36 = ssub.s32 %s16, %s35
      %s37 = ssub.s32 %s18, %s27
      %s38 = sor.u32 %s36, %s37
      %p39 = scmp.eq.s32.totalorder %s38, 0
      %s41 = sadd.s32 %s40, 1
      %s42 = scalar_select %p39, %s40, %s41
      %p45 = pneg %p39
      %p46 = scmp.eq.s32.totalorder %s9, 17
      %p47 = por %p45, %p46
      %p48 = scmp.ne.s32.totalorder %s40, %s43
      %p49 = scmp.eq.s32.totalorder %s9, 0
      %p50 = por %p48, %p49
      %p51 = scmp.ne.s32.totalorder %s40, %s43
      %p52 = scmp.eq.s32.totalorder %s14, 17
      %p53 = por %p51, %p52
      %p54 = scmp.ne.s32.totalorder %s43, %s44
      %p55 = scmp.eq.s32.totalorder %s14, 0
      %p56 = por %p54, %p55
      %p57 = scmp.ne.s32.totalorder %s43, %s44
      %p58 = scmp.eq.s32.totalorder %s15, 17
      %p59 = por %p57, %p58
      %p61 = scmp.ne.s32.totalorder %s44, %s60
      %p62 = scmp.eq.s32.totalorder %s15, 0
      %p63 = por %p61, %p62
      %s64 = ssub.s32 %s18, %s27
      %s65 = ssub.s32 %s17, %s31
      %s66 = sor.u32 %s64, %s65
      %p67 = scmp.eq.s32.totalorder %s66, 0
      %s69 = sadd.s32 %s68, 1
      %s70 = scalar_select %p67, %s68, %s69
      %p73 = pneg %p67
      %p74 = scmp.eq.s32.totalorder %s9, 17
      %p75 = por %p73, %p74
      %p76 = scmp.ne.s32.totalorder %s68, %s71
      %p77 = scmp.eq.s32.totalorder %s9, 0
      %p78 = por %p76, %p77
      %p79 = scmp.ne.s32.totalorder %s68, %s71
      %p80 = scmp.eq.s32.totalorder %s14, 17
      %p81 = por %p79, %p80
      %p82 = scmp.ne.s32.totalorder %s71, %s72
      %p83 = scmp.eq.s32.totalorder %s14, 0
      %p84 = por %p82, %p83
      %p85 = scmp.ne.s32.totalorder %s71, %s72
      %p86 = scmp.eq.s32.totalorder %s15, 17
      %p87 = por %p85, %p86
      %p89 = scmp.ne.s32.totalorder %s72, %s88
      %p90 = scmp.eq.s32.totalorder %s15, 0
      %p91 = por %p89, %p90
      %s92 = ssub.s32 %s17, %s31
      %p93 = scmp.eq.s32.totalorder %s92, 0
      %s95 = sadd.s32 %s94, 1
      %s96 = scalar_select %p93, %s94, %s95
      %p99 = pneg %p93
      %p100 = scmp.eq.s32.totalorder %s9, 17
      %p101 = por %p99, %p100
      %p102 = scmp.ne.s32.totalorder %s94, %s97
      %p103 = scmp.eq.s32.totalorder %s9, 0
      %p104 = por %p102, %p103
      %p105 = scmp.ne.s32.totalorder %s94, %s97
      %p106 = scmp.eq.s32.totalorder %s14, 17
      %p107 = por %p105, %p106
      %p108 = scmp.ne.s32.totalorder %s97, %s98
      %p109 = scmp.eq.s32.totalorder %s14, 0
      %p110 = por %p108, %p109
      %p111 = scmp.ne.s32.totalorder %s97, %s98
      %p112 = scmp.eq.s32.totalorder %s15, 17
      %p113 = por %p111, %p112
      %p115 = scmp.ne.s32.totalorder %s98, %s114
      %p116 = scmp.eq.s32.totalorder %s15, 0
      %p117 = por %p115, %p116
      %s118 = ssub.s32 %s16, %s35
      %s119 = ssub.s32 %s17, %s31
      %s120 = sor.u32 %s118, %s119
      %p121 = scmp.eq.s32.totalorder %s120, 0
      %s123 = sadd.s32 %s122, 1
      %s124 = scalar_select %p121, %s122, %s123
      %p127 = pneg %p121
      %p128 = scmp.eq.s32.totalorder %s9, 17
      %p129 = por %p127, %p128
      %p130 = scmp.ne.s32.totalorder %s122, %s125
      %p131 = scmp.eq.s32.totalorder %s9, 0
      %p132 = por %p130, %p131
      %p133 = scmp.ne.s32.totalorder %s122, %s125
      %p134 = scmp.eq.s32.totalorder %s14, 17
      %p135 = por %p133, %p134
      %p136 = scmp.ne.s32.totalorder %s125, %s126
      %p137 = scmp.eq.s32.totalorder %s14, 0
      %p138 = por %p136, %p137
      %p139 = scmp.ne.s32.totalorder %s125, %s126
      %p140 = scmp.eq.s32.totalorder %s15, 17
      %p141 = por %p139, %p140
      %p143 = scmp.ne.s32.totalorder %s126, %s142
      %p144 = scmp.eq.s32.totalorder %s15, 0
      %p145 = por %p143, %p144
      %p146 = scmp.le.s32.totalorder 1, %s9
      %p147 = scmp.lt.s32.totalorder %s9, 19
      %p148 = pnand %p146, %p147
      %p149 = pneg %p148
      // Predicated region
      $region9: #{_lambda_.9} parent=5 // pred_check
        _
      $region10: #{_lambda_.9} parent=5 // pred_check_branch
        %151 = sbr.rel (%p148) target = $region12
      $region11: #{_lambda_.9} parent=5 // pred_region
        %s152 = ssub.s32 %s9, 1
        // Predicated region
        $region13: #{_lambda_.9} parent=11 // pred_check
          %p153 = pneg %p110
        $region14: #{_lambda_.9} parent=11 // pred_check_branch
          %155 = sbr.rel (%p153) target = $region16
        $region15: #{_lambda_.9} parent=11 // pred_region
          %s156 = smul.u32 2, %s20
          %p157 = scmp.lt.s32.totalorder %s156, 1
          %s158 = scalar_select %p157, %s156, 1
          %s159 = scalar_lea.vmem %s2, %s158
          %s160 = smul.u32 2, %s20
        $region16: #{_lambda_.9} parent=11 // pred_fallthru
          _
      $region12: #{_lambda_.9} parent=5 // pred_fallthru
        _
      %p161 = scmp.lt.s32.totalorder %s9, 18
      // Predicated region
      $region17: #{_lambda_.9} parent=5 // pred_check
        %p162 = pneg %p161
      $region18: #{_lambda_.9} parent=5 // pred_check_branch
        %164 = sbr.rel (%p162) target = $region20
      $region19: #{_lambda_.9} parent=5 // pred_region
        // Predicated region
        $region21: #{_lambda_.9} parent=19 // pred_check
          %p165 = pneg %p50
        $region22: #{_lambda_.9} parent=19 // pred_check_branch
          %167 = sbr.rel (%p165) target = $region24
        $region23: #{_lambda_.9} parent=19 // pred_region
          %s168 = sand.u32 %s40, 1
          %s169 = sand.u32 %s40, 1
          %s170 = smul.addr %s169, 256
          %s171 = scalar_lea.vmem [#allocation3], %s170
          %s172 = smul.u32 32, %s16
          %s173 = smul.u32 2, %s18
          %s174 = smul.addr %s172, 18
          %s175 = sadd.s32 %s173, %s174
          %s176 = smul.addr %s175, 4
          %s177 = scalar_lea.vmem %s0, %s176
          // Predicated region
          $region25: #{_lambda_.9} parent=23 // pred_check
            _
          $region26: #{_lambda_.9} parent=23 // pred_check_branch
            %179 = sbr.rel (0) target = $region28
          $region27: #{_lambda_.9} parent=23 // pred_region
            // Predicated region
            $region29: #{_lambda_.9} parent=27 // pred_check
              _
            $region30: #{_lambda_.9} parent=27 // pred_check_branch
              %181 = sbr.rel (0) target = $region32
            $region31: #{_lambda_.9} parent=27 // pred_region
              // Predicated region
              $region44: #{_lambda_.9} parent=31 // pred_check
                _
              $region45: #{_lambda_.9} parent=31 // pred_check_branch
                %259 = sbr.rel (0) target = $region47
              $region46: #{_lambda_.9} parent=31 // pred_region
                loop: start=0, step=1, limit=1
                $region48: #{_lambda_.9} parent=46 // loop_pre_header
                  _
                $region49: #{_lambda_.9} parent=46 // loop_header
                  %s261 = sphi 0, %s265
                  %p262 = scmp.ge.s32.totalorder %s261, 1
                  %s266 = sphi %s177, %s177
                  %s267 = sphi %s171, %s171
                $region50: #{_lambda_.9} parent=46 // loop_header_branch
                  %264 = sbr.rel (%p262) target = $region54
                $region51: #{_lambda_.9} parent=46 // loop_body
                  %v268 = vld [vmem:[%s266] sm:$0xff]
                  %269 = vst [vmem:[%s267] sm:$0xff] %v268
                  %v270 = vld [vmem:[%s266 + $0x48] sm:$0xff]
                  %271 = vst [vmem:[%s267 + $0x8] sm:$0xff] %v270
                  %v272 = vld [vmem:[%s266 + $0x90] sm:$0xff]
                  %273 = vst [vmem:[%s267 + $0x10] sm:$0xff] %v272
                  %v274 = vld [vmem:[%s266 + $0xd8] sm:$0xff]
                  %275 = vst [vmem:[%s267 + $0x18] sm:$0xff] %v274
                  %v276 = vld [vmem:[%s266 + $0x120] sm:$0xff]
                  %277 = vst [vmem:[%s267 + $0x20] sm:$0xff] %v276
                  %v278 = vld [vmem:[%s266 + $0x168] sm:$0xff]
                  %279 = vst [vmem:[%s267 + $0x28] sm:$0xff] %v278
                  %v280 = vld [vmem:[%s266 + $0x1b0] sm:$0xff]
                  %281 = vst [vmem:[%s267 + $0x30] sm:$0xff] %v280
                  %v282 = vld [vmem:[%s266 + $0x1f8] sm:$0xff]
                  %283 = vst [vmem:[%s267 + $0x38] sm:$0xff] %v282
                  %v284 = vld [vmem:[%s266 + $0x240] sm:$0xff]
                  %285 = vst [vmem:[%s267 + $0x40] sm:$0xff] %v284
                  %v286 = vld [vmem:[%s266 + $0x288] sm:$0xff]
                  %287 = vst [vmem:[%s267 + $0x48] sm:$0xff] %v286
                  %v288 = vld [vmem:[%s266 + $0x2d0] sm:$0xff]
                  %289 = vst [vmem:[%s267 + $0x50] sm:$0xff] %v288
                  %v290 = vld [vmem:[%s266 + $0x318] sm:$0xff]
                  %291 = vst [vmem:[%s267 + $0x58] sm:$0xff] %v290
                  %v292 = vld [vmem:[%s266 + $0x360] sm:$0xff]
                  %293 = vst [vmem:[%s267 + $0x60] sm:$0xff] %v292
                  %v294 = vld [vmem:[%s266 + $0x3a8] sm:$0xff]
                  %295 = vst [vmem:[%s267 + $0x68] sm:$0xff] %v294
                  %v296 = vld [vmem:[%s266 + $0x3f0] sm:$0xff]
                  %297 = vst [vmem:[%s267 + $0x70] sm:$0xff] %v296
                  %v298 = vld [vmem:[%s266 + $0x438] sm:$0xff]
                  %299 = vst [vmem:[%s267 + $0x78] sm:$0xff] %v298
                  %v300 = vld [vmem:[%s266 + $0x480] sm:$0xff]
                  %301 = vst [vmem:[%s267 + $0x80] sm:$0xff] %v300
                  %v302 = vld [vmem:[%s266 + $0x4c8] sm:$0xff]
                  %303 = vst [vmem:[%s267 + $0x88] sm:$0xff] %v302
                  %v304 = vld [vmem:[%s266 + $0x510] sm:$0xff]
                  %305 = vst [vmem:[%s267 + $0x90] sm:$0xff] %v304
                  %v306 = vld [vmem:[%s266 + $0x558] sm:$0xff]
                  %307 = vst [vmem:[%s267 + $0x98] sm:$0xff] %v306
                  %v308 = vld [vmem:[%s266 + $0x5a0] sm:$0xff]
                  %309 = vst [vmem:[%s267 + $0xa0] sm:$0xff] %v308
                  %v310 = vld [vmem:[%s266 + $0x5e8] sm:$0xff]
                  %311 = vst [vmem:[%s267 + $0xa8] sm:$0xff] %v310
                  %v312 = vld [vmem:[%s266 + $0x630] sm:$0xff]
                  %313 = vst [vmem:[%s267 + $0xb0] sm:$0xff] %v312
                  %v314 = vld [vmem:[%s266 + $0x678] sm:$0xff]
                  %315 = vst [vmem:[%s267 + $0xb8] sm:$0xff] %v314
                  %v316 = vld [vmem:[%s266 + $0x6c0] sm:$0xff]
                  %317 = vst [vmem:[%s267 + $0xc0] sm:$0xff] %v316
                  %v318 = vld [vmem:[%s266 + $0x708] sm:$0xff]
                  %319 = vst [vmem:[%s267 + $0xc8] sm:$0xff] %v318
                  %v320 = vld [vmem:[%s266 + $0x750] sm:$0xff]
                  %321 = vst [vmem:[%s267 + $0xd0] sm:$0xff] %v320
                  %v322 = vld [vmem:[%s266 + $0x798] sm:$0xff]
                  %323 = vst [vmem:[%s267 + $0xd8] sm:$0xff] %v322
                  %v324 = vld [vmem:[%s266 + $0x7e0] sm:$0xff]
                  %325 = vst [vmem:[%s267 + $0xe0] sm:$0xff] %v324
                  %v326 = vld [vmem:[%s266 + $0x828] sm:$0xff]
                  %327 = vst [vmem:[%s267 + $0xe8] sm:$0xff] %v326
                  %v328 = vld [vmem:[%s266 + $0x870] sm:$0xff]
                  %329 = vst [vmem:[%s267 + $0xf0] sm:$0xff] %v328
                  %v330 = vld [vmem:[%s266 + $0x8b8] sm:$0xff]
                  %331 = vst [vmem:[%s267 + $0xf8] sm:$0xff] %v330
                $region52: #{_lambda_.9} parent=46 // loop_footer
                  %s265 = sadd.s32 1, %s261
                $region53: #{_lambda_.9} parent=46 // loop_footer_branch
                  %260 = sbr.rel target = $region49
                $region54: #{_lambda_.9} parent=46 // loop_exit
                  _
              $region47: #{_lambda_.9} parent=31 // pred_fallthru
                _
              // Predicated region
              $region55: #{_lambda_.9} parent=31 // pred_check
                _
              $region56: #{_lambda_.9} parent=31 // pred_check_branch
                %333 = sbr.rel target = $region58
              $region57: #{_lambda_.9} parent=31 // pred_region
                _
              $region58: #{_lambda_.9} parent=31 // pred_fallthru
                _
            $region32: #{_lambda_.9} parent=27 // pred_fallthru
              _
            // Predicated region
            $region33: #{_lambda_.9} parent=27 // pred_check
              _
            $region34: #{_lambda_.9} parent=27 // pred_check_branch
              %183 = sbr.rel target = $region36
            $region35: #{_lambda_.9} parent=27 // pred_region
              %s185 = ssub.s32 256, 1
              loop: start=0, step=1, limit=1
              $region37: #{_lambda_.9} parent=35 // loop_pre_header
                _
              $region38: #{_lambda_.9} parent=35 // loop_header
                %s187 = sphi 0, %s191
                %p188 = scmp.ge.s32.totalorder %s187, 1
                %s192 = sphi %s177, %s177
                %s193 = sphi %s171, %s171
              $region39: #{_lambda_.9} parent=35 // loop_header_branch
                %190 = sbr.rel (%p188) target = $region43
              $region40: #{_lambda_.9} parent=35 // loop_body
                %v194 = vld [vmem:[%s192] sm:%s185]
                %195 = vst [vmem:[%s193] sm:%s185] %v194
                %v196 = vld [vmem:[%s192 + $0x48] sm:%s185]
                %197 = vst [vmem:[%s193 + $0x8] sm:%s185] %v196
                %v198 = vld [vmem:[%s192 + $0x90] sm:%s185]
                %199 = vst [vmem:[%s193 + $0x10] sm:%s185] %v198
                %v200 = vld [vmem:[%s192 + $0xd8] sm:%s185]
                %201 = vst [vmem:[%s193 + $0x18] sm:%s185] %v200
                %v202 = vld [vmem:[%s192 + $0x120] sm:%s185]
                %203 = vst [vmem:[%s193 + $0x20] sm:%s185] %v202
                %v204 = vld [vmem:[%s192 + $0x168] sm:%s185]
                %205 = vst [vmem:[%s193 + $0x28] sm:%s185] %v204
                %v206 = vld [vmem:[%s192 + $0x1b0] sm:%s185]
                %207 = vst [vmem:[%s193 + $0x30] sm:%s185] %v206
                %v208 = vld [vmem:[%s192 + $0x1f8] sm:%s185]
                %209 = vst [vmem:[%s193 + $0x38] sm:%s185] %v208
                %v210 = vld [vmem:[%s192 + $0x240] sm:%s185]
                %211 = vst [vmem:[%s193 + $0x40] sm:%s185] %v210
                %v212 = vld [vmem:[%s192 + $0x288] sm:%s185]
                %213 = vst [vmem:[%s193 + $0x48] sm:%s185] %v212
                %v214 = vld [vmem:[%s192 + $0x2d0] sm:%s185]
                %215 = vst [vmem:[%s193 + $0x50] sm:%s185] %v214
                %v216 = vld [vmem:[%s192 + $0x318] sm:%s185]
                %217 = vst [vmem:[%s193 + $0x58] sm:%s185] %v216
                %v218 = vld [vmem:[%s192 + $0x360] sm:%s185]
                %219 = vst [vmem:[%s193 + $0x60] sm:%s185] %v218
                %v220 = vld [vmem:[%s192 + $0x3a8] sm:%s185]
                %221 = vst [vmem:[%s193 + $0x68] sm:%s185] %v220
                %v222 = vld [vmem:[%s192 + $0x3f0] sm:%s185]
                %223 = vst [vmem:[%s193 + $0x70] sm:%s185] %v222
                %v224 = vld [vmem:[%s192 + $0x438] sm:%s185]
                %225 = vst [vmem:[%s193 + $0x78] sm:%s185] %v224
                %v226 = vld [vmem:[%s192 + $0x480] sm:%s185]
                %227 = vst [vmem:[%s193 + $0x80] sm:%s185] %v226
                %v228 = vld [vmem:[%s192 + $0x4c8] sm:%s185]
                %229 = vst [vmem:[%s193 + $0x88] sm:%s185] %v228
                %v230 = vld [vmem:[%s192 + $0x510] sm:%s185]
                %231 = vst [vmem:[%s193 + $0x90] sm:%s185] %v230
                %v232 = vld [vmem:[%s192 + $0x558] sm:%s185]
                %233 = vst [vmem:[%s193 + $0x98] sm:%s185] %v232
                %v234 = vld [vmem:[%s192 + $0x5a0] sm:%s185]
                %235 = vst [vmem:[%s193 + $0xa0] sm:%s185] %v234
                %v236 = vld [vmem:[%s192 + $0x5e8] sm:%s185]
                %237 = vst [vmem:[%s193 + $0xa8] sm:%s185] %v236
                %v238 = vld [vmem:[%s192 + $0x630] sm:%s185]
                %239 = vst [vmem:[%s193 + $0xb0] sm:%s185] %v238
                %v240 = vld [vmem:[%s192 + $0x678] sm:%s185]
                %241 = vst [vmem:[%s193 + $0xb8] sm:%s185] %v240
                %v242 = vld [vmem:[%s192 + $0x6c0] sm:%s185]
                %243 = vst [vmem:[%s193 + $0xc0] sm:%s185] %v242
                %v244 = vld [vmem:[%s192 + $0x708] sm:%s185]
                %245 = vst [vmem:[%s193 + $0xc8] sm:%s185] %v244
                %v246 = vld [vmem:[%s192 + $0x750] sm:%s185]
                %247 = vst [vmem:[%s193 + $0xd0] sm:%s185] %v246
                %v248 = vld [vmem:[%s192 + $0x798] sm:%s185]
                %249 = vst [vmem:[%s193 + $0xd8] sm:%s185] %v248
                %v250 = vld [vmem:[%s192 + $0x7e0] sm:%s185]
                %251 = vst [vmem:[%s193 + $0xe0] sm:%s185] %v250
                %v252 = vld [vmem:[%s192 + $0x828] sm:%s185]
                %253 = vst [vmem:[%s193 + $0xe8] sm:%s185] %v252
                %v254 = vld [vmem:[%s192 + $0x870] sm:%s185]
                %255 = vst [vmem:[%s193 + $0xf0] sm:%s185] %v254
                %v256 = vld [vmem:[%s192 + $0x8b8] sm:%s185]
                %257 = vst [vmem:[%s193 + $0xf8] sm:%s185] %v256
              $region41: #{_lambda_.9} parent=35 // loop_footer
                %s191 = sadd.s32 1, %s187
              $region42: #{_lambda_.9} parent=35 // loop_footer_branch
                %186 = sbr.rel target = $region38
              $region43: #{_lambda_.9} parent=35 // loop_exit
                _
            $region36: #{_lambda_.9} parent=27 // pred_fallthru
              _
          $region28: #{_lambda_.9} parent=23 // pred_fallthru
            _
          %334 = vnop
        $region24: #{_lambda_.9} parent=19 // pred_fallthru
          _
        // Predicated region
        $region59: #{_lambda_.9} parent=19 // pred_check
          %p335 = pneg %p78
        $region60: #{_lambda_.9} parent=19 // pred_check_branch
          %337 = sbr.rel (%p335) target = $region62
        $region61: #{_lambda_.9} parent=19 // pred_region
          %s338 = smul.u32 32, %s18
          %s339 = smul.u32 2, %s17
          %p340 = scmp.lt.s32.totalorder %s338, 287
          %s341 = scalar_select %p340, %s338, 287
          %p342 = scmp.lt.s32.totalorder %s339, 1
          %s343 = scalar_select %p342, %s339, 1
          %s344 = smul.addr %s341, 2
          %s345 = sadd.s32 %s343, %s344
          %s346 = smul.addr %s345, 4
          %s347 = scalar_lea.vmem %s1, %s346
          %s348 = smul.u32 32, %s18
          %s349 = smul.u32 2, %s17
        $region62: #{_lambda_.9} parent=19 // pred_fallthru
          _
      $region20: #{_lambda_.9} parent=5 // pred_fallthru
        _
      %p350 = scmp.le.s32.totalorder 1, %s9
      %p351 = scmp.lt.s32.totalorder %s9, 19
      %p352 = pnand %p350, %p351
      %p353 = pneg %p352
      // Predicated region
      $region63: #{_lambda_.9} parent=5 // pred_check
        _
      $region64: #{_lambda_.9} parent=5 // pred_check_branch
        %355 = sbr.rel (%p352) target = $region66
      $region65: #{_lambda_.9} parent=5 // pred_region
        %s356 = ssub.s32 %s9, 1
        %s357 = sand.u32 %s43, 1
        %s358 = sand.u32 %s43, 1
        %s359 = smul.addr %s358, 256
        %s360 = scalar_lea.vmem [#allocation3], %s359
        // Predicated region
        $region67: #{_lambda_.9} parent=65 // pred_check
          %p361 = pneg %p56
        $region68: #{_lambda_.9} parent=65 // pred_check_branch
          %363 = sbr.rel (%p361) target = $region70
        $region69: #{_lambda_.9} parent=65 // pred_region
          _
        $region70: #{_lambda_.9} parent=65 // pred_fallthru
          _
        %s364 = sand.u32 %s43, 1
        %s365 = sand.u32 %s43, 1
        %s366 = smul.addr %s365, 256
        %s367 = scalar_lea.vmem [#allocation3], %s366
        %p368 = pneg %p56
        %p369 = pneg %p53
        %s370 = smul.u32 32, %s21
        %s371 = smul.u32 2, %s20
        %p372 = scmp.lt.s32.totalorder %s370, 287
        %s373 = scalar_select %p372, %s370, 287
        %p374 = scmp.lt.s32.totalorder %s371, 1
        %s375 = scalar_select %p374, %s371, 1
        %s376 = smul.addr %s373, 2
        %s377 = sadd.s32 %s375, %s376
        %s378 = smul.addr %s377, 4
        %s379 = scalar_lea.vmem %s1, %s378
        %p380 = pneg %p84
        %p381 = pneg %p81
        %s382 = smul.u32 2, %s20
        %p383 = scmp.lt.s32.totalorder %s382, 1
        %s384 = scalar_select %p383, %s382, 1
        %s385 = scalar_lea.vmem %s2, %s384
        %p386 = pneg %p110
        %p387 = pneg %p107
        %p388 = pneg %p138
        %p389 = pneg %p135
        %s390 = smul.u32 32, %s19
        %s391 = smul.u32 2, %s20
        %p392 = scmp.lt.s32.totalorder %s390, 63
        %s393 = scalar_select %p392, %s390, 63
        %p394 = scmp.lt.s32.totalorder %s391, 1
        %s395 = scalar_select %p394, %s391, 1
        %s396 = smul.addr %s393, 2
        %s397 = sadd.s32 %s395, %s396
        %s398 = smul.addr %s397, 8
        %s399 = scalar_lea.vmem %s3, %s398
        %s400 = smul.u32 32, %s19
        %s401 = smul.u32 2, %s21
        %s402 = smul.u32 32, %s21
        %s403 = smul.u32 2, %s20
        %p404 = scmp.lt.s32.totalorder %s402, 287
        %s405 = scalar_select %p404, %s402, 287
        %p406 = scmp.lt.s32.totalorder %s403, 1
        %s407 = scalar_select %p406, %s403, 1
        %s408 = smul.addr %s405, 2
        %s409 = sadd.s32 %s407, %s408
        %s410 = smul.addr %s409, 4
        %s411 = scalar_lea.vmem %s1, %s410
        %s412 = smul.u32 32, %s21
        %s413 = smul.u32 2, %s20
        %s414 = smul.u32 2, %s20
        %p415 = scmp.lt.s32.totalorder %s414, 1
        %s416 = scalar_select %p415, %s414, 1
        %s417 = scalar_lea.vmem %s2, %s416
        %s418 = smul.u32 2, %s20
        %s419 = smul.u32 32, %s19
        %s420 = smul.u32 2, %s20
        %p421 = scmp.lt.s32.totalorder %s419, 63
        %s422 = scalar_select %p421, %s419, 63
        %p423 = scmp.lt.s32.totalorder %s420, 1
        %s424 = scalar_select %p423, %s420, 1
        %s425 = smul.addr %s422, 2
        %s426 = sadd.s32 %s424, %s425
        %s427 = smul.addr %s426, 8
        %s428 = scalar_lea.vmem %s3, %s427
        %s429 = smul.u32 32, %s19
        %s430 = smul.u32 2, %s20
        %p431 = scmp.eq.s32.totalorder %s21, 0
        // Predicated region
        $region71: #{_lambda_.9} parent=65 // pred_check
          %p432 = pneg %p431
        $region72: #{_lambda_.9} parent=65 // pred_check_branch
          %434 = sbr.rel (%p432) target = $region74
        $region73: #{_lambda_.9} parent=65 // pred_region
          %435 = vst [vmem:[#allocation2] sm:$0xff] 0.0
          %436 = vst [vmem:[#allocation2 + $0x8] sm:$0xff] 0.0
          %437 = vst [vmem:[#allocation2 + $0x10] sm:$0xff] 0.0
          %438 = vst [vmem:[#allocation2 + $0x18] sm:$0xff] 0.0
          %439 = vst [vmem:[#allocation2 + $0x20] sm:$0xff] 0.0
          %440 = vst [vmem:[#allocation2 + $0x28] sm:$0xff] 0.0
          %441 = vst [vmem:[#allocation2 + $0x30] sm:$0xff] 0.0
          %442 = vst [vmem:[#allocation2 + $0x38] sm:$0xff] 0.0
          %443 = vst [vmem:[#allocation2 + $0x40] sm:$0xff] 0.0
          %444 = vst [vmem:[#allocation2 + $0x48] sm:$0xff] 0.0
          %445 = vst [vmem:[#allocation2 + $0x50] sm:$0xff] 0.0
          %446 = vst [vmem:[#allocation2 + $0x58] sm:$0xff] 0.0
          %447 = vst [vmem:[#allocation2 + $0x60] sm:$0xff] 0.0
          %448 = vst [vmem:[#allocation2 + $0x68] sm:$0xff] 0.0
          %449 = vst [vmem:[#allocation2 + $0x70] sm:$0xff] 0.0
          %450 = vst [vmem:[#allocation2 + $0x78] sm:$0xff] 0.0
          %451 = vst [vmem:[#allocation2 + $0x80] sm:$0xff] 0.0
          %452 = vst [vmem:[#allocation2 + $0x88] sm:$0xff] 0.0
          %453 = vst [vmem:[#allocation2 + $0x90] sm:$0xff] 0.0
          %454 = vst [vmem:[#allocation2 + $0x98] sm:$0xff] 0.0
          %455 = vst [vmem:[#allocation2 + $0xa0] sm:$0xff] 0.0
          %456 = vst [vmem:[#allocation2 + $0xa8] sm:$0xff] 0.0
          %457 = vst [vmem:[#allocation2 + $0xb0] sm:$0xff] 0.0
          %458 = vst [vmem:[#allocation2 + $0xb8] sm:$0xff] 0.0
          %459 = vst [vmem:[#allocation2 + $0xc0] sm:$0xff] 0.0
          %460 = vst [vmem:[#allocation2 + $0xc8] sm:$0xff] 0.0
          %461 = vst [vmem:[#allocation2 + $0xd0] sm:$0xff] 0.0
          %462 = vst [vmem:[#allocation2 + $0xd8] sm:$0xff] 0.0
          %463 = vst [vmem:[#allocation2 + $0xe0] sm:$0xff] 0.0
          %464 = vst [vmem:[#allocation2 + $0xe8] sm:$0xff] 0.0
          %465 = vst [vmem:[#allocation2 + $0xf0] sm:$0xff] 0.0
          %466 = vst [vmem:[#allocation2 + $0xf8] sm:$0xff] 0.0
          %467 = vst [vmem:[#allocation2 + $0x100] sm:$0xff] 0.0
          %468 = vst [vmem:[#allocation2 + $0x108] sm:$0xff] 0.0
          %469 = vst [vmem:[#allocation2 + $0x110] sm:$0xff] 0.0
          %470 = vst [vmem:[#allocation2 + $0x118] sm:$0xff] 0.0
          %471 = vst [vmem:[#allocation2 + $0x120] sm:$0xff] 0.0
          %472 = vst [vmem:[#allocation2 + $0x128] sm:$0xff] 0.0
          %473 = vst [vmem:[#allocation2 + $0x130] sm:$0xff] 0.0
          %474 = vst [vmem:[#allocation2 + $0x138] sm:$0xff] 0.0
          %475 = vst [vmem:[#allocation2 + $0x140] sm:$0xff] 0.0
          %476 = vst [vmem:[#allocation2 + $0x148] sm:$0xff] 0.0
          %477 = vst [vmem:[#allocation2 + $0x150] sm:$0xff] 0.0
          %478 = vst [vmem:[#allocation2 + $0x158] sm:$0xff] 0.0
          %479 = vst [vmem:[#allocation2 + $0x160] sm:$0xff] 0.0
          %480 = vst [vmem:[#allocation2 + $0x168] sm:$0xff] 0.0
          %481 = vst [vmem:[#allocation2 + $0x170] sm:$0xff] 0.0
          %482 = vst [vmem:[#allocation2 + $0x178] sm:$0xff] 0.0
          %483 = vst [vmem:[#allocation2 + $0x180] sm:$0xff] 0.0
          %484 = vst [vmem:[#allocation2 + $0x188] sm:$0xff] 0.0
          %485 = vst [vmem:[#allocation2 + $0x190] sm:$0xff] 0.0
          %486 = vst [vmem:[#allocation2 + $0x198] sm:$0xff] 0.0
          %487 = vst [vmem:[#allocation2 + $0x1a0] sm:$0xff] 0.0
          %488 = vst [vmem:[#allocation2 + $0x1a8] sm:$0xff] 0.0
          %489 = vst [vmem:[#allocation2 + $0x1b0] sm:$0xff] 0.0
          %490 = vst [vmem:[#allocation2 + $0x1b8] sm:$0xff] 0.0
          %491 = vst [vmem:[#allocation2 + $0x1c0] sm:$0xff] 0.0
          %492 = vst [vmem:[#allocation2 + $0x1c8] sm:$0xff] 0.0
          %493 = vst [vmem:[#allocation2 + $0x1d0] sm:$0xff] 0.0
          %494 = vst [vmem:[#allocation2 + $0x1d8] sm:$0xff] 0.0
          %495 = vst [vmem:[#allocation2 + $0x1e0] sm:$0xff] 0.0
          %496 = vst [vmem:[#allocation2 + $0x1e8] sm:$0xff] 0.0
          %497 = vst [vmem:[#allocation2 + $0x1f0] sm:$0xff] 0.0
          %498 = vst [vmem:[#allocation2 + $0x1f8] sm:$0xff] 0.0
        $region74: #{_lambda_.9} parent=65 // pred_fallthru
          _
        %v499 = vld [vmem:[#allocation2] sm:$0xff]
        %v500 = vld [vmem:[#allocation2 + $0x8] sm:$0xff]
        %v501 = vld [vmem:[#allocation2 + $0x10] sm:$0xff]
        %v502 = vld [vmem:[#allocation2 + $0x18] sm:$0xff]
        %v503 = vld [vmem:[#allocation2 + $0x20] sm:$0xff]
        %v504 = vld [vmem:[#allocation2 + $0x28] sm:$0xff]
        %v505 = vld [vmem:[#allocation2 + $0x30] sm:$0xff]
        %v506 = vld [vmem:[#allocation2 + $0x38] sm:$0xff]
        %v507 = vld [vmem:[#allocation2 + $0x40] sm:$0xff]
        %v508 = vld [vmem:[#allocation2 + $0x48] sm:$0xff]
        %v509 = vld [vmem:[#allocation2 + $0x50] sm:$0xff]
        %v510 = vld [vmem:[#allocation2 + $0x58] sm:$0xff]
        %v511 = vld [vmem:[#allocation2 + $0x60] sm:$0xff]
        %v512 = vld [vmem:[#allocation2 + $0x68] sm:$0xff]
        %v513 = vld [vmem:[#allocation2 + $0x70] sm:$0xff]
        %v514 = vld [vmem:[#allocation2 + $0x78] sm:$0xff]
        %v515 = vld [vmem:[#allocation2 + $0x80] sm:$0xff]
        %v516 = vld [vmem:[#allocation2 + $0x88] sm:$0xff]
        %v517 = vld [vmem:[#allocation2 + $0x90] sm:$0xff]
        %v518 = vld [vmem:[#allocation2 + $0x98] sm:$0xff]
        %v519 = vld [vmem:[#allocation2 + $0xa0] sm:$0xff]
        %v520 = vld [vmem:[#allocation2 + $0xa8] sm:$0xff]
        %v521 = vld [vmem:[#allocation2 + $0xb0] sm:$0xff]
        %v522 = vld [vmem:[#allocation2 + $0xb8] sm:$0xff]
        %v523 = vld [vmem:[#allocation2 + $0xc0] sm:$0xff]
        %v524 = vld [vmem:[#allocation2 + $0xc8] sm:$0xff]
        %v525 = vld [vmem:[#allocation2 + $0xd0] sm:$0xff]
        %v526 = vld [vmem:[#allocation2 + $0xd8] sm:$0xff]
        %v527 = vld [vmem:[#allocation2 + $0xe0] sm:$0xff]
        %v528 = vld [vmem:[#allocation2 + $0xe8] sm:$0xff]
        %v529 = vld [vmem:[#allocation2 + $0xf0] sm:$0xff]
        %v530 = vld [vmem:[#allocation2 + $0xf8] sm:$0xff]
        %v531 = vld [vmem:[#allocation2 + $0x100] sm:$0xff]
        %v532 = vld [vmem:[#allocation2 + $0x108] sm:$0xff]
        %v533 = vld [vmem:[#allocation2 + $0x110] sm:$0xff]
        %v534 = vld [vmem:[#allocation2 + $0x118] sm:$0xff]
        %v535 = vld [vmem:[#allocation2 + $0x120] sm:$0xff]
        %v536 = vld [vmem:[#allocation2 + $0x128] sm:$0xff]
        %v537 = vld [vmem:[#allocation2 + $0x130] sm:$0xff]
        %v538 = vld [vmem:[#allocation2 + $0x138] sm:$0xff]
        %v539 = vld [vmem:[#allocation2 + $0x140] sm:$0xff]
        %v540 = vld [vmem:[#allocation2 + $0x148] sm:$0xff]
        %v541 = vld [vmem:[#allocation2 + $0x150] sm:$0xff]
        %v542 = vld [vmem:[#allocation2 + $0x158] sm:$0xff]
        %v543 = vld [vmem:[#allocation2 + $0x160] sm:$0xff]
        %v544 = vld [vmem:[#allocation2 + $0x168] sm:$0xff]
        %v545 = vld [vmem:[#allocation2 + $0x170] sm:$0xff]
        %v546 = vld [vmem:[#allocation2 + $0x178] sm:$0xff]
        %v547 = vld [vmem:[#allocation2 + $0x180] sm:$0xff]
        %v548 = vld [vmem:[#allocation2 + $0x188] sm:$0xff]
        %v549 = vld [vmem:[#allocation2 + $0x190] sm:$0xff]
        %v550 = vld [vmem:[#allocation2 + $0x198] sm:$0xff]
        %v551 = vld [vmem:[#allocation2 + $0x1a0] sm:$0xff]
        %v552 = vld [vmem:[#allocation2 + $0x1a8] sm:$0xff]
        %v553 = vld [vmem:[#allocation2 + $0x1b0] sm:$0xff]
        %v554 = vld [vmem:[#allocation2 + $0x1b8] sm:$0xff]
        %v555 = vld [vmem:[#allocation2 + $0x1c0] sm:$0xff]
        %v556 = vld [vmem:[#allocation2 + $0x1c8] sm:$0xff]
        %v557 = vld [vmem:[#allocation2 + $0x1d0] sm:$0xff]
        %v558 = vld [vmem:[#allocation2 + $0x1d8] sm:$0xff]
        %v559 = vld [vmem:[#allocation2 + $0x1e0] sm:$0xff]
        %v560 = vld [vmem:[#allocation2 + $0x1e8] sm:$0xff]
        %v561 = vld [vmem:[#allocation2 + $0x1f0] sm:$0xff]
        %v562 = vld [vmem:[#allocation2 + $0x1f8] sm:$0xff]
        %v563 = vld [vmem:[%s360] sm:$0xff]
        %v564 = vld [vmem:[%s360 + $0x8] sm:$0xff]
        %v565 = vld [vmem:[%s360 + $0x10] sm:$0xff]
        %v566 = vld [vmem:[%s360 + $0x18] sm:$0xff]
        %v567 = vld [vmem:[%s360 + $0x20] sm:$0xff]
        %v568 = vld [vmem:[%s360 + $0x28] sm:$0xff]
        %v569 = vld [vmem:[%s360 + $0x30] sm:$0xff]
        %v570 = vld [vmem:[%s360 + $0x38] sm:$0xff]
        %v571 = vld [vmem:[%s360 + $0x40] sm:$0xff]
        %v572 = vld [vmem:[%s360 + $0x48] sm:$0xff]
        %v573 = vld [vmem:[%s360 + $0x50] sm:$0xff]
        %v574 = vld [vmem:[%s360 + $0x58] sm:$0xff]
        %v575 = vld [vmem:[%s360 + $0x60] sm:$0xff]
        %v576 = vld [vmem:[%s360 + $0x68] sm:$0xff]
        %v577 = vld [vmem:[%s360 + $0x70] sm:$0xff]
        %v578 = vld [vmem:[%s360 + $0x78] sm:$0xff]
        %v579 = vld [vmem:[%s360 + $0x80] sm:$0xff]
        %v580 = vld [vmem:[%s360 + $0x88] sm:$0xff]
        %v581 = vld [vmem:[%s360 + $0x90] sm:$0xff]
        %v582 = vld [vmem:[%s360 + $0x98] sm:$0xff]
        %v583 = vld [vmem:[%s360 + $0xa0] sm:$0xff]
        %v584 = vld [vmem:[%s360 + $0xa8] sm:$0xff]
        %v585 = vld [vmem:[%s360 + $0xb0] sm:$0xff]
        %v586 = vld [vmem:[%s360 + $0xb8] sm:$0xff]
        %v587 = vld [vmem:[%s360 + $0xc0] sm:$0xff]
        %v588 = vld [vmem:[%s360 + $0xc8] sm:$0xff]
        %v589 = vld [vmem:[%s360 + $0xd0] sm:$0xff]
        %v590 = vld [vmem:[%s360 + $0xd8] sm:$0xff]
        %v591 = vld [vmem:[%s360 + $0xe0] sm:$0xff]
        %v592 = vld [vmem:[%s360 + $0xe8] sm:$0xff]
        %v593 = vld [vmem:[%s360 + $0xf0] sm:$0xff]
        %v594 = vld [vmem:[%s360 + $0xf8] sm:$0xff]
        %v595 = vld [vmem:[%s411] sm:$0xff]
        %v596 = vld [vmem:[%s411 + $0x8] sm:$0xff]
        %v597 = vld [vmem:[%s411 + $0x10] sm:$0xff]
        %v598 = vld [vmem:[%s411 + $0x18] sm:$0xff]
        %v599 = vld [vmem:[%s411 + $0x20] sm:$0xff]
        %v600 = vld [vmem:[%s411 + $0x28] sm:$0xff]
        %v601 = vld [vmem:[%s411 + $0x30] sm:$0xff]
        %v602 = vld [vmem:[%s411 + $0x38] sm:$0xff]
        %v603 = vld [vmem:[%s411 + $0x40] sm:$0xff]
        %v604 = vld [vmem:[%s411 + $0x48] sm:$0xff]
        %v605 = vld [vmem:[%s411 + $0x50] sm:$0xff]
        %v606 = vld [vmem:[%s411 + $0x58] sm:$0xff]
        %v607 = vld [vmem:[%s411 + $0x60] sm:$0xff]
        %v608 = vld [vmem:[%s411 + $0x68] sm:$0xff]
        %v609 = vld [vmem:[%s411 + $0x70] sm:$0xff]
        %v610 = vld [vmem:[%s411 + $0x78] sm:$0xff]
        %v611 = vld [vmem:[%s411 + $0x80] sm:$0xff]
        %v612 = vld [vmem:[%s411 + $0x88] sm:$0xff]
        %v613 = vld [vmem:[%s411 + $0x90] sm:$0xff]
        %v614 = vld [vmem:[%s411 + $0x98] sm:$0xff]
        %v615 = vld [vmem:[%s411 + $0xa0] sm:$0xff]
        %v616 = vld [vmem:[%s411 + $0xa8] sm:$0xff]
        %v617 = vld [vmem:[%s411 + $0xb0] sm:$0xff]
        %v618 = vld [vmem:[%s411 + $0xb8] sm:$0xff]
        %v619 = vld [vmem:[%s411 + $0xc0] sm:$0xff]
        %v620 = vld [vmem:[%s411 + $0xc8] sm:$0xff]
        %v621 = vld [vmem:[%s411 + $0xd0] sm:$0xff]
        %v622 = vld [vmem:[%s411 + $0xd8] sm:$0xff]
        %v623 = vld [vmem:[%s411 + $0xe0] sm:$0xff]
        %v624 = vld [vmem:[%s411 + $0xe8] sm:$0xff]
        %v625 = vld [vmem:[%s411 + $0xf0] sm:$0xff]
        %v626 = vld [vmem:[%s411 + $0xf8] sm:$0xff]
        %v659 = vunpack.c.l.b16 %v563
        %v660 = vunpack.c.h.b16 %v563
        %v661 = vunpack.c.l.b16 %v564
        %v662 = vunpack.c.h.b16 %v564
        %v663 = vunpack.c.l.b16 %v565
        %v664 = vunpack.c.h.b16 %v565
        %v665 = vunpack.c.l.b16 %v566
        %v666 = vunpack.c.h.b16 %v566
        %v667 = vunpack.c.l.b16 %v567
        %v668 = vunpack.c.h.b16 %v567
        %v669 = vunpack.c.l.b16 %v568
        %v670 = vunpack.c.h.b16 %v568
        %v671 = vunpack.c.l.b16 %v569
        %v672 = vunpack.c.h.b16 %v569
        %v673 = vunpack.c.l.b16 %v570
        %v674 = vunpack.c.h.b16 %v570
        %v675 = vunpack.c.l.b16 %v571
        %v676 = vunpack.c.h.b16 %v571
        %v677 = vunpack.c.l.b16 %v572
        %v678 = vunpack.c.h.b16 %v572
        %v679 = vunpack.c.l.b16 %v573
        %v680 = vunpack.c.h.b16 %v573
        %v681 = vunpack.c.l.b16 %v574
        %v682 = vunpack.c.h.b16 %v574
        %v683 = vunpack.c.l.b16 %v575
        %v684 = vunpack.c.h.b16 %v575
        %v685 = vunpack.c.l.b16 %v576
        %v686 = vunpack.c.h.b16 %v576
        %v687 = vunpack.c.l.b16 %v577
        %v688 = vunpack.c.h.b16 %v577
        %v689 = vunpack.c.l.b16 %v578
        %v690 = vunpack.c.h.b16 %v578
        %v691 = vunpack.c.l.b16 %v579
        %v692 = vunpack.c.h.b16 %v579
        %v693 = vunpack.c.l.b16 %v580
        %v694 = vunpack.c.h.b16 %v580
        %v695 = vunpack.c.l.b16 %v581
        %v696 = vunpack.c.h.b16 %v581
        %v697 = vunpack.c.l.b16 %v582
        %v698 = vunpack.c.h.b16 %v582
        %v699 = vunpack.c.l.b16 %v583
        %v700 = vunpack.c.h.b16 %v583
        %v701 = vunpack.c.l.b16 %v584
        %v702 = vunpack.c.h.b16 %v584
        %v703 = vunpack.c.l.b16 %v585
        %v704 = vunpack.c.h.b16 %v585
        %v705 = vunpack.c.l.b16 %v586
        %v706 = vunpack.c.h.b16 %v586
        %v707 = vunpack.c.l.b16 %v587
        %v708 = vunpack.c.h.b16 %v587
        %v709 = vunpack.c.l.b16 %v588
        %v710 = vunpack.c.h.b16 %v588
        %v711 = vunpack.c.l.b16 %v589
        %v712 = vunpack.c.h.b16 %v589
        %v713 = vunpack.c.l.b16 %v590
        %v714 = vunpack.c.h.b16 %v590
        %v715 = vunpack.c.l.b16 %v591
        %v716 = vunpack.c.h.b16 %v591
        %v717 = vunpack.c.l.b16 %v592
        %v718 = vunpack.c.h.b16 %v592
        %v719 = vunpack.c.l.b16 %v593
        %v720 = vunpack.c.h.b16 %v593
        %v721 = vunpack.c.l.b16 %v594
        %v722 = vunpack.c.h.b16 %v594
        %v723 = vpack.c.b16 %v661, %v659
        %v724 = vpack.c.b16 %v662, %v660
        %v725 = vpack.c.b16 %v665, %v663
        %v726 = vpack.c.b16 %v666, %v664
        %v727 = vpack.c.b16 %v669, %v667
        %v728 = vpack.c.b16 %v670, %v668
        %v729 = vpack.c.b16 %v673, %v671
        %v730 = vpack.c.b16 %v674, %v672
        %v731 = vpack.c.b16 %v677, %v675
        %v732 = vpack.c.b16 %v678, %v676
        %v733 = vpack.c.b16 %v681, %v679
        %v734 = vpack.c.b16 %v682, %v680
        %v735 = vpack.c.b16 %v685, %v683
        %v736 = vpack.c.b16 %v686, %v684
        %v737 = vpack.c.b16 %v689, %v687
        %v738 = vpack.c.b16 %v690, %v688
        %v739 = vpack.c.b16 %v693, %v691
        %v740 = vpack.c.b16 %v694, %v692
        %v741 = vpack.c.b16 %v697, %v695
        %v742 = vpack.c.b16 %v698, %v696
        %v743 = vpack.c.b16 %v701, %v699
        %v744 = vpack.c.b16 %v702, %v700
        %v745 = vpack.c.b16 %v705, %v703
        %v746 = vpack.c.b16 %v706, %v704
        %v747 = vpack.c.b16 %v709, %v707
        %v748 = vpack.c.b16 %v710, %v708
        %v749 = vpack.c.b16 %v713, %v711
        %v750 = vpack.c.b16 %v714, %v712
        %v751 = vpack.c.b16 %v717, %v715
        %v752 = vpack.c.b16 %v718, %v716
        %v753 = vpack.c.b16 %v721, %v719
        %v754 = vpack.c.b16 %v722, %v720
        %v819 = vunpack.c.l.b16 %v595
        %v820 = vunpack.c.h.b16 %v595
        %v821 = vunpack.c.l.b16 %v596
        %v822 = vunpack.c.h.b16 %v596
        %v823 = vunpack.c.l.b16 %v597
        %v824 = vunpack.c.h.b16 %v597
        %v825 = vunpack.c.l.b16 %v598
        %v826 = vunpack.c.h.b16 %v598
        %v827 = vunpack.c.l.b16 %v599
        %v828 = vunpack.c.h.b16 %v599
        %v829 = vunpack.c.l.b16 %v600
        %v830 = vunpack.c.h.b16 %v600
        %v831 = vunpack.c.l.b16 %v601
        %v832 = vunpack.c.h.b16 %v601
        %v833 = vunpack.c.l.b16 %v602
        %v834 = vunpack.c.h.b16 %v602
        %v835 = vunpack.c.l.b16 %v603
        %v836 = vunpack.c.h.b16 %v603
        %v837 = vunpack.c.l.b16 %v604
        %v838 = vunpack.c.h.b16 %v604
        %v839 = vunpack.c.l.b16 %v605
        %v840 = vunpack.c.h.b16 %v605
        %v841 = vunpack.c.l.b16 %v606
        %v842 = vunpack.c.h.b16 %v606
        %v843 = vunpack.c.l.b16 %v607
        %v844 = vunpack.c.h.b16 %v607
        %v845 = vunpack.c.l.b16 %v608
        %v846 = vunpack.c.h.b16 %v608
        %v847 = vunpack.c.l.b16 %v609
        %v848 = vunpack.c.h.b16 %v609
        %v849 = vunpack.c.l.b16 %v610
        %v850 = vunpack.c.h.b16 %v610
        %v851 = vunpack.c.l.b16 %v611
        %v852 = vunpack.c.h.b16 %v611
        %v853 = vunpack.c.l.b16 %v612
        %v854 = vunpack.c.h.b16 %v612
        %v855 = vunpack.c.l.b16 %v613
        %v856 = vunpack.c.h.b16 %v613
        %v857 = vunpack.c.l.b16 %v614
        %v858 = vunpack.c.h.b16 %v614
        %v859 = vunpack.c.l.b16 %v615
        %v860 = vunpack.c.h.b16 %v615
        %v861 = vunpack.c.l.b16 %v616
        %v862 = vunpack.c.h.b16 %v616
        %v863 = vunpack.c.l.b16 %v617
        %v864 = vunpack.c.h.b16 %v617
        %v865 = vunpack.c.l.b16 %v618
        %v866 = vunpack.c.h.b16 %v618
        %v867 = vunpack.c.l.b16 %v619
        %v868 = vunpack.c.h.b16 %v619
        %v869 = vunpack.c.l.b16 %v620
        %v870 = vunpack.c.h.b16 %v620
        %v871 = vunpack.c.l.b16 %v621
        %v872 = vunpack.c.h.b16 %v621
        %v873 = vunpack.c.l.b16 %v622
        %v874 = vunpack.c.h.b16 %v622
        %v875 = vunpack.c.l.b16 %v623
        %v876 = vunpack.c.h.b16 %v623
        %v877 = vunpack.c.l.b16 %v624
        %v878 = vunpack.c.h.b16 %v624
        %v879 = vunpack.c.l.b16 %v625
        %v880 = vunpack.c.h.b16 %v625
        %v881 = vunpack.c.l.b16 %v626
        %v882 = vunpack.c.h.b16 %v626
        %v883 = vpack.c.b16 %v821, %v819
        %v884 = vpack.c.b16 %v822, %v820
        %v885 = vpack.c.b16 %v825, %v823
        %v886 = vpack.c.b16 %v826, %v824
        %v887 = vpack.c.b16 %v829, %v827
        %v888 = vpack.c.b16 %v830, %v828
        %v889 = vpack.c.b16 %v833, %v831
        %v890 = vpack.c.b16 %v834, %v832
        %v891 = vpack.c.b16 %v837, %v835
        %v892 = vpack.c.b16 %v838, %v836
        %v893 = vpack.c.b16 %v841, %v839
        %v894 = vpack.c.b16 %v842, %v840
        %v895 = vpack.c.b16 %v845, %v843
        %v896 = vpack.c.b16 %v846, %v844
        %v897 = vpack.c.b16 %v849, %v847
        %v898 = vpack.c.b16 %v850, %v848
        %v899 = vpack.c.b16 %v853, %v851
        %v900 = vpack.c.b16 %v854, %v852
        %v901 = vpack.c.b16 %v857, %v855
        %v902 = vpack.c.b16 %v858, %v856
        %v903 = vpack.c.b16 %v861, %v859
        %v904 = vpack.c.b16 %v862, %v860
        %v905 = vpack.c.b16 %v865, %v863
        %v906 = vpack.c.b16 %v866, %v864
        %v907 = vpack.c.b16 %v869, %v867
        %v908 = vpack.c.b16 %v870, %v868
        %v909 = vpack.c.b16 %v873, %v871
        %v910 = vpack.c.b16 %v874, %v872
        %v911 = vpack.c.b16 %v877, %v875
        %v912 = vpack.c.b16 %v878, %v876
        %v913 = vpack.c.b16 %v881, %v879
        %v914 = vpack.c.b16 %v882, %v880
        %947 = vmatprep.subr.bf16.mxu0 %v898
        %948 = vmatpush1.bf16.msra.mxu0 %v897
        %949 = vmatprep.subr.bf16.mxu0 %v896
        %950 = vmatpush1.bf16.msra.mxu0 %v895
        %951 = vmatprep.subr.bf16.mxu0 %v894
        %952 = vmatpush1.bf16.msra.mxu0 %v893
        %953 = vmatprep.subr.bf16.mxu0 %v892
        %954 = vmatpush1.bf16.msra.mxu0 %v891
        %955 = vmatprep.subr.bf16.mxu0 %v890
        %956 = vmatpush1.bf16.msra.mxu0 %v889
        %957 = vmatprep.subr.bf16.mxu0 %v888
        %958 = vmatpush1.bf16.msra.mxu0 %v887
        %959 = vmatprep.subr.bf16.mxu0 %v886
        %960 = vmatpush1.bf16.msra.mxu0 %v885
        %961 = vmatprep.subr.bf16.mxu0 %v884
        %962 = vmatpush1.bf16.msra.mxu0 %v883
        %963 = vmatprep.subr.bf16.mxu0 %v914
        %964 = vmatpush2.bf16.msra.mxu0 %v913
        %965 = vmatprep.subr.bf16.mxu0 %v912
        %966 = vmatpush2.bf16.msra.mxu0 %v911
        %967 = vmatprep.subr.bf16.mxu0 %v910
        %968 = vmatpush2.bf16.msra.mxu0 %v909
        %969 = vmatprep.subr.bf16.mxu0 %v908
        %970 = vmatpush2.bf16.msra.mxu0 %v907
        %971 = vmatprep.subr.bf16.mxu0 %v906
        %972 = vmatpush2.bf16.msra.mxu0 %v905
        %973 = vmatprep.subr.bf16.mxu0 %v904
        %974 = vmatpush2.bf16.msra.mxu0 %v903
        %975 = vmatprep.subr.bf16.mxu0 %v902
        %976 = vmatpush2.bf16.msra.mxu0 %v901
        %977 = vmatprep.subr.bf16.mxu0 %v900
        %978 = vmatpush2.bf16.msra.mxu0 %v899
        %979 = vmatprep.mubr.bf16.mxu0 %v724
        %980 = vmatmul.mubr.bf16.gmra.mxu0 %v723
        %v981 = vpop.f32.mrf.mxu0
        %v982 = vadd.f32 0.0, %v981
        %v983 = vpop.f32.mrf.mxu0
        %v984 = vadd.f32 0.0, %v983
        %v985 = vpop.f32.mrf.mxu0
        %v986 = vadd.f32 0.0, %v985
        %v987 = vpop.f32.mrf.mxu0
        %v988 = vadd.f32 0.0, %v987
        %989 = vmatprep.mubr.bf16.mxu0 %v726
        %990 = vmatmul.mubr.bf16.gmra.mxu0 %v725
        %v991 = vpop.f32.mrf.mxu0
        %v992 = vadd.f32 0.0, %v991
        %v993 = vpop.f32.mrf.mxu0
        %v994 = vadd.f32 0.0, %v993
        %v995 = vpop.f32.mrf.mxu0
        %v996 = vadd.f32 0.0, %v995
        %v997 = vpop.f32.mrf.mxu0
        %v998 = vadd.f32 0.0, %v997
        %999 = vmatprep.mubr.bf16.mxu0 %v728
        %1000 = vmatmul.mubr.bf16.gmra.mxu0 %v727
        %v1001 = vpop.f32.mrf.mxu0
        %v1002 = vadd.f32 0.0, %v1001
        %v1003 = vpop.f32.mrf.mxu0
        %v1004 = vadd.f32 0.0, %v1003
        %v1005 = vpop.f32.mrf.mxu0
        %v1006 = vadd.f32 0.0, %v1005
        %v1007 = vpop.f32.mrf.mxu0
        %v1008 = vadd.f32 0.0, %v1007
        %1009 = vmatprep.mubr.bf16.mxu0 %v730
        %1010 = vmatmul.mubr.bf16.gmra.mxu0 %v729
        %v1011 = vpop.f32.mrf.mxu0
        %v1012 = vadd.f32 0.0, %v1011
        %v1013 = vpop.f32.mrf.mxu0
        %v1014 = vadd.f32 0.0, %v1013
        %v1015 = vpop.f32.mrf.mxu0
        %v1016 = vadd.f32 0.0, %v1015
        %v1017 = vpop.f32.mrf.mxu0
        %v1018 = vadd.f32 0.0, %v1017
        %1019 = vmatprep.mubr.bf16.mxu0 %v732
        %1020 = vmatmul.mubr.bf16.gmra.mxu0 %v731
        %v1021 = vpop.f32.mrf.mxu0
        %v1022 = vadd.f32 0.0, %v1021
        %v1023 = vpop.f32.mrf.mxu0
        %v1024 = vadd.f32 0.0, %v1023
        %v1025 = vpop.f32.mrf.mxu0
        %v1026 = vadd.f32 0.0, %v1025
        %v1027 = vpop.f32.mrf.mxu0
        %v1028 = vadd.f32 0.0, %v1027
        %1029 = vmatprep.mubr.bf16.mxu0 %v734
        %1030 = vmatmul.mubr.bf16.gmra.mxu0 %v733
        %v1031 = vpop.f32.mrf.mxu0
        %v1032 = vadd.f32 0.0, %v1031
        %v1033 = vpop.f32.mrf.mxu0
        %v1034 = vadd.f32 0.0, %v1033
        %v1035 = vpop.f32.mrf.mxu0
        %v1036 = vadd.f32 0.0, %v1035
        %v1037 = vpop.f32.mrf.mxu0
        %v1038 = vadd.f32 0.0, %v1037
        %1039 = vmatprep.mubr.bf16.mxu0 %v736
        %1040 = vmatmul.mubr.bf16.gmra.mxu0 %v735
        %v1041 = vpop.f32.mrf.mxu0
        %v1042 = vadd.f32 0.0, %v1041
        %v1043 = vpop.f32.mrf.mxu0
        %v1044 = vadd.f32 0.0, %v1043
        %v1045 = vpop.f32.mrf.mxu0
        %v1046 = vadd.f32 0.0, %v1045
        %v1047 = vpop.f32.mrf.mxu0
        %v1048 = vadd.f32 0.0, %v1047
        %1049 = vmatprep.mubr.bf16.mxu0 %v738
        %1050 = vmatmul.mubr.bf16.gmra.mxu0 %v737
        %v1051 = vpop.f32.mrf.mxu0
        %v1052 = vadd.f32 0.0, %v1051
        %v1053 = vpop.f32.mrf.mxu0
        %v1054 = vadd.f32 0.0, %v1053
        %v1055 = vpop.f32.mrf.mxu0
        %v1056 = vadd.f32 0.0, %v1055
        %v1057 = vpop.f32.mrf.mxu0
        %v1058 = vadd.f32 0.0, %v1057
        %1059 = vmatprep.mubr.bf16.mxu0 %v740
        %1060 = vmatmul.mubr.bf16.gmra.mxu0 %v739
        %v1061 = vpop.f32.mrf.mxu0
        %v1062 = vadd.f32 0.0, %v1061
        %v1063 = vpop.f32.mrf.mxu0
        %v1064 = vadd.f32 0.0, %v1063
        %v1065 = vpop.f32.mrf.mxu0
        %v1066 = vadd.f32 0.0, %v1065
        %v1067 = vpop.f32.mrf.mxu0
        %v1068 = vadd.f32 0.0, %v1067
        %1069 = vmatprep.mubr.bf16.mxu0 %v742
        %1070 = vmatmul.mubr.bf16.gmra.mxu0 %v741
        %v1071 = vpop.f32.mrf.mxu0
        %v1072 = vadd.f32 0.0, %v1071
        %v1073 = vpop.f32.mrf.mxu0
        %v1074 = vadd.f32 0.0, %v1073
        %v1075 = vpop.f32.mrf.mxu0
        %v1076 = vadd.f32 0.0, %v1075
        %v1077 = vpop.f32.mrf.mxu0
        %v1078 = vadd.f32 0.0, %v1077
        %1079 = vmatprep.mubr.bf16.mxu0 %v744
        %1080 = vmatmul.mubr.bf16.gmra.mxu0 %v743
        %v1081 = vpop.f32.mrf.mxu0
        %v1082 = vadd.f32 0.0, %v1081
        %v1083 = vpop.f32.mrf.mxu0
        %v1084 = vadd.f32 0.0, %v1083
        %v1085 = vpop.f32.mrf.mxu0
        %v1086 = vadd.f32 0.0, %v1085
        %v1087 = vpop.f32.mrf.mxu0
        %v1088 = vadd.f32 0.0, %v1087
        %1089 = vmatprep.mubr.bf16.mxu0 %v746
        %1090 = vmatmul.mubr.bf16.gmra.mxu0 %v745
        %v1091 = vpop.f32.mrf.mxu0
        %v1092 = vadd.f32 0.0, %v1091
        %v1093 = vpop.f32.mrf.mxu0
        %v1094 = vadd.f32 0.0, %v1093
        %v1095 = vpop.f32.mrf.mxu0
        %v1096 = vadd.f32 0.0, %v1095
        %v1097 = vpop.f32.mrf.mxu0
        %v1098 = vadd.f32 0.0, %v1097
        %1099 = vmatprep.mubr.bf16.mxu0 %v748
        %1100 = vmatmul.mubr.bf16.gmra.mxu0 %v747
        %v1101 = vpop.f32.mrf.mxu0
        %v1102 = vadd.f32 0.0, %v1101
        %v1103 = vpop.f32.mrf.mxu0
        %v1104 = vadd.f32 0.0, %v1103
        %v1105 = vpop.f32.mrf.mxu0
        %v1106 = vadd.f32 0.0, %v1105
        %v1107 = vpop.f32.mrf.mxu0
        %v1108 = vadd.f32 0.0, %v1107
        %1109 = vmatprep.mubr.bf16.mxu0 %v750
        %1110 = vmatmul.mubr.bf16.gmra.mxu0 %v749
        %v1111 = vpop.f32.mrf.mxu0
        %v1112 = vadd.f32 0.0, %v1111
        %v1113 = vpop.f32.mrf.mxu0
        %v1114 = vadd.f32 0.0, %v1113
        %v1115 = vpop.f32.mrf.mxu0
        %v1116 = vadd.f32 0.0, %v1115
        %v1117 = vpop.f32.mrf.mxu0
        %v1118 = vadd.f32 0.0, %v1117
        %1119 = vmatprep.mubr.bf16.mxu0 %v752
        %1120 = vmatmul.mubr.bf16.gmra.mxu0 %v751
        %v1121 = vpop.f32.mrf.mxu0
        %v1122 = vadd.f32 0.0, %v1121
        %v1123 = vpop.f32.mrf.mxu0
        %v1124 = vadd.f32 0.0, %v1123
        %v1125 = vpop.f32.mrf.mxu0
        %v1126 = vadd.f32 0.0, %v1125
        %v1127 = vpop.f32.mrf.mxu0
        %v1128 = vadd.f32 0.0, %v1127
        %1129 = vmatprep.mubr.bf16.mxu0 %v754
        %1130 = vmatmul.mubr.bf16.gmra.mxu0 %v753
        %v1131 = vpop.f32.mrf.mxu0
        %v1132 = vadd.f32 0.0, %v1131
        %v1133 = vpop.f32.mrf.mxu0
        %v1134 = vadd.f32 0.0, %v1133
        %v1135 = vpop.f32.mrf.mxu0
        %v1136 = vadd.f32 0.0, %v1135
        %v1137 = vpop.f32.mrf.mxu0
        %v1138 = vadd.f32 0.0, %v1137
        %1139 = vdwg.mxu0
        %v1140 = vadd.f32 %v499, %v982
        %v1141 = vadd.f32 %v500, %v984
        %v1142 = vadd.f32 %v501, %v986
        %v1143 = vadd.f32 %v502, %v988
        %v1144 = vadd.f32 %v503, %v992
        %v1145 = vadd.f32 %v504, %v994
        %v1146 = vadd.f32 %v505, %v996
        %v1147 = vadd.f32 %v506, %v998
        %v1148 = vadd.f32 %v507, %v1002
        %v1149 = vadd.f32 %v508, %v1004
        %v1150 = vadd.f32 %v509, %v1006
        %v1151 = vadd.f32 %v510, %v1008
        %v1152 = vadd.f32 %v511, %v1012
        %v1153 = vadd.f32 %v512, %v1014
        %v1154 = vadd.f32 %v513, %v1016
        %v1155 = vadd.f32 %v514, %v1018
        %v1156 = vadd.f32 %v515, %v1022
        %v1157 = vadd.f32 %v516, %v1024
        %v1158 = vadd.f32 %v517, %v1026
        %v1159 = vadd.f32 %v518, %v1028
        %v1160 = vadd.f32 %v519, %v1032
        %v1161 = vadd.f32 %v520, %v1034
        %v1162 = vadd.f32 %v521, %v1036
        %v1163 = vadd.f32 %v522, %v1038
        %v1164 = vadd.f32 %v523, %v1042
        %v1165 = vadd.f32 %v524, %v1044
        %v1166 = vadd.f32 %v525, %v1046
        %v1167 = vadd.f32 %v526, %v1048
        %v1168 = vadd.f32 %v527, %v1052
        %v1169 = vadd.f32 %v528, %v1054
        %v1170 = vadd.f32 %v529, %v1056
        %v1171 = vadd.f32 %v530, %v1058
        %v1172 = vadd.f32 %v531, %v1062
        %v1173 = vadd.f32 %v532, %v1064
        %v1174 = vadd.f32 %v533, %v1066
        %v1175 = vadd.f32 %v534, %v1068
        %v1176 = vadd.f32 %v535, %v1072
        %v1177 = vadd.f32 %v536, %v1074
        %v1178 = vadd.f32 %v537, %v1076
        %v1179 = vadd.f32 %v538, %v1078
        %v1180 = vadd.f32 %v539, %v1082
        %v1181 = vadd.f32 %v540, %v1084
        %v1182 = vadd.f32 %v541, %v1086
        %v1183 = vadd.f32 %v542, %v1088
        %v1184 = vadd.f32 %v543, %v1092
        %v1185 = vadd.f32 %v544, %v1094
        %v1186 = vadd.f32 %v545, %v1096
        %v1187 = vadd.f32 %v546, %v1098
        %v1188 = vadd.f32 %v547, %v1102
        %v1189 = vadd.f32 %v548, %v1104
        %v1190 = vadd.f32 %v549, %v1106
        %v1191 = vadd.f32 %v550, %v1108
        %v1192 = vadd.f32 %v551, %v1112
        %v1193 = vadd.f32 %v552, %v1114
        %v1194 = vadd.f32 %v553, %v1116
        %v1195 = vadd.f32 %v554, %v1118
        %v1196 = vadd.f32 %v555, %v1122
        %v1197 = vadd.f32 %v556, %v1124
        %v1198 = vadd.f32 %v557, %v1126
        %v1199 = vadd.f32 %v558, %v1128
        %v1200 = vadd.f32 %v559, %v1132
        %v1201 = vadd.f32 %v560, %v1134
        %v1202 = vadd.f32 %v561, %v1136
        %v1203 = vadd.f32 %v562, %v1138
        %1204 = vst [vmem:[#allocation2] sm:$0xff] %v1140
        %1205 = vst [vmem:[#allocation2 + $0x8] sm:$0xff] %v1141
        %1206 = vst [vmem:[#allocation2 + $0x10] sm:$0xff] %v1142
        %1207 = vst [vmem:[#allocation2 + $0x18] sm:$0xff] %v1143
        %1208 = vst [vmem:[#allocation2 + $0x20] sm:$0xff] %v1144
        %1209 = vst [vmem:[#allocation2 + $0x28] sm:$0xff] %v1145
        %1210 = vst [vmem:[#allocation2 + $0x30] sm:$0xff] %v1146
        %1211 = vst [vmem:[#allocation2 + $0x38] sm:$0xff] %v1147
        %1212 = vst [vmem:[#allocation2 + $0x40] sm:$0xff] %v1148
        %1213 = vst [vmem:[#allocation2 + $0x48] sm:$0xff] %v1149
        %1214 = vst [vmem:[#allocation2 + $0x50] sm:$0xff] %v1150
        %1215 = vst [vmem:[#allocation2 + $0x58] sm:$0xff] %v1151
        %1216 = vst [vmem:[#allocation2 + $0x60] sm:$0xff] %v1152
        %1217 = vst [vmem:[#allocation2 + $0x68] sm:$0xff] %v1153
        %1218 = vst [vmem:[#allocation2 + $0x70] sm:$0xff] %v1154
        %1219 = vst [vmem:[#allocation2 + $0x78] sm:$0xff] %v1155
        %1220 = vst [vmem:[#allocation2 + $0x80] sm:$0xff] %v1156
        %1221 = vst [vmem:[#allocation2 + $0x88] sm:$0xff] %v1157
        %1222 = vst [vmem:[#allocation2 + $0x90] sm:$0xff] %v1158
        %1223 = vst [vmem:[#allocation2 + $0x98] sm:$0xff] %v1159
        %1224 = vst [vmem:[#allocation2 + $0xa0] sm:$0xff] %v1160
        %1225 = vst [vmem:[#allocation2 + $0xa8] sm:$0xff] %v1161
        %1226 = vst [vmem:[#allocation2 + $0xb0] sm:$0xff] %v1162
        %1227 = vst [vmem:[#allocation2 + $0xb8] sm:$0xff] %v1163
        %1228 = vst [vmem:[#allocation2 + $0xc0] sm:$0xff] %v1164
        %1229 = vst [vmem:[#allocation2 + $0xc8] sm:$0xff] %v1165
        %1230 = vst [vmem:[#allocation2 + $0xd0] sm:$0xff] %v1166
        %1231 = vst [vmem:[#allocation2 + $0xd8] sm:$0xff] %v1167
        %1232 = vst [vmem:[#allocation2 + $0xe0] sm:$0xff] %v1168
        %1233 = vst [vmem:[#allocation2 + $0xe8] sm:$0xff] %v1169
        %1234 = vst [vmem:[#allocation2 + $0xf0] sm:$0xff] %v1170
        %1235 = vst [vmem:[#allocation2 + $0xf8] sm:$0xff] %v1171
        %1236 = vst [vmem:[#allocation2 + $0x100] sm:$0xff] %v1172
        %1237 = vst [vmem:[#allocation2 + $0x108] sm:$0xff] %v1173
        %1238 = vst [vmem:[#allocation2 + $0x110] sm:$0xff] %v1174
        %1239 = vst [vmem:[#allocation2 + $0x118] sm:$0xff] %v1175
        %1240 = vst [vmem:[#allocation2 + $0x120] sm:$0xff] %v1176
        %1241 = vst [vmem:[#allocation2 + $0x128] sm:$0xff] %v1177
        %1242 = vst [vmem:[#allocation2 + $0x130] sm:$0xff] %v1178
        %1243 = vst [vmem:[#allocation2 + $0x138] sm:$0xff] %v1179
        %1244 = vst [vmem:[#allocation2 + $0x140] sm:$0xff] %v1180
        %1245 = vst [vmem:[#allocation2 + $0x148] sm:$0xff] %v1181
        %1246 = vst [vmem:[#allocation2 + $0x150] sm:$0xff] %v1182
        %1247 = vst [vmem:[#allocation2 + $0x158] sm:$0xff] %v1183
        %1248 = vst [vmem:[#allocation2 + $0x160] sm:$0xff] %v1184
        %1249 = vst [vmem:[#allocation2 + $0x168] sm:$0xff] %v1185
        %1250 = vst [vmem:[#allocation2 + $0x170] sm:$0xff] %v1186
        %1251 = vst [vmem:[#allocation2 + $0x178] sm:$0xff] %v1187
        %1252 = vst [vmem:[#allocation2 + $0x180] sm:$0xff] %v1188
        %1253 = vst [vmem:[#allocation2 + $0x188] sm:$0xff] %v1189
        %1254 = vst [vmem:[#allocation2 + $0x190] sm:$0xff] %v1190
        %1255 = vst [vmem:[#allocation2 + $0x198] sm:$0xff] %v1191
        %1256 = vst [vmem:[#allocation2 + $0x1a0] sm:$0xff] %v1192
        %1257 = vst [vmem:[#allocation2 + $0x1a8] sm:$0xff] %v1193
        %1258 = vst [vmem:[#allocation2 + $0x1b0] sm:$0xff] %v1194
        %1259 = vst [vmem:[#allocation2 + $0x1b8] sm:$0xff] %v1195
        %1260 = vst [vmem:[#allocation2 + $0x1c0] sm:$0xff] %v1196
        %1261 = vst [vmem:[#allocation2 + $0x1c8] sm:$0xff] %v1197
        %1262 = vst [vmem:[#allocation2 + $0x1d0] sm:$0xff] %v1198
        %1263 = vst [vmem:[#allocation2 + $0x1d8] sm:$0xff] %v1199
        %1264 = vst [vmem:[#allocation2 + $0x1e0] sm:$0xff] %v1200
        %1265 = vst [vmem:[#allocation2 + $0x1e8] sm:$0xff] %v1201
        %1266 = vst [vmem:[#allocation2 + $0x1f0] sm:$0xff] %v1202
        %1267 = vst [vmem:[#allocation2 + $0x1f8] sm:$0xff] %v1203
        %p1268 = scmp.eq.s32.totalorder %s21, 8
        // Predicated region
        $region75: #{_lambda_.9} parent=65 // pred_check
          %p1269 = pneg %p1268
        $region76: #{_lambda_.9} parent=65 // pred_check_branch
          %1271 = sbr.rel (%p1269) target = $region78
        $region77: #{_lambda_.9} parent=65 // pred_region
          %v1272 = vld [vmem:[#allocation2] sm:$0xff]
          %v1273 = vld [vmem:[#allocation2 + $0x8] sm:$0xff]
          %v1274 = vld [vmem:[#allocation2 + $0x10] sm:$0xff]
          %v1275 = vld [vmem:[#allocation2 + $0x18] sm:$0xff]
          %v1276 = vld [vmem:[#allocation2 + $0x20] sm:$0xff]
          %v1277 = vld [vmem:[#allocation2 + $0x28] sm:$0xff]
          %v1278 = vld [vmem:[#allocation2 + $0x30] sm:$0xff]
          %v1279 = vld [vmem:[#allocation2 + $0x38] sm:$0xff]
          %v1280 = vld [vmem:[#allocation2 + $0x40] sm:$0xff]
          %v1281 = vld [vmem:[#allocation2 + $0x48] sm:$0xff]
          %v1282 = vld [vmem:[#allocation2 + $0x50] sm:$0xff]
          %v1283 = vld [vmem:[#allocation2 + $0x58] sm:$0xff]
          %v1284 = vld [vmem:[#allocation2 + $0x60] sm:$0xff]
          %v1285 = vld [vmem:[#allocation2 + $0x68] sm:$0xff]
          %v1286 = vld [vmem:[#allocation2 + $0x70] sm:$0xff]
          %v1287 = vld [vmem:[#allocation2 + $0x78] sm:$0xff]
          %v1288 = vld [vmem:[#allocation2 + $0x80] sm:$0xff]
          %v1289 = vld [vmem:[#allocation2 + $0x88] sm:$0xff]
          %v1290 = vld [vmem:[#allocation2 + $0x90] sm:$0xff]
          %v1291 = vld [vmem:[#allocation2 + $0x98] sm:$0xff]
          %v1292 = vld [vmem:[#allocation2 + $0xa0] sm:$0xff]
          %v1293 = vld [vmem:[#allocation2 + $0xa8] sm:$0xff]
          %v1294 = vld [vmem:[#allocation2 + $0xb0] sm:$0xff]
          %v1295 = vld [vmem:[#allocation2 + $0xb8] sm:$0xff]
          %v1296 = vld [vmem:[#allocation2 + $0xc0] sm:$0xff]
          %v1297 = vld [vmem:[#allocation2 + $0xc8] sm:$0xff]
          %v1298 = vld [vmem:[#allocation2 + $0xd0] sm:$0xff]
          %v1299 = vld [vmem:[#allocation2 + $0xd8] sm:$0xff]
          %v1300 = vld [vmem:[#allocation2 + $0xe0] sm:$0xff]
          %v1301 = vld [vmem:[#allocation2 + $0xe8] sm:$0xff]
          %v1302 = vld [vmem:[#allocation2 + $0xf0] sm:$0xff]
          %v1303 = vld [vmem:[#allocation2 + $0xf8] sm:$0xff]
          %v1304 = vld [vmem:[#allocation2 + $0x100] sm:$0xff]
          %v1305 = vld [vmem:[#allocation2 + $0x108] sm:$0xff]
          %v1306 = vld [vmem:[#allocation2 + $0x110] sm:$0xff]
          %v1307 = vld [vmem:[#allocation2 + $0x118] sm:$0xff]
          %v1308 = vld [vmem:[#allocation2 + $0x120] sm:$0xff]
          %v1309 = vld [vmem:[#allocation2 + $0x128] sm:$0xff]
          %v1310 = vld [vmem:[#allocation2 + $0x130] sm:$0xff]
          %v1311 = vld [vmem:[#allocation2 + $0x138] sm:$0xff]
          %v1312 = vld [vmem:[#allocation2 + $0x140] sm:$0xff]
          %v1313 = vld [vmem:[#allocation2 + $0x148] sm:$0xff]
          %v1314 = vld [vmem:[#allocation2 + $0x150] sm:$0xff]
          %v1315 = vld [vmem:[#allocation2 + $0x158] sm:$0xff]
          %v1316 = vld [vmem:[#allocation2 + $0x160] sm:$0xff]
          %v1317 = vld [vmem:[#allocation2 + $0x168] sm:$0xff]
          %v1318 = vld [vmem:[#allocation2 + $0x170] sm:$0xff]
          %v1319 = vld [vmem:[#allocation2 + $0x178] sm:$0xff]
          %v1320 = vld [vmem:[#allocation2 + $0x180] sm:$0xff]
          %v1321 = vld [vmem:[#allocation2 + $0x188] sm:$0xff]
          %v1322 = vld [vmem:[#allocation2 + $0x190] sm:$0xff]
          %v1323 = vld [vmem:[#allocation2 + $0x198] sm:$0xff]
          %v1324 = vld [vmem:[#allocation2 + $0x1a0] sm:$0xff]
          %v1325 = vld [vmem:[#allocation2 + $0x1a8] sm:$0xff]
          %v1326 = vld [vmem:[#allocation2 + $0x1b0] sm:$0xff]
          %v1327 = vld [vmem:[#allocation2 + $0x1b8] sm:$0xff]
          %v1328 = vld [vmem:[#allocation2 + $0x1c0] sm:$0xff]
          %v1329 = vld [vmem:[#allocation2 + $0x1c8] sm:$0xff]
          %v1330 = vld [vmem:[#allocation2 + $0x1d0] sm:$0xff]
          %v1331 = vld [vmem:[#allocation2 + $0x1d8] sm:$0xff]
          %v1332 = vld [vmem:[#allocation2 + $0x1e0] sm:$0xff]
          %v1333 = vld [vmem:[#allocation2 + $0x1e8] sm:$0xff]
          %v1334 = vld [vmem:[#allocation2 + $0x1f0] sm:$0xff]
          %v1335 = vld [vmem:[#allocation2 + $0x1f8] sm:$0xff]
          %v1336 = vld [vmem:[%s417] sm:$0x3]
          %v1338 = vlaneseq
          %v1339 = vshrl.u32 %v1338, 7
          %v1340 = vsub.s32 0, %v1339
          %v1341 = vrot.slane %v1336, %v1340
          %v1342 = vlaneseq
          %v1343 = vshrl.u32 %v1342, 7
          %v1344 = vsub.s32 1, %v1343
          %v1345 = vrot.slane %v1336, %v1344
          %v1348 = vadd.f32 %v1272, %v1341
          %v1349 = vadd.f32 %v1273, %v1345
          %v1350 = vadd.f32 %v1274, %v1341
          %v1351 = vadd.f32 %v1275, %v1345
          %v1352 = vadd.f32 %v1276, %v1341
          %v1353 = vadd.f32 %v1277, %v1345
          %v1354 = vadd.f32 %v1278, %v1341
          %v1355 = vadd.f32 %v1279, %v1345
          %v1356 = vadd.f32 %v1280, %v1341
          %v1357 = vadd.f32 %v1281, %v1345
          %v1358 = vadd.f32 %v1282, %v1341
          %v1359 = vadd.f32 %v1283, %v1345
          %v1360 = vadd.f32 %v1284, %v1341
          %v1361 = vadd.f32 %v1285, %v1345
          %v1362 = vadd.f32 %v1286, %v1341
          %v1363 = vadd.f32 %v1287, %v1345
          %v1364 = vadd.f32 %v1288, %v1341
          %v1365 = vadd.f32 %v1289, %v1345
          %v1366 = vadd.f32 %v1290, %v1341
          %v1367 = vadd.f32 %v1291, %v1345
          %v1368 = vadd.f32 %v1292, %v1341
          %v1369 = vadd.f32 %v1293, %v1345
          %v1370 = vadd.f32 %v1294, %v1341
          %v1371 = vadd.f32 %v1295, %v1345
          %v1372 = vadd.f32 %v1296, %v1341
          %v1373 = vadd.f32 %v1297, %v1345
          %v1374 = vadd.f32 %v1298, %v1341
          %v1375 = vadd.f32 %v1299, %v1345
          %v1376 = vadd.f32 %v1300, %v1341
          %v1377 = vadd.f32 %v1301, %v1345
          %v1378 = vadd.f32 %v1302, %v1341
          %v1379 = vadd.f32 %v1303, %v1345
          %v1380 = vadd.f32 %v1304, %v1341
          %v1381 = vadd.f32 %v1305, %v1345
          %v1382 = vadd.f32 %v1306, %v1341
          %v1383 = vadd.f32 %v1307, %v1345
          %v1384 = vadd.f32 %v1308, %v1341
          %v1385 = vadd.f32 %v1309, %v1345
          %v1386 = vadd.f32 %v1310, %v1341
          %v1387 = vadd.f32 %v1311, %v1345
          %v1388 = vadd.f32 %v1312, %v1341
          %v1389 = vadd.f32 %v1313, %v1345
          %v1390 = vadd.f32 %v1314, %v1341
          %v1391 = vadd.f32 %v1315, %v1345
          %v1392 = vadd.f32 %v1316, %v1341
          %v1393 = vadd.f32 %v1317, %v1345
          %v1394 = vadd.f32 %v1318, %v1341
          %v1395 = vadd.f32 %v1319, %v1345
          %v1396 = vadd.f32 %v1320, %v1341
          %v1397 = vadd.f32 %v1321, %v1345
          %v1398 = vadd.f32 %v1322, %v1341
          %v1399 = vadd.f32 %v1323, %v1345
          %v1400 = vadd.f32 %v1324, %v1341
          %v1401 = vadd.f32 %v1325, %v1345
          %v1402 = vadd.f32 %v1326, %v1341
          %v1403 = vadd.f32 %v1327, %v1345
          %v1404 = vadd.f32 %v1328, %v1341
          %v1405 = vadd.f32 %v1329, %v1345
          %v1406 = vadd.f32 %v1330, %v1341
          %v1407 = vadd.f32 %v1331, %v1345
          %v1408 = vadd.f32 %v1332, %v1341
          %v1409 = vadd.f32 %v1333, %v1345
          %v1410 = vadd.f32 %v1334, %v1341
          %v1411 = vadd.f32 %v1335, %v1345
          %vm1412 = vcmp.ge.f32.partialorder %v1348, 0.0
          %vm1413 = vcmp.ge.f32.partialorder %v1349, 0.0
          %vm1414 = vcmp.ge.f32.partialorder %v1350, 0.0
          %vm1415 = vcmp.ge.f32.partialorder %v1351, 0.0
          %vm1416 = vcmp.ge.f32.partialorder %v1352, 0.0
          %vm1417 = vcmp.ge.f32.partialorder %v1353, 0.0
          %vm1418 = vcmp.ge.f32.partialorder %v1354, 0.0
          %vm1419 = vcmp.ge.f32.partialorder %v1355, 0.0
          %vm1420 = vcmp.ge.f32.partialorder %v1356, 0.0
          %vm1421 = vcmp.ge.f32.partialorder %v1357, 0.0
          %vm1422 = vcmp.ge.f32.partialorder %v1358, 0.0
          %vm1423 = vcmp.ge.f32.partialorder %v1359, 0.0
          %vm1424 = vcmp.ge.f32.partialorder %v1360, 0.0
          %vm1425 = vcmp.ge.f32.partialorder %v1361, 0.0
          %vm1426 = vcmp.ge.f32.partialorder %v1362, 0.0
          %vm1427 = vcmp.ge.f32.partialorder %v1363, 0.0
          %vm1428 = vcmp.ge.f32.partialorder %v1364, 0.0
          %vm1429 = vcmp.ge.f32.partialorder %v1365, 0.0
          %vm1430 = vcmp.ge.f32.partialorder %v1366, 0.0
          %vm1431 = vcmp.ge.f32.partialorder %v1367, 0.0
          %vm1432 = vcmp.ge.f32.partialorder %v1368, 0.0
          %vm1433 = vcmp.ge.f32.partialorder %v1369, 0.0
          %vm1434 = vcmp.ge.f32.partialorder %v1370, 0.0
          %vm1435 = vcmp.ge.f32.partialorder %v1371, 0.0
          %vm1436 = vcmp.ge.f32.partialorder %v1372, 0.0
          %vm1437 = vcmp.ge.f32.partialorder %v1373, 0.0
          %vm1438 = vcmp.ge.f32.partialorder %v1374, 0.0
          %vm1439 = vcmp.ge.f32.partialorder %v1375, 0.0
          %vm1440 = vcmp.ge.f32.partialorder %v1376, 0.0
          %vm1441 = vcmp.ge.f32.partialorder %v1377, 0.0
          %vm1442 = vcmp.ge.f32.partialorder %v1378, 0.0
          %vm1443 = vcmp.ge.f32.partialorder %v1379, 0.0
          %vm1444 = vcmp.ge.f32.partialorder %v1380, 0.0
          %vm1445 = vcmp.ge.f32.partialorder %v1381, 0.0
          %vm1446 = vcmp.ge.f32.partialorder %v1382, 0.0
          %vm1447 = vcmp.ge.f32.partialorder %v1383, 0.0
          %vm1448 = vcmp.ge.f32.partialorder %v1384, 0.0
          %vm1449 = vcmp.ge.f32.partialorder %v1385, 0.0
          %vm1450 = vcmp.ge.f32.partialorder %v1386, 0.0
          %vm1451 = vcmp.ge.f32.partialorder %v1387, 0.0
          %vm1452 = vcmp.ge.f32.partialorder %v1388, 0.0
          %vm1453 = vcmp.ge.f32.partialorder %v1389, 0.0
          %vm1454 = vcmp.ge.f32.partialorder %v1390, 0.0
          %vm1455 = vcmp.ge.f32.partialorder %v1391, 0.0
          %vm1456 = vcmp.ge.f32.partialorder %v1392, 0.0
          %vm1457 = vcmp.ge.f32.partialorder %v1393, 0.0
          %vm1458 = vcmp.ge.f32.partialorder %v1394, 0.0
          %vm1459 = vcmp.ge.f32.partialorder %v1395, 0.0
          %vm1460 = vcmp.ge.f32.partialorder %v1396, 0.0
          %vm1461 = vcmp.ge.f32.partialorder %v1397, 0.0
          %vm1462 = vcmp.ge.f32.partialorder %v1398, 0.0
          %vm1463 = vcmp.ge.f32.partialorder %v1399, 0.0
          %vm1464 = vcmp.ge.f32.partialorder %v1400, 0.0
          %vm1465 = vcmp.ge.f32.partialorder %v1401, 0.0
          %vm1466 = vcmp.ge.f32.partialorder %v1402, 0.0
          %vm1467 = vcmp.ge.f32.partialorder %v1403, 0.0
          %vm1468 = vcmp.ge.f32.partialorder %v1404, 0.0
          %vm1469 = vcmp.ge.f32.partialorder %v1405, 0.0
          %vm1470 = vcmp.ge.f32.partialorder %v1406, 0.0
          %vm1471 = vcmp.ge.f32.partialorder %v1407, 0.0
          %vm1472 = vcmp.ge.f32.partialorder %v1408, 0.0
          %vm1473 = vcmp.ge.f32.partialorder %v1409, 0.0
          %vm1474 = vcmp.ge.f32.partialorder %v1410, 0.0
          %vm1475 = vcmp.ge.f32.partialorder %v1411, 0.0
          %v1476 = vmul.f32 %v1348, 0.01
          %v1477 = vmul.f32 %v1349, 0.01
          %v1478 = vmul.f32 %v1350, 0.01
          %v1479 = vmul.f32 %v1351, 0.01
          %v1480 = vmul.f32 %v1352, 0.01
          %v1481 = vmul.f32 %v1353, 0.01
          %v1482 = vmul.f32 %v1354, 0.01
          %v1483 = vmul.f32 %v1355, 0.01
          %v1484 = vmul.f32 %v1356, 0.01
          %v1485 = vmul.f32 %v1357, 0.01
          %v1486 = vmul.f32 %v1358, 0.01
          %v1487 = vmul.f32 %v1359, 0.01
          %v1488 = vmul.f32 %v1360, 0.01
          %v1489 = vmul.f32 %v1361, 0.01
          %v1490 = vmul.f32 %v1362, 0.01
          %v1491 = vmul.f32 %v1363, 0.01
          %v1492 = vmul.f32 %v1364, 0.01
          %v1493 = vmul.f32 %v1365, 0.01
          %v1494 = vmul.f32 %v1366, 0.01
          %v1495 = vmul.f32 %v1367, 0.01
          %v1496 = vmul.f32 %v1368, 0.01
          %v1497 = vmul.f32 %v1369, 0.01
          %v1498 = vmul.f32 %v1370, 0.01
          %v1499 = vmul.f32 %v1371, 0.01
          %v1500 = vmul.f32 %v1372, 0.01
          %v1501 = vmul.f32 %v1373, 0.01
          %v1502 = vmul.f32 %v1374, 0.01
          %v1503 = vmul.f32 %v1375, 0.01
          %v1504 = vmul.f32 %v1376, 0.01
          %v1505 = vmul.f32 %v1377, 0.01
          %v1506 = vmul.f32 %v1378, 0.01
          %v1507 = vmul.f32 %v1379, 0.01
          %v1508 = vmul.f32 %v1380, 0.01
          %v1509 = vmul.f32 %v1381, 0.01
          %v1510 = vmul.f32 %v1382, 0.01
          %v1511 = vmul.f32 %v1383, 0.01
          %v1512 = vmul.f32 %v1384, 0.01
          %v1513 = vmul.f32 %v1385, 0.01
          %v1514 = vmul.f32 %v1386, 0.01
          %v1515 = vmul.f32 %v1387, 0.01
          %v1516 = vmul.f32 %v1388, 0.01
          %v1517 = vmul.f32 %v1389, 0.01
          %v1518 = vmul.f32 %v1390, 0.01
          %v1519 = vmul.f32 %v1391, 0.01
          %v1520 = vmul.f32 %v1392, 0.01
          %v1521 = vmul.f32 %v1393, 0.01
          %v1522 = vmul.f32 %v1394, 0.01
          %v1523 = vmul.f32 %v1395, 0.01
          %v1524 = vmul.f32 %v1396, 0.01
          %v1525 = vmul.f32 %v1397, 0.01
          %v1526 = vmul.f32 %v1398, 0.01
          %v1527 = vmul.f32 %v1399, 0.01
          %v1528 = vmul.f32 %v1400, 0.01
          %v1529 = vmul.f32 %v1401, 0.01
          %v1530 = vmul.f32 %v1402, 0.01
          %v1531 = vmul.f32 %v1403, 0.01
          %v1532 = vmul.f32 %v1404, 0.01
          %v1533 = vmul.f32 %v1405, 0.01
          %v1534 = vmul.f32 %v1406, 0.01
          %v1535 = vmul.f32 %v1407, 0.01
          %v1536 = vmul.f32 %v1408, 0.01
          %v1537 = vmul.f32 %v1409, 0.01
          %v1538 = vmul.f32 %v1410, 0.01
          %v1539 = vmul.f32 %v1411, 0.01
          %v1540 = vsel %vm1412, %v1348, %v1476
          %v1541 = vsel %vm1413, %v1349, %v1477
          %v1542 = vsel %vm1414, %v1350, %v1478
          %v1543 = vsel %vm1415, %v1351, %v1479
          %v1544 = vsel %vm1416, %v1352, %v1480
          %v1545 = vsel %vm1417, %v1353, %v1481
          %v1546 = vsel %vm1418, %v1354, %v1482
          %v1547 = vsel %vm1419, %v1355, %v1483
          %v1548 = vsel %vm1420, %v1356, %v1484
          %v1549 = vsel %vm1421, %v1357, %v1485
          %v1550 = vsel %vm1422, %v1358, %v1486
          %v1551 = vsel %vm1423, %v1359, %v1487
          %v1552 = vsel %vm1424, %v1360, %v1488
          %v1553 = vsel %vm1425, %v1361, %v1489
          %v1554 = vsel %vm1426, %v1362, %v1490
          %v1555 = vsel %vm1427, %v1363, %v1491
          %v1556 = vsel %vm1428, %v1364, %v1492
          %v1557 = vsel %vm1429, %v1365, %v1493
          %v1558 = vsel %vm1430, %v1366, %v1494
          %v1559 = vsel %vm1431, %v1367, %v1495
          %v1560 = vsel %vm1432, %v1368, %v1496
          %v1561 = vsel %vm1433, %v1369, %v1497
          %v1562 = vsel %vm1434, %v1370, %v1498
          %v1563 = vsel %vm1435, %v1371, %v1499
          %v1564 = vsel %vm1436, %v1372, %v1500
          %v1565 = vsel %vm1437, %v1373, %v1501
          %v1566 = vsel %vm1438, %v1374, %v1502
          %v1567 = vsel %vm1439, %v1375, %v1503
          %v1568 = vsel %vm1440, %v1376, %v1504
          %v1569 = vsel %vm1441, %v1377, %v1505
          %v1570 = vsel %vm1442, %v1378, %v1506
          %v1571 = vsel %vm1443, %v1379, %v1507
          %v1572 = vsel %vm1444, %v1380, %v1508
          %v1573 = vsel %vm1445, %v1381, %v1509
          %v1574 = vsel %vm1446, %v1382, %v1510
          %v1575 = vsel %vm1447, %v1383, %v1511
          %v1576 = vsel %vm1448, %v1384, %v1512
          %v1577 = vsel %vm1449, %v1385, %v1513
          %v1578 = vsel %vm1450, %v1386, %v1514
          %v1579 = vsel %vm1451, %v1387, %v1515
          %v1580 = vsel %vm1452, %v1388, %v1516
          %v1581 = vsel %vm1453, %v1389, %v1517
          %v1582 = vsel %vm1454, %v1390, %v1518
          %v1583 = vsel %vm1455, %v1391, %v1519
          %v1584 = vsel %vm1456, %v1392, %v1520
          %v1585 = vsel %vm1457, %v1393, %v1521
          %v1586 = vsel %vm1458, %v1394, %v1522
          %v1587 = vsel %vm1459, %v1395, %v1523
          %v1588 = vsel %vm1460, %v1396, %v1524
          %v1589 = vsel %vm1461, %v1397, %v1525
          %v1590 = vsel %vm1462, %v1398, %v1526
          %v1591 = vsel %vm1463, %v1399, %v1527
          %v1592 = vsel %vm1464, %v1400, %v1528
          %v1593 = vsel %vm1465, %v1401, %v1529
          %v1594 = vsel %vm1466, %v1402, %v1530
          %v1595 = vsel %vm1467, %v1403, %v1531
          %v1596 = vsel %vm1468, %v1404, %v1532
          %v1597 = vsel %vm1469, %v1405, %v1533
          %v1598 = vsel %vm1470, %v1406, %v1534
          %v1599 = vsel %vm1471, %v1407, %v1535
          %v1600 = vsel %vm1472, %v1408, %v1536
          %v1601 = vsel %vm1473, %v1409, %v1537
          %v1602 = vsel %vm1474, %v1410, %v1538
          %v1603 = vsel %vm1475, %v1411, %v1539
          %1604 = vst [vmem:[%s428] sm:$0xff] %v1540
          %1605 = vst [vmem:[%s428 + $0x8] sm:$0xff] %v1541
          %1606 = vst [vmem:[%s428 + $0x10] sm:$0xff] %v1542
          %1607 = vst [vmem:[%s428 + $0x18] sm:$0xff] %v1543
          %1608 = vst [vmem:[%s428 + $0x20] sm:$0xff] %v1544
          %1609 = vst [vmem:[%s428 + $0x28] sm:$0xff] %v1545
          %1610 = vst [vmem:[%s428 + $0x30] sm:$0xff] %v1546
          %1611 = vst [vmem:[%s428 + $0x38] sm:$0xff] %v1547
          %1612 = vst [vmem:[%s428 + $0x40] sm:$0xff] %v1548
          %1613 = vst [vmem:[%s428 + $0x48] sm:$0xff] %v1549
          %1614 = vst [vmem:[%s428 + $0x50] sm:$0xff] %v1550
          %1615 = vst [vmem:[%s428 + $0x58] sm:$0xff] %v1551
          %1616 = vst [vmem:[%s428 + $0x60] sm:$0xff] %v1552
          %1617 = vst [vmem:[%s428 + $0x68] sm:$0xff] %v1553
          %1618 = vst [vmem:[%s428 + $0x70] sm:$0xff] %v1554
          %1619 = vst [vmem:[%s428 + $0x78] sm:$0xff] %v1555
          %1620 = vst [vmem:[%s428 + $0x80] sm:$0xff] %v1556
          %1621 = vst [vmem:[%s428 + $0x88] sm:$0xff] %v1557
          %1622 = vst [vmem:[%s428 + $0x90] sm:$0xff] %v1558
          %1623 = vst [vmem:[%s428 + $0x98] sm:$0xff] %v1559
          %1624 = vst [vmem:[%s428 + $0xa0] sm:$0xff] %v1560
          %1625 = vst [vmem:[%s428 + $0xa8] sm:$0xff] %v1561
          %1626 = vst [vmem:[%s428 + $0xb0] sm:$0xff] %v1562
          %1627 = vst [vmem:[%s428 + $0xb8] sm:$0xff] %v1563
          %1628 = vst [vmem:[%s428 + $0xc0] sm:$0xff] %v1564
          %1629 = vst [vmem:[%s428 + $0xc8] sm:$0xff] %v1565
          %1630 = vst [vmem:[%s428 + $0xd0] sm:$0xff] %v1566
          %1631 = vst [vmem:[%s428 + $0xd8] sm:$0xff] %v1567
          %1632 = vst [vmem:[%s428 + $0xe0] sm:$0xff] %v1568
          %1633 = vst [vmem:[%s428 + $0xe8] sm:$0xff] %v1569
          %1634 = vst [vmem:[%s428 + $0xf0] sm:$0xff] %v1570
          %1635 = vst [vmem:[%s428 + $0xf8] sm:$0xff] %v1571
          %1636 = vst [vmem:[%s428 + $0x100] sm:$0xff] %v1572
          %1637 = vst [vmem:[%s428 + $0x108] sm:$0xff] %v1573
          %1638 = vst [vmem:[%s428 + $0x110] sm:$0xff] %v1574
          %1639 = vst [vmem:[%s428 + $0x118] sm:$0xff] %v1575
          %1640 = vst [vmem:[%s428 + $0x120] sm:$0xff] %v1576
          %1641 = vst [vmem:[%s428 + $0x128] sm:$0xff] %v1577
          %1642 = vst [vmem:[%s428 + $0x130] sm:$0xff] %v1578
          %1643 = vst [vmem:[%s428 + $0x138] sm:$0xff] %v1579
          %1644 = vst [vmem:[%s428 + $0x140] sm:$0xff] %v1580
          %1645 = vst [vmem:[%s428 + $0x148] sm:$0xff] %v1581
          %1646 = vst [vmem:[%s428 + $0x150] sm:$0xff] %v1582
          %1647 = vst [vmem:[%s428 + $0x158] sm:$0xff] %v1583
          %1648 = vst [vmem:[%s428 + $0x160] sm:$0xff] %v1584
          %1649 = vst [vmem:[%s428 + $0x168] sm:$0xff] %v1585
          %1650 = vst [vmem:[%s428 + $0x170] sm:$0xff] %v1586
          %1651 = vst [vmem:[%s428 + $0x178] sm:$0xff] %v1587
          %1652 = vst [vmem:[%s428 + $0x180] sm:$0xff] %v1588
          %1653 = vst [vmem:[%s428 + $0x188] sm:$0xff] %v1589
          %1654 = vst [vmem:[%s428 + $0x190] sm:$0xff] %v1590
          %1655 = vst [vmem:[%s428 + $0x198] sm:$0xff] %v1591
          %1656 = vst [vmem:[%s428 + $0x1a0] sm:$0xff] %v1592
          %1657 = vst [vmem:[%s428 + $0x1a8] sm:$0xff] %v1593
          %1658 = vst [vmem:[%s428 + $0x1b0] sm:$0xff] %v1594
          %1659 = vst [vmem:[%s428 + $0x1b8] sm:$0xff] %v1595
          %1660 = vst [vmem:[%s428 + $0x1c0] sm:$0xff] %v1596
          %1661 = vst [vmem:[%s428 + $0x1c8] sm:$0xff] %v1597
          %1662 = vst [vmem:[%s428 + $0x1d0] sm:$0xff] %v1598
          %1663 = vst [vmem:[%s428 + $0x1d8] sm:$0xff] %v1599
          %1664 = vst [vmem:[%s428 + $0x1e0] sm:$0xff] %v1600
          %1665 = vst [vmem:[%s428 + $0x1e8] sm:$0xff] %v1601
          %1666 = vst [vmem:[%s428 + $0x1f0] sm:$0xff] %v1602
          %1667 = vst [vmem:[%s428 + $0x1f8] sm:$0xff] %v1603
        $region78: #{_lambda_.9} parent=65 // pred_fallthru
          _
        %s1668 = smul.u32 32, %s19
        %s1669 = smul.u32 2, %s20
        %p1670 = scmp.lt.s32.totalorder %s1668, 63
        %s1671 = scalar_select %p1670, %s1668, 63
        %p1672 = scmp.lt.s32.totalorder %s1669, 1
        %s1673 = scalar_select %p1672, %s1669, 1
        %s1674 = smul.addr %s1671, 2
        %s1675 = sadd.s32 %s1673, %s1674
        %s1676 = smul.addr %s1675, 8
        %s1677 = scalar_lea.vmem %s3, %s1676
        // Predicated region
        $region79: #{_lambda_.9} parent=65 // pred_check
          %p1678 = pneg %p135
        $region80: #{_lambda_.9} parent=65 // pred_check_branch
          %1680 = sbr.rel (%p1678) target = $region82
        $region81: #{_lambda_.9} parent=65 // pred_region
          %s1681 = smul.u32 32, %s19
          %s1682 = smul.u32 2, %s20
        $region82: #{_lambda_.9} parent=65 // pred_fallthru
          _
      $region66: #{_lambda_.9} parent=5 // pred_fallthru
        _
      %p1683 = scmp.le.s32.totalorder 2, %s9
      // Predicated region
      $region83: #{_lambda_.9} parent=5 // pred_check
        %p1684 = pneg %p1683
      $region84: #{_lambda_.9} parent=5 // pred_check_branch
        %1686 = sbr.rel (%p1684) target = $region86
      $region85: #{_lambda_.9} parent=5 // pred_region
        %s1687 = ssub.s32 %s9, 2
        // Predicated region
        $region87: #{_lambda_.9} parent=85 // pred_check
          %p1688 = pneg %p141
        $region88: #{_lambda_.9} parent=85 // pred_check_branch
          %1690 = sbr.rel (%p1688) target = $region90
        $region89: #{_lambda_.9} parent=85 // pred_region
          %s1691 = smul.u32 32, %s22
          %s1692 = smul.u32 2, %s23
          %p1693 = scmp.lt.s32.totalorder %s1691, 63
          %s1694 = scalar_select %p1693, %s1691, 63
          %p1695 = scmp.lt.s32.totalorder %s1692, 1
          %s1696 = scalar_select %p1695, %s1692, 1
          %s1697 = smul.addr %s1694, 2
          %s1698 = sadd.s32 %s1696, %s1697
          %s1699 = smul.addr %s1698, 8
          %s1700 = scalar_lea.vmem %s3, %s1699
        $region90: #{_lambda_.9} parent=85 // pred_fallthru
          _
      $region86: #{_lambda_.9} parent=5 // pred_fallthru
        _
    $region6: #{_lambda_.9} parent=1 // loop_footer
      %s13 = sadd.s32 1, %s9
    $region7: #{_lambda_.9} parent=1 // loop_footer_branch
      %8 = sbr.rel target = $region3
    $region8: #{_lambda_.9} parent=1 // loop_exit
      _

// kernel: _lambda_.10
$region0: #{_lambda_.10}
  #allocation0 [shape = 'u32[]', space=smem, size = 0x4, offset = 0x4, fixed_abs, tag = 'smem constant byte address 0x4 - core index']
  #allocation1 [shape = 'u32[144,128]{1,0:T(1,128)}', space=vmem, size = 0x12000, scoped, tag = 'internal scratch']
  #allocation2 [shape = 'f32[256,128]{1,0:T(8,128)}', space=vmem, size = 0x20000, scoped, tag = 'scratch operand']
  %s0 = inlined_call_operand.vmem [shape: bf16[512,256], index: 0, kind: input, shape index: {}]
  %s1 = inlined_call_operand.vmem [shape: bf16[256,128], index: 1, kind: input, shape index: {}]
  %s2 = inlined_call_operand.vmem [shape: f32[1,128], index: 2, kind: input, shape index: {}]
  %s3 = inlined_call_operand.vmem [shape: f32[512,128], index: 3, kind: output, shape index: {}]
  %s4 = sld [smem:[#allocation0]]
  $region53: #{_lambda_.10} parent=0
    _
  %s6 = ssub.s32 1, %s4
  %s7 = scalar_select 0, %s6, %s4
  loop: start=0, step=1, limit=4
  $region2: #{_lambda_.10} parent=0 // loop_pre_header
    _
  $region3: #{_lambda_.10} parent=0 // loop_header
    %s9 = sphi 0, %s13
    %p10 = scmp.ge.s32.totalorder %s9, 4
    %s16 = sphi 0, %s35
    %s17 = sphi 0, %s31
    %s18 = sphi 0, %s27
    %s19 = sphi 0, %s16
    %s20 = sphi 0, %s17
    %s21 = sphi 0, %s18
    %s22 = sphi 0, %s19
    %s23 = sphi 0, %s20
    %s24 = sphi 0, %s21
    %s40 = sphi 0, %s42
    %s43 = sphi 0, %s40
    %s44 = sphi 0, %s43
    %s60 = sphi 0, %s44
    %s68 = sphi 0, %s70
    %s71 = sphi 0, %s68
    %s72 = sphi 0, %s71
    %s88 = sphi 0, %s72
    %s94 = sphi 0, %s96
    %s97 = sphi 0, %s94
    %s98 = sphi 0, %s97
    %s114 = sphi 0, %s98
    %s122 = sphi 0, %s124
    %s125 = sphi 0, %s122
    %s126 = sphi 0, %s125
    %s142 = sphi 0, %s126
  $region4: #{_lambda_.10} parent=0 // loop_header_branch
    %12 = sbr.rel (%p10) target = $region8
  $region5: #{_lambda_.10} parent=0 // loop_body
    %s14 = ssub.s32 %s9, 1
    %s15 = ssub.s32 %s9, 2
    %s25 = sadd.s32 1, %s18
    %p26 = scmp.ge.s32.totalorder %s25, 1
    %s27 = scalar_select %p26, 0, %s25
    %s28 = sadd.s32 1, %s17
    %s29 = scalar_select %p26, %s28, %s17
    %p30 = scmp.ge.s32.totalorder %s29, 1
    %s31 = scalar_select %p30, 0, %s29
    %s32 = sadd.s32 1, %s16
    %s33 = scalar_select %p30, %s32, %s16
    %p34 = scmp.ge.s32.totalorder %s33, 2
    %s35 = scalar_select %p34, 0, %s33
    %s36 = ssub.s32 %s16, %s35
    %s37 = ssub.s32 %s18, %s27
    %s38 = sor.u32 %s36, %s37
    %p39 = scmp.eq.s32.totalorder %s38, 0
    %s41 = sadd.s32 %s40, 1
    %s42 = scalar_select %p39, %s40, %s41
    %p45 = pneg %p39
    %p46 = scmp.eq.s32.totalorder %s9, 1
    %p47 = por %p45, %p46
    %p48 = scmp.ne.s32.totalorder %s40, %s43
    %p49 = scmp.eq.s32.totalorder %s9, 0
    %p50 = por %p48, %p49
    %p51 = scmp.ne.s32.totalorder %s40, %s43
    %p52 = scmp.eq.s32.totalorder %s14, 1
    %p53 = por %p51, %p52
    %p54 = scmp.ne.s32.totalorder %s43, %s44
    %p55 = scmp.eq.s32.totalorder %s14, 0
    %p56 = por %p54, %p55
    %p57 = scmp.ne.s32.totalorder %s43, %s44
    %p58 = scmp.eq.s32.totalorder %s15, 1
    %p59 = por %p57, %p58
    %p61 = scmp.ne.s32.totalorder %s44, %s60
    %p62 = scmp.eq.s32.totalorder %s15, 0
    %p63 = por %p61, %p62
    %s64 = ssub.s32 %s18, %s27
    %s65 = ssub.s32 %s17, %s31
    %s66 = sor.u32 %s64, %s65
    %p67 = scmp.eq.s32.totalorder %s66, 0
    %s69 = sadd.s32 %s68, 1
    %s70 = scalar_select %p67, %s68, %s69
    %p73 = pneg %p67
    %p74 = scmp.eq.s32.totalorder %s9, 1
    %p75 = por %p73, %p74
    %p76 = scmp.ne.s32.totalorder %s68, %s71
    %p77 = scmp.eq.s32.totalorder %s9, 0
    %p78 = por %p76, %p77
    %p79 = scmp.ne.s32.totalorder %s68, %s71
    %p80 = scmp.eq.s32.totalorder %s14, 1
    %p81 = por %p79, %p80
    %p82 = scmp.ne.s32.totalorder %s71, %s72
    %p83 = scmp.eq.s32.totalorder %s14, 0
    %p84 = por %p82, %p83
    %p85 = scmp.ne.s32.totalorder %s71, %s72
    %p86 = scmp.eq.s32.totalorder %s15, 1
    %p87 = por %p85, %p86
    %p89 = scmp.ne.s32.totalorder %s72, %s88
    %p90 = scmp.eq.s32.totalorder %s15, 0
    %p91 = por %p89, %p90
    %s92 = ssub.s32 %s17, %s31
    %p93 = scmp.eq.s32.totalorder %s92, 0
    %s95 = sadd.s32 %s94, 1
    %s96 = scalar_select %p93, %s94, %s95
    %p99 = pneg %p93
    %p100 = scmp.eq.s32.totalorder %s9, 1
    %p101 = por %p99, %p100
    %p102 = scmp.ne.s32.totalorder %s94, %s97
    %p103 = scmp.eq.s32.totalorder %s9, 0
    %p104 = por %p102, %p103
    %p105 = scmp.ne.s32.totalorder %s94, %s97
    %p106 = scmp.eq.s32.totalorder %s14, 1
    %p107 = por %p105, %p106
    %p108 = scmp.ne.s32.totalorder %s97, %s98
    %p109 = scmp.eq.s32.totalorder %s14, 0
    %p110 = por %p108, %p109
    %p111 = scmp.ne.s32.totalorder %s97, %s98
    %p112 = scmp.eq.s32.totalorder %s15, 1
    %p113 = por %p111, %p112
    %p115 = scmp.ne.s32.totalorder %s98, %s114
    %p116 = scmp.eq.s32.totalorder %s15, 0
    %p117 = por %p115, %p116
    %s118 = ssub.s32 %s16, %s35
    %s119 = ssub.s32 %s17, %s31
    %s120 = sor.u32 %s118, %s119
    %p121 = scmp.eq.s32.totalorder %s120, 0
    %s123 = sadd.s32 %s122, 1
    %s124 = scalar_select %p121, %s122, %s123
    %p127 = pneg %p121
    %p128 = scmp.eq.s32.totalorder %s9, 1
    %p129 = por %p127, %p128
    %p130 = scmp.ne.s32.totalorder %s122, %s125
    %p131 = scmp.eq.s32.totalorder %s9, 0
    %p132 = por %p130, %p131
    %p133 = scmp.ne.s32.totalorder %s122, %s125
    %p134 = scmp.eq.s32.totalorder %s14, 1
    %p135 = por %p133, %p134
    %p136 = scmp.ne.s32.totalorder %s125, %s126
    %p137 = scmp.eq.s32.totalorder %s14, 0
    %p138 = por %p136, %p137
    %p139 = scmp.ne.s32.totalorder %s125, %s126
    %p140 = scmp.eq.s32.totalorder %s15, 1
    %p141 = por %p139, %p140
    %p143 = scmp.ne.s32.totalorder %s126, %s142
    %p144 = scmp.eq.s32.totalorder %s15, 0
    %p145 = por %p143, %p144
    %p146 = scmp.le.s32.totalorder 1, %s9
    %p147 = scmp.lt.s32.totalorder %s9, 3
    %p148 = pnand %p146, %p147
    %p149 = pneg %p148
    // Predicated region
    $region9: #{_lambda_.10} parent=5 // pred_check
      _
    $region10: #{_lambda_.10} parent=5 // pred_check_branch
      %151 = sbr.rel (%p148) target = $region12
    $region11: #{_lambda_.10} parent=5 // pred_region
      %s152 = ssub.s32 %s9, 1
      // Predicated region
      $region13: #{_lambda_.10} parent=11 // pred_check
        %p153 = pneg %p84
      $region14: #{_lambda_.10} parent=11 // pred_check_branch
        %155 = sbr.rel (%p153) target = $region16
      $region15: #{_lambda_.10} parent=11 // pred_region
        %s156 = smul.u32 32, %s21
        %p157 = scmp.lt.s32.totalorder %s156, 31
        %s158 = scalar_select %p157, %s156, 31
        %p159 = scmp.lt.s32.totalorder %s20, 0
        %s160 = scalar_select %p159, %s20, 0
        %s161 = sadd.s32 %s160, %s158
        %s162 = smul.addr %s161, 4
        %s163 = scalar_lea.vmem %s1, %s162
        %s164 = smul.u32 32, %s21
      $region16: #{_lambda_.10} parent=11 // pred_fallthru
        _
      // Predicated region
      $region17: #{_lambda_.10} parent=11 // pred_check
        %p165 = pneg %p110
      $region18: #{_lambda_.10} parent=11 // pred_check_branch
        %167 = sbr.rel (%p165) target = $region20
      $region19: #{_lambda_.10} parent=11 // pred_region
        %p168 = scmp.lt.s32.totalorder %s20, 0
        %s169 = scalar_select %p168, %s20, 0
        %s170 = scalar_lea.vmem %s2, %s169
      $region20: #{_lambda_.10} parent=11 // pred_fallthru
        _
    $region12: #{_lambda_.10} parent=5 // pred_fallthru
      _
    %p171 = scmp.lt.s32.totalorder %s9, 2
    // Predicated region
    $region21: #{_lambda_.10} parent=5 // pred_check
      %p172 = pneg %p171
    $region22: #{_lambda_.10} parent=5 // pred_check_branch
      %174 = sbr.rel (%p172) target = $region24
    $region23: #{_lambda_.10} parent=5 // pred_region
      // Predicated region
      $region25: #{_lambda_.10} parent=23 // pred_check
        %p175 = pneg %p50
      $region26: #{_lambda_.10} parent=23 // pred_check_branch
        %177 = sbr.rel (%p175) target = $region28
      $region27: #{_lambda_.10} parent=23 // pred_region
        %s178 = smul.u32 32, %s16
        %s179 = smul.u32 2, %s18
        %p180 = scmp.lt.s32.totalorder %s178, 63
        %s181 = scalar_select %p180, %s178, 63
        %p182 = scmp.lt.s32.totalorder %s179, 1
        %s183 = scalar_select %p182, %s179, 1
        %s184 = smul.addr %s181, 2
        %s185 = sadd.s32 %s183, %s184
        %s186 = smul.addr %s185, 4
        %s187 = scalar_lea.vmem %s0, %s186
        %s188 = smul.u32 32, %s16
        %s189 = smul.u32 2, %s18
      $region28: #{_lambda_.10} parent=23 // pred_fallthru
        _
    $region24: #{_lambda_.10} parent=5 // pred_fallthru
      _
    %p190 = scmp.le.s32.totalorder 1, %s9
    %p191 = scmp.lt.s32.totalorder %s9, 3
    %p192 = pnand %p190, %p191
    %p193 = pneg %p192
    // Predicated region
    $region29: #{_lambda_.10} parent=5 // pred_check
      _
    $region30: #{_lambda_.10} parent=5 // pred_check_branch
      %195 = sbr.rel (%p192) target = $region32
    $region31: #{_lambda_.10} parent=5 // pred_region
      %s196 = ssub.s32 %s9, 1
      %s197 = smul.u32 32, %s19
      %s198 = smul.u32 2, %s21
      %p199 = scmp.lt.s32.totalorder %s197, 63
      %s200 = scalar_select %p199, %s197, 63
      %p201 = scmp.lt.s32.totalorder %s198, 1
      %s202 = scalar_select %p201, %s198, 1
      %s203 = smul.addr %s200, 2
      %s204 = sadd.s32 %s202, %s203
      %s205 = smul.addr %s204, 4
      %s206 = scalar_lea.vmem %s0, %s205
      %p207 = pneg %p56
      %p208 = pneg %p53
      %s209 = smul.u32 32, %s21
      %p210 = scmp.lt.s32.totalorder %s209, 31
      %s211 = scalar_select %p210, %s209, 31
      %p212 = scmp.lt.s32.totalorder %s20, 0
      %s213 = scalar_select %p212, %s20, 0
      %s214 = sadd.s32 %s213, %s211
      %s215 = smul.addr %s214, 4
      %s216 = scalar_lea.vmem %s1, %s215
      %p217 = pneg %p84
      %p218 = pneg %p81
      %p219 = scmp.lt.s32.totalorder %s20, 0
      %s220 = scalar_select %p219, %s20, 0
      %s221 = scalar_lea.vmem %s2, %s220
      %p222 = pneg %p110
      %p223 = pneg %p107
      %p224 = pneg %p138
      %p225 = pneg %p135
      %s226 = smul.u32 32, %s19
      %p227 = scmp.lt.s32.totalorder %s226, 63
      %s228 = scalar_select %p227, %s226, 63
      %p229 = scmp.lt.s32.totalorder %s20, 0
      %s230 = scalar_select %p229, %s20, 0
      %s231 = sadd.s32 %s230, %s228
      %s232 = smul.addr %s231, 8
      %s233 = scalar_lea.vmem %s3, %s232
      %s234 = smul.u32 32, %s19
      %s235 = smul.u32 2, %s21
      %p236 = scmp.lt.s32.totalorder %s234, 63
      %s237 = scalar_select %p236, %s234, 63
      %p238 = scmp.lt.s32.totalorder %s235, 1
      %s239 = scalar_select %p238, %s235, 1
      %s240 = smul.addr %s237, 2
      %s241 = sadd.s32 %s239, %s240
      %s242 = smul.addr %s241, 4
      %s243 = scalar_lea.vmem %s0, %s242
      %s244 = smul.u32 32, %s19
      %s245 = smul.u32 2, %s21
      %s246 = smul.u32 32, %s21
      %p247 = scmp.lt.s32.totalorder %s246, 31
      %s248 = scalar_select %p247, %s246, 31
      %p249 = scmp.lt.s32.totalorder %s20, 0
      %s250 = scalar_select %p249, %s20, 0
      %s251 = sadd.s32 %s250, %s248
      %s252 = smul.addr %s251, 4
      %s253 = scalar_lea.vmem %s1, %s252
      %s254 = smul.u32 32, %s21
      %p255 = scmp.lt.s32.totalorder %s20, 0
      %s256 = scalar_select %p255, %s20, 0
      %s257 = scalar_lea.vmem %s2, %s256
      %s258 = smul.u32 32, %s19
      %p259 = scmp.lt.s32.totalorder %s258, 63
      %s260 = scalar_select %p259, %s258, 63
      %p261 = scmp.lt.s32.totalorder %s20, 0
      %s262 = scalar_select %p261, %s20, 0
      %s263 = sadd.s32 %s262, %s260
      %s264 = smul.addr %s263, 8
      %s265 = scalar_lea.vmem %s3, %s264
      %s266 = smul.u32 32, %s19
      %p268 = scmp.eq.s32.totalorder %s21, 0
      // Predicated region
      $region33: #{_lambda_.10} parent=31 // pred_check
        %p269 = pneg %p268
      $region34: #{_lambda_.10} parent=31 // pred_check_branch
        %271 = sbr.rel (%p269) target = $region36
      $region35: #{_lambda_.10} parent=31 // pred_region
        %272 = vst [vmem:[#allocation2] sm:$0xff] 0.0
        %273 = vst [vmem:[#allocation2 + $0x8] sm:$0xff] 0.0
        %274 = vst [vmem:[#allocation2 + $0x10] sm:$0xff] 0.0
        %275 = vst [vmem:[#allocation2 + $0x18] sm:$0xff] 0.0
        %276 = vst [vmem:[#allocation2 + $0x20] sm:$0xff] 0.0
        %277 = vst [vmem:[#allocation2 + $0x28] sm:$0xff] 0.0
        %278 = vst [vmem:[#allocation2 + $0x30] sm:$0xff] 0.0
        %279 = vst [vmem:[#allocation2 + $0x38] sm:$0xff] 0.0
        %280 = vst [vmem:[#allocation2 + $0x40] sm:$0xff] 0.0
        %281 = vst [vmem:[#allocation2 + $0x48] sm:$0xff] 0.0
        %282 = vst [vmem:[#allocation2 + $0x50] sm:$0xff] 0.0
        %283 = vst [vmem:[#allocation2 + $0x58] sm:$0xff] 0.0
        %284 = vst [vmem:[#allocation2 + $0x60] sm:$0xff] 0.0
        %285 = vst [vmem:[#allocation2 + $0x68] sm:$0xff] 0.0
        %286 = vst [vmem:[#allocation2 + $0x70] sm:$0xff] 0.0
        %287 = vst [vmem:[#allocation2 + $0x78] sm:$0xff] 0.0
        %288 = vst [vmem:[#allocation2 + $0x80] sm:$0xff] 0.0
        %289 = vst [vmem:[#allocation2 + $0x88] sm:$0xff] 0.0
        %290 = vst [vmem:[#allocation2 + $0x90] sm:$0xff] 0.0
        %291 = vst [vmem:[#allocation2 + $0x98] sm:$0xff] 0.0
        %292 = vst [vmem:[#allocation2 + $0xa0] sm:$0xff] 0.0
        %293 = vst [vmem:[#allocation2 + $0xa8] sm:$0xff] 0.0
        %294 = vst [vmem:[#allocation2 + $0xb0] sm:$0xff] 0.0
        %295 = vst [vmem:[#allocation2 + $0xb8] sm:$0xff] 0.0
        %296 = vst [vmem:[#allocation2 + $0xc0] sm:$0xff] 0.0
        %297 = vst [vmem:[#allocation2 + $0xc8] sm:$0xff] 0.0
        %298 = vst [vmem:[#allocation2 + $0xd0] sm:$0xff] 0.0
        %299 = vst [vmem:[#allocation2 + $0xd8] sm:$0xff] 0.0
        %300 = vst [vmem:[#allocation2 + $0xe0] sm:$0xff] 0.0
        %301 = vst [vmem:[#allocation2 + $0xe8] sm:$0xff] 0.0
        %302 = vst [vmem:[#allocation2 + $0xf0] sm:$0xff] 0.0
        %303 = vst [vmem:[#allocation2 + $0xf8] sm:$0xff] 0.0
      $region36: #{_lambda_.10} parent=31 // pred_fallthru
        _
      %v304 = vld [vmem:[#allocation2] sm:$0xff]
      %v305 = vld [vmem:[#allocation2 + $0x8] sm:$0xff]
      %v306 = vld [vmem:[#allocation2 + $0x10] sm:$0xff]
      %v307 = vld [vmem:[#allocation2 + $0x18] sm:$0xff]
      %v308 = vld [vmem:[#allocation2 + $0x20] sm:$0xff]
      %v309 = vld [vmem:[#allocation2 + $0x28] sm:$0xff]
      %v310 = vld [vmem:[#allocation2 + $0x30] sm:$0xff]
      %v311 = vld [vmem:[#allocation2 + $0x38] sm:$0xff]
      %v312 = vld [vmem:[#allocation2 + $0x40] sm:$0xff]
      %v313 = vld [vmem:[#allocation2 + $0x48] sm:$0xff]
      %v314 = vld [vmem:[#allocation2 + $0x50] sm:$0xff]
      %v315 = vld [vmem:[#allocation2 + $0x58] sm:$0xff]
      %v316 = vld [vmem:[#allocation2 + $0x60] sm:$0xff]
      %v317 = vld [vmem:[#allocation2 + $0x68] sm:$0xff]
      %v318 = vld [vmem:[#allocation2 + $0x70] sm:$0xff]
      %v319 = vld [vmem:[#allocation2 + $0x78] sm:$0xff]
      %v320 = vld [vmem:[#allocation2 + $0x80] sm:$0xff]
      %v321 = vld [vmem:[#allocation2 + $0x88] sm:$0xff]
      %v322 = vld [vmem:[#allocation2 + $0x90] sm:$0xff]
      %v323 = vld [vmem:[#allocation2 + $0x98] sm:$0xff]
      %v324 = vld [vmem:[#allocation2 + $0xa0] sm:$0xff]
      %v325 = vld [vmem:[#allocation2 + $0xa8] sm:$0xff]
      %v326 = vld [vmem:[#allocation2 + $0xb0] sm:$0xff]
      %v327 = vld [vmem:[#allocation2 + $0xb8] sm:$0xff]
      %v328 = vld [vmem:[#allocation2 + $0xc0] sm:$0xff]
      %v329 = vld [vmem:[#allocation2 + $0xc8] sm:$0xff]
      %v330 = vld [vmem:[#allocation2 + $0xd0] sm:$0xff]
      %v331 = vld [vmem:[#allocation2 + $0xd8] sm:$0xff]
      %v332 = vld [vmem:[#allocation2 + $0xe0] sm:$0xff]
      %v333 = vld [vmem:[#allocation2 + $0xe8] sm:$0xff]
      %v334 = vld [vmem:[#allocation2 + $0xf0] sm:$0xff]
      %v335 = vld [vmem:[#allocation2 + $0xf8] sm:$0xff]
      %v336 = vld [vmem:[%s243] sm:$0xff]
      %v337 = vld [vmem:[%s243 + $0x8] sm:$0xff]
      %v338 = vld [vmem:[%s243 + $0x10] sm:$0xff]
      %v339 = vld [vmem:[%s243 + $0x18] sm:$0xff]
      %v340 = vld [vmem:[%s243 + $0x20] sm:$0xff]
      %v341 = vld [vmem:[%s243 + $0x28] sm:$0xff]
      %v342 = vld [vmem:[%s243 + $0x30] sm:$0xff]
      %v343 = vld [vmem:[%s243 + $0x38] sm:$0xff]
      %v344 = vld [vmem:[%s243 + $0x40] sm:$0xff]
      %v345 = vld [vmem:[%s243 + $0x48] sm:$0xff]
      %v346 = vld [vmem:[%s243 + $0x50] sm:$0xff]
      %v347 = vld [vmem:[%s243 + $0x58] sm:$0xff]
      %v348 = vld [vmem:[%s243 + $0x60] sm:$0xff]
      %v349 = vld [vmem:[%s243 + $0x68] sm:$0xff]
      %v350 = vld [vmem:[%s243 + $0x70] sm:$0xff]
      %v351 = vld [vmem:[%s243 + $0x78] sm:$0xff]
      %v352 = vld [vmem:[%s243 + $0x80] sm:$0xff]
      %v353 = vld [vmem:[%s243 + $0x88] sm:$0xff]
      %v354 = vld [vmem:[%s243 + $0x90] sm:$0xff]
      %v355 = vld [vmem:[%s243 + $0x98] sm:$0xff]
      %v356 = vld [vmem:[%s243 + $0xa0] sm:$0xff]
      %v357 = vld [vmem:[%s243 + $0xa8] sm:$0xff]
      %v358 = vld [vmem:[%s243 + $0xb0] sm:$0xff]
      %v359 = vld [vmem:[%s243 + $0xb8] sm:$0xff]
      %v360 = vld [vmem:[%s243 + $0xc0] sm:$0xff]
      %v361 = vld [vmem:[%s243 + $0xc8] sm:$0xff]
      %v362 = vld [vmem:[%s243 + $0xd0] sm:$0xff]
      %v363 = vld [vmem:[%s243 + $0xd8] sm:$0xff]
      %v364 = vld [vmem:[%s243 + $0xe0] sm:$0xff]
      %v365 = vld [vmem:[%s243 + $0xe8] sm:$0xff]
      %v366 = vld [vmem:[%s243 + $0xf0] sm:$0xff]
      %v367 = vld [vmem:[%s243 + $0xf8] sm:$0xff]
      %v368 = vld [vmem:[%s253] sm:$0xf]
      %v369 = vld [vmem:[%s253 + $0x4] sm:$0xf]
      %v370 = vld [vmem:[%s253 + $0x8] sm:$0xf]
      %v371 = vld [vmem:[%s253 + $0xc] sm:$0xf]
      %v372 = vld [vmem:[%s253 + $0x10] sm:$0xf]
      %v373 = vld [vmem:[%s253 + $0x14] sm:$0xf]
      %v374 = vld [vmem:[%s253 + $0x18] sm:$0xf]
      %v375 = vld [vmem:[%s253 + $0x1c] sm:$0xf]
      %v376 = vld [vmem:[%s253 + $0x20] sm:$0xf]
      %v377 = vld [vmem:[%s253 + $0x24] sm:$0xf]
      %v378 = vld [vmem:[%s253 + $0x28] sm:$0xf]
      %v379 = vld [vmem:[%s253 + $0x2c] sm:$0xf]
      %v380 = vld [vmem:[%s253 + $0x30] sm:$0xf]
      %v381 = vld [vmem:[%s253 + $0x34] sm:$0xf]
      %v382 = vld [vmem:[%s253 + $0x38] sm:$0xf]
      %v383 = vld [vmem:[%s253 + $0x3c] sm:$0xf]
      %v384 = vld [vmem:[%s253 + $0x40] sm:$0xf]
      %v385 = vld [vmem:[%s253 + $0x44] sm:$0xf]
      %v386 = vld [vmem:[%s253 + $0x48] sm:$0xf]
      %v387 = vld [vmem:[%s253 + $0x4c] sm:$0xf]
      %v388 = vld [vmem:[%s253 + $0x50] sm:$0xf]
      %v389 = vld [vmem:[%s253 + $0x54] sm:$0xf]
      %v390 = vld [vmem:[%s253 + $0x58] sm:$0xf]
      %v391 = vld [vmem:[%s253 + $0x5c] sm:$0xf]
      %v392 = vld [vmem:[%s253 + $0x60] sm:$0xf]
      %v393 = vld [vmem:[%s253 + $0x64] sm:$0xf]
      %v394 = vld [vmem:[%s253 + $0x68] sm:$0xf]
      %v395 = vld [vmem:[%s253 + $0x6c] sm:$0xf]
      %v396 = vld [vmem:[%s253 + $0x70] sm:$0xf]
      %v397 = vld [vmem:[%s253 + $0x74] sm:$0xf]
      %v398 = vld [vmem:[%s253 + $0x78] sm:$0xf]
      %v399 = vld [vmem:[%s253 + $0x7c] sm:$0xf]
      %v432 = vunpack.c.l.b16 %v336
      %v433 = vunpack.c.h.b16 %v336
      %v434 = vunpack.c.l.b16 %v337
      %v435 = vunpack.c.h.b16 %v337
      %v436 = vunpack.c.l.b16 %v338
      %v437 = vunpack.c.h.b16 %v338
      %v438 = vunpack.c.l.b16 %v339
      %v439 = vunpack.c.h.b16 %v339
      %v440 = vunpack.c.l.b16 %v340
      %v441 = vunpack.c.h.b16 %v340
      %v442 = vunpack.c.l.b16 %v341
      %v443 = vunpack.c.h.b16 %v341
      %v444 = vunpack.c.l.b16 %v342
      %v445 = vunpack.c.h.b16 %v342
      %v446 = vunpack.c.l.b16 %v343
      %v447 = vunpack.c.h.b16 %v343
      %v448 = vunpack.c.l.b16 %v344
      %v449 = vunpack.c.h.b16 %v344
      %v450 = vunpack.c.l.b16 %v345
      %v451 = vunpack.c.h.b16 %v345
      %v452 = vunpack.c.l.b16 %v346
      %v453 = vunpack.c.h.b16 %v346
      %v454 = vunpack.c.l.b16 %v347
      %v455 = vunpack.c.h.b16 %v347
      %v456 = vunpack.c.l.b16 %v348
      %v457 = vunpack.c.h.b16 %v348
      %v458 = vunpack.c.l.b16 %v349
      %v459 = vunpack.c.h.b16 %v349
      %v460 = vunpack.c.l.b16 %v350
      %v461 = vunpack.c.h.b16 %v350
      %v462 = vunpack.c.l.b16 %v351
      %v463 = vunpack.c.h.b16 %v351
      %v464 = vunpack.c.l.b16 %v352
      %v465 = vunpack.c.h.b16 %v352
      %v466 = vunpack.c.l.b16 %v353
      %v467 = vunpack.c.h.b16 %v353
      %v468 = vunpack.c.l.b16 %v354
      %v469 = vunpack.c.h.b16 %v354
      %v470 = vunpack.c.l.b16 %v355
      %v471 = vunpack.c.h.b16 %v355
      %v472 = vunpack.c.l.b16 %v356
      %v473 = vunpack.c.h.b16 %v356
      %v474 = vunpack.c.l.b16 %v357
      %v475 = vunpack.c.h.b16 %v357
      %v476 = vunpack.c.l.b16 %v358
      %v477 = vunpack.c.h.b16 %v358
      %v478 = vunpack.c.l.b16 %v359
      %v479 = vunpack.c.h.b16 %v359
      %v480 = vunpack.c.l.b16 %v360
      %v481 = vunpack.c.h.b16 %v360
      %v482 = vunpack.c.l.b16 %v361
      %v483 = vunpack.c.h.b16 %v361
      %v484 = vunpack.c.l.b16 %v362
      %v485 = vunpack.c.h.b16 %v362
      %v486 = vunpack.c.l.b16 %v363
      %v487 = vunpack.c.h.b16 %v363
      %v488 = vunpack.c.l.b16 %v364
      %v489 = vunpack.c.h.b16 %v364
      %v490 = vunpack.c.l.b16 %v365
      %v491 = vunpack.c.h.b16 %v365
      %v492 = vunpack.c.l.b16 %v366
      %v493 = vunpack.c.h.b16 %v366
      %v494 = vunpack.c.l.b16 %v367
      %v495 = vunpack.c.h.b16 %v367
      %v496 = vpack.c.b16 %v434, %v432
      %v497 = vpack.c.b16 %v435, %v433
      %v498 = vpack.c.b16 %v438, %v436
      %v499 = vpack.c.b16 %v439, %v437
      %v500 = vpack.c.b16 %v442, %v440
      %v501 = vpack.c.b16 %v443, %v441
      %v502 = vpack.c.b16 %v446, %v444
      %v503 = vpack.c.b16 %v447, %v445
      %v504 = vpack.c.b16 %v450, %v448
      %v505 = vpack.c.b16 %v451, %v449
      %v506 = vpack.c.b16 %v454, %v452
      %v507 = vpack.c.b16 %v455, %v453
      %v508 = vpack.c.b16 %v458, %v456
      %v509 = vpack.c.b16 %v459, %v457
      %v510 = vpack.c.b16 %v462, %v460
      %v511 = vpack.c.b16 %v463, %v461
      %v512 = vpack.c.b16 %v466, %v464
      %v513 = vpack.c.b16 %v467, %v465
      %v514 = vpack.c.b16 %v470, %v468
      %v515 = vpack.c.b16 %v471, %v469
      %v516 = vpack.c.b16 %v474, %v472
      %v517 = vpack.c.b16 %v475, %v473
      %v518 = vpack.c.b16 %v478, %v476
      %v519 = vpack.c.b16 %v479, %v477
      %v520 = vpack.c.b16 %v482, %v480
      %v521 = vpack.c.b16 %v483, %v481
      %v522 = vpack.c.b16 %v486, %v484
      %v523 = vpack.c.b16 %v487, %v485
      %v524 = vpack.c.b16 %v490, %v488
      %v525 = vpack.c.b16 %v491, %v489
      %v526 = vpack.c.b16 %v494, %v492
      %v527 = vpack.c.b16 %v495, %v493
      %v592 = vunpack.c.l.b16 %v368
      %v593 = vunpack.c.l.b16 %v369
      %v594 = vunpack.c.l.b16 %v370
      %v595 = vunpack.c.l.b16 %v371
      %v596 = vunpack.c.l.b16 %v372
      %v597 = vunpack.c.l.b16 %v373
      %v598 = vunpack.c.l.b16 %v374
      %v599 = vunpack.c.l.b16 %v375
      %v600 = vunpack.c.l.b16 %v376
      %v601 = vunpack.c.l.b16 %v377
      %v602 = vunpack.c.l.b16 %v378
      %v603 = vunpack.c.l.b16 %v379
      %v604 = vunpack.c.l.b16 %v380
      %v605 = vunpack.c.l.b16 %v381
      %v606 = vunpack.c.l.b16 %v382
      %v607 = vunpack.c.l.b16 %v383
      %v608 = vunpack.c.l.b16 %v384
      %v609 = vunpack.c.l.b16 %v385
      %v610 = vunpack.c.l.b16 %v386
      %v611 = vunpack.c.l.b16 %v387
      %v612 = vunpack.c.l.b16 %v388
      %v613 = vunpack.c.l.b16 %v389
      %v614 = vunpack.c.l.b16 %v390
      %v615 = vunpack.c.l.b16 %v391
      %v616 = vunpack.c.l.b16 %v392
      %v617 = vunpack.c.l.b16 %v393
      %v618 = vunpack.c.l.b16 %v394
      %v619 = vunpack.c.l.b16 %v395
      %v620 = vunpack.c.l.b16 %v396
      %v621 = vunpack.c.l.b16 %v397
      %v622 = vunpack.c.l.b16 %v398
      %v623 = vunpack.c.l.b16 %v399
      %v624 = vpack.c.b16 %v593, %v592
      %v625 = vpack.c.b16 %v595, %v594
      %v626 = vpack.c.b16 %v597, %v596
      %v627 = vpack.c.b16 %v599, %v598
      %v628 = vpack.c.b16 %v601, %v600
      %v629 = vpack.c.b16 %v603, %v602
      %v630 = vpack.c.b16 %v605, %v604
      %v631 = vpack.c.b16 %v607, %v606
      %v632 = vpack.c.b16 %v609, %v608
      %v633 = vpack.c.b16 %v611, %v610
      %v634 = vpack.c.b16 %v613, %v612
      %v635 = vpack.c.b16 %v615, %v614
      %v636 = vpack.c.b16 %v617, %v616
      %v637 = vpack.c.b16 %v619, %v618
      %v638 = vpack.c.b16 %v621, %v620
      %v639 = vpack.c.b16 %v623, %v622
      %656 = vmatprep.subr.bf16.mxu0 0
      %657 = vmatpush1.bf16.msra.mxu0 %v631
      %658 = vmatprep.subr.bf16.mxu0 0
      %659 = vmatpush1.bf16.msra.mxu0 %v630
      %660 = vmatprep.subr.bf16.mxu0 0
      %661 = vmatpush1.bf16.msra.mxu0 %v629
      %662 = vmatprep.subr.bf16.mxu0 0
      %663 = vmatpush1.bf16.msra.mxu0 %v628
      %664 = vmatprep.subr.bf16.mxu0 0
      %665 = vmatpush1.bf16.msra.mxu0 %v627
      %666 = vmatprep.subr.bf16.mxu0 0
      %667 = vmatpush1.bf16.msra.mxu0 %v626
      %668 = vmatprep.subr.bf16.mxu0 0
      %669 = vmatpush1.bf16.msra.mxu0 %v625
      %670 = vmatprep.subr.bf16.mxu0 0
      %671 = vmatpush1.bf16.msra.mxu0 %v624
      %672 = vmatprep.subr.bf16.mxu0 0
      %673 = vmatpush2.bf16.msra.mxu0 %v639
      %674 = vmatprep.subr.bf16.mxu0 0
      %675 = vmatpush2.bf16.msra.mxu0 %v638
      %676 = vmatprep.subr.bf16.mxu0 0
      %677 = vmatpush2.bf16.msra.mxu0 %v637
      %678 = vmatprep.subr.bf16.mxu0 0
      %679 = vmatpush2.bf16.msra.mxu0 %v636
      %680 = vmatprep.subr.bf16.mxu0 0
      %681 = vmatpush2.bf16.msra.mxu0 %v635
      %682 = vmatprep.subr.bf16.mxu0 0
      %683 = vmatpush2.bf16.msra.mxu0 %v634
      %684 = vmatprep.subr.bf16.mxu0 0
      %685 = vmatpush2.bf16.msra.mxu0 %v633
      %686 = vmatprep.subr.bf16.mxu0 0
      %687 = vmatpush2.bf16.msra.mxu0 %v632
      %688 = vmatprep.mubr.bf16.mxu0 %v497
      %689 = vmatmul.mubr.bf16.gmra.mxu0 %v496
      %v690 = vpop.f32.mrf.mxu0
      %v691 = vadd.f32 0.0, %v690
      %v692 = vpop.f32.mrf.mxu0
      %v693 = vpop.f32.mrf.mxu0
      %v694 = vadd.f32 0.0, %v693
      %v695 = vpop.f32.mrf.mxu0
      %696 = vmatprep.mubr.bf16.mxu0 %v499
      %697 = vmatmul.mubr.bf16.gmra.mxu0 %v498
      %v698 = vpop.f32.mrf.mxu0
      %v699 = vadd.f32 0.0, %v698
      %v700 = vpop.f32.mrf.mxu0
      %v701 = vpop.f32.mrf.mxu0
      %v702 = vadd.f32 0.0, %v701
      %v703 = vpop.f32.mrf.mxu0
      %704 = vmatprep.mubr.bf16.mxu0 %v501
      %705 = vmatmul.mubr.bf16.gmra.mxu0 %v500
      %v706 = vpop.f32.mrf.mxu0
      %v707 = vadd.f32 0.0, %v706
      %v708 = vpop.f32.mrf.mxu0
      %v709 = vpop.f32.mrf.mxu0
      %v710 = vadd.f32 0.0, %v709
      %v711 = vpop.f32.mrf.mxu0
      %712 = vmatprep.mubr.bf16.mxu0 %v503
      %713 = vmatmul.mubr.bf16.gmra.mxu0 %v502
      %v714 = vpop.f32.mrf.mxu0
      %v715 = vadd.f32 0.0, %v714
      %v716 = vpop.f32.mrf.mxu0
      %v717 = vpop.f32.mrf.mxu0
      %v718 = vadd.f32 0.0, %v717
      %v719 = vpop.f32.mrf.mxu0
      %720 = vmatprep.mubr.bf16.mxu0 %v505
      %721 = vmatmul.mubr.bf16.gmra.mxu0 %v504
      %v722 = vpop.f32.mrf.mxu0
      %v723 = vadd.f32 0.0, %v722
      %v724 = vpop.f32.mrf.mxu0
      %v725 = vpop.f32.mrf.mxu0
      %v726 = vadd.f32 0.0, %v725
      %v727 = vpop.f32.mrf.mxu0
      %728 = vmatprep.mubr.bf16.mxu0 %v507
      %729 = vmatmul.mubr.bf16.gmra.mxu0 %v506
      %v730 = vpop.f32.mrf.mxu0
      %v731 = vadd.f32 0.0, %v730
      %v732 = vpop.f32.mrf.mxu0
      %v733 = vpop.f32.mrf.mxu0
      %v734 = vadd.f32 0.0, %v733
      %v735 = vpop.f32.mrf.mxu0
      %736 = vmatprep.mubr.bf16.mxu0 %v509
      %737 = vmatmul.mubr.bf16.gmra.mxu0 %v508
      %v738 = vpop.f32.mrf.mxu0
      %v739 = vadd.f32 0.0, %v738
      %v740 = vpop.f32.mrf.mxu0
      %v741 = vpop.f32.mrf.mxu0
      %v742 = vadd.f32 0.0, %v741
      %v743 = vpop.f32.mrf.mxu0
      %744 = vmatprep.mubr.bf16.mxu0 %v511
      %745 = vmatmul.mubr.bf16.gmra.mxu0 %v510
      %v746 = vpop.f32.mrf.mxu0
      %v747 = vadd.f32 0.0, %v746
      %v748 = vpop.f32.mrf.mxu0
      %v749 = vpop.f32.mrf.mxu0
      %v750 = vadd.f32 0.0, %v749
      %v751 = vpop.f32.mrf.mxu0
      %752 = vmatprep.mubr.bf16.mxu0 %v513
      %753 = vmatmul.mubr.bf16.gmra.mxu0 %v512
      %v754 = vpop.f32.mrf.mxu0
      %v755 = vadd.f32 0.0, %v754
      %v756 = vpop.f32.mrf.mxu0
      %v757 = vpop.f32.mrf.mxu0
      %v758 = vadd.f32 0.0, %v757
      %v759 = vpop.f32.mrf.mxu0
      %760 = vmatprep.mubr.bf16.mxu0 %v515
      %761 = vmatmul.mubr.bf16.gmra.mxu0 %v514
      %v762 = vpop.f32.mrf.mxu0
      %v763 = vadd.f32 0.0, %v762
      %v764 = vpop.f32.mrf.mxu0
      %v765 = vpop.f32.mrf.mxu0
      %v766 = vadd.f32 0.0, %v765
      %v767 = vpop.f32.mrf.mxu0
      %768 = vmatprep.mubr.bf16.mxu0 %v517
      %769 = vmatmul.mubr.bf16.gmra.mxu0 %v516
      %v770 = vpop.f32.mrf.mxu0
      %v771 = vadd.f32 0.0, %v770
      %v772 = vpop.f32.mrf.mxu0
      %v773 = vpop.f32.mrf.mxu0
      %v774 = vadd.f32 0.0, %v773
      %v775 = vpop.f32.mrf.mxu0
      %776 = vmatprep.mubr.bf16.mxu0 %v519
      %777 = vmatmul.mubr.bf16.gmra.mxu0 %v518
      %v778 = vpop.f32.mrf.mxu0
      %v779 = vadd.f32 0.0, %v778
      %v780 = vpop.f32.mrf.mxu0
      %v781 = vpop.f32.mrf.mxu0
      %v782 = vadd.f32 0.0, %v781
      %v783 = vpop.f32.mrf.mxu0
      %784 = vmatprep.mubr.bf16.mxu0 %v521
      %785 = vmatmul.mubr.bf16.gmra.mxu0 %v520
      %v786 = vpop.f32.mrf.mxu0
      %v787 = vadd.f32 0.0, %v786
      %v788 = vpop.f32.mrf.mxu0
      %v789 = vpop.f32.mrf.mxu0
      %v790 = vadd.f32 0.0, %v789
      %v791 = vpop.f32.mrf.mxu0
      %792 = vmatprep.mubr.bf16.mxu0 %v523
      %793 = vmatmul.mubr.bf16.gmra.mxu0 %v522
      %v794 = vpop.f32.mrf.mxu0
      %v795 = vadd.f32 0.0, %v794
      %v796 = vpop.f32.mrf.mxu0
      %v797 = vpop.f32.mrf.mxu0
      %v798 = vadd.f32 0.0, %v797
      %v799 = vpop.f32.mrf.mxu0
      %800 = vmatprep.mubr.bf16.mxu0 %v525
      %801 = vmatmul.mubr.bf16.gmra.mxu0 %v524
      %v802 = vpop.f32.mrf.mxu0
      %v803 = vadd.f32 0.0, %v802
      %v804 = vpop.f32.mrf.mxu0
      %v805 = vpop.f32.mrf.mxu0
      %v806 = vadd.f32 0.0, %v805
      %v807 = vpop.f32.mrf.mxu0
      %808 = vmatprep.mubr.bf16.mxu0 %v527
      %809 = vmatmul.mubr.bf16.gmra.mxu0 %v526
      %v810 = vpop.f32.mrf.mxu0
      %v811 = vadd.f32 0.0, %v810
      %v812 = vpop.f32.mrf.mxu0
      %v813 = vpop.f32.mrf.mxu0
      %v814 = vadd.f32 0.0, %v813
      %v815 = vpop.f32.mrf.mxu0
      %816 = vdwg.mxu0
      %v817 = vadd.f32 %v304, %v691
      %v818 = vadd.f32 %v305, %v694
      %v819 = vadd.f32 %v306, %v699
      %v820 = vadd.f32 %v307, %v702
      %v821 = vadd.f32 %v308, %v707
      %v822 = vadd.f32 %v309, %v710
      %v823 = vadd.f32 %v310, %v715
      %v824 = vadd.f32 %v311, %v718
      %v825 = vadd.f32 %v312, %v723
      %v826 = vadd.f32 %v313, %v726
      %v827 = vadd.f32 %v314, %v731
      %v828 = vadd.f32 %v315, %v734
      %v829 = vadd.f32 %v316, %v739
      %v830 = vadd.f32 %v317, %v742
      %v831 = vadd.f32 %v318, %v747
      %v832 = vadd.f32 %v319, %v750
      %v833 = vadd.f32 %v320, %v755
      %v834 = vadd.f32 %v321, %v758
      %v835 = vadd.f32 %v322, %v763
      %v836 = vadd.f32 %v323, %v766
      %v837 = vadd.f32 %v324, %v771
      %v838 = vadd.f32 %v325, %v774
      %v839 = vadd.f32 %v326, %v779
      %v840 = vadd.f32 %v327, %v782
      %v841 = vadd.f32 %v328, %v787
      %v842 = vadd.f32 %v329, %v790
      %v843 = vadd.f32 %v330, %v795
      %v844 = vadd.f32 %v331, %v798
      %v845 = vadd.f32 %v332, %v803
      %v846 = vadd.f32 %v333, %v806
      %v847 = vadd.f32 %v334, %v811
      %v848 = vadd.f32 %v335, %v814
      %849 = vst [vmem:[#allocation2] sm:$0xff] %v817
      %850 = vst [vmem:[#allocation2 + $0x8] sm:$0xff] %v818
      %851 = vst [vmem:[#allocation2 + $0x10] sm:$0xff] %v819
      %852 = vst [vmem:[#allocation2 + $0x18] sm:$0xff] %v820
      %853 = vst [vmem:[#allocation2 + $0x20] sm:$0xff] %v821
      %854 = vst [vmem:[#allocation2 + $0x28] sm:$0xff] %v822
      %855 = vst [vmem:[#allocation2 + $0x30] sm:$0xff] %v823
      %856 = vst [vmem:[#allocation2 + $0x38] sm:$0xff] %v824
      %857 = vst [vmem:[#allocation2 + $0x40] sm:$0xff] %v825
      %858 = vst [vmem:[#allocation2 + $0x48] sm:$0xff] %v826
      %859 = vst [vmem:[#allocation2 + $0x50] sm:$0xff] %v827
      %860 = vst [vmem:[#allocation2 + $0x58] sm:$0xff] %v828
      %861 = vst [vmem:[#allocation2 + $0x60] sm:$0xff] %v829
      %862 = vst [vmem:[#allocation2 + $0x68] sm:$0xff] %v830
      %863 = vst [vmem:[#allocation2 + $0x70] sm:$0xff] %v831
      %864 = vst [vmem:[#allocation2 + $0x78] sm:$0xff] %v832
      %865 = vst [vmem:[#allocation2 + $0x80] sm:$0xff] %v833
      %866 = vst [vmem:[#allocation2 + $0x88] sm:$0xff] %v834
      %867 = vst [vmem:[#allocation2 + $0x90] sm:$0xff] %v835
      %868 = vst [vmem:[#allocation2 + $0x98] sm:$0xff] %v836
      %869 = vst [vmem:[#allocation2 + $0xa0] sm:$0xff] %v837
      %870 = vst [vmem:[#allocation2 + $0xa8] sm:$0xff] %v838
      %871 = vst [vmem:[#allocation2 + $0xb0] sm:$0xff] %v839
      %872 = vst [vmem:[#allocation2 + $0xb8] sm:$0xff] %v840
      %873 = vst [vmem:[#allocation2 + $0xc0] sm:$0xff] %v841
      %874 = vst [vmem:[#allocation2 + $0xc8] sm:$0xff] %v842
      %875 = vst [vmem:[#allocation2 + $0xd0] sm:$0xff] %v843
      %876 = vst [vmem:[#allocation2 + $0xd8] sm:$0xff] %v844
      %877 = vst [vmem:[#allocation2 + $0xe0] sm:$0xff] %v845
      %878 = vst [vmem:[#allocation2 + $0xe8] sm:$0xff] %v846
      %879 = vst [vmem:[#allocation2 + $0xf0] sm:$0xff] %v847
      %880 = vst [vmem:[#allocation2 + $0xf8] sm:$0xff] %v848
      // Predicated region
      $region37: #{_lambda_.10} parent=31 // pred_check
        %p881 = pneg %p268
      $region38: #{_lambda_.10} parent=31 // pred_check_branch
        %883 = sbr.rel (%p881) target = $region40
      $region39: #{_lambda_.10} parent=31 // pred_region
        %v884 = vld [vmem:[#allocation2] sm:$0xff]
        %v885 = vld [vmem:[#allocation2 + $0x8] sm:$0xff]
        %v886 = vld [vmem:[#allocation2 + $0x10] sm:$0xff]
        %v887 = vld [vmem:[#allocation2 + $0x18] sm:$0xff]
        %v888 = vld [vmem:[#allocation2 + $0x20] sm:$0xff]
        %v889 = vld [vmem:[#allocation2 + $0x28] sm:$0xff]
        %v890 = vld [vmem:[#allocation2 + $0x30] sm:$0xff]
        %v891 = vld [vmem:[#allocation2 + $0x38] sm:$0xff]
        %v892 = vld [vmem:[#allocation2 + $0x40] sm:$0xff]
        %v893 = vld [vmem:[#allocation2 + $0x48] sm:$0xff]
        %v894 = vld [vmem:[#allocation2 + $0x50] sm:$0xff]
        %v895 = vld [vmem:[#allocation2 + $0x58] sm:$0xff]
        %v896 = vld [vmem:[#allocation2 + $0x60] sm:$0xff]
        %v897 = vld [vmem:[#allocation2 + $0x68] sm:$0xff]
        %v898 = vld [vmem:[#allocation2 + $0x70] sm:$0xff]
        %v899 = vld [vmem:[#allocation2 + $0x78] sm:$0xff]
        %v900 = vld [vmem:[#allocation2 + $0x80] sm:$0xff]
        %v901 = vld [vmem:[#allocation2 + $0x88] sm:$0xff]
        %v902 = vld [vmem:[#allocation2 + $0x90] sm:$0xff]
        %v903 = vld [vmem:[#allocation2 + $0x98] sm:$0xff]
        %v904 = vld [vmem:[#allocation2 + $0xa0] sm:$0xff]
        %v905 = vld [vmem:[#allocation2 + $0xa8] sm:$0xff]
        %v906 = vld [vmem:[#allocation2 + $0xb0] sm:$0xff]
        %v907 = vld [vmem:[#allocation2 + $0xb8] sm:$0xff]
        %v908 = vld [vmem:[#allocation2 + $0xc0] sm:$0xff]
        %v909 = vld [vmem:[#allocation2 + $0xc8] sm:$0xff]
        %v910 = vld [vmem:[#allocation2 + $0xd0] sm:$0xff]
        %v911 = vld [vmem:[#allocation2 + $0xd8] sm:$0xff]
        %v912 = vld [vmem:[#allocation2 + $0xe0] sm:$0xff]
        %v913 = vld [vmem:[#allocation2 + $0xe8] sm:$0xff]
        %v914 = vld [vmem:[#allocation2 + $0xf0] sm:$0xff]
        %v915 = vld [vmem:[#allocation2 + $0xf8] sm:$0xff]
        %v916 = vld [vmem:[%s257] sm:$0x1]
        %v918 = vlaneseq
        %v919 = vshrl.u32 %v918, 7
        %v920 = vsub.s32 0, %v919
        %v921 = vrot.slane %v916, %v920
        %v923 = vadd.f32 %v884, %v921
        %v924 = vadd.f32 %v885, %v921
        %v925 = vadd.f32 %v886, %v921
        %v926 = vadd.f32 %v887, %v921
        %v927 = vadd.f32 %v888, %v921
        %v928 = vadd.f32 %v889, %v921
        %v929 = vadd.f32 %v890, %v921
        %v930 = vadd.f32 %v891, %v921
        %v931 = vadd.f32 %v892, %v921
        %v932 = vadd.f32 %v893, %v921
        %v933 = vadd.f32 %v894, %v921
        %v934 = vadd.f32 %v895, %v921
        %v935 = vadd.f32 %v896, %v921
        %v936 = vadd.f32 %v897, %v921
        %v937 = vadd.f32 %v898, %v921
        %v938 = vadd.f32 %v899, %v921
        %v939 = vadd.f32 %v900, %v921
        %v940 = vadd.f32 %v901, %v921
        %v941 = vadd.f32 %v902, %v921
        %v942 = vadd.f32 %v903, %v921
        %v943 = vadd.f32 %v904, %v921
        %v944 = vadd.f32 %v905, %v921
        %v945 = vadd.f32 %v906, %v921
        %v946 = vadd.f32 %v907, %v921
        %v947 = vadd.f32 %v908, %v921
        %v948 = vadd.f32 %v909, %v921
        %v949 = vadd.f32 %v910, %v921
        %v950 = vadd.f32 %v911, %v921
        %v951 = vadd.f32 %v912, %v921
        %v952 = vadd.f32 %v913, %v921
        %v953 = vadd.f32 %v914, %v921
        %v954 = vadd.f32 %v915, %v921
        %955 = vst [vmem:[%s265] sm:$0xff] %v923
        %956 = vst [vmem:[%s265 + $0x8] sm:$0xff] %v924
        %957 = vst [vmem:[%s265 + $0x10] sm:$0xff] %v925
        %958 = vst [vmem:[%s265 + $0x18] sm:$0xff] %v926
        %959 = vst [vmem:[%s265 + $0x20] sm:$0xff] %v927
        %960 = vst [vmem:[%s265 + $0x28] sm:$0xff] %v928
        %961 = vst [vmem:[%s265 + $0x30] sm:$0xff] %v929
        %962 = vst [vmem:[%s265 + $0x38] sm:$0xff] %v930
        %963 = vst [vmem:[%s265 + $0x40] sm:$0xff] %v931
        %964 = vst [vmem:[%s265 + $0x48] sm:$0xff] %v932
        %965 = vst [vmem:[%s265 + $0x50] sm:$0xff] %v933
        %966 = vst [vmem:[%s265 + $0x58] sm:$0xff] %v934
        %967 = vst [vmem:[%s265 + $0x60] sm:$0xff] %v935
        %968 = vst [vmem:[%s265 + $0x68] sm:$0xff] %v936
        %969 = vst [vmem:[%s265 + $0x70] sm:$0xff] %v937
        %970 = vst [vmem:[%s265 + $0x78] sm:$0xff] %v938
        %971 = vst [vmem:[%s265 + $0x80] sm:$0xff] %v939
        %972 = vst [vmem:[%s265 + $0x88] sm:$0xff] %v940
        %973 = vst [vmem:[%s265 + $0x90] sm:$0xff] %v941
        %974 = vst [vmem:[%s265 + $0x98] sm:$0xff] %v942
        %975 = vst [vmem:[%s265 + $0xa0] sm:$0xff] %v943
        %976 = vst [vmem:[%s265 + $0xa8] sm:$0xff] %v944
        %977 = vst [vmem:[%s265 + $0xb0] sm:$0xff] %v945
        %978 = vst [vmem:[%s265 + $0xb8] sm:$0xff] %v946
        %979 = vst [vmem:[%s265 + $0xc0] sm:$0xff] %v947
        %980 = vst [vmem:[%s265 + $0xc8] sm:$0xff] %v948
        %981 = vst [vmem:[%s265 + $0xd0] sm:$0xff] %v949
        %982 = vst [vmem:[%s265 + $0xd8] sm:$0xff] %v950
        %983 = vst [vmem:[%s265 + $0xe0] sm:$0xff] %v951
        %984 = vst [vmem:[%s265 + $0xe8] sm:$0xff] %v952
        %985 = vst [vmem:[%s265 + $0xf0] sm:$0xff] %v953
        %986 = vst [vmem:[%s265 + $0xf8] sm:$0xff] %v954
      $region40: #{_lambda_.10} parent=31 // pred_fallthru
        _
      %s987 = smul.u32 32, %s19
      %p988 = scmp.lt.s32.totalorder %s987, 63
      %s989 = scalar_select %p988, %s987, 63
      %p990 = scmp.lt.s32.totalorder %s20, 0
      %s991 = scalar_select %p990, %s20, 0
      %s992 = sadd.s32 %s991, %s989
      %s993 = smul.addr %s992, 8
      %s994 = scalar_lea.vmem %s3, %s993
      // Predicated region
      $region41: #{_lambda_.10} parent=31 // pred_check
        %p995 = pneg %p135
      $region42: #{_lambda_.10} parent=31 // pred_check_branch
        %997 = sbr.rel (%p995) target = $region44
      $region43: #{_lambda_.10} parent=31 // pred_region
        %s998 = smul.u32 32, %s19
      $region44: #{_lambda_.10} parent=31 // pred_fallthru
        _
    $region32: #{_lambda_.10} parent=5 // pred_fallthru
      _
    %p999 = scmp.le.s32.totalorder 2, %s9
    // Predicated region
    $region45: #{_lambda_.10} parent=5 // pred_check
      %p1000 = pneg %p999
    $region46: #{_lambda_.10} parent=5 // pred_check_branch
      %1002 = sbr.rel (%p1000) target = $region48
    $region47: #{_lambda_.10} parent=5 // pred_region
      %s1003 = ssub.s32 %s9, 2
      // Predicated region
      $region49: #{_lambda_.10} parent=47 // pred_check
        %p1004 = pneg %p141
      $region50: #{_lambda_.10} parent=47 // pred_check_branch
        %1006 = sbr.rel (%p1004) target = $region52
      $region51: #{_lambda_.10} parent=47 // pred_region
        %s1007 = smul.u32 32, %s22
        %p1008 = scmp.lt.s32.totalorder %s1007, 63
        %s1009 = scalar_select %p1008, %s1007, 63
        %p1010 = scmp.lt.s32.totalorder %s23, 0
        %s1011 = scalar_select %p1010, %s23, 0
        %s1012 = sadd.s32 %s1011, %s1009
        %s1013 = smul.addr %s1012, 8
        %s1014 = scalar_lea.vmem %s3, %s1013
      $region52: #{_lambda_.10} parent=47 // pred_fallthru
        _
    $region48: #{_lambda_.10} parent=5 // pred_fallthru
      _
  $region6: #{_lambda_.10} parent=0 // loop_footer
    %s13 = sadd.s32 1, %s9
  $region7: #{_lambda_.10} parent=0 // loop_footer_branch
    %8 = sbr.rel target = $region3
  $region8: #{_lambda_.10} parent=0 // loop_exit
    _

// kernel: _lambda_.11
$region0: #{_lambda_.11}
  #allocation0 [shape = 'u32[]', space=smem, size = 0x4, offset = 0x4, fixed_abs, tag = 'smem constant byte address 0x4 - core index']
  #allocation1 [shape = 'u32[144,128]{1,0:T(1,128)}', space=vmem, size = 0x12000, scoped, tag = 'internal scratch']
  %s0 = inlined_call_operand.vmem [shape: f32[16,128], index: 0, kind: input, shape index: {}]
  %s1 = inlined_call_operand.vmem [shape: f32[16,128], index: 1, kind: input, shape index: {}]
  %s2 = inlined_call_operand.vmem [shape: f32[16,128], index: 2, kind: input, shape index: {}]
  %s3 = inlined_call_operand.vmem [shape: f32[16,128], index: 3, kind: output, shape index: {0}]
  %s4 = inlined_call_operand.vmem [shape: f32[16,128], index: 4, kind: output, shape index: {1}]
  %5 = xla_tuple %s3, %s4
  %s6 = sld [smem:[#allocation0]]
  $region30: #{_lambda_.11} parent=0
    _
  %s8 = ssub.s32 1, %s6
  %s9 = scalar_select 0, %s8, %s6
  // Predicated region
  $region2: #{_lambda_.11} parent=0 // pred_check
    _
  $region3: #{_lambda_.11} parent=0 // pred_check_branch
    %11 = sbr.rel (0) target = $region5
  $region4: #{_lambda_.11} parent=0 // pred_region
    _
  $region5: #{_lambda_.11} parent=0 // pred_fallthru
    _
  // Predicated region
  $region6: #{_lambda_.11} parent=0 // pred_check
    _
  $region7: #{_lambda_.11} parent=0 // pred_check_branch
    %13 = sbr.rel (0) target = $region9
  $region8: #{_lambda_.11} parent=0 // pred_region
    _
  $region9: #{_lambda_.11} parent=0 // pred_fallthru
    _
  // Predicated region
  $region10: #{_lambda_.11} parent=0 // pred_check
    _
  $region11: #{_lambda_.11} parent=0 // pred_check_branch
    %15 = sbr.rel (0) target = $region13
  $region12: #{_lambda_.11} parent=0 // pred_region
    _
  $region13: #{_lambda_.11} parent=0 // pred_fallthru
    _
  %v16 = vld [vmem:[%s0] sm:$0xff]
  %v17 = vld [vmem:[%s0 + $0x8] sm:$0xff]
  %v18 = vld [vmem:[%s2] sm:$0xff]
  %v19 = vld [vmem:[%s2 + $0x8] sm:$0xff]
  %v20 = vld [vmem:[%s1] sm:$0xff]
  %v21 = vld [vmem:[%s1 + $0x8] sm:$0xff]
  %v22 = vmax.f32 %v20, 0.11
  %v23 = vmax.f32 %v21, 0.11
  %v24 = vsub.f32 %v16, %v18
  %v25 = vsub.f32 %v17, %v19
  %v26 = vround.ne.pseudo %v24
  %v27 = vround.ne.pseudo %v25
  %v28 = vadd.f32 %v26, %v18
  %v29 = vadd.f32 %v27, %v19
  %30 = vst [vmem:[%s3] sm:$0xff] %v28
  %31 = vst [vmem:[%s3 + $0x8] sm:$0xff] %v29
  %v32 = vand.u32 2147483647, %v26
  %v33 = vand.u32 2147483647, %v27
  %v34 = vrcp.pop %v22
  %v35 = vmul.f32 1.0, %v34
  %v36 = vrcp.pop %v23
  %v37 = vmul.f32 1.0, %v36
  %v38 = vsub.f32 0.5, %v32
  %v39 = vsub.f32 0.5, %v33
  %v40 = vmul.f32 %v38, %v35
  %v41 = vmul.f32 %v39, %v37
  %v42 = vsub.f32 0.0, %v40
  %v43 = vsub.f32 0.0, %v41
  %v44 = vmul.f32 %v42, 0.70710677
  %v45 = vmul.f32 %v43, 0.70710677
  %v46 = vand.u32 2147483647, %v44
  %v47 = vand.u32 2147483647, %v45
  %v48 = vmul.f32 %v46, 0.3275911
  %v49 = vmul.f32 %v47, 0.3275911
  %v50 = vadd.f32 %v48, 1.0
  %v51 = vadd.f32 %v49, 1.0
  %v52 = vrcp.pop %v50
  %v53 = vmul.f32 1.0, %v52
  %v54 = vrcp.pop %v51
  %v55 = vmul.f32 1.0, %v54
  %v56 = vmul.f32 %v53, 1.0614054
  %v57 = vmul.f32 %v55, 1.0614054
  %v58 = vsub.f32 %v56, 1.4531521
  %v59 = vsub.f32 %v57, 1.4531521
  %v60 = vmul.f32 %v58, %v53
  %v61 = vmul.f32 %v59, %v55
  %v62 = vadd.f32 %v60, 1.4214138
  %v63 = vadd.f32 %v61, 1.4214138
  %v64 = vmul.f32 %v62, %v53
  %v65 = vmul.f32 %v63, %v55
  %v66 = vsub.f32 %v64, 0.28449672
  %v67 = vsub.f32 %v65, 0.28449672
  %v68 = vmul.f32 %v66, %v53
  %v69 = vmul.f32 %v67, %v55
  %v70 = vadd.f32 %v68, 0.2548296
  %v71 = vadd.f32 %v69, 0.2548296
  %v72 = vmul.f32 %v70, %v53
  %v73 = vmul.f32 %v71, %v55
  %v74 = vmul.f32 %v72, 0.5
  %v75 = vmul.f32 %v73, 0.5
  %v76 = vsub.f32 0.0, %v46
  %v77 = vsub.f32 0.0, %v47
  %v78 = vmul.f32 %v76, %v46
  %v79 = vmul.f32 %v77, %v47
  %v80 = vmul.f32 %v78, 1.442695
  %v81 = vpow.pop %v80
  %v82 = vmul.f32 %v79, 1.442695
  %v83 = vpow.pop %v82
  %v84 = vmul.f32 %v74, %v81
  %v85 = vmul.f32 %v75, %v83
  %vm86 = vcmp.ge.f32.partialorder %v44, 0.0
  %vm87 = vcmp.ge.f32.partialorder %v45, 0.0
  %v88 = vsub.f32 1.0, %v84
  %v89 = vsub.f32 1.0, %v85
  %v90 = vsel %vm86, %v84, %v88
  %v91 = vsel %vm87, %v85, %v89
  %v92 = vsub.f32 -0.5, %v32
  %v93 = vsub.f32 -0.5, %v33
  %v94 = vmul.f32 %v92, %v35
  %v95 = vmul.f32 %v93, %v37
  %v96 = vsub.f32 0.0, %v94
  %v97 = vsub.f32 0.0, %v95
  %v98 = vmul.f32 %v96, 0.70710677
  %v99 = vmul.f32 %v97, 0.70710677
  %v100 = vand.u32 2147483647, %v98
  %v101 = vand.u32 2147483647, %v99
  %v102 = vmul.f32 %v100, 0.3275911
  %v103 = vmul.f32 %v101, 0.3275911
  %v104 = vadd.f32 %v102, 1.0
  %v105 = vadd.f32 %v103, 1.0
  %v106 = vrcp.pop %v104
  %v107 = vmul.f32 1.0, %v106
  %v108 = vrcp.pop %v105
  %v109 = vmul.f32 1.0, %v108
  %v110 = vmul.f32 %v107, 1.0614054
  %v111 = vmul.f32 %v109, 1.0614054
  %v112 = vsub.f32 %v110, 1.4531521
  %v113 = vsub.f32 %v111, 1.4531521
  %v114 = vmul.f32 %v112, %v107
  %v115 = vmul.f32 %v113, %v109
  %v116 = vadd.f32 %v114, 1.4214138
  %v117 = vadd.f32 %v115, 1.4214138
  %v118 = vmul.f32 %v116, %v107
  %v119 = vmul.f32 %v117, %v109
  %v120 = vsub.f32 %v118, 0.28449672
  %v121 = vsub.f32 %v119, 0.28449672
  %v122 = vmul.f32 %v120, %v107
  %v123 = vmul.f32 %v121, %v109
  %v124 = vadd.f32 %v122, 0.2548296
  %v125 = vadd.f32 %v123, 0.2548296
  %v126 = vmul.f32 %v124, %v107
  %v127 = vmul.f32 %v125, %v109
  %v128 = vmul.f32 %v126, 0.5
  %v129 = vmul.f32 %v127, 0.5
  %v130 = vsub.f32 0.0, %v100
  %v131 = vsub.f32 0.0, %v101
  %v132 = vmul.f32 %v130, %v100
  %v133 = vmul.f32 %v131, %v101
  %v134 = vmul.f32 %v132, 1.442695
  %v135 = vpow.pop %v134
  %v136 = vmul.f32 %v133, 1.442695
  %v137 = vpow.pop %v136
  %v138 = vmul.f32 %v128, %v135
  %v139 = vmul.f32 %v129, %v137
  %vm140 = vcmp.ge.f32.partialorder %v98, 0.0
  %vm141 = vcmp.ge.f32.partialorder %v99, 0.0
  %v142 = vsub.f32 1.0, %v138
  %v143 = vsub.f32 1.0, %v139
  %v144 = vsel %vm140, %v138, %v142
  %v145 = vsel %vm141, %v139, %v143
  %v146 = vsub.f32 %v90, %v144
  %v147 = vsub.f32 %v91, %v145
  %v148 = vmax.f32 %v146, 1e-09
  %v149 = vmax.f32 %v147, 1e-09
  %v150 = vlog2.pop %v148
  %v151 = vmul.f32 %v150, 0.6931472
  %v152 = vlog2.pop %v149
  %v153 = vmul.f32 %v152, 0.6931472
  %v154 = vrcp.pop 0.6931472
  %v155 = vmul.f32 %v151, %v154
  %v156 = vmul.f32 %v153, %v154
  %v157 = vsub.f32 0.0, %v155
  %v158 = vsub.f32 0.0, %v156
  %159 = vst [vmem:[%s4] sm:$0xff] %v157
  %160 = vst [vmem:[%s4 + $0x8] sm:$0xff] %v158
  // Predicated region
  $region14: #{_lambda_.11} parent=0 // pred_check
    _
  $region15: #{_lambda_.11} parent=0 // pred_check_branch
    %162 = sbr.rel (0) target = $region17
  $region16: #{_lambda_.11} parent=0 // pred_region
    _
  $region17: #{_lambda_.11} parent=0 // pred_fallthru
    _
  // Predicated region
  $region18: #{_lambda_.11} parent=0 // pred_check
    _
  $region19: #{_lambda_.11} parent=0 // pred_check_branch
    %164 = sbr.rel (0) target = $region21
  $region20: #{_lambda_.11} parent=0 // pred_region
    _
  $region21: #{_lambda_.11} parent=0 // pred_fallthru
    _
  // Predicated region
  $region22: #{_lambda_.11} parent=0 // pred_check
    _
  $region23: #{_lambda_.11} parent=0 // pred_check_branch
    %166 = sbr.rel (0) target = $region25
  $region24: #{_lambda_.11} parent=0 // pred_region
    _
  $region25: #{_lambda_.11} parent=0 // pred_fallthru
    _
  // Predicated region
  $region26: #{_lambda_.11} parent=0 // pred_check
    _
  $region27: #{_lambda_.11} parent=0 // pred_check_branch
    %168 = sbr.rel (0) target = $region29
  $region28: #{_lambda_.11} parent=0 // pred_region
    _
  $region29: #{_lambda_.11} parent=0 // pred_fallthru
    _

// kernel: _lambda_.6
$region0: #{_lambda_.6}
  #allocation0 [shape = 'u32[]', space=smem, size = 0x4, offset = 0x4, fixed_abs, tag = 'smem constant byte address 0x4 - core index']
  #allocation1 [shape = 'u32[144,128]{1,0:T(1,128)}', space=vmem, size = 0x12000, scoped, tag = 'internal scratch']
  %s0 = inlined_call_operand.vmem [shape: f32[1,59], index: 0, kind: input, shape index: {}]
  %s1 = inlined_call_operand.vmem [shape: f32[1,8,128], index: 1, kind: input, shape index: {}]
  %s2 = inlined_call_operand.vmem [shape: f32[1,8,128], index: 2, kind: output, shape index: {0}]
  %s3 = inlined_call_operand.vmem [shape: f32[1,8,128], index: 3, kind: output, shape index: {1}]
  %4 = xla_tuple %s2, %s3
  %s5 = sld [smem:[#allocation0]]
  $region30: #{_lambda_.6} parent=0
    _
  %s7 = ssub.s32 1, %s5
  %s8 = scalar_select 0, %s7, %s5
  $region1: #{_lambda_.6} parent=0
    #allocation2 [shape = 'u8[512]{0}', space=smem, size = 0x200, scoped, tag = 'input window, operand 0, single buffered']
    #allocation3 [shape = 's32[1]{0}', space=sflag, size = 0x4, scoped, tag = 'scoped memory for _lambda_.6']
    %9 = vsyncpa [#allocation3], 0
    // Predicated region
    $region2: #{_lambda_.6} parent=1 // pred_check
      _
    $region3: #{_lambda_.6} parent=1 // pred_check_branch
      %11 = sbr.rel (0) target = $region5
    $region4: #{_lambda_.6} parent=1 // pred_region
      %s13 = ssub.s32 16, 16
      %14 = vsyncadd [#allocation3], %s13
      %s16 = sshll.u32 %s0, 4
      %s17 = int_to_ptr.vmem [resolvable:$true] %s16
      %19 = dma.vmem_to_smem %s17, 16, [#allocation2], [#allocation3]
    $region5: #{_lambda_.6} parent=1 // pred_fallthru
      _
    // Predicated region
    $region6: #{_lambda_.6} parent=1 // pred_check
      _
    $region7: #{_lambda_.6} parent=1 // pred_check_branch
      %21 = sbr.rel (0) target = $region9
    $region8: #{_lambda_.6} parent=1 // pred_region
      _
    $region9: #{_lambda_.6} parent=1 // pred_fallthru
      _
    // Predicated region
    $region10: #{_lambda_.6} parent=1 // pred_check
      _
    $region11: #{_lambda_.6} parent=1 // pred_check_branch
      %23 = sbr.rel (0) target = $region13
    $region12: #{_lambda_.6} parent=1 // pred_region
      %24 = dma.done [#allocation3], 16
    $region13: #{_lambda_.6} parent=1 // pred_fallthru
      _
    %25 = sfence
    %v26 = vld [vmem:[%s1] sm:$0xff]
    %s27 = smul.u32 0, 128
    %s28 = sld [smem:[#allocation2 + %s27]]
    %v29 = vstv %s28
    %v30 = vsub.f32 %v26, %v29
    %v31 = vround.ne.pseudo %v30
    %v32 = vadd.f32 %v31, %v29
    %33 = vst [vmem:[%s2] sm:$0xff] %v32
    %v34 = vsub.f32 %v32, 0.5
    %s35 = sadd.s32 %s27, 1
    %s36 = sld [smem:[#allocation2 + %s35]]
    %v37 = vstv %s36
    %v38 = vmul.f32 %v37, %v34
    %s39 = sadd.s32 %s27, 4
    %s40 = sld [smem:[#allocation2 + %s39]]
    %v41 = vstv %s40
    %v42 = vadd.f32 %v38, %v41
    %s43 = sadd.s32 %s27, 2
    %s44 = sld [smem:[#allocation2 + %s43]]
    %v45 = vstv %s44
    %v46 = vmul.f32 %v45, %v34
    %s47 = sadd.s32 %s27, 5
    %s48 = sld [smem:[#allocation2 + %s47]]
    %v49 = vstv %s48
    %v50 = vadd.f32 %v46, %v49
    %s51 = sadd.s32 %s27, 3
    %s52 = sld [smem:[#allocation2 + %s51]]
    %v53 = vstv %s52
    %v54 = vmul.f32 %v53, %v34
    %s55 = sadd.s32 %s27, 6
    %s56 = sld [smem:[#allocation2 + %s55]]
    %v57 = vstv %s56
    %v58 = vadd.f32 %v54, %v57
    %s59 = sadd.s32 %s27, 7
    %s60 = sld [smem:[#allocation2 + %s59]]
    %v61 = vtanh.pop %v42
    %v62 = vstv %s60
    %v63 = vmul.f32 %v62, %v61
    %v64 = vadd.f32 %v42, %v63
    %s65 = sadd.s32 %s27, 8
    %s66 = sld [smem:[#allocation2 + %s65]]
    %v67 = vtanh.pop %v50
    %v68 = vstv %s66
    %v69 = vmul.f32 %v68, %v67
    %v70 = vadd.f32 %v50, %v69
    %s71 = sadd.s32 %s27, 9
    %s72 = sld [smem:[#allocation2 + %s71]]
    %v73 = vtanh.pop %v58
    %v74 = vstv %s72
    %v75 = vmul.f32 %v74, %v73
    %v76 = vadd.f32 %v58, %v75
    %s77 = sadd.s32 %s27, 10
    %s78 = sld [smem:[#allocation2 + %s77]]
    %v79 = vstv %s78
    %v80 = vmul.f32 %v79, %v64
    %s81 = sadd.s32 %s27, 11
    %s82 = sld [smem:[#allocation2 + %s81]]
    %v83 = vstv %s82
    %v84 = vmul.f32 %v83, %v70
    %v85 = vadd.f32 %v80, %v84
    %s86 = sadd.s32 %s27, 12
    %s87 = sld [smem:[#allocation2 + %s86]]
    %v88 = vstv %s87
    %v89 = vmul.f32 %v88, %v76
    %v90 = vadd.f32 %v85, %v89
    %s91 = sadd.s32 %s27, 19
    %s92 = sld [smem:[#allocation2 + %s91]]
    %v93 = vstv %s92
    %v94 = vadd.f32 %v90, %v93
    %s95 = sadd.s32 %s27, 22
    %s96 = sld [smem:[#allocation2 + %s95]]
    %v97 = vtanh.pop %v94
    %v98 = vstv %s96
    %v99 = vmul.f32 %v98, %v97
    %v100 = vadd.f32 %v94, %v99
    %s101 = sadd.s32 %s27, 13
    %s102 = sld [smem:[#allocation2 + %s101]]
    %v103 = vstv %s102
    %v104 = vmul.f32 %v103, %v64
    %s105 = sadd.s32 %s27, 14
    %s106 = sld [smem:[#allocation2 + %s105]]
    %v107 = vstv %s106
    %v108 = vmul.f32 %v107, %v70
    %v109 = vadd.f32 %v104, %v108
    %s110 = sadd.s32 %s27, 15
    %s111 = sld [smem:[#allocation2 + %s110]]
    %v112 = vstv %s111
    %v113 = vmul.f32 %v112, %v76
    %v114 = vadd.f32 %v109, %v113
    %s115 = sadd.s32 %s27, 20
    %s116 = sld [smem:[#allocation2 + %s115]]
    %v117 = vstv %s116
    %v118 = vadd.f32 %v114, %v117
    %s119 = sadd.s32 %s27, 23
    %s120 = sld [smem:[#allocation2 + %s119]]
    %v121 = vtanh.pop %v118
    %v122 = vstv %s120
    %v123 = vmul.f32 %v122, %v121
    %v124 = vadd.f32 %v118, %v123
    %s125 = sadd.s32 %s27, 16
    %s126 = sld [smem:[#allocation2 + %s125]]
    %v127 = vstv %s126
    %v128 = vmul.f32 %v127, %v64
    %s129 = sadd.s32 %s27, 17
    %s130 = sld [smem:[#allocation2 + %s129]]
    %v131 = vstv %s130
    %v132 = vmul.f32 %v131, %v70
    %v133 = vadd.f32 %v128, %v132
    %s134 = sadd.s32 %s27, 18
    %s135 = sld [smem:[#allocation2 + %s134]]
    %v136 = vstv %s135
    %v137 = vmul.f32 %v136, %v76
    %v138 = vadd.f32 %v133, %v137
    %s139 = sadd.s32 %s27, 21
    %s140 = sld [smem:[#allocation2 + %s139]]
    %v141 = vstv %s140
    %v142 = vadd.f32 %v138, %v141
    %s143 = sadd.s32 %s27, 24
    %s144 = sld [smem:[#allocation2 + %s143]]
    %v145 = vtanh.pop %v142
    %v146 = vstv %s144
    %v147 = vmul.f32 %v146, %v145
    %v148 = vadd.f32 %v142, %v147
    %s149 = sadd.s32 %s27, 25
    %s150 = sld [smem:[#allocation2 + %s149]]
    %v151 = vstv %s150
    %v152 = vmul.f32 %v151, %v100
    %s153 = sadd.s32 %s27, 26
    %s154 = sld [smem:[#allocation2 + %s153]]
    %v155 = vstv %s154
    %v156 = vmul.f32 %v155, %v124
    %v157 = vadd.f32 %v152, %v156
    %s158 = sadd.s32 %s27, 27
    %s159 = sld [smem:[#allocation2 + %s158]]
    %v160 = vstv %s159
    %v161 = vmul.f32 %v160, %v148
    %v162 = vadd.f32 %v157, %v161
    %s163 = sadd.s32 %s27, 34
    %s164 = sld [smem:[#allocation2 + %s163]]
    %v165 = vstv %s164
    %v166 = vadd.f32 %v162, %v165
    %s167 = sadd.s32 %s27, 37
    %s168 = sld [smem:[#allocation2 + %s167]]
    %v169 = vtanh.pop %v166
    %v170 = vstv %s168
    %v171 = vmul.f32 %v170, %v169
    %v172 = vadd.f32 %v166, %v171
    %s173 = sadd.s32 %s27, 28
    %s174 = sld [smem:[#allocation2 + %s173]]
    %v175 = vstv %s174
    %v176 = vmul.f32 %v175, %v100
    %s177 = sadd.s32 %s27, 29
    %s178 = sld [smem:[#allocation2 + %s177]]
    %v179 = vstv %s178
    %v180 = vmul.f32 %v179, %v124
    %v181 = vadd.f32 %v176, %v180
    %s182 = sadd.s32 %s27, 30
    %s183 = sld [smem:[#allocation2 + %s182]]
    %v184 = vstv %s183
    %v185 = vmul.f32 %v184, %v148
    %v186 = vadd.f32 %v181, %v185
    %s187 = sadd.s32 %s27, 35
    %s188 = sld [smem:[#allocation2 + %s187]]
    %v189 = vstv %s188
    %v190 = vadd.f32 %v186, %v189
    %s191 = sadd.s32 %s27, 38
    %s192 = sld [smem:[#allocation2 + %s191]]
    %v193 = vtanh.pop %v190
    %v194 = vstv %s192
    %v195 = vmul.f32 %v194, %v193
    %v196 = vadd.f32 %v190, %v195
    %s197 = sadd.s32 %s27, 31
    %s198 = sld [smem:[#allocation2 + %s197]]
    %v199 = vstv %s198
    %v200 = vmul.f32 %v199, %v100
    %s201 = sadd.s32 %s27, 32
    %s202 = sld [smem:[#allocation2 + %s201]]
    %v203 = vstv %s202
    %v204 = vmul.f32 %v203, %v124
    %v205 = vadd.f32 %v200, %v204
    %s206 = sadd.s32 %s27, 33
    %s207 = sld [smem:[#allocation2 + %s206]]
    %v208 = vstv %s207
    %v209 = vmul.f32 %v208, %v148
    %v210 = vadd.f32 %v205, %v209
    %s211 = sadd.s32 %s27, 36
    %s212 = sld [smem:[#allocation2 + %s211]]
    %v213 = vstv %s212
    %v214 = vadd.f32 %v210, %v213
    %s215 = sadd.s32 %s27, 39
    %s216 = sld [smem:[#allocation2 + %s215]]
    %v217 = vtanh.pop %v214
    %v218 = vstv %s216
    %v219 = vmul.f32 %v218, %v217
    %v220 = vadd.f32 %v214, %v219
    %s221 = sadd.s32 %s27, 40
    %s222 = sld [smem:[#allocation2 + %s221]]
    %v223 = vstv %s222
    %v224 = vmul.f32 %v223, %v172
    %s225 = sadd.s32 %s27, 41
    %s226 = sld [smem:[#allocation2 + %s225]]
    %v227 = vstv %s226
    %v228 = vmul.f32 %v227, %v196
    %v229 = vadd.f32 %v224, %v228
    %s230 = sadd.s32 %s27, 42
    %s231 = sld [smem:[#allocation2 + %s230]]
    %v232 = vstv %s231
    %v233 = vmul.f32 %v232, %v220
    %v234 = vadd.f32 %v229, %v233
    %s235 = sadd.s32 %s27, 49
    %s236 = sld [smem:[#allocation2 + %s235]]
    %v237 = vstv %s236
    %v238 = vadd.f32 %v234, %v237
    %s239 = sadd.s32 %s27, 52
    %s240 = sld [smem:[#allocation2 + %s239]]
    %v241 = vtanh.pop %v238
    %v242 = vstv %s240
    %v243 = vmul.f32 %v242, %v241
    %v244 = vadd.f32 %v238, %v243
    %s245 = sadd.s32 %s27, 43
    %s246 = sld [smem:[#allocation2 + %s245]]
    %v247 = vstv %s246
    %v248 = vmul.f32 %v247, %v172
    %s249 = sadd.s32 %s27, 44
    %s250 = sld [smem:[#allocation2 + %s249]]
    %v251 = vstv %s250
    %v252 = vmul.f32 %v251, %v196
    %v253 = vadd.f32 %v248, %v252
    %s254 = sadd.s32 %s27, 45
    %s255 = sld [smem:[#allocation2 + %s254]]
    %v256 = vstv %s255
    %v257 = vmul.f32 %v256, %v220
    %v258 = vadd.f32 %v253, %v257
    %s259 = sadd.s32 %s27, 50
    %s260 = sld [smem:[#allocation2 + %s259]]
    %v261 = vstv %s260
    %v262 = vadd.f32 %v258, %v261
    %s263 = sadd.s32 %s27, 53
    %s264 = sld [smem:[#allocation2 + %s263]]
    %v265 = vtanh.pop %v262
    %v266 = vstv %s264
    %v267 = vmul.f32 %v266, %v265
    %v268 = vadd.f32 %v262, %v267
    %s269 = sadd.s32 %s27, 46
    %s270 = sld [smem:[#allocation2 + %s269]]
    %v271 = vstv %s270
    %v272 = vmul.f32 %v271, %v172
    %s273 = sadd.s32 %s27, 47
    %s274 = sld [smem:[#allocation2 + %s273]]
    %v275 = vstv %s274
    %v276 = vmul.f32 %v275, %v196
    %v277 = vadd.f32 %v272, %v276
    %s278 = sadd.s32 %s27, 48
    %s279 = sld [smem:[#allocation2 + %s278]]
    %v280 = vstv %s279
    %v281 = vmul.f32 %v280, %v220
    %v282 = vadd.f32 %v277, %v281
    %s283 = sadd.s32 %s27, 51
    %s284 = sld [smem:[#allocation2 + %s283]]
    %v285 = vstv %s284
    %v286 = vadd.f32 %v282, %v285
    %s287 = sadd.s32 %s27, 54
    %s288 = sld [smem:[#allocation2 + %s287]]
    %v289 = vtanh.pop %v286
    %v290 = vstv %s288
    %v291 = vmul.f32 %v290, %v289
    %v292 = vadd.f32 %v286, %v291
    %s293 = sadd.s32 %s27, 55
    %s294 = sld [smem:[#allocation2 + %s293]]
    %v295 = vstv %s294
    %v296 = vmul.f32 %v295, %v244
    %s297 = sadd.s32 %s27, 56
    %s298 = sld [smem:[#allocation2 + %s297]]
    %v299 = vstv %s298
    %v300 = vmul.f32 %v299, %v268
    %v301 = vadd.f32 %v296, %v300
    %s302 = sadd.s32 %s27, 57
    %s303 = sld [smem:[#allocation2 + %s302]]
    %v304 = vstv %s303
    %v305 = vmul.f32 %v304, %v292
    %v306 = vadd.f32 %v301, %v305
    %s307 = sadd.s32 %s27, 58
    %s308 = sld [smem:[#allocation2 + %s307]]
    %v309 = vstv %s308
    %v310 = vadd.f32 %v306, %v309
    %v311 = vadd.f32 %v32, 0.5
    %v312 = vmul.f32 %v37, %v311
    %v313 = vadd.f32 %v312, %v41
    %v314 = vmul.f32 %v45, %v311
    %v315 = vadd.f32 %v314, %v49
    %v316 = vmul.f32 %v53, %v311
    %v317 = vadd.f32 %v316, %v57
    %v318 = vtanh.pop %v313
    %v319 = vmul.f32 %v62, %v318
    %v320 = vadd.f32 %v313, %v319
    %v321 = vtanh.pop %v315
    %v322 = vmul.f32 %v68, %v321
    %v323 = vadd.f32 %v315, %v322
    %v324 = vtanh.pop %v317
    %v325 = vmul.f32 %v74, %v324
    %v326 = vadd.f32 %v317, %v325
    %v327 = vmul.f32 %v79, %v320
    %v328 = vmul.f32 %v83, %v323
    %v329 = vadd.f32 %v327, %v328
    %v330 = vmul.f32 %v88, %v326
    %v331 = vadd.f32 %v329, %v330
    %v332 = vadd.f32 %v331, %v93
    %v333 = vtanh.pop %v332
    %v334 = vmul.f32 %v98, %v333
    %v335 = vadd.f32 %v332, %v334
    %v336 = vmul.f32 %v103, %v320
    %v337 = vmul.f32 %v107, %v323
    %v338 = vadd.f32 %v336, %v337
    %v339 = vmul.f32 %v112, %v326
    %v340 = vadd.f32 %v338, %v339
    %v341 = vadd.f32 %v340, %v117
    %v342 = vtanh.pop %v341
    %v343 = vmul.f32 %v122, %v342
    %v344 = vadd.f32 %v341, %v343
    %v345 = vmul.f32 %v127, %v320
    %v346 = vmul.f32 %v131, %v323
    %v347 = vadd.f32 %v345, %v346
    %v348 = vmul.f32 %v136, %v326
    %v349 = vadd.f32 %v347, %v348
    %v350 = vadd.f32 %v349, %v141
    %v351 = vtanh.pop %v350
    %v352 = vmul.f32 %v146, %v351
    %v353 = vadd.f32 %v350, %v352
    %v354 = vmul.f32 %v151, %v335
    %v355 = vmul.f32 %v155, %v344
    %v356 = vadd.f32 %v354, %v355
    %v357 = vmul.f32 %v160, %v353
    %v358 = vadd.f32 %v356, %v357
    %v359 = vadd.f32 %v358, %v165
    %v360 = vtanh.pop %v359
    %v361 = vmul.f32 %v170, %v360
    %v362 = vadd.f32 %v359, %v361
    %v363 = vmul.f32 %v175, %v335
    %v364 = vmul.f32 %v179, %v344
    %v365 = vadd.f32 %v363, %v364
    %v366 = vmul.f32 %v184, %v353
    %v367 = vadd.f32 %v365, %v366
    %v368 = vadd.f32 %v367, %v189
    %v369 = vtanh.pop %v368
    %v370 = vmul.f32 %v194, %v369
    %v371 = vadd.f32 %v368, %v370
    %v372 = vmul.f32 %v199, %v335
    %v373 = vmul.f32 %v203, %v344
    %v374 = vadd.f32 %v372, %v373
    %v375 = vmul.f32 %v208, %v353
    %v376 = vadd.f32 %v374, %v375
    %v377 = vadd.f32 %v376, %v213
    %v378 = vtanh.pop %v377
    %v379 = vmul.f32 %v218, %v378
    %v380 = vadd.f32 %v377, %v379
    %v381 = vmul.f32 %v223, %v362
    %v382 = vmul.f32 %v227, %v371
    %v383 = vadd.f32 %v381, %v382
    %v384 = vmul.f32 %v232, %v380
    %v385 = vadd.f32 %v383, %v384
    %v386 = vadd.f32 %v385, %v237
    %v387 = vtanh.pop %v386
    %v388 = vmul.f32 %v242, %v387
    %v389 = vadd.f32 %v386, %v388
    %v390 = vmul.f32 %v247, %v362
    %v391 = vmul.f32 %v251, %v371
    %v392 = vadd.f32 %v390, %v391
    %v393 = vmul.f32 %v256, %v380
    %v394 = vadd.f32 %v392, %v393
    %v395 = vadd.f32 %v394, %v261
    %v396 = vtanh.pop %v395
    %v397 = vmul.f32 %v266, %v396
    %v398 = vadd.f32 %v395, %v397
    %v399 = vmul.f32 %v271, %v362
    %v400 = vmul.f32 %v275, %v371
    %v401 = vadd.f32 %v399, %v400
    %v402 = vmul.f32 %v280, %v380
    %v403 = vadd.f32 %v401, %v402
    %v404 = vadd.f32 %v403, %v285
    %v405 = vtanh.pop %v404
    %v406 = vmul.f32 %v290, %v405
    %v407 = vadd.f32 %v404, %v406
    %v408 = vmul.f32 %v295, %v389
    %v409 = vmul.f32 %v299, %v398
    %v410 = vadd.f32 %v408, %v409
    %v411 = vmul.f32 %v304, %v407
    %v412 = vadd.f32 %v410, %v411
    %v413 = vadd.f32 %v412, %v309
    %v414 = vadd.f32 %v310, %v413
    %vm415 = vcmp.gt.f32.partialorder %v414, 0.0
    %vm416 = vcmp.lt.f32.partialorder %v414, 0.0
    %v417 = vsel %vm416, 1.0, 0.0
    %v418 = vsel %vm415, -1.0, %v417
    %v419 = vmul.f32 %v418, %v413
    %v420 = vsub.f32 0.0, %v419
    %v421 = vmul.f32 %v420, 1.442695
    %v422 = vpow.pop %v421
    %v423 = vadd.f32 %v422, 1.0
    %v424 = vrcp.pop %v423
    %v425 = vmul.f32 1.0, %v424
    %v426 = vmul.f32 %v418, %v310
    %v427 = vsub.f32 0.0, %v426
    %v428 = vmul.f32 %v427, 1.442695
    %v429 = vpow.pop %v428
    %v430 = vadd.f32 %v429, 1.0
    %v431 = vrcp.pop %v430
    %v432 = vmul.f32 1.0, %v431
    %v433 = vsub.f32 %v425, %v432
    %v434 = vand.u32 2147483647, %v433
    %v435 = vmax.f32 %v434, 1e-09
    %v436 = vlog2.pop %v435
    %v437 = vmul.f32 %v436, 0.6931472
    %v438 = vrcp.pop 0.6931472
    %v439 = vmul.f32 %v437, %v438
    %v440 = vsub.f32 0.0, %v439
    %441 = vst [vmem:[%s3] sm:$0xff] %v440
    // Predicated region
    $region14: #{_lambda_.6} parent=1 // pred_check
      _
    $region15: #{_lambda_.6} parent=1 // pred_check_branch
      %443 = sbr.rel (0) target = $region17
    $region16: #{_lambda_.6} parent=1 // pred_region
      _
    $region17: #{_lambda_.6} parent=1 // pred_fallthru
      _
    // Predicated region
    $region18: #{_lambda_.6} parent=1 // pred_check
      _
    $region19: #{_lambda_.6} parent=1 // pred_check_branch
      %445 = sbr.rel (0) target = $region21
    $region20: #{_lambda_.6} parent=1 // pred_region
      _
    $region21: #{_lambda_.6} parent=1 // pred_fallthru
      _
    // Predicated region
    $region22: #{_lambda_.6} parent=1 // pred_check
      _
    $region23: #{_lambda_.6} parent=1 // pred_check_branch
      %447 = sbr.rel (0) target = $region25
    $region24: #{_lambda_.6} parent=1 // pred_region
      _
    $region25: #{_lambda_.6} parent=1 // pred_fallthru
      _
    // Predicated region
    $region26: #{_lambda_.6} parent=1 // pred_check
      _
    $region27: #{_lambda_.6} parent=1 // pred_check_branch
      %449 = sbr.rel (0) target = $region29
    $region28: #{_lambda_.6} parent=1 // pred_region
      _
    $region29: #{_lambda_.6} parent=1 // pred_fallthru
      _
    %450 = vsyncpa [#allocation3], 1

</llo_original>
